<compile_context>
chip_gen: v7x
topology: tpu7x:2x2x1
jax: 0.10.0
libtpu: 0.0.40
codegen_flags: <defaults>
</compile_context>

<pallas_src>
import functools

import jax
import jax.numpy as jnp
import numpy as np
from jax.experimental import pallas as pl
from jax.experimental.pallas import tpu as pltpu

BN_EPS = 1e-5


def _vmem_spec():
    return pl.BlockSpec(memory_space=pltpu.MemorySpace.VMEM)


# ----------------------------------------------------------------------------
# The fused kernel
# ----------------------------------------------------------------------------
def _lenet5_kernel(
    x_ref,
    b1m_ref, bias1_ref, g1_ref, be1_ref, gs1_ref, ge1_ref,
    ce1_ref, co1_ref, re1_ref, ro1_ref,
    b2m_ref, bias2_ref, g2_ref, be2_ref, gs2_ref, ge2_ref,
    ce2_ref, co2_ref, re2_ref, ro2_ref,
    wf1_ref, bf1_ref, wf2_ref, bf2_ref, wf3_ref, bf3_ref,
    out_ref,
):
    f32 = jnp.float32
    n_batch = x_ref.shape[0]
    k = b1m_ref.shape[0]              # 5
    oh1 = x_ref.shape[1] - k + 1      # 28
    oh2 = oh1 // 2 - k + 1            # 10
    oh3 = oh2 // 2                    # 5

    def dot(a, b):
        return jnp.dot(a, b, preferred_element_type=f32)

    # Small shared constant matrices (loaded once).
    gs1, ge1 = gs1_ref[...], ge1_ref[...]
    ce1, co1 = ce1_ref[...], co1_ref[...]
    re1, ro1 = re1_ref[...], ro1_ref[...]
    gs2, ge2 = gs2_ref[...], ge2_ref[...]
    ce2, co2 = ce2_ref[...], co2_ref[...]
    re2, ro2 = re2_ref[...], ro2_ref[...]

    # ---- layer1: conv1 as 5 Toeplitz-band matmuls (im2col stays in VMEM) ----
    y1 = []
    for n in range(n_batch):
        xn = x_ref[n]                                        # (32, 32)
        acc = dot(xn[0:oh1, :], b1m_ref[0])
        for kh in range(1, k):
            acc = acc + dot(xn[kh:kh + oh1, :], b1m_ref[kh])
        y1.append(acc + bias1_ref[...])                      # (28, 6*28)

    # ---- BatchNorm1: one-pass batch stats over (N, OH, OW) per channel ----
    s = jnp.zeros(bias1_ref.shape, f32)
    ss = jnp.zeros(bias1_ref.shape, f32)
    for n in range(n_batch):
        s = s + jnp.sum(y1[n], axis=0, keepdims=True)
        ss = ss + jnp.sum(y1[n] * y1[n], axis=0, keepdims=True)
    cnt = float(n_batch * oh1 * oh1)
    mu = dot(s, gs1) / cnt                                   # (1, 8)
    var = jnp.maximum(dot(ss, gs1) / cnt - mu * mu, 0.0)     # biased var, clamped
    scale = g1_ref[...] * jax.lax.rsqrt(var + BN_EPS)
    shift = be1_ref[...] - mu * scale
    scale_l, shift_l = dot(scale, ge1), dot(shift, ge1)      # broadcast back to lanes

    # ---- ReLU + 2x2 max-pool (exact 0/1 gather matmuls) ----
    p1 = []
    for n in range(n_batch):
        z = jnp.maximum(y1[n] * scale_l + shift_l, 0.0)      # (28, 168)
        zc = jnp.maximum(dot(z, ce1), dot(z, co1))           # (28, 6*14)
        p1.append(jnp.maximum(dot(re1, zc), dot(ro1, zc)))   # (14, 6*14)

    # ---- layer2: conv2 (channel mixing + kw taps folded into the bands) ----
    y2 = []
    for n in range(n_batch):
        acc = dot(p1[n][0:oh2, :], b2m_ref[0])
        for kh in range(1, k):
            acc = acc + dot(p1[n][kh:kh + oh2, :], b2m_ref[kh])
        y2.append(acc + bias2_ref[...])                      # (10, 16*10)

    # ---- BatchNorm2 ----
    s2 = jnp.zeros(bias2_ref.shape, f32)
    ss2 = jnp.zeros(bias2_ref.shape, f32)
    for n in range(n_batch):
        s2 = s2 + jnp.sum(y2[n], axis=0, keepdims=True)
        ss2 = ss2 + jnp.sum(y2[n] * y2[n], axis=0, keepdims=True)
    cnt2 = float(n_batch * oh2 * oh2)
    mu2 = dot(s2, gs2) / cnt2                                # (1, 16)
    var2 = jnp.maximum(dot(ss2, gs2) / cnt2 - mu2 * mu2, 0.0)
    scale2 = g2_ref[...] * jax.lax.rsqrt(var2 + BN_EPS)
    shift2 = be2_ref[...] - mu2 * scale2
    scale2_l, shift2_l = dot(scale2, ge2), dot(shift2, ge2)  # (1, 160)

    # ---- ReLU + pool2 + (NCHW flatten folded into fc weights) + MLP ----
    for n in range(n_batch):
        z = jnp.maximum(y2[n] * scale2_l + shift2_l, 0.0)    # (10, 160)
        zc = jnp.maximum(dot(z, ce2), dot(z, co2))           # (10, 16*5)
        p = jnp.maximum(dot(re2, zc), dot(ro2, zc))          # (5, 16*5)
        h = bf1_ref[...]                                     # (1, 128)
        for r in range(oh3):
            h = h + dot(p[r:r + 1, :], wf1_ref[r])           # fc(400->120)
        h = jnp.maximum(h, 0.0)
        h = jnp.maximum(dot(h, wf2_ref[...]) + bf2_ref[...], 0.0)   # fc1(120->84)
        h = dot(h, wf3_ref[...]) + bf3_ref[...]              # fc2(84->num_classes)
        out_ref[n:n + 1, :] = h                              # lane-dense (1, 128) store


# ----------------------------------------------------------------------------
# Parameter initialisation / one-time preparation (outside the jit hot path)
# ----------------------------------------------------------------------------
def init_params(key, num_classes=10):
    ks = jax.random.split(key, 5)
    f32 = jnp.float32

    def nrm(k, shape, scale=0.1):
        return scale * jax.random.normal(k, shape, f32)

    return {
        # layer1: Conv2d(1, 6, 5) + BatchNorm2d(6)
        "conv1_w": nrm(ks[0], (6, 1, 5, 5)),
        "conv1_b": jnp.zeros((6,), f32),
        "bn1_gamma": jnp.ones((6,), f32),
        "bn1_beta": jnp.zeros((6,), f32),
        # layer2: Conv2d(6, 16, 5) + BatchNorm2d(16)
        "conv2_w": nrm(ks[1], (16, 6, 5, 5)),
        "conv2_b": jnp.zeros((16,), f32),
        "bn2_gamma": jnp.ones((16,), f32),
        "bn2_beta": jnp.zeros((16,), f32),
        # fc layers, stored already transposed as (in, out): y = x @ W + b
        "fc_w": nrm(ks[2], (400, 120)),
        "fc_b": jnp.zeros((120,), f32),
        "fc1_w": nrm(ks[3], (120, 84)),
        "fc1_b": jnp.zeros((84,), f32),
        "fc2_w": nrm(ks[4], (84, num_classes)),
        "fc2_b": jnp.zeros((num_classes,), f32),
    }


def prepare_params(params, num_classes=10):
    """Fold im2col, pooling, BN grouping and the NCHW flatten into small
    structured constant matrices.  Runs once, outside the jit hot path."""
    f32 = np.float32

    def band(w, in_w):
        # w: (Cout, Cin, K, K) -> (K, Cin*in_w, Cout*out_w) Toeplitz bands.
        co, ci, kh, kw = w.shape
        out_w = in_w - kw + 1
        b = np.zeros((kh, ci * in_w, co * out_w), f32)
        for h in range(kh):
            for o in range(co):
                for i in range(ci):
                    for ow in range(out_w):
                        b[h, i * in_w + ow:i * in_w + ow + kw, o * out_w + ow] = w[o, i, h, :]
        return b

    def pool_cols(c, w):
        wo = w // 2
        ce = np.zeros((c * w, c * wo), f32)
        co_ = np.zeros((c * w, c * wo), f32)
        for ch in range(c):
            for j in range(wo):
                ce[ch * w + 2 * j, ch * wo + j] = 1.0
                co_[ch * w + 2 * j + 1, ch * wo + j] = 1.0
        return ce, co_

    def pool_rows(h):
        ho = h // 2
        re = np.zeros((ho, h), f32)
        ro = np.zeros((ho, h), f32)
        for i in range(ho):
            re[i, 2 * i] = 1.0
            ro[i, 2 * i + 1] = 1.0
        return re, ro

    def group(c, w, c_pad):
        gs = np.zeros((c * w, c_pad), f32)
        for ch in range(c):
            gs[ch * w:(ch + 1) * w, ch] = 1.0
        return gs, np.ascontiguousarray(gs.T)

    def padded(v, n):
        out = np.zeros((n,), f32)
        v = np.asarray(v, f32)
        out[: v.shape[0]] = v
        return out

    w1 = np.asarray(params["conv1_w"], f32)       # (6, 1, 5, 5)
    w2 = np.asarray(params["conv2_w"], f32)       # (16, 6, 5, 5)

    b1m = band(w1, 32)                            # (5, 32, 168)
    b2m = band(w2, 14)                            # (5, 84, 160)
    bias1 = np.repeat(np.asarray(params["conv1_b"], f32), 28)[None, :]   # (1, 168)
    bias2 = np.repeat(np.asarray(params["conv2_b"], f32), 10)[None, :]   # (1, 160)
    g1, be1 = padded(params["bn1_gamma"], 8)[None, :], padded(params["bn1_beta"], 8)[None, :]
    g2, be2 = padded(params["bn2_gamma"], 16)[None, :], padded(params["bn2_beta"], 16)[None, :]
    gs1, ge1 = group(6, 28, 8)                    # (168, 8), (8, 168)
    gs2, ge2 = group(16, 10, 16)                  # (160, 16), (16, 160)
    ce1, co1 = pool_cols(6, 28)                   # (168, 84)
    re1, ro1 = pool_rows(28)                      # (14, 28)
    ce2, co2 = pool_cols(16, 10)                  # (160, 80)
    re2, ro2 = pool_rows(10)                      # (5, 10)

    # fc weights: PyTorch flatten order is (C=16, H=5, W=5) -> c*25 + h*5 + w.
    fcw = np.asarray(params["fc_w"], f32)         # (400, 120)
    wf1 = np.zeros((5, 80, 128), f32)
    for h in range(5):
        for c in range(16):
            for w in range(5):
                wf1[h, c * 5 + w, :120] = fcw[c * 25 + h * 5 + w, :]
    bf1 = np.zeros((1, 128), f32)
    bf1[0, :120] = np.asarray(params["fc_b"], f32)
    wf2 = np.zeros((128, 128), f32)
    wf2[:120, :84] = np.asarray(params["fc1_w"], f32)
    bf2 = np.zeros((1, 128), f32)
    bf2[0, :84] = np.asarray(params["fc1_b"], f32)
    wf3 = np.zeros((128, 128), f32)
    wf3[:84, :num_classes] = np.asarray(params["fc2_w"], f32)
    bf3 = np.zeros((1, 128), f32)
    bf3[0, :num_classes] = np.asarray(params["fc2_b"], f32)

    prepped = (b1m, bias1, g1, be1, gs1, ge1, ce1, co1, re1, ro1,
               b2m, bias2, g2, be2, gs2, ge2, ce2, co2, re2, ro2,
               wf1, bf1, wf2, bf2, wf3, bf3)
    return tuple(jnp.asarray(a) for a in prepped)


# ----------------------------------------------------------------------------
# Forward
# ----------------------------------------------------------------------------
@functools.partial(jax.jit, static_argnames=("num_classes",))
def lenet5_forward(x_nchw, prepped, num_classes=10):
    n, _, h, w = x_nchw.shape
    x = x_nchw.astype(jnp.float32).reshape(n, h, w)      # squeeze Cin=1
    out = pl.pallas_call(
        _lenet5_kernel,
        out_shape=jax.ShapeDtypeStruct((n, 128), jnp.float32),
        in_specs=[_vmem_spec()] * (1 + len(prepped)),
        out_specs=_vmem_spec(),
    )(x, *prepped)
    return out[:, :num_classes]


if __name__ == "__main__":
    key = jax.random.PRNGKey(0)
    k_param, k_x = jax.random.split(key)
    params = init_params(k_param, num_classes=10)
    prepped = prepare_params(params, num_classes=10)

    # LeNet5's fc(400, 120) implies a 32x32 single-channel input.
    x = jax.random.normal(k_x, (2, 1, 32, 32), jnp.float32)

    out = lenet5_forward(x, prepped, num_classes=10)
    jax.block_until_ready(out)
    assert out.shape == (2, 10) and out.dtype == jnp.float32
    print("KERNEL_OK")
</pallas_src>

<mosaic_0001>
module attributes {stable_mosaic.version = 11 : i64} {
  func.func @_lenet5_kernel(%arg0: memref<2x32x32xf32, #tpu.memory_space<vmem>>, %arg1: memref<5x32x168xf32, #tpu.memory_space<vmem>>, %arg2: memref<1x168xf32, #tpu.memory_space<vmem>>, %arg3: memref<1x8xf32, #tpu.memory_space<vmem>>, %arg4: memref<1x8xf32, #tpu.memory_space<vmem>>, %arg5: memref<168x8xf32, #tpu.memory_space<vmem>>, %arg6: memref<8x168xf32, #tpu.memory_space<vmem>>, %arg7: memref<168x84xf32, #tpu.memory_space<vmem>>, %arg8: memref<168x84xf32, #tpu.memory_space<vmem>>, %arg9: memref<14x28xf32, #tpu.memory_space<vmem>>, %arg10: memref<14x28xf32, #tpu.memory_space<vmem>>, %arg11: memref<5x84x160xf32, #tpu.memory_space<vmem>>, %arg12: memref<1x160xf32, #tpu.memory_space<vmem>>, %arg13: memref<1x16xf32, #tpu.memory_space<vmem>>, %arg14: memref<1x16xf32, #tpu.memory_space<vmem>>, %arg15: memref<160x16xf32, #tpu.memory_space<vmem>>, %arg16: memref<16x160xf32, #tpu.memory_space<vmem>>, %arg17: memref<160x80xf32, #tpu.memory_space<vmem>>, %arg18: memref<160x80xf32, #tpu.memory_space<vmem>>, %arg19: memref<5x10xf32, #tpu.memory_space<vmem>>, %arg20: memref<5x10xf32, #tpu.memory_space<vmem>>, %arg21: memref<5x80x128xf32, #tpu.memory_space<vmem>>, %arg22: memref<1x128xf32, #tpu.memory_space<vmem>>, %arg23: memref<128x128xf32, #tpu.memory_space<vmem>>, %arg24: memref<1x128xf32, #tpu.memory_space<vmem>>, %arg25: memref<128x128xf32, #tpu.memory_space<vmem>>, %arg26: memref<1x128xf32, #tpu.memory_space<vmem>>, %arg27: memref<2x128xf32, #tpu.memory_space<vmem>>) attributes {dimension_semantics = [], scalar_prefetch = 0 : i64, scratch_operands = 0 : i64, tpu.core_type = #tpu.core_type<tc>} {
    %c0 = arith.constant 0 : index
    %c0_0 = arith.constant 0 : index
    %0 = vector.load %arg5[%c0, %c0_0] : memref<168x8xf32, #tpu.memory_space<vmem>>, vector<168x8xf32>
    %c0_1 = arith.constant 0 : index
    %c0_2 = arith.constant 0 : index
    %1 = vector.load %arg6[%c0_1, %c0_2] : memref<8x168xf32, #tpu.memory_space<vmem>>, vector<8x168xf32>
    %c0_3 = arith.constant 0 : index
    %c0_4 = arith.constant 0 : index
    %2 = vector.load %arg7[%c0_3, %c0_4] : memref<168x84xf32, #tpu.memory_space<vmem>>, vector<168x84xf32>
    %c0_5 = arith.constant 0 : index
    %c0_6 = arith.constant 0 : index
    %3 = vector.load %arg8[%c0_5, %c0_6] : memref<168x84xf32, #tpu.memory_space<vmem>>, vector<168x84xf32>
    %c0_7 = arith.constant 0 : index
    %c0_8 = arith.constant 0 : index
    %4 = vector.load %arg9[%c0_7, %c0_8] : memref<14x28xf32, #tpu.memory_space<vmem>>, vector<14x28xf32>
    %c0_9 = arith.constant 0 : index
    %c0_10 = arith.constant 0 : index
    %5 = vector.load %arg10[%c0_9, %c0_10] : memref<14x28xf32, #tpu.memory_space<vmem>>, vector<14x28xf32>
    %c0_11 = arith.constant 0 : index
    %c0_12 = arith.constant 0 : index
    %6 = vector.load %arg15[%c0_11, %c0_12] : memref<160x16xf32, #tpu.memory_space<vmem>>, vector<160x16xf32>
    %c0_13 = arith.constant 0 : index
    %c0_14 = arith.constant 0 : index
    %7 = vector.load %arg16[%c0_13, %c0_14] : memref<16x160xf32, #tpu.memory_space<vmem>>, vector<16x160xf32>
    %c0_15 = arith.constant 0 : index
    %c0_16 = arith.constant 0 : index
    %8 = vector.load %arg17[%c0_15, %c0_16] : memref<160x80xf32, #tpu.memory_space<vmem>>, vector<160x80xf32>
    %c0_17 = arith.constant 0 : index
    %c0_18 = arith.constant 0 : index
    %9 = vector.load %arg18[%c0_17, %c0_18] : memref<160x80xf32, #tpu.memory_space<vmem>>, vector<160x80xf32>
    %c0_19 = arith.constant 0 : index
    %c0_20 = arith.constant 0 : index
    %10 = vector.load %arg19[%c0_19, %c0_20] : memref<5x10xf32, #tpu.memory_space<vmem>>, vector<5x10xf32>
    %c0_21 = arith.constant 0 : index
    %c0_22 = arith.constant 0 : index
    %11 = vector.load %arg20[%c0_21, %c0_22] : memref<5x10xf32, #tpu.memory_space<vmem>>, vector<5x10xf32>
    %c0_23 = arith.constant 0 : index
    %c0_24 = arith.constant 0 : index
    %c0_25 = arith.constant 0 : index
    %12 = vector.load %arg0[%c0_23, %c0_24, %c0_25] : memref<2x32x32xf32, #tpu.memory_space<vmem>>, vector<1x32x32xf32>
    %13 = vector.shape_cast %12 : vector<1x32x32xf32> to vector<32x32xf32>
    %14 = vector.extract_strided_slice %13 {offsets = [0, 0], sizes = [28, 32], strides = [1, 1]} : vector<32x32xf32> to vector<28x32xf32>
    %c0_26 = arith.constant 0 : index
    %c0_27 = arith.constant 0 : index
    %c0_28 = arith.constant 0 : index
    %15 = vector.load %arg1[%c0_26, %c0_27, %c0_28] : memref<5x32x168xf32, #tpu.memory_space<vmem>>, vector<1x32x168xf32>
    %16 = vector.shape_cast %15 : vector<1x32x168xf32> to vector<32x168xf32>
    %cst = arith.constant dense<0.000000e+00> : vector<28x168xf32>
    %17 = tpu.matmul %14, %16, %cst {dimension_numbers = #tpu.dot_dimension_numbers<[1], [0], [0], [1], [0, 0, 1, 1], [], []>} : vector<28x32xf32>, vector<32x168xf32>, vector<28x168xf32> -> vector<28x168xf32>
    %18 = vector.extract_strided_slice %13 {offsets = [1, 0], sizes = [28, 32], strides = [1, 1]} : vector<32x32xf32> to vector<28x32xf32>
    %c1 = arith.constant 1 : index
    %c0_29 = arith.constant 0 : index
    %c0_30 = arith.constant 0 : index
    %19 = vector.load %arg1[%c1, %c0_29, %c0_30] : memref<5x32x168xf32, #tpu.memory_space<vmem>>, vector<1x32x168xf32>
    %20 = vector.shape_cast %19 : vector<1x32x168xf32> to vector<32x168xf32>
    %cst_31 = arith.constant dense<0.000000e+00> : vector<28x168xf32>
    %21 = tpu.matmul %18, %20, %cst_31 {dimension_numbers = #tpu.dot_dimension_numbers<[1], [0], [0], [1], [0, 0, 1, 1], [], []>} : vector<28x32xf32>, vector<32x168xf32>, vector<28x168xf32> -> vector<28x168xf32>
    %22 = arith.addf %17, %21 : vector<28x168xf32>
    %23 = vector.extract_strided_slice %13 {offsets = [2, 0], sizes = [28, 32], strides = [1, 1]} : vector<32x32xf32> to vector<28x32xf32>
    %c2 = arith.constant 2 : index
    %c0_32 = arith.constant 0 : index
    %c0_33 = arith.constant 0 : index
    %24 = vector.load %arg1[%c2, %c0_32, %c0_33] : memref<5x32x168xf32, #tpu.memory_space<vmem>>, vector<1x32x168xf32>
    %25 = vector.shape_cast %24 : vector<1x32x168xf32> to vector<32x168xf32>
    %cst_34 = arith.constant dense<0.000000e+00> : vector<28x168xf32>
    %26 = tpu.matmul %23, %25, %cst_34 {dimension_numbers = #tpu.dot_dimension_numbers<[1], [0], [0], [1], [0, 0, 1, 1], [], []>} : vector<28x32xf32>, vector<32x168xf32>, vector<28x168xf32> -> vector<28x168xf32>
    %27 = arith.addf %22, %26 : vector<28x168xf32>
    %28 = vector.extract_strided_slice %13 {offsets = [3, 0], sizes = [28, 32], strides = [1, 1]} : vector<32x32xf32> to vector<28x32xf32>
    %c3 = arith.constant 3 : index
    %c0_35 = arith.constant 0 : index
    %c0_36 = arith.constant 0 : index
    %29 = vector.load %arg1[%c3, %c0_35, %c0_36] : memref<5x32x168xf32, #tpu.memory_space<vmem>>, vector<1x32x168xf32>
    %30 = vector.shape_cast %29 : vector<1x32x168xf32> to vector<32x168xf32>
    %cst_37 = arith.constant dense<0.000000e+00> : vector<28x168xf32>
    %31 = tpu.matmul %28, %30, %cst_37 {dimension_numbers = #tpu.dot_dimension_numbers<[1], [0], [0], [1], [0, 0, 1, 1], [], []>} : vector<28x32xf32>, vector<32x168xf32>, vector<28x168xf32> -> vector<28x168xf32>
    %32 = arith.addf %27, %31 : vector<28x168xf32>
    %33 = vector.extract_strided_slice %13 {offsets = [4, 0], sizes = [28, 32], strides = [1, 1]} : vector<32x32xf32> to vector<28x32xf32>
    %c4 = arith.constant 4 : index
    %c0_38 = arith.constant 0 : index
    %c0_39 = arith.constant 0 : index
    %34 = vector.load %arg1[%c4, %c0_38, %c0_39] : memref<5x32x168xf32, #tpu.memory_space<vmem>>, vector<1x32x168xf32>
    %35 = vector.shape_cast %34 : vector<1x32x168xf32> to vector<32x168xf32>
    %cst_40 = arith.constant dense<0.000000e+00> : vector<28x168xf32>
    %36 = tpu.matmul %33, %35, %cst_40 {dimension_numbers = #tpu.dot_dimension_numbers<[1], [0], [0], [1], [0, 0, 1, 1], [], []>} : vector<28x32xf32>, vector<32x168xf32>, vector<28x168xf32> -> vector<28x168xf32>
    %37 = arith.addf %32, %36 : vector<28x168xf32>
    %c0_41 = arith.constant 0 : index
    %c0_42 = arith.constant 0 : index
    %38 = vector.load %arg2[%c0_41, %c0_42] : memref<1x168xf32, #tpu.memory_space<vmem>>, vector<1x168xf32>
    %39 = vector.broadcast %38 : vector<1x168xf32> to vector<28x168xf32>
    %40 = arith.addf %37, %39 : vector<28x168xf32>
    %c1_43 = arith.constant 1 : index
    %c0_44 = arith.constant 0 : index
    %c0_45 = arith.constant 0 : index
    %41 = vector.load %arg0[%c1_43, %c0_44, %c0_45] : memref<2x32x32xf32, #tpu.memory_space<vmem>>, vector<1x32x32xf32>
    %42 = vector.shape_cast %41 : vector<1x32x32xf32> to vector<32x32xf32>
    %43 = vector.extract_strided_slice %42 {offsets = [0, 0], sizes = [28, 32], strides = [1, 1]} : vector<32x32xf32> to vector<28x32xf32>
    %c0_46 = arith.constant 0 : index
    %c0_47 = arith.constant 0 : index
    %c0_48 = arith.constant 0 : index
    %44 = vector.load %arg1[%c0_46, %c0_47, %c0_48] : memref<5x32x168xf32, #tpu.memory_space<vmem>>, vector<1x32x168xf32>
    %45 = vector.shape_cast %44 : vector<1x32x168xf32> to vector<32x168xf32>
    %cst_49 = arith.constant dense<0.000000e+00> : vector<28x168xf32>
    %46 = tpu.matmul %43, %45, %cst_49 {dimension_numbers = #tpu.dot_dimension_numbers<[1], [0], [0], [1], [0, 0, 1, 1], [], []>} : vector<28x32xf32>, vector<32x168xf32>, vector<28x168xf32> -> vector<28x168xf32>
    %47 = vector.extract_strided_slice %42 {offsets = [1, 0], sizes = [28, 32], strides = [1, 1]} : vector<32x32xf32> to vector<28x32xf32>
    %c1_50 = arith.constant 1 : index
    %c0_51 = arith.constant 0 : index
    %c0_52 = arith.constant 0 : index
    %48 = vector.load %arg1[%c1_50, %c0_51, %c0_52] : memref<5x32x168xf32, #tpu.memory_space<vmem>>, vector<1x32x168xf32>
    %49 = vector.shape_cast %48 : vector<1x32x168xf32> to vector<32x168xf32>
    %cst_53 = arith.constant dense<0.000000e+00> : vector<28x168xf32>
    %50 = tpu.matmul %47, %49, %cst_53 {dimension_numbers = #tpu.dot_dimension_numbers<[1], [0], [0], [1], [0, 0, 1, 1], [], []>} : vector<28x32xf32>, vector<32x168xf32>, vector<28x168xf32> -> vector<28x168xf32>
    %51 = arith.addf %46, %50 : vector<28x168xf32>
    %52 = vector.extract_strided_slice %42 {offsets = [2, 0], sizes = [28, 32], strides = [1, 1]} : vector<32x32xf32> to vector<28x32xf32>
    %c2_54 = arith.constant 2 : index
    %c0_55 = arith.constant 0 : index
    %c0_56 = arith.constant 0 : index
    %53 = vector.load %arg1[%c2_54, %c0_55, %c0_56] : memref<5x32x168xf32, #tpu.memory_space<vmem>>, vector<1x32x168xf32>
    %54 = vector.shape_cast %53 : vector<1x32x168xf32> to vector<32x168xf32>
    %cst_57 = arith.constant dense<0.000000e+00> : vector<28x168xf32>
    %55 = tpu.matmul %52, %54, %cst_57 {dimension_numbers = #tpu.dot_dimension_numbers<[1], [0], [0], [1], [0, 0, 1, 1], [], []>} : vector<28x32xf32>, vector<32x168xf32>, vector<28x168xf32> -> vector<28x168xf32>
    %56 = arith.addf %51, %55 : vector<28x168xf32>
    %57 = vector.extract_strided_slice %42 {offsets = [3, 0], sizes = [28, 32], strides = [1, 1]} : vector<32x32xf32> to vector<28x32xf32>
    %c3_58 = arith.constant 3 : index
    %c0_59 = arith.constant 0 : index
    %c0_60 = arith.constant 0 : index
    %58 = vector.load %arg1[%c3_58, %c0_59, %c0_60] : memref<5x32x168xf32, #tpu.memory_space<vmem>>, vector<1x32x168xf32>
    %59 = vector.shape_cast %58 : vector<1x32x168xf32> to vector<32x168xf32>
    %cst_61 = arith.constant dense<0.000000e+00> : vector<28x168xf32>
    %60 = tpu.matmul %57, %59, %cst_61 {dimension_numbers = #tpu.dot_dimension_numbers<[1], [0], [0], [1], [0, 0, 1, 1], [], []>} : vector<28x32xf32>, vector<32x168xf32>, vector<28x168xf32> -> vector<28x168xf32>
    %61 = arith.addf %56, %60 : vector<28x168xf32>
    %62 = vector.extract_strided_slice %42 {offsets = [4, 0], sizes = [28, 32], strides = [1, 1]} : vector<32x32xf32> to vector<28x32xf32>
    %c4_62 = arith.constant 4 : index
    %c0_63 = arith.constant 0 : index
    %c0_64 = arith.constant 0 : index
    %63 = vector.load %arg1[%c4_62, %c0_63, %c0_64] : memref<5x32x168xf32, #tpu.memory_space<vmem>>, vector<1x32x168xf32>
    %64 = vector.shape_cast %63 : vector<1x32x168xf32> to vector<32x168xf32>
    %cst_65 = arith.constant dense<0.000000e+00> : vector<28x168xf32>
    %65 = tpu.matmul %62, %64, %cst_65 {dimension_numbers = #tpu.dot_dimension_numbers<[1], [0], [0], [1], [0, 0, 1, 1], [], []>} : vector<28x32xf32>, vector<32x168xf32>, vector<28x168xf32> -> vector<28x168xf32>
    %66 = arith.addf %61, %65 : vector<28x168xf32>
    %c0_66 = arith.constant 0 : index
    %c0_67 = arith.constant 0 : index
    %67 = vector.load %arg2[%c0_66, %c0_67] : memref<1x168xf32, #tpu.memory_space<vmem>>, vector<1x168xf32>
    %68 = vector.broadcast %67 : vector<1x168xf32> to vector<28x168xf32>
    %69 = arith.addf %66, %68 : vector<28x168xf32>
    %cst_68 = arith.constant 0.000000e+00 : f32
    %70 = vector.broadcast %cst_68 : f32 to vector<1x168xf32>
    %cst_69 = arith.constant 0.000000e+00 : f32
    %71 = vector.broadcast %cst_69 : f32 to vector<1x168xf32>
    %cst_70 = arith.constant dense<0.000000e+00> : vector<168xf32>
    %72 = vector.multi_reduction <add>, %40, %cst_70 [0] : vector<28x168xf32> to vector<168xf32>
    %73 = vector.shape_cast %72 : vector<168xf32> to vector<1x168xf32>
    %74 = arith.addf %70, %73 : vector<1x168xf32>
    %75 = arith.mulf %40, %40 : vector<28x168xf32>
    %cst_71 = arith.constant dense<0.000000e+00> : vector<168xf32>
    %76 = vector.multi_reduction <add>, %75, %cst_71 [0] : vector<28x168xf32> to vector<168xf32>
    %77 = vector.shape_cast %76 : vector<168xf32> to vector<1x168xf32>
    %78 = arith.addf %71, %77 : vector<1x168xf32>
    %cst_72 = arith.constant dense<0.000000e+00> : vector<168xf32>
    %79 = vector.multi_reduction <add>, %69, %cst_72 [0] : vector<28x168xf32> to vector<168xf32>
    %80 = vector.shape_cast %79 : vector<168xf32> to vector<1x168xf32>
    %81 = arith.addf %74, %80 : vector<1x168xf32>
    %82 = arith.mulf %69, %69 : vector<28x168xf32>
    %cst_73 = arith.constant dense<0.000000e+00> : vector<168xf32>
    %83 = vector.multi_reduction <add>, %82, %cst_73 [0] : vector<28x168xf32> to vector<168xf32>
    %84 = vector.shape_cast %83 : vector<168xf32> to vector<1x168xf32>
    %85 = arith.addf %78, %84 : vector<1x168xf32>
    %cst_74 = arith.constant dense<0.000000e+00> : vector<1x8xf32>
    %86 = tpu.matmul %81, %0, %cst_74 {dimension_numbers = #tpu.dot_dimension_numbers<[1], [0], [0], [1], [0, 0, 1, 1], [], []>} : vector<1x168xf32>, vector<168x8xf32>, vector<1x8xf32> -> vector<1x8xf32>
    %cst_75 = arith.constant 1.568000e+03 : f32
    %87 = vector.broadcast %cst_75 : f32 to vector<1x8xf32>
    %88 = arith.divf %86, %87 : vector<1x8xf32>
    %cst_76 = arith.constant dense<0.000000e+00> : vector<1x8xf32>
    %89 = tpu.matmul %85, %0, %cst_76 {dimension_numbers = #tpu.dot_dimension_numbers<[1], [0], [0], [1], [0, 0, 1, 1], [], []>} : vector<1x168xf32>, vector<168x8xf32>, vector<1x8xf32> -> vector<1x8xf32>
    %cst_77 = arith.constant 1.568000e+03 : f32
    %90 = vector.broadcast %cst_77 : f32 to vector<1x8xf32>
    %91 = arith.divf %89, %90 : vector<1x8xf32>
    %92 = arith.mulf %88, %88 : vector<1x8xf32>
    %93 = arith.subf %91, %92 : vector<1x8xf32>
    %cst_78 = arith.constant 0.000000e+00 : f32
    %94 = vector.broadcast %cst_78 : f32 to vector<1x8xf32>
    %95 = arith.maximumf %93, %94 : vector<1x8xf32>
    %c0_79 = arith.constant 0 : index
    %c0_80 = arith.constant 0 : index
    %96 = vector.load %arg3[%c0_79, %c0_80] : memref<1x8xf32, #tpu.memory_space<vmem>>, vector<1x8xf32>
    %cst_81 = arith.constant 9.99999974E-6 : f32
    %97 = vector.broadcast %cst_81 : f32 to vector<1x8xf32>
    %98 = arith.addf %95, %97 : vector<1x8xf32>
    %99 = math.rsqrt %98 : vector<1x8xf32>
    %100 = arith.mulf %96, %99 : vector<1x8xf32>
    %c0_82 = arith.constant 0 : index
    %c0_83 = arith.constant 0 : index
    %101 = vector.load %arg4[%c0_82, %c0_83] : memref<1x8xf32, #tpu.memory_space<vmem>>, vector<1x8xf32>
    %102 = arith.mulf %88, %100 : vector<1x8xf32>
    %103 = arith.subf %101, %102 : vector<1x8xf32>
    %cst_84 = arith.constant dense<0.000000e+00> : vector<1x168xf32>
    %104 = tpu.matmul %100, %1, %cst_84 {dimension_numbers = #tpu.dot_dimension_numbers<[1], [0], [0], [1], [0, 0, 1, 1], [], []>} : vector<1x8xf32>, vector<8x168xf32>, vector<1x168xf32> -> vector<1x168xf32>
    %cst_85 = arith.constant dense<0.000000e+00> : vector<1x168xf32>
    %105 = tpu.matmul %103, %1, %cst_85 {dimension_numbers = #tpu.dot_dimension_numbers<[1], [0], [0], [1], [0, 0, 1, 1], [], []>} : vector<1x8xf32>, vector<8x168xf32>, vector<1x168xf32> -> vector<1x168xf32>
    %106 = vector.broadcast %104 : vector<1x168xf32> to vector<28x168xf32>
    %107 = arith.mulf %40, %106 : vector<28x168xf32>
    %108 = vector.broadcast %105 : vector<1x168xf32> to vector<28x168xf32>
    %109 = arith.addf %107, %108 : vector<28x168xf32>
    %cst_86 = arith.constant 0.000000e+00 : f32
    %110 = vector.broadcast %cst_86 : f32 to vector<28x168xf32>
    %111 = arith.maximumf %109, %110 : vector<28x168xf32>
    %cst_87 = arith.constant dense<0.000000e+00> : vector<28x84xf32>
    %112 = tpu.matmul %111, %2, %cst_87 {dimension_numbers = #tpu.dot_dimension_numbers<[1], [0], [0], [1], [0, 0, 1, 1], [], []>} : vector<28x168xf32>, vector<168x84xf32>, vector<28x84xf32> -> vector<28x84xf32>
    %cst_88 = arith.constant dense<0.000000e+00> : vector<28x84xf32>
    %113 = tpu.matmul %111, %3, %cst_88 {dimension_numbers = #tpu.dot_dimension_numbers<[1], [0], [0], [1], [0, 0, 1, 1], [], []>} : vector<28x168xf32>, vector<168x84xf32>, vector<28x84xf32> -> vector<28x84xf32>
    %114 = arith.maximumf %112, %113 : vector<28x84xf32>
    %cst_89 = arith.constant dense<0.000000e+00> : vector<14x84xf32>
    %115 = tpu.matmul %4, %114, %cst_89 {dimension_numbers = #tpu.dot_dimension_numbers<[1], [0], [0], [1], [0, 0, 1, 1], [], []>} : vector<14x28xf32>, vector<28x84xf32>, vector<14x84xf32> -> vector<14x84xf32>
    %cst_90 = arith.constant dense<0.000000e+00> : vector<14x84xf32>
    %116 = tpu.matmul %5, %114, %cst_90 {dimension_numbers = #tpu.dot_dimension_numbers<[1], [0], [0], [1], [0, 0, 1, 1], [], []>} : vector<14x28xf32>, vector<28x84xf32>, vector<14x84xf32> -> vector<14x84xf32>
    %117 = arith.maximumf %115, %116 : vector<14x84xf32>
    %118 = vector.broadcast %104 : vector<1x168xf32> to vector<28x168xf32>
    %119 = arith.mulf %69, %118 : vector<28x168xf32>
    %120 = vector.broadcast %105 : vector<1x168xf32> to vector<28x168xf32>
    %121 = arith.addf %119, %120 : vector<28x168xf32>
    %cst_91 = arith.constant 0.000000e+00 : f32
    %122 = vector.broadcast %cst_91 : f32 to vector<28x168xf32>
    %123 = arith.maximumf %121, %122 : vector<28x168xf32>
    %cst_92 = arith.constant dense<0.000000e+00> : vector<28x84xf32>
    %124 = tpu.matmul %123, %2, %cst_92 {dimension_numbers = #tpu.dot_dimension_numbers<[1], [0], [0], [1], [0, 0, 1, 1], [], []>} : vector<28x168xf32>, vector<168x84xf32>, vector<28x84xf32> -> vector<28x84xf32>
    %cst_93 = arith.constant dense<0.000000e+00> : vector<28x84xf32>
    %125 = tpu.matmul %123, %3, %cst_93 {dimension_numbers = #tpu.dot_dimension_numbers<[1], [0], [0], [1], [0, 0, 1, 1], [], []>} : vector<28x168xf32>, vector<168x84xf32>, vector<28x84xf32> -> vector<28x84xf32>
    %126 = arith.maximumf %124, %125 : vector<28x84xf32>
    %cst_94 = arith.constant dense<0.000000e+00> : vector<14x84xf32>
    %127 = tpu.matmul %4, %126, %cst_94 {dimension_numbers = #tpu.dot_dimension_numbers<[1], [0], [0], [1], [0, 0, 1, 1], [], []>} : vector<14x28xf32>, vector<28x84xf32>, vector<14x84xf32> -> vector<14x84xf32>
    %cst_95 = arith.constant dense<0.000000e+00> : vector<14x84xf32>
    %128 = tpu.matmul %5, %126, %cst_95 {dimension_numbers = #tpu.dot_dimension_numbers<[1], [0], [0], [1], [0, 0, 1, 1], [], []>} : vector<14x28xf32>, vector<28x84xf32>, vector<14x84xf32> -> vector<14x84xf32>
    %129 = arith.maximumf %127, %128 : vector<14x84xf32>
    %130 = vector.extract_strided_slice %117 {offsets = [0, 0], sizes = [10, 84], strides = [1, 1]} : vector<14x84xf32> to vector<10x84xf32>
    %c0_96 = arith.constant 0 : index
    %c0_97 = arith.constant 0 : index
    %c0_98 = arith.constant 0 : index
    %131 = vector.load %arg11[%c0_96, %c0_97, %c0_98] : memref<5x84x160xf32, #tpu.memory_space<vmem>>, vector<1x84x160xf32>
    %132 = vector.shape_cast %131 : vector<1x84x160xf32> to vector<84x160xf32>
    %cst_99 = arith.constant dense<0.000000e+00> : vector<10x160xf32>
    %133 = tpu.matmul %130, %132, %cst_99 {dimension_numbers = #tpu.dot_dimension_numbers<[1], [0], [0], [1], [0, 0, 1, 1], [], []>} : vector<10x84xf32>, vector<84x160xf32>, vector<10x160xf32> -> vector<10x160xf32>
    %134 = vector.extract_strided_slice %117 {offsets = [1, 0], sizes = [10, 84], strides = [1, 1]} : vector<14x84xf32> to vector<10x84xf32>
    %c1_100 = arith.constant 1 : index
    %c0_101 = arith.constant 0 : index
    %c0_102 = arith.constant 0 : index
    %135 = vector.load %arg11[%c1_100, %c0_101, %c0_102] : memref<5x84x160xf32, #tpu.memory_space<vmem>>, vector<1x84x160xf32>
    %136 = vector.shape_cast %135 : vector<1x84x160xf32> to vector<84x160xf32>
    %cst_103 = arith.constant dense<0.000000e+00> : vector<10x160xf32>
    %137 = tpu.matmul %134, %136, %cst_103 {dimension_numbers = #tpu.dot_dimension_numbers<[1], [0], [0], [1], [0, 0, 1, 1], [], []>} : vector<10x84xf32>, vector<84x160xf32>, vector<10x160xf32> -> vector<10x160xf32>
    %138 = arith.addf %133, %137 : vector<10x160xf32>
    %139 = vector.extract_strided_slice %117 {offsets = [2, 0], sizes = [10, 84], strides = [1, 1]} : vector<14x84xf32> to vector<10x84xf32>
    %c2_104 = arith.constant 2 : index
    %c0_105 = arith.constant 0 : index
    %c0_106 = arith.constant 0 : index
    %140 = vector.load %arg11[%c2_104, %c0_105, %c0_106] : memref<5x84x160xf32, #tpu.memory_space<vmem>>, vector<1x84x160xf32>
    %141 = vector.shape_cast %140 : vector<1x84x160xf32> to vector<84x160xf32>
    %cst_107 = arith.constant dense<0.000000e+00> : vector<10x160xf32>
    %142 = tpu.matmul %139, %141, %cst_107 {dimension_numbers = #tpu.dot_dimension_numbers<[1], [0], [0], [1], [0, 0, 1, 1], [], []>} : vector<10x84xf32>, vector<84x160xf32>, vector<10x160xf32> -> vector<10x160xf32>
    %143 = arith.addf %138, %142 : vector<10x160xf32>
    %144 = vector.extract_strided_slice %117 {offsets = [3, 0], sizes = [10, 84], strides = [1, 1]} : vector<14x84xf32> to vector<10x84xf32>
    %c3_108 = arith.constant 3 : index
    %c0_109 = arith.constant 0 : index
    %c0_110 = arith.constant 0 : index
    %145 = vector.load %arg11[%c3_108, %c0_109, %c0_110] : memref<5x84x160xf32, #tpu.memory_space<vmem>>, vector<1x84x160xf32>
    %146 = vector.shape_cast %145 : vector<1x84x160xf32> to vector<84x160xf32>
    %cst_111 = arith.constant dense<0.000000e+00> : vector<10x160xf32>
    %147 = tpu.matmul %144, %146, %cst_111 {dimension_numbers = #tpu.dot_dimension_numbers<[1], [0], [0], [1], [0, 0, 1, 1], [], []>} : vector<10x84xf32>, vector<84x160xf32>, vector<10x160xf32> -> vector<10x160xf32>
    %148 = arith.addf %143, %147 : vector<10x160xf32>
    %149 = vector.extract_strided_slice %117 {offsets = [4, 0], sizes = [10, 84], strides = [1, 1]} : vector<14x84xf32> to vector<10x84xf32>
    %c4_112 = arith.constant 4 : index
    %c0_113 = arith.constant 0 : index
    %c0_114 = arith.constant 0 : index
    %150 = vector.load %arg11[%c4_112, %c0_113, %c0_114] : memref<5x84x160xf32, #tpu.memory_space<vmem>>, vector<1x84x160xf32>
    %151 = vector.shape_cast %150 : vector<1x84x160xf32> to vector<84x160xf32>
    %cst_115 = arith.constant dense<0.000000e+00> : vector<10x160xf32>
    %152 = tpu.matmul %149, %151, %cst_115 {dimension_numbers = #tpu.dot_dimension_numbers<[1], [0], [0], [1], [0, 0, 1, 1], [], []>} : vector<10x84xf32>, vector<84x160xf32>, vector<10x160xf32> -> vector<10x160xf32>
    %153 = arith.addf %148, %152 : vector<10x160xf32>
    %c0_116 = arith.constant 0 : index
    %c0_117 = arith.constant 0 : index
    %154 = vector.load %arg12[%c0_116, %c0_117] : memref<1x160xf32, #tpu.memory_space<vmem>>, vector<1x160xf32>
    %155 = vector.broadcast %154 : vector<1x160xf32> to vector<10x160xf32>
    %156 = arith.addf %153, %155 : vector<10x160xf32>
    %157 = vector.extract_strided_slice %129 {offsets = [0, 0], sizes = [10, 84], strides = [1, 1]} : vector<14x84xf32> to vector<10x84xf32>
    %c0_118 = arith.constant 0 : index
    %c0_119 = arith.constant 0 : index
    %c0_120 = arith.constant 0 : index
    %158 = vector.load %arg11[%c0_118, %c0_119, %c0_120] : memref<5x84x160xf32, #tpu.memory_space<vmem>>, vector<1x84x160xf32>
    %159 = vector.shape_cast %158 : vector<1x84x160xf32> to vector<84x160xf32>
    %cst_121 = arith.constant dense<0.000000e+00> : vector<10x160xf32>
    %160 = tpu.matmul %157, %159, %cst_121 {dimension_numbers = #tpu.dot_dimension_numbers<[1], [0], [0], [1], [0, 0, 1, 1], [], []>} : vector<10x84xf32>, vector<84x160xf32>, vector<10x160xf32> -> vector<10x160xf32>
    %161 = vector.extract_strided_slice %129 {offsets = [1, 0], sizes = [10, 84], strides = [1, 1]} : vector<14x84xf32> to vector<10x84xf32>
    %c1_122 = arith.constant 1 : index
    %c0_123 = arith.constant 0 : index
    %c0_124 = arith.constant 0 : index
    %162 = vector.load %arg11[%c1_122, %c0_123, %c0_124] : memref<5x84x160xf32, #tpu.memory_space<vmem>>, vector<1x84x160xf32>
    %163 = vector.shape_cast %162 : vector<1x84x160xf32> to vector<84x160xf32>
    %cst_125 = arith.constant dense<0.000000e+00> : vector<10x160xf32>
    %164 = tpu.matmul %161, %163, %cst_125 {dimension_numbers = #tpu.dot_dimension_numbers<[1], [0], [0], [1], [0, 0, 1, 1], [], []>} : vector<10x84xf32>, vector<84x160xf32>, vector<10x160xf32> -> vector<10x160xf32>
    %165 = arith.addf %160, %164 : vector<10x160xf32>
    %166 = vector.extract_strided_slice %129 {offsets = [2, 0], sizes = [10, 84], strides = [1, 1]} : vector<14x84xf32> to vector<10x84xf32>
    %c2_126 = arith.constant 2 : index
    %c0_127 = arith.constant 0 : index
    %c0_128 = arith.constant 0 : index
    %167 = vector.load %arg11[%c2_126, %c0_127, %c0_128] : memref<5x84x160xf32, #tpu.memory_space<vmem>>, vector<1x84x160xf32>
    %168 = vector.shape_cast %167 : vector<1x84x160xf32> to vector<84x160xf32>
    %cst_129 = arith.constant dense<0.000000e+00> : vector<10x160xf32>
    %169 = tpu.matmul %166, %168, %cst_129 {dimension_numbers = #tpu.dot_dimension_numbers<[1], [0], [0], [1], [0, 0, 1, 1], [], []>} : vector<10x84xf32>, vector<84x160xf32>, vector<10x160xf32> -> vector<10x160xf32>
    %170 = arith.addf %165, %169 : vector<10x160xf32>
    %171 = vector.extract_strided_slice %129 {offsets = [3, 0], sizes = [10, 84], strides = [1, 1]} : vector<14x84xf32> to vector<10x84xf32>
    %c3_130 = arith.constant 3 : index
    %c0_131 = arith.constant 0 : index
    %c0_132 = arith.constant 0 : index
    %172 = vector.load %arg11[%c3_130, %c0_131, %c0_132] : memref<5x84x160xf32, #tpu.memory_space<vmem>>, vector<1x84x160xf32>
    %173 = vector.shape_cast %172 : vector<1x84x160xf32> to vector<84x160xf32>
    %cst_133 = arith.constant dense<0.000000e+00> : vector<10x160xf32>
    %174 = tpu.matmul %171, %173, %cst_133 {dimension_numbers = #tpu.dot_dimension_numbers<[1], [0], [0], [1], [0, 0, 1, 1], [], []>} : vector<10x84xf32>, vector<84x160xf32>, vector<10x160xf32> -> vector<10x160xf32>
    %175 = arith.addf %170, %174 : vector<10x160xf32>
    %176 = vector.extract_strided_slice %129 {offsets = [4, 0], sizes = [10, 84], strides = [1, 1]} : vector<14x84xf32> to vector<10x84xf32>
    %c4_134 = arith.constant 4 : index
    %c0_135 = arith.constant 0 : index
    %c0_136 = arith.constant 0 : index
    %177 = vector.load %arg11[%c4_134, %c0_135, %c0_136] : memref<5x84x160xf32, #tpu.memory_space<vmem>>, vector<1x84x160xf32>
    %178 = vector.shape_cast %177 : vector<1x84x160xf32> to vector<84x160xf32>
    %cst_137 = arith.constant dense<0.000000e+00> : vector<10x160xf32>
    %179 = tpu.matmul %176, %178, %cst_137 {dimension_numbers = #tpu.dot_dimension_numbers<[1], [0], [0], [1], [0, 0, 1, 1], [], []>} : vector<10x84xf32>, vector<84x160xf32>, vector<10x160xf32> -> vector<10x160xf32>
    %180 = arith.addf %175, %179 : vector<10x160xf32>
    %c0_138 = arith.constant 0 : index
    %c0_139 = arith.constant 0 : index
    %181 = vector.load %arg12[%c0_138, %c0_139] : memref<1x160xf32, #tpu.memory_space<vmem>>, vector<1x160xf32>
    %182 = vector.broadcast %181 : vector<1x160xf32> to vector<10x160xf32>
    %183 = arith.addf %180, %182 : vector<10x160xf32>
    %cst_140 = arith.constant 0.000000e+00 : f32
    %184 = vector.broadcast %cst_140 : f32 to vector<1x160xf32>
    %cst_141 = arith.constant 0.000000e+00 : f32
    %185 = vector.broadcast %cst_141 : f32 to vector<1x160xf32>
    %cst_142 = arith.constant dense<0.000000e+00> : vector<160xf32>
    %186 = vector.multi_reduction <add>, %156, %cst_142 [0] : vector<10x160xf32> to vector<160xf32>
    %187 = vector.shape_cast %186 : vector<160xf32> to vector<1x160xf32>
    %188 = arith.addf %184, %187 : vector<1x160xf32>
    %189 = arith.mulf %156, %156 : vector<10x160xf32>
    %cst_143 = arith.constant dense<0.000000e+00> : vector<160xf32>
    %190 = vector.multi_reduction <add>, %189, %cst_143 [0] : vector<10x160xf32> to vector<160xf32>
    %191 = vector.shape_cast %190 : vector<160xf32> to vector<1x160xf32>
    %192 = arith.addf %185, %191 : vector<1x160xf32>
    %cst_144 = arith.constant dense<0.000000e+00> : vector<160xf32>
    %193 = vector.multi_reduction <add>, %183, %cst_144 [0] : vector<10x160xf32> to vector<160xf32>
    %194 = vector.shape_cast %193 : vector<160xf32> to vector<1x160xf32>
    %195 = arith.addf %188, %194 : vector<1x160xf32>
    %196 = arith.mulf %183, %183 : vector<10x160xf32>
    %cst_145 = arith.constant dense<0.000000e+00> : vector<160xf32>
    %197 = vector.multi_reduction <add>, %196, %cst_145 [0] : vector<10x160xf32> to vector<160xf32>
    %198 = vector.shape_cast %197 : vector<160xf32> to vector<1x160xf32>
    %199 = arith.addf %192, %198 : vector<1x160xf32>
    %cst_146 = arith.constant dense<0.000000e+00> : vector<1x16xf32>
    %200 = tpu.matmul %195, %6, %cst_146 {dimension_numbers = #tpu.dot_dimension_numbers<[1], [0], [0], [1], [0, 0, 1, 1], [], []>} : vector<1x160xf32>, vector<160x16xf32>, vector<1x16xf32> -> vector<1x16xf32>
    %cst_147 = arith.constant 2.000000e+02 : f32
    %201 = vector.broadcast %cst_147 : f32 to vector<1x16xf32>
    %202 = arith.divf %200, %201 : vector<1x16xf32>
    %cst_148 = arith.constant dense<0.000000e+00> : vector<1x16xf32>
    %203 = tpu.matmul %199, %6, %cst_148 {dimension_numbers = #tpu.dot_dimension_numbers<[1], [0], [0], [1], [0, 0, 1, 1], [], []>} : vector<1x160xf32>, vector<160x16xf32>, vector<1x16xf32> -> vector<1x16xf32>
    %cst_149 = arith.constant 2.000000e+02 : f32
    %204 = vector.broadcast %cst_149 : f32 to vector<1x16xf32>
    %205 = arith.divf %203, %204 : vector<1x16xf32>
    %206 = arith.mulf %202, %202 : vector<1x16xf32>
    %207 = arith.subf %205, %206 : vector<1x16xf32>
    %cst_150 = arith.constant 0.000000e+00 : f32
    %208 = vector.broadcast %cst_150 : f32 to vector<1x16xf32>
    %209 = arith.maximumf %207, %208 : vector<1x16xf32>
    %c0_151 = arith.constant 0 : index
    %c0_152 = arith.constant 0 : index
    %210 = vector.load %arg13[%c0_151, %c0_152] : memref<1x16xf32, #tpu.memory_space<vmem>>, vector<1x16xf32>
    %cst_153 = arith.constant 9.99999974E-6 : f32
    %211 = vector.broadcast %cst_153 : f32 to vector<1x16xf32>
    %212 = arith.addf %209, %211 : vector<1x16xf32>
    %213 = math.rsqrt %212 : vector<1x16xf32>
    %214 = arith.mulf %210, %213 : vector<1x16xf32>
    %c0_154 = arith.constant 0 : index
    %c0_155 = arith.constant 0 : index
    %215 = vector.load %arg14[%c0_154, %c0_155] : memref<1x16xf32, #tpu.memory_space<vmem>>, vector<1x16xf32>
    %216 = arith.mulf %202, %214 : vector<1x16xf32>
    %217 = arith.subf %215, %216 : vector<1x16xf32>
    %cst_156 = arith.constant dense<0.000000e+00> : vector<1x160xf32>
    %218 = tpu.matmul %214, %7, %cst_156 {dimension_numbers = #tpu.dot_dimension_numbers<[1], [0], [0], [1], [0, 0, 1, 1], [], []>} : vector<1x16xf32>, vector<16x160xf32>, vector<1x160xf32> -> vector<1x160xf32>
    %cst_157 = arith.constant dense<0.000000e+00> : vector<1x160xf32>
    %219 = tpu.matmul %217, %7, %cst_157 {dimension_numbers = #tpu.dot_dimension_numbers<[1], [0], [0], [1], [0, 0, 1, 1], [], []>} : vector<1x16xf32>, vector<16x160xf32>, vector<1x160xf32> -> vector<1x160xf32>
    %220 = vector.broadcast %218 : vector<1x160xf32> to vector<10x160xf32>
    %221 = arith.mulf %156, %220 : vector<10x160xf32>
    %222 = vector.broadcast %219 : vector<1x160xf32> to vector<10x160xf32>
    %223 = arith.addf %221, %222 : vector<10x160xf32>
    %cst_158 = arith.constant 0.000000e+00 : f32
    %224 = vector.broadcast %cst_158 : f32 to vector<10x160xf32>
    %225 = arith.maximumf %223, %224 : vector<10x160xf32>
    %cst_159 = arith.constant dense<0.000000e+00> : vector<10x80xf32>
    %226 = tpu.matmul %225, %8, %cst_159 {dimension_numbers = #tpu.dot_dimension_numbers<[1], [0], [0], [1], [0, 0, 1, 1], [], []>} : vector<10x160xf32>, vector<160x80xf32>, vector<10x80xf32> -> vector<10x80xf32>
    %cst_160 = arith.constant dense<0.000000e+00> : vector<10x80xf32>
    %227 = tpu.matmul %225, %9, %cst_160 {dimension_numbers = #tpu.dot_dimension_numbers<[1], [0], [0], [1], [0, 0, 1, 1], [], []>} : vector<10x160xf32>, vector<160x80xf32>, vector<10x80xf32> -> vector<10x80xf32>
    %228 = arith.maximumf %226, %227 : vector<10x80xf32>
    %cst_161 = arith.constant dense<0.000000e+00> : vector<5x80xf32>
    %229 = tpu.matmul %10, %228, %cst_161 {dimension_numbers = #tpu.dot_dimension_numbers<[1], [0], [0], [1], [0, 0, 1, 1], [], []>} : vector<5x10xf32>, vector<10x80xf32>, vector<5x80xf32> -> vector<5x80xf32>
    %cst_162 = arith.constant dense<0.000000e+00> : vector<5x80xf32>
    %230 = tpu.matmul %11, %228, %cst_162 {dimension_numbers = #tpu.dot_dimension_numbers<[1], [0], [0], [1], [0, 0, 1, 1], [], []>} : vector<5x10xf32>, vector<10x80xf32>, vector<5x80xf32> -> vector<5x80xf32>
    %231 = arith.maximumf %229, %230 : vector<5x80xf32>
    %c0_163 = arith.constant 0 : index
    %c0_164 = arith.constant 0 : index
    %232 = vector.load %arg22[%c0_163, %c0_164] : memref<1x128xf32, #tpu.memory_space<vmem>>, vector<1x128xf32>
    %233 = vector.extract_strided_slice %231 {offsets = [0, 0], sizes = [1, 80], strides = [1, 1]} : vector<5x80xf32> to vector<1x80xf32>
    %c0_165 = arith.constant 0 : index
    %c0_166 = arith.constant 0 : index
    %c0_167 = arith.constant 0 : index
    %234 = vector.load %arg21[%c0_165, %c0_166, %c0_167] : memref<5x80x128xf32, #tpu.memory_space<vmem>>, vector<1x80x128xf32>
    %235 = vector.shape_cast %234 : vector<1x80x128xf32> to vector<80x128xf32>
    %cst_168 = arith.constant dense<0.000000e+00> : vector<1x128xf32>
    %236 = tpu.matmul %233, %235, %cst_168 {dimension_numbers = #tpu.dot_dimension_numbers<[1], [0], [0], [1], [0, 0, 1, 1], [], []>} : vector<1x80xf32>, vector<80x128xf32>, vector<1x128xf32> -> vector<1x128xf32>
    %237 = arith.addf %232, %236 : vector<1x128xf32>
    %238 = vector.extract_strided_slice %231 {offsets = [1, 0], sizes = [1, 80], strides = [1, 1]} : vector<5x80xf32> to vector<1x80xf32>
    %c1_169 = arith.constant 1 : index
    %c0_170 = arith.constant 0 : index
    %c0_171 = arith.constant 0 : index
    %239 = vector.load %arg21[%c1_169, %c0_170, %c0_171] : memref<5x80x128xf32, #tpu.memory_space<vmem>>, vector<1x80x128xf32>
    %240 = vector.shape_cast %239 : vector<1x80x128xf32> to vector<80x128xf32>
    %cst_172 = arith.constant dense<0.000000e+00> : vector<1x128xf32>
    %241 = tpu.matmul %238, %240, %cst_172 {dimension_numbers = #tpu.dot_dimension_numbers<[1], [0], [0], [1], [0, 0, 1, 1], [], []>} : vector<1x80xf32>, vector<80x128xf32>, vector<1x128xf32> -> vector<1x128xf32>
    %242 = arith.addf %237, %241 : vector<1x128xf32>
    %243 = vector.extract_strided_slice %231 {offsets = [2, 0], sizes = [1, 80], strides = [1, 1]} : vector<5x80xf32> to vector<1x80xf32>
    %c2_173 = arith.constant 2 : index
    %c0_174 = arith.constant 0 : index
    %c0_175 = arith.constant 0 : index
    %244 = vector.load %arg21[%c2_173, %c0_174, %c0_175] : memref<5x80x128xf32, #tpu.memory_space<vmem>>, vector<1x80x128xf32>
    %245 = vector.shape_cast %244 : vector<1x80x128xf32> to vector<80x128xf32>
    %cst_176 = arith.constant dense<0.000000e+00> : vector<1x128xf32>
    %246 = tpu.matmul %243, %245, %cst_176 {dimension_numbers = #tpu.dot_dimension_numbers<[1], [0], [0], [1], [0, 0, 1, 1], [], []>} : vector<1x80xf32>, vector<80x128xf32>, vector<1x128xf32> -> vector<1x128xf32>
    %247 = arith.addf %242, %246 : vector<1x128xf32>
    %248 = vector.extract_strided_slice %231 {offsets = [3, 0], sizes = [1, 80], strides = [1, 1]} : vector<5x80xf32> to vector<1x80xf32>
    %c3_177 = arith.constant 3 : index
    %c0_178 = arith.constant 0 : index
    %c0_179 = arith.constant 0 : index
    %249 = vector.load %arg21[%c3_177, %c0_178, %c0_179] : memref<5x80x128xf32, #tpu.memory_space<vmem>>, vector<1x80x128xf32>
    %250 = vector.shape_cast %249 : vector<1x80x128xf32> to vector<80x128xf32>
    %cst_180 = arith.constant dense<0.000000e+00> : vector<1x128xf32>
    %251 = tpu.matmul %248, %250, %cst_180 {dimension_numbers = #tpu.dot_dimension_numbers<[1], [0], [0], [1], [0, 0, 1, 1], [], []>} : vector<1x80xf32>, vector<80x128xf32>, vector<1x128xf32> -> vector<1x128xf32>
    %252 = arith.addf %247, %251 : vector<1x128xf32>
    %253 = vector.extract_strided_slice %231 {offsets = [4, 0], sizes = [1, 80], strides = [1, 1]} : vector<5x80xf32> to vector<1x80xf32>
    %c4_181 = arith.constant 4 : index
    %c0_182 = arith.constant 0 : index
    %c0_183 = arith.constant 0 : index
    %254 = vector.load %arg21[%c4_181, %c0_182, %c0_183] : memref<5x80x128xf32, #tpu.memory_space<vmem>>, vector<1x80x128xf32>
    %255 = vector.shape_cast %254 : vector<1x80x128xf32> to vector<80x128xf32>
    %cst_184 = arith.constant dense<0.000000e+00> : vector<1x128xf32>
    %256 = tpu.matmul %253, %255, %cst_184 {dimension_numbers = #tpu.dot_dimension_numbers<[1], [0], [0], [1], [0, 0, 1, 1], [], []>} : vector<1x80xf32>, vector<80x128xf32>, vector<1x128xf32> -> vector<1x128xf32>
    %257 = arith.addf %252, %256 : vector<1x128xf32>
    %cst_185 = arith.constant 0.000000e+00 : f32
    %258 = vector.broadcast %cst_185 : f32 to vector<1x128xf32>
    %259 = arith.maximumf %257, %258 : vector<1x128xf32>
    %c0_186 = arith.constant 0 : index
    %c0_187 = arith.constant 0 : index
    %260 = vector.load %arg23[%c0_186, %c0_187] : memref<128x128xf32, #tpu.memory_space<vmem>>, vector<128x128xf32>
    %cst_188 = arith.constant dense<0.000000e+00> : vector<1x128xf32>
    %261 = tpu.matmul %259, %260, %cst_188 {dimension_numbers = #tpu.dot_dimension_numbers<[1], [0], [0], [1], [0, 0, 1, 1], [], []>} : vector<1x128xf32>, vector<128x128xf32>, vector<1x128xf32> -> vector<1x128xf32>
    %c0_189 = arith.constant 0 : index
    %c0_190 = arith.constant 0 : index
    %262 = vector.load %arg24[%c0_189, %c0_190] : memref<1x128xf32, #tpu.memory_space<vmem>>, vector<1x128xf32>
    %263 = arith.addf %261, %262 : vector<1x128xf32>
    %cst_191 = arith.constant 0.000000e+00 : f32
    %264 = vector.broadcast %cst_191 : f32 to vector<1x128xf32>
    %265 = arith.maximumf %263, %264 : vector<1x128xf32>
    %c0_192 = arith.constant 0 : index
    %c0_193 = arith.constant 0 : index
    %266 = vector.load %arg25[%c0_192, %c0_193] : memref<128x128xf32, #tpu.memory_space<vmem>>, vector<128x128xf32>
    %cst_194 = arith.constant dense<0.000000e+00> : vector<1x128xf32>
    %267 = tpu.matmul %265, %266, %cst_194 {dimension_numbers = #tpu.dot_dimension_numbers<[1], [0], [0], [1], [0, 0, 1, 1], [], []>} : vector<1x128xf32>, vector<128x128xf32>, vector<1x128xf32> -> vector<1x128xf32>
    %c0_195 = arith.constant 0 : index
    %c0_196 = arith.constant 0 : index
    %268 = vector.load %arg26[%c0_195, %c0_196] : memref<1x128xf32, #tpu.memory_space<vmem>>, vector<1x128xf32>
    %269 = arith.addf %267, %268 : vector<1x128xf32>
    %c0_197 = arith.constant 0 : index
    %c0_198 = arith.constant 0 : index
    %270 = vector.load %arg27[%c0_197, %c0_198] : memref<2x128xf32, #tpu.memory_space<vmem>>, vector<1x128xf32>
    tpu.vector_store %arg27[%c0_197, %c0_198], %269 {strides = array<i32>} : memref<2x128xf32, #tpu.memory_space<vmem>>, vector<1x128xf32>,
    %271 = vector.broadcast %218 : vector<1x160xf32> to vector<10x160xf32>
    %272 = arith.mulf %183, %271 : vector<10x160xf32>
    %273 = vector.broadcast %219 : vector<1x160xf32> to vector<10x160xf32>
    %274 = arith.addf %272, %273 : vector<10x160xf32>
    %cst_199 = arith.constant 0.000000e+00 : f32
    %275 = vector.broadcast %cst_199 : f32 to vector<10x160xf32>
    %276 = arith.maximumf %274, %275 : vector<10x160xf32>
    %cst_200 = arith.constant dense<0.000000e+00> : vector<10x80xf32>
    %277 = tpu.matmul %276, %8, %cst_200 {dimension_numbers = #tpu.dot_dimension_numbers<[1], [0], [0], [1], [0, 0, 1, 1], [], []>} : vector<10x160xf32>, vector<160x80xf32>, vector<10x80xf32> -> vector<10x80xf32>
    %cst_201 = arith.constant dense<0.000000e+00> : vector<10x80xf32>
    %278 = tpu.matmul %276, %9, %cst_201 {dimension_numbers = #tpu.dot_dimension_numbers<[1], [0], [0], [1], [0, 0, 1, 1], [], []>} : vector<10x160xf32>, vector<160x80xf32>, vector<10x80xf32> -> vector<10x80xf32>
    %279 = arith.maximumf %277, %278 : vector<10x80xf32>
    %cst_202 = arith.constant dense<0.000000e+00> : vector<5x80xf32>
    %280 = tpu.matmul %10, %279, %cst_202 {dimension_numbers = #tpu.dot_dimension_numbers<[1], [0], [0], [1], [0, 0, 1, 1], [], []>} : vector<5x10xf32>, vector<10x80xf32>, vector<5x80xf32> -> vector<5x80xf32>
    %cst_203 = arith.constant dense<0.000000e+00> : vector<5x80xf32>
    %281 = tpu.matmul %11, %279, %cst_203 {dimension_numbers = #tpu.dot_dimension_numbers<[1], [0], [0], [1], [0, 0, 1, 1], [], []>} : vector<5x10xf32>, vector<10x80xf32>, vector<5x80xf32> -> vector<5x80xf32>
    %282 = arith.maximumf %280, %281 : vector<5x80xf32>
    %c0_204 = arith.constant 0 : index
    %c0_205 = arith.constant 0 : index
    %283 = vector.load %arg22[%c0_204, %c0_205] : memref<1x128xf32, #tpu.memory_space<vmem>>, vector<1x128xf32>
    %284 = vector.extract_strided_slice %282 {offsets = [0, 0], sizes = [1, 80], strides = [1, 1]} : vector<5x80xf32> to vector<1x80xf32>
    %c0_206 = arith.constant 0 : index
    %c0_207 = arith.constant 0 : index
    %c0_208 = arith.constant 0 : index
    %285 = vector.load %arg21[%c0_206, %c0_207, %c0_208] : memref<5x80x128xf32, #tpu.memory_space<vmem>>, vector<1x80x128xf32>
    %286 = vector.shape_cast %285 : vector<1x80x128xf32> to vector<80x128xf32>
    %cst_209 = arith.constant dense<0.000000e+00> : vector<1x128xf32>
    %287 = tpu.matmul %284, %286, %cst_209 {dimension_numbers = #tpu.dot_dimension_numbers<[1], [0], [0], [1], [0, 0, 1, 1], [], []>} : vector<1x80xf32>, vector<80x128xf32>, vector<1x128xf32> -> vector<1x128xf32>
    %288 = arith.addf %283, %287 : vector<1x128xf32>
    %289 = vector.extract_strided_slice %282 {offsets = [1, 0], sizes = [1, 80], strides = [1, 1]} : vector<5x80xf32> to vector<1x80xf32>
    %c1_210 = arith.constant 1 : index
    %c0_211 = arith.constant 0 : index
    %c0_212 = arith.constant 0 : index
    %290 = vector.load %arg21[%c1_210, %c0_211, %c0_212] : memref<5x80x128xf32, #tpu.memory_space<vmem>>, vector<1x80x128xf32>
    %291 = vector.shape_cast %290 : vector<1x80x128xf32> to vector<80x128xf32>
    %cst_213 = arith.constant dense<0.000000e+00> : vector<1x128xf32>
    %292 = tpu.matmul %289, %291, %cst_213 {dimension_numbers = #tpu.dot_dimension_numbers<[1], [0], [0], [1], [0, 0, 1, 1], [], []>} : vector<1x80xf32>, vector<80x128xf32>, vector<1x128xf32> -> vector<1x128xf32>
    %293 = arith.addf %288, %292 : vector<1x128xf32>
    %294 = vector.extract_strided_slice %282 {offsets = [2, 0], sizes = [1, 80], strides = [1, 1]} : vector<5x80xf32> to vector<1x80xf32>
    %c2_214 = arith.constant 2 : index
    %c0_215 = arith.constant 0 : index
    %c0_216 = arith.constant 0 : index
    %295 = vector.load %arg21[%c2_214, %c0_215, %c0_216] : memref<5x80x128xf32, #tpu.memory_space<vmem>>, vector<1x80x128xf32>
    %296 = vector.shape_cast %295 : vector<1x80x128xf32> to vector<80x128xf32>
    %cst_217 = arith.constant dense<0.000000e+00> : vector<1x128xf32>
    %297 = tpu.matmul %294, %296, %cst_217 {dimension_numbers = #tpu.dot_dimension_numbers<[1], [0], [0], [1], [0, 0, 1, 1], [], []>} : vector<1x80xf32>, vector<80x128xf32>, vector<1x128xf32> -> vector<1x128xf32>
    %298 = arith.addf %293, %297 : vector<1x128xf32>
    %299 = vector.extract_strided_slice %282 {offsets = [3, 0], sizes = [1, 80], strides = [1, 1]} : vector<5x80xf32> to vector<1x80xf32>
    %c3_218 = arith.constant 3 : index
    %c0_219 = arith.constant 0 : index
    %c0_220 = arith.constant 0 : index
    %300 = vector.load %arg21[%c3_218, %c0_219, %c0_220] : memref<5x80x128xf32, #tpu.memory_space<vmem>>, vector<1x80x128xf32>
    %301 = vector.shape_cast %300 : vector<1x80x128xf32> to vector<80x128xf32>
    %cst_221 = arith.constant dense<0.000000e+00> : vector<1x128xf32>
    %302 = tpu.matmul %299, %301, %cst_221 {dimension_numbers = #tpu.dot_dimension_numbers<[1], [0], [0], [1], [0, 0, 1, 1], [], []>} : vector<1x80xf32>, vector<80x128xf32>, vector<1x128xf32> -> vector<1x128xf32>
    %303 = arith.addf %298, %302 : vector<1x128xf32>
    %304 = vector.extract_strided_slice %282 {offsets = [4, 0], sizes = [1, 80], strides = [1, 1]} : vector<5x80xf32> to vector<1x80xf32>
    %c4_222 = arith.constant 4 : index
    %c0_223 = arith.constant 0 : index
    %c0_224 = arith.constant 0 : index
    %305 = vector.load %arg21[%c4_222, %c0_223, %c0_224] : memref<5x80x128xf32, #tpu.memory_space<vmem>>, vector<1x80x128xf32>
    %306 = vector.shape_cast %305 : vector<1x80x128xf32> to vector<80x128xf32>
    %cst_225 = arith.constant dense<0.000000e+00> : vector<1x128xf32>
    %307 = tpu.matmul %304, %306, %cst_225 {dimension_numbers = #tpu.dot_dimension_numbers<[1], [0], [0], [1], [0, 0, 1, 1], [], []>} : vector<1x80xf32>, vector<80x128xf32>, vector<1x128xf32> -> vector<1x128xf32>
    %308 = arith.addf %303, %307 : vector<1x128xf32>
    %cst_226 = arith.constant 0.000000e+00 : f32
    %309 = vector.broadcast %cst_226 : f32 to vector<1x128xf32>
    %310 = arith.maximumf %308, %309 : vector<1x128xf32>
    %c0_227 = arith.constant 0 : index
    %c0_228 = arith.constant 0 : index
    %311 = vector.load %arg23[%c0_227, %c0_228] : memref<128x128xf32, #tpu.memory_space<vmem>>, vector<128x128xf32>
    %cst_229 = arith.constant dense<0.000000e+00> : vector<1x128xf32>
    %312 = tpu.matmul %310, %311, %cst_229 {dimension_numbers = #tpu.dot_dimension_numbers<[1], [0], [0], [1], [0, 0, 1, 1], [], []>} : vector<1x128xf32>, vector<128x128xf32>, vector<1x128xf32> -> vector<1x128xf32>
    %c0_230 = arith.constant 0 : index
    %c0_231 = arith.constant 0 : index
    %313 = vector.load %arg24[%c0_230, %c0_231] : memref<1x128xf32, #tpu.memory_space<vmem>>, vector<1x128xf32>
    %314 = arith.addf %312, %313 : vector<1x128xf32>
    %cst_232 = arith.constant 0.000000e+00 : f32
    %315 = vector.broadcast %cst_232 : f32 to vector<1x128xf32>
    %316 = arith.maximumf %314, %315 : vector<1x128xf32>
    %c0_233 = arith.constant 0 : index
    %c0_234 = arith.constant 0 : index
    %317 = vector.load %arg25[%c0_233, %c0_234] : memref<128x128xf32, #tpu.memory_space<vmem>>, vector<128x128xf32>
    %cst_235 = arith.constant dense<0.000000e+00> : vector<1x128xf32>
    %318 = tpu.matmul %316, %317, %cst_235 {dimension_numbers = #tpu.dot_dimension_numbers<[1], [0], [0], [1], [0, 0, 1, 1], [], []>} : vector<1x128xf32>, vector<128x128xf32>, vector<1x128xf32> -> vector<1x128xf32>
    %c0_236 = arith.constant 0 : index
    %c0_237 = arith.constant 0 : index
    %319 = vector.load %arg26[%c0_236, %c0_237] : memref<1x128xf32, #tpu.memory_space<vmem>>, vector<1x128xf32>
    %320 = arith.addf %318, %319 : vector<1x128xf32>
    %c1_238 = arith.constant 1 : index
    %c0_239 = arith.constant 0 : index
    %321 = vector.load %arg27[%c1_238, %c0_239] : memref<2x128xf32, #tpu.memory_space<vmem>>, vector<1x128xf32>
    tpu.vector_store %arg27[%c1_238, %c0_239], %320 {strides = array<i32>} : memref<2x128xf32, #tpu.memory_space<vmem>>, vector<1x128xf32>,
    return
  }
}

</mosaic_0001>

<llo_original>
// kernel: lenet5_forward.1
$region0: #{lenet5_forward.1}
  #allocation0 [shape = 'u32[]', space=smem, size = 0x4, offset = 0x4, fixed_abs, tag = 'smem constant byte address 0x4 - core index']
  #allocation1 [shape = 'u32[144,128]{1,0:T(1,128)}', space=vmem, size = 0x12000, scoped, tag = 'internal scratch']
  %s0 = inlined_call_operand.vmem [shape: f32[2,32,32], index: 0, kind: input, shape index: {}]
  %s1 = inlined_call_operand.vmem [shape: f32[5,32,168], index: 1, kind: input, shape index: {}]
  %s2 = inlined_call_operand.vmem [shape: f32[1,168], index: 2, kind: input, shape index: {}]
  %s3 = inlined_call_operand.vmem [shape: f32[1,8], index: 3, kind: input, shape index: {}]
  %s4 = inlined_call_operand.vmem [shape: f32[1,8], index: 4, kind: input, shape index: {}]
  %s5 = inlined_call_operand.vmem [shape: f32[168,8], index: 5, kind: input, shape index: {}]
  %s6 = inlined_call_operand.vmem [shape: f32[8,168], index: 6, kind: input, shape index: {}]
  %s7 = inlined_call_operand.vmem [shape: f32[168,84], index: 7, kind: input, shape index: {}]
  %s8 = inlined_call_operand.vmem [shape: f32[168,84], index: 8, kind: input, shape index: {}]
  %s9 = inlined_call_operand.vmem [shape: f32[14,28], index: 9, kind: input, shape index: {}]
  %s10 = inlined_call_operand.vmem [shape: f32[14,28], index: 10, kind: input, shape index: {}]
  %s11 = inlined_call_operand.vmem [shape: f32[5,84,160], index: 11, kind: input, shape index: {}]
  %s12 = inlined_call_operand.vmem [shape: f32[1,160], index: 12, kind: input, shape index: {}]
  %s13 = inlined_call_operand.vmem [shape: f32[1,16], index: 13, kind: input, shape index: {}]
  %s14 = inlined_call_operand.vmem [shape: f32[1,16], index: 14, kind: input, shape index: {}]
  %s15 = inlined_call_operand.vmem [shape: f32[160,16], index: 15, kind: input, shape index: {}]
  %s16 = inlined_call_operand.vmem [shape: f32[16,160], index: 16, kind: input, shape index: {}]
  %s17 = inlined_call_operand.vmem [shape: f32[160,80], index: 17, kind: input, shape index: {}]
  %s18 = inlined_call_operand.vmem [shape: f32[160,80], index: 18, kind: input, shape index: {}]
  %s19 = inlined_call_operand.vmem [shape: f32[5,10], index: 19, kind: input, shape index: {}]
  %s20 = inlined_call_operand.vmem [shape: f32[5,10], index: 20, kind: input, shape index: {}]
  %s21 = inlined_call_operand.vmem [shape: f32[5,80,128], index: 21, kind: input, shape index: {}]
  %s22 = inlined_call_operand.vmem [shape: f32[1,128], index: 22, kind: input, shape index: {}]
  %s23 = inlined_call_operand.vmem [shape: f32[128,128], index: 23, kind: input, shape index: {}]
  %s24 = inlined_call_operand.vmem [shape: f32[1,128], index: 24, kind: input, shape index: {}]
  %s25 = inlined_call_operand.vmem [shape: f32[128,128], index: 25, kind: input, shape index: {}]
  %s26 = inlined_call_operand.vmem [shape: f32[1,128], index: 26, kind: input, shape index: {}]
  %s27 = inlined_call_operand.hbm [shape: f32[2,128], index: 27, kind: output, shape index: {}]
  %s28 = sld [smem:[#allocation0]]
  $region118: #{lenet5_forward.1} parent=0
    _
  %s30 = ssub.s32 1, %s28
  %s31 = scalar_select 0, %s30, %s28
  $region1: #{lenet5_forward.1} parent=0
    #allocation2 [shape = 'u8[1024]{0}', space=vmem, size = 0x400, scoped, tag = 'output window, operand 0, single buffered']
    #allocation3 [shape = 's32[1]{0}', space=sflag, size = 0x4, scoped, tag = 'scoped memory for lenet5_forward.1']
    %32 = vsyncpa [#allocation3], 0
    // Predicated region
    $region2: #{lenet5_forward.1} parent=1 // pred_check
      _
    $region3: #{lenet5_forward.1} parent=1 // pred_check_branch
      %34 = sbr.rel (0) target = $region5
    $region4: #{lenet5_forward.1} parent=1 // pred_region
      _
    $region5: #{lenet5_forward.1} parent=1 // pred_fallthru
      _
    // Predicated region
    $region6: #{lenet5_forward.1} parent=1 // pred_check
      _
    $region7: #{lenet5_forward.1} parent=1 // pred_check_branch
      %36 = sbr.rel (0) target = $region9
    $region8: #{lenet5_forward.1} parent=1 // pred_region
      _
    $region9: #{lenet5_forward.1} parent=1 // pred_fallthru
      _
    // Predicated region
    $region10: #{lenet5_forward.1} parent=1 // pred_check
      _
    $region11: #{lenet5_forward.1} parent=1 // pred_check_branch
      %38 = sbr.rel (0) target = $region13
    $region12: #{lenet5_forward.1} parent=1 // pred_region
      _
    $region13: #{lenet5_forward.1} parent=1 // pred_fallthru
      _
    // Predicated region
    $region14: #{lenet5_forward.1} parent=1 // pred_check
      _
    $region15: #{lenet5_forward.1} parent=1 // pred_check_branch
      %40 = sbr.rel (0) target = $region17
    $region16: #{lenet5_forward.1} parent=1 // pred_region
      _
    $region17: #{lenet5_forward.1} parent=1 // pred_fallthru
      _
    // Predicated region
    $region18: #{lenet5_forward.1} parent=1 // pred_check
      _
    $region19: #{lenet5_forward.1} parent=1 // pred_check_branch
      %42 = sbr.rel (0) target = $region21
    $region20: #{lenet5_forward.1} parent=1 // pred_region
      _
    $region21: #{lenet5_forward.1} parent=1 // pred_fallthru
      _
    // Predicated region
    $region22: #{lenet5_forward.1} parent=1 // pred_check
      _
    $region23: #{lenet5_forward.1} parent=1 // pred_check_branch
      %44 = sbr.rel (0) target = $region25
    $region24: #{lenet5_forward.1} parent=1 // pred_region
      _
    $region25: #{lenet5_forward.1} parent=1 // pred_fallthru
      _
    // Predicated region
    $region26: #{lenet5_forward.1} parent=1 // pred_check
      _
    $region27: #{lenet5_forward.1} parent=1 // pred_check_branch
      %46 = sbr.rel (0) target = $region29
    $region28: #{lenet5_forward.1} parent=1 // pred_region
      _
    $region29: #{lenet5_forward.1} parent=1 // pred_fallthru
      _
    // Predicated region
    $region30: #{lenet5_forward.1} parent=1 // pred_check
      _
    $region31: #{lenet5_forward.1} parent=1 // pred_check_branch
      %48 = sbr.rel (0) target = $region33
    $region32: #{lenet5_forward.1} parent=1 // pred_region
      _
    $region33: #{lenet5_forward.1} parent=1 // pred_fallthru
      _
    // Predicated region
    $region34: #{lenet5_forward.1} parent=1 // pred_check
      _
    $region35: #{lenet5_forward.1} parent=1 // pred_check_branch
      %50 = sbr.rel (0) target = $region37
    $region36: #{lenet5_forward.1} parent=1 // pred_region
      _
    $region37: #{lenet5_forward.1} parent=1 // pred_fallthru
      _
    // Predicated region
    $region38: #{lenet5_forward.1} parent=1 // pred_check
      _
    $region39: #{lenet5_forward.1} parent=1 // pred_check_branch
      %52 = sbr.rel (0) target = $region41
    $region40: #{lenet5_forward.1} parent=1 // pred_region
      _
    $region41: #{lenet5_forward.1} parent=1 // pred_fallthru
      _
    // Predicated region
    $region42: #{lenet5_forward.1} parent=1 // pred_check
      _
    $region43: #{lenet5_forward.1} parent=1 // pred_check_branch
      %54 = sbr.rel (0) target = $region45
    $region44: #{lenet5_forward.1} parent=1 // pred_region
      _
    $region45: #{lenet5_forward.1} parent=1 // pred_fallthru
      _
    // Predicated region
    $region46: #{lenet5_forward.1} parent=1 // pred_check
      _
    $region47: #{lenet5_forward.1} parent=1 // pred_check_branch
      %56 = sbr.rel (0) target = $region49
    $region48: #{lenet5_forward.1} parent=1 // pred_region
      _
    $region49: #{lenet5_forward.1} parent=1 // pred_fallthru
      _
    // Predicated region
    $region50: #{lenet5_forward.1} parent=1 // pred_check
      _
    $region51: #{lenet5_forward.1} parent=1 // pred_check_branch
      %58 = sbr.rel (0) target = $region53
    $region52: #{lenet5_forward.1} parent=1 // pred_region
      _
    $region53: #{lenet5_forward.1} parent=1 // pred_fallthru
      _
    // Predicated region
    $region54: #{lenet5_forward.1} parent=1 // pred_check
      _
    $region55: #{lenet5_forward.1} parent=1 // pred_check_branch
      %60 = sbr.rel (0) target = $region57
    $region56: #{lenet5_forward.1} parent=1 // pred_region
      _
    $region57: #{lenet5_forward.1} parent=1 // pred_fallthru
      _
    // Predicated region
    $region58: #{lenet5_forward.1} parent=1 // pred_check
      _
    $region59: #{lenet5_forward.1} parent=1 // pred_check_branch
      %62 = sbr.rel (0) target = $region61
    $region60: #{lenet5_forward.1} parent=1 // pred_region
      _
    $region61: #{lenet5_forward.1} parent=1 // pred_fallthru
      _
    // Predicated region
    $region62: #{lenet5_forward.1} parent=1 // pred_check
      _
    $region63: #{lenet5_forward.1} parent=1 // pred_check_branch
      %64 = sbr.rel (0) target = $region65
    $region64: #{lenet5_forward.1} parent=1 // pred_region
      _
    $region65: #{lenet5_forward.1} parent=1 // pred_fallthru
      _
    // Predicated region
    $region66: #{lenet5_forward.1} parent=1 // pred_check
      _
    $region67: #{lenet5_forward.1} parent=1 // pred_check_branch
      %66 = sbr.rel (0) target = $region69
    $region68: #{lenet5_forward.1} parent=1 // pred_region
      _
    $region69: #{lenet5_forward.1} parent=1 // pred_fallthru
      _
    // Predicated region
    $region70: #{lenet5_forward.1} parent=1 // pred_check
      _
    $region71: #{lenet5_forward.1} parent=1 // pred_check_branch
      %68 = sbr.rel (0) target = $region73
    $region72: #{lenet5_forward.1} parent=1 // pred_region
      _
    $region73: #{lenet5_forward.1} parent=1 // pred_fallthru
      _
    // Predicated region
    $region74: #{lenet5_forward.1} parent=1 // pred_check
      _
    $region75: #{lenet5_forward.1} parent=1 // pred_check_branch
      %70 = sbr.rel (0) target = $region77
    $region76: #{lenet5_forward.1} parent=1 // pred_region
      _
    $region77: #{lenet5_forward.1} parent=1 // pred_fallthru
      _
    // Predicated region
    $region78: #{lenet5_forward.1} parent=1 // pred_check
      _
    $region79: #{lenet5_forward.1} parent=1 // pred_check_branch
      %72 = sbr.rel (0) target = $region81
    $region80: #{lenet5_forward.1} parent=1 // pred_region
      _
    $region81: #{lenet5_forward.1} parent=1 // pred_fallthru
      _
    // Predicated region
    $region82: #{lenet5_forward.1} parent=1 // pred_check
      _
    $region83: #{lenet5_forward.1} parent=1 // pred_check_branch
      %74 = sbr.rel (0) target = $region85
    $region84: #{lenet5_forward.1} parent=1 // pred_region
      _
    $region85: #{lenet5_forward.1} parent=1 // pred_fallthru
      _
    // Predicated region
    $region86: #{lenet5_forward.1} parent=1 // pred_check
      _
    $region87: #{lenet5_forward.1} parent=1 // pred_check_branch
      %76 = sbr.rel (0) target = $region89
    $region88: #{lenet5_forward.1} parent=1 // pred_region
      _
    $region89: #{lenet5_forward.1} parent=1 // pred_fallthru
      _
    // Predicated region
    $region90: #{lenet5_forward.1} parent=1 // pred_check
      _
    $region91: #{lenet5_forward.1} parent=1 // pred_check_branch
      %78 = sbr.rel (0) target = $region93
    $region92: #{lenet5_forward.1} parent=1 // pred_region
      _
    $region93: #{lenet5_forward.1} parent=1 // pred_fallthru
      _
    // Predicated region
    $region94: #{lenet5_forward.1} parent=1 // pred_check
      _
    $region95: #{lenet5_forward.1} parent=1 // pred_check_branch
      %80 = sbr.rel (0) target = $region97
    $region96: #{lenet5_forward.1} parent=1 // pred_region
      _
    $region97: #{lenet5_forward.1} parent=1 // pred_fallthru
      _
    // Predicated region
    $region98: #{lenet5_forward.1} parent=1 // pred_check
      _
    $region99: #{lenet5_forward.1} parent=1 // pred_check_branch
      %82 = sbr.rel (0) target = $region101
    $region100: #{lenet5_forward.1} parent=1 // pred_region
      _
    $region101: #{lenet5_forward.1} parent=1 // pred_fallthru
      _
    // Predicated region
    $region102: #{lenet5_forward.1} parent=1 // pred_check
      _
    $region103: #{lenet5_forward.1} parent=1 // pred_check_branch
      %84 = sbr.rel (0) target = $region105
    $region104: #{lenet5_forward.1} parent=1 // pred_region
      _
    $region105: #{lenet5_forward.1} parent=1 // pred_fallthru
      _
    // Predicated region
    $region106: #{lenet5_forward.1} parent=1 // pred_check
      _
    $region107: #{lenet5_forward.1} parent=1 // pred_check_branch
      %86 = sbr.rel (0) target = $region109
    $region108: #{lenet5_forward.1} parent=1 // pred_region
      _
    $region109: #{lenet5_forward.1} parent=1 // pred_fallthru
      _
    %v87 = vld [vmem:[%s5] sm:$0xff]
    %v88 = vld [vmem:[%s5 + $0x8] sm:$0xff]
    %v89 = vld [vmem:[%s5 + $0x10] sm:$0xff]
    %v90 = vld [vmem:[%s5 + $0x18] sm:$0xff]
    %v91 = vld [vmem:[%s5 + $0x20] sm:$0xff]
    %v92 = vld [vmem:[%s5 + $0x28] sm:$0xff]
    %v93 = vld [vmem:[%s5 + $0x30] sm:$0xff]
    %v94 = vld [vmem:[%s5 + $0x38] sm:$0xff]
    %v95 = vld [vmem:[%s5 + $0x40] sm:$0xff]
    %v96 = vld [vmem:[%s5 + $0x48] sm:$0xff]
    %v97 = vld [vmem:[%s5 + $0x50] sm:$0xff]
    %v98 = vld [vmem:[%s5 + $0x58] sm:$0xff]
    %v99 = vld [vmem:[%s5 + $0x60] sm:$0xff]
    %v100 = vld [vmem:[%s5 + $0x68] sm:$0xff]
    %v101 = vld [vmem:[%s5 + $0x70] sm:$0xff]
    %v102 = vld [vmem:[%s5 + $0x78] sm:$0xff]
    %v103 = vld [vmem:[%s5 + $0x80] sm:$0xff]
    %v104 = vld [vmem:[%s5 + $0x88] sm:$0xff]
    %v105 = vld [vmem:[%s5 + $0x90] sm:$0xff]
    %v106 = vld [vmem:[%s5 + $0x98] sm:$0xff]
    %v107 = vld [vmem:[%s5 + $0xa0] sm:$0xff]
    %v108 = vld [vmem:[%s6] sm:$0xff]
    %v109 = vld [vmem:[%s6 + $0x8] sm:$0xff]
    %v110 = vld [vmem:[%s7] sm:$0xff]
    %v111 = vld [vmem:[%s7 + $0x8] sm:$0xff]
    %v112 = vld [vmem:[%s7 + $0x10] sm:$0xff]
    %v113 = vld [vmem:[%s7 + $0x18] sm:$0xff]
    %v114 = vld [vmem:[%s7 + $0x20] sm:$0xff]
    %v115 = vld [vmem:[%s7 + $0x28] sm:$0xff]
    %v116 = vld [vmem:[%s7 + $0x30] sm:$0xff]
    %v117 = vld [vmem:[%s7 + $0x38] sm:$0xff]
    %v118 = vld [vmem:[%s7 + $0x40] sm:$0xff]
    %v119 = vld [vmem:[%s7 + $0x48] sm:$0xff]
    %v120 = vld [vmem:[%s7 + $0x50] sm:$0xff]
    %v121 = vld [vmem:[%s7 + $0x58] sm:$0xff]
    %v122 = vld [vmem:[%s7 + $0x60] sm:$0xff]
    %v123 = vld [vmem:[%s7 + $0x68] sm:$0xff]
    %v124 = vld [vmem:[%s7 + $0x70] sm:$0xff]
    %v125 = vld [vmem:[%s7 + $0x78] sm:$0xff]
    %v126 = vld [vmem:[%s7 + $0x80] sm:$0xff]
    %v127 = vld [vmem:[%s7 + $0x88] sm:$0xff]
    %v128 = vld [vmem:[%s7 + $0x90] sm:$0xff]
    %v129 = vld [vmem:[%s7 + $0x98] sm:$0xff]
    %v130 = vld [vmem:[%s7 + $0xa0] sm:$0xff]
    %v131 = vld [vmem:[%s8] sm:$0xff]
    %v132 = vld [vmem:[%s8 + $0x8] sm:$0xff]
    %v133 = vld [vmem:[%s8 + $0x10] sm:$0xff]
    %v134 = vld [vmem:[%s8 + $0x18] sm:$0xff]
    %v135 = vld [vmem:[%s8 + $0x20] sm:$0xff]
    %v136 = vld [vmem:[%s8 + $0x28] sm:$0xff]
    %v137 = vld [vmem:[%s8 + $0x30] sm:$0xff]
    %v138 = vld [vmem:[%s8 + $0x38] sm:$0xff]
    %v139 = vld [vmem:[%s8 + $0x40] sm:$0xff]
    %v140 = vld [vmem:[%s8 + $0x48] sm:$0xff]
    %v141 = vld [vmem:[%s8 + $0x50] sm:$0xff]
    %v142 = vld [vmem:[%s8 + $0x58] sm:$0xff]
    %v143 = vld [vmem:[%s8 + $0x60] sm:$0xff]
    %v144 = vld [vmem:[%s8 + $0x68] sm:$0xff]
    %v145 = vld [vmem:[%s8 + $0x70] sm:$0xff]
    %v146 = vld [vmem:[%s8 + $0x78] sm:$0xff]
    %v147 = vld [vmem:[%s8 + $0x80] sm:$0xff]
    %v148 = vld [vmem:[%s8 + $0x88] sm:$0xff]
    %v149 = vld [vmem:[%s8 + $0x90] sm:$0xff]
    %v150 = vld [vmem:[%s8 + $0x98] sm:$0xff]
    %v151 = vld [vmem:[%s8 + $0xa0] sm:$0xff]
    %v152 = vld [vmem:[%s9] sm:$0xff]
    %v153 = vld [vmem:[%s9 + $0x8] sm:$0x3f]
    %v154 = vld [vmem:[%s10] sm:$0xff]
    %v155 = vld [vmem:[%s10 + $0x8] sm:$0x3f]
    %v156 = vld [vmem:[%s15] sm:$0xff]
    %v157 = vld [vmem:[%s15 + $0x8] sm:$0xff]
    %v158 = vld [vmem:[%s15 + $0x10] sm:$0xff]
    %v159 = vld [vmem:[%s15 + $0x18] sm:$0xff]
    %v160 = vld [vmem:[%s15 + $0x20] sm:$0xff]
    %v161 = vld [vmem:[%s15 + $0x28] sm:$0xff]
    %v162 = vld [vmem:[%s15 + $0x30] sm:$0xff]
    %v163 = vld [vmem:[%s15 + $0x38] sm:$0xff]
    %v164 = vld [vmem:[%s15 + $0x40] sm:$0xff]
    %v165 = vld [vmem:[%s15 + $0x48] sm:$0xff]
    %v166 = vld [vmem:[%s15 + $0x50] sm:$0xff]
    %v167 = vld [vmem:[%s15 + $0x58] sm:$0xff]
    %v168 = vld [vmem:[%s15 + $0x60] sm:$0xff]
    %v169 = vld [vmem:[%s15 + $0x68] sm:$0xff]
    %v170 = vld [vmem:[%s15 + $0x70] sm:$0xff]
    %v171 = vld [vmem:[%s15 + $0x78] sm:$0xff]
    %v172 = vld [vmem:[%s15 + $0x80] sm:$0xff]
    %v173 = vld [vmem:[%s15 + $0x88] sm:$0xff]
    %v174 = vld [vmem:[%s15 + $0x90] sm:$0xff]
    %v175 = vld [vmem:[%s15 + $0x98] sm:$0xff]
    %v176 = vld [vmem:[%s16] sm:$0xff]
    %v177 = vld [vmem:[%s16 + $0x8] sm:$0xff]
    %v178 = vld [vmem:[%s16 + $0x10] sm:$0xff]
    %v179 = vld [vmem:[%s16 + $0x18] sm:$0xff]
    %v180 = vld [vmem:[%s17] sm:$0xff]
    %v181 = vld [vmem:[%s17 + $0x8] sm:$0xff]
    %v182 = vld [vmem:[%s17 + $0x10] sm:$0xff]
    %v183 = vld [vmem:[%s17 + $0x18] sm:$0xff]
    %v184 = vld [vmem:[%s17 + $0x20] sm:$0xff]
    %v185 = vld [vmem:[%s17 + $0x28] sm:$0xff]
    %v186 = vld [vmem:[%s17 + $0x30] sm:$0xff]
    %v187 = vld [vmem:[%s17 + $0x38] sm:$0xff]
    %v188 = vld [vmem:[%s17 + $0x40] sm:$0xff]
    %v189 = vld [vmem:[%s17 + $0x48] sm:$0xff]
    %v190 = vld [vmem:[%s17 + $0x50] sm:$0xff]
    %v191 = vld [vmem:[%s17 + $0x58] sm:$0xff]
    %v192 = vld [vmem:[%s17 + $0x60] sm:$0xff]
    %v193 = vld [vmem:[%s17 + $0x68] sm:$0xff]
    %v194 = vld [vmem:[%s17 + $0x70] sm:$0xff]
    %v195 = vld [vmem:[%s17 + $0x78] sm:$0xff]
    %v196 = vld [vmem:[%s17 + $0x80] sm:$0xff]
    %v197 = vld [vmem:[%s17 + $0x88] sm:$0xff]
    %v198 = vld [vmem:[%s17 + $0x90] sm:$0xff]
    %v199 = vld [vmem:[%s17 + $0x98] sm:$0xff]
    %v200 = vld [vmem:[%s18] sm:$0xff]
    %v201 = vld [vmem:[%s18 + $0x8] sm:$0xff]
    %v202 = vld [vmem:[%s18 + $0x10] sm:$0xff]
    %v203 = vld [vmem:[%s18 + $0x18] sm:$0xff]
    %v204 = vld [vmem:[%s18 + $0x20] sm:$0xff]
    %v205 = vld [vmem:[%s18 + $0x28] sm:$0xff]
    %v206 = vld [vmem:[%s18 + $0x30] sm:$0xff]
    %v207 = vld [vmem:[%s18 + $0x38] sm:$0xff]
    %v208 = vld [vmem:[%s18 + $0x40] sm:$0xff]
    %v209 = vld [vmem:[%s18 + $0x48] sm:$0xff]
    %v210 = vld [vmem:[%s18 + $0x50] sm:$0xff]
    %v211 = vld [vmem:[%s18 + $0x58] sm:$0xff]
    %v212 = vld [vmem:[%s18 + $0x60] sm:$0xff]
    %v213 = vld [vmem:[%s18 + $0x68] sm:$0xff]
    %v214 = vld [vmem:[%s18 + $0x70] sm:$0xff]
    %v215 = vld [vmem:[%s18 + $0x78] sm:$0xff]
    %v216 = vld [vmem:[%s18 + $0x80] sm:$0xff]
    %v217 = vld [vmem:[%s18 + $0x88] sm:$0xff]
    %v218 = vld [vmem:[%s18 + $0x90] sm:$0xff]
    %v219 = vld [vmem:[%s18 + $0x98] sm:$0xff]
    %v220 = vld [vmem:[%s19] sm:$0x1f]
    %v221 = vld [vmem:[%s20] sm:$0x1f]
    %v222 = vld [vmem:[%s0] sm:$0xff]
    %v223 = vld [vmem:[%s0 + $0x8] sm:$0xff]
    %v224 = vld [vmem:[%s0 + $0x10] sm:$0xff]
    %v225 = vld [vmem:[%s0 + $0x18] sm:$0xff]
    %v226 = vld [vmem:[%s1] sm:$0xff]
    %v227 = vld [vmem:[%s1 + $0x8] sm:$0xff]
    %v228 = vld [vmem:[%s1 + $0x10] sm:$0xff]
    %v229 = vld [vmem:[%s1 + $0x18] sm:$0xff]
    %v230 = vld [vmem:[%s1 + $0x20] sm:$0xff]
    %v231 = vld [vmem:[%s1 + $0x28] sm:$0xff]
    %v232 = vld [vmem:[%s1 + $0x30] sm:$0xff]
    %v233 = vld [vmem:[%s1 + $0x38] sm:$0xff]
    %s234 = scalar_lea.vmem %s1, 64
    %v235 = vld [vmem:[%s234] sm:$0xff]
    %v236 = vld [vmem:[%s234 + $0x8] sm:$0xff]
    %v237 = vld [vmem:[%s234 + $0x10] sm:$0xff]
    %v238 = vld [vmem:[%s234 + $0x18] sm:$0xff]
    %v239 = vld [vmem:[%s234 + $0x20] sm:$0xff]
    %v240 = vld [vmem:[%s234 + $0x28] sm:$0xff]
    %v241 = vld [vmem:[%s234 + $0x30] sm:$0xff]
    %v242 = vld [vmem:[%s234 + $0x38] sm:$0xff]
    %vm247 = vcmask 1046528
    %v248 = vrot.slane %v222, 1
    %v249 = vrot.slane %v223, 1
    %v250 = vsel %vm247, %v248, %v249
    %v251 = vrot.slane %v224, 1
    %v252 = vsel %vm247, %v249, %v251
    %v253 = vrot.slane %v225, 1
    %v254 = vsel %vm247, %v251, %v253
    %vm255 = vcmask 261120
    %v256 = vsel %vm255, %v250, 0
    %v258 = vsel %vm255, %v252, 0
    %v260 = vsel %vm255, %v254, 0
    %v262 = vsel %vm255, %v253, 0
    %264 = vmatprep.subr.mxu0 %v236
    %265 = vmatpush1.msra.mxu0 %v235
    %266 = vmatprep.subr.mxu0 %v238
    %267 = vmatpush1.msra.mxu0 %v237
    %268 = vmatprep.subr.mxu0 %v240
    %269 = vmatpush1.msra.mxu0 %v239
    %270 = vmatprep.subr.mxu0 %v242
    %271 = vmatpush1.msra.mxu0 %v241
    %272 = vmatprep.subr.mxu0 0.0
    %273 = vmatpush1.msra.mxu0 0.0
    %274 = vmatprep.subr.mxu0 0.0
    %275 = vmatpush1.msra.mxu0 0.0
    %276 = vmatprep.subr.mxu0 0.0
    %277 = vmatpush1.msra.mxu0 0.0
    %278 = vmatprep.subr.mxu0 0.0
    %279 = vmatpush1.msra.mxu0 0.0
    %280 = vmatprep.subr.mxu0 0.0
    %281 = vmatpush1.msra.mxu0 0.0
    %282 = vmatprep.subr.mxu0 0.0
    %283 = vmatpush1.msra.mxu0 0.0
    %284 = vmatprep.subr.mxu0 0.0
    %285 = vmatpush1.msra.mxu0 0.0
    %286 = vmatprep.subr.mxu0 0.0
    %287 = vmatpush1.msra.mxu0 0.0
    %288 = vmatprep.subr.mxu0 0.0
    %289 = vmatpush1.msra.mxu0 0.0
    %290 = vmatprep.subr.mxu0 0.0
    %291 = vmatpush1.msra.mxu0 0.0
    %292 = vmatprep.subr.mxu0 0.0
    %293 = vmatpush1.msra.mxu0 0.0
    %294 = vmatprep.subr.mxu0 0.0
    %295 = vmatpush1.msra.mxu0 0.0
    %296 = vmatprep.subr.mxu0 0.0
    %297 = vmatpush1.msra.mxu0 0.0
    %298 = vmatprep.subr.mxu0 0.0
    %299 = vmatpush1.msra.mxu0 0.0
    %300 = vmatprep.subr.mxu0 0.0
    %301 = vmatpush1.msra.mxu0 0.0
    %302 = vmatprep.subr.mxu0 0.0
    %303 = vmatpush1.msra.mxu0 0.0
    %304 = vmatprep.subr.mxu0 0.0
    %305 = vmatpush1.msra.mxu0 0.0
    %306 = vmatprep.subr.mxu0 0.0
    %307 = vmatpush1.msra.mxu0 0.0
    %308 = vmatprep.subr.mxu0 0.0
    %309 = vmatpush1.msra.mxu0 0.0
    %310 = vmatprep.subr.mxu0 0.0
    %311 = vmatpush1.msra.mxu0 0.0
    %312 = vmatprep.subr.mxu0 0.0
    %313 = vmatpush1.msra.mxu0 0.0
    %314 = vmatprep.subr.mxu0 0.0
    %315 = vmatpush1.msra.mxu0 0.0
    %316 = vmatprep.subr.mxu0 0.0
    %317 = vmatpush1.msra.mxu0 0.0
    %318 = vmatprep.subr.mxu0 0.0
    %319 = vmatpush1.msra.mxu0 0.0
    %320 = vmatprep.subr.mxu0 0.0
    %321 = vmatpush1.msra.mxu0 0.0
    %322 = vmatprep.subr.mxu0 0.0
    %323 = vmatpush1.msra.mxu0 0.0
    %324 = vmatprep.subr.mxu0 0.0
    %325 = vmatpush1.msra.mxu0 0.0
    %326 = vmatprep.subr.mxu0 0.0
    %327 = vmatpush1.msra.mxu0 0.0
    %328 = vmatprep.mubr.f32.mxu0 0.0
    %329 = vmatmul.mubr.f32.gmra.mrb[0].mxu0 %v256
    %v330 = vpop.f32.mrb[0].mxu0
    %v331 = vadd.f32 0.0, %v330
    %v332 = vpop.f32.mrb[0].mxu0
    %v333 = vadd.f32 0.0, %v332
    %334 = vmatprep.mubr.f32.mxu0 0.0
    %335 = vmatmul.mubr.f32.gmra.mrb[0].mxu0 %v258
    %v336 = vpop.f32.mrb[0].mxu0
    %v337 = vadd.f32 0.0, %v336
    %v338 = vpop.f32.mrb[0].mxu0
    %v339 = vadd.f32 0.0, %v338
    %340 = vmatprep.mubr.f32.mxu0 0.0
    %341 = vmatmul.mubr.f32.gmra.mrb[0].mxu0 %v260
    %v342 = vpop.f32.mrb[0].mxu0
    %v343 = vadd.f32 0.0, %v342
    %v344 = vpop.f32.mrb[0].mxu0
    %v345 = vadd.f32 0.0, %v344
    %346 = vmatprep.mubr.f32.mxu0 0.0
    %347 = vmatmul.mubr.f32.gmra.mrb[0].mxu0 %v262
    %v348 = vpop.f32.mrb[0].mxu0
    %v349 = vadd.f32 0.0, %v348
    %v350 = vpop.f32.mrb[0].mxu0
    %v351 = vadd.f32 0.0, %v350
    %352 = vdwg.mxu0
    %v353 = vsel %vm255, %v222, 0
    %v355 = vsel %vm255, %v223, 0
    %v357 = vsel %vm255, %v224, 0
    %v359 = vsel %vm255, %v225, 0
    %361 = vmatprep.subr.mxu0 %v227
    %362 = vmatpush1.msra.mxu0 %v226
    %363 = vmatprep.subr.mxu0 %v229
    %364 = vmatpush1.msra.mxu0 %v228
    %365 = vmatprep.subr.mxu0 %v231
    %366 = vmatpush1.msra.mxu0 %v230
    %367 = vmatprep.subr.mxu0 %v233
    %368 = vmatpush1.msra.mxu0 %v232
    %369 = vmatprep.subr.mxu0 0.0
    %370 = vmatpush1.msra.mxu0 0.0
    %371 = vmatprep.subr.mxu0 0.0
    %372 = vmatpush1.msra.mxu0 0.0
    %373 = vmatprep.subr.mxu0 0.0
    %374 = vmatpush1.msra.mxu0 0.0
    %375 = vmatprep.subr.mxu0 0.0
    %376 = vmatpush1.msra.mxu0 0.0
    %377 = vmatprep.subr.mxu0 0.0
    %378 = vmatpush1.msra.mxu0 0.0
    %379 = vmatprep.subr.mxu0 0.0
    %380 = vmatpush1.msra.mxu0 0.0
    %381 = vmatprep.subr.mxu0 0.0
    %382 = vmatpush1.msra.mxu0 0.0
    %383 = vmatprep.subr.mxu0 0.0
    %384 = vmatpush1.msra.mxu0 0.0
    %385 = vmatprep.subr.mxu0 0.0
    %386 = vmatpush1.msra.mxu0 0.0
    %387 = vmatprep.subr.mxu0 0.0
    %388 = vmatpush1.msra.mxu0 0.0
    %389 = vmatprep.subr.mxu0 0.0
    %390 = vmatpush1.msra.mxu0 0.0
    %391 = vmatprep.subr.mxu0 0.0
    %392 = vmatpush1.msra.mxu0 0.0
    %393 = vmatprep.subr.mxu0 0.0
    %394 = vmatpush1.msra.mxu0 0.0
    %395 = vmatprep.subr.mxu0 0.0
    %396 = vmatpush1.msra.mxu0 0.0
    %397 = vmatprep.subr.mxu0 0.0
    %398 = vmatpush1.msra.mxu0 0.0
    %399 = vmatprep.subr.mxu0 0.0
    %400 = vmatpush1.msra.mxu0 0.0
    %401 = vmatprep.subr.mxu0 0.0
    %402 = vmatpush1.msra.mxu0 0.0
    %403 = vmatprep.subr.mxu0 0.0
    %404 = vmatpush1.msra.mxu0 0.0
    %405 = vmatprep.subr.mxu0 0.0
    %406 = vmatpush1.msra.mxu0 0.0
    %407 = vmatprep.subr.mxu0 0.0
    %408 = vmatpush1.msra.mxu0 0.0
    %409 = vmatprep.subr.mxu0 0.0
    %410 = vmatpush1.msra.mxu0 0.0
    %411 = vmatprep.subr.mxu0 0.0
    %412 = vmatpush1.msra.mxu0 0.0
    %413 = vmatprep.subr.mxu0 0.0
    %414 = vmatpush1.msra.mxu0 0.0
    %415 = vmatprep.subr.mxu0 0.0
    %416 = vmatpush1.msra.mxu0 0.0
    %417 = vmatprep.subr.mxu0 0.0
    %418 = vmatpush1.msra.mxu0 0.0
    %419 = vmatprep.subr.mxu0 0.0
    %420 = vmatpush1.msra.mxu0 0.0
    %421 = vmatprep.subr.mxu0 0.0
    %422 = vmatpush1.msra.mxu0 0.0
    %423 = vmatprep.subr.mxu0 0.0
    %424 = vmatpush1.msra.mxu0 0.0
    %425 = vmatprep.mubr.f32.mxu0 0.0
    %426 = vmatmul.mubr.f32.gmra.mrb[0].mxu0 %v353
    %v427 = vpop.f32.mrb[0].mxu0
    %v428 = vadd.f32 %v331, %v427
    %v429 = vpop.f32.mrb[0].mxu0
    %v430 = vadd.f32 %v333, %v429
    %431 = vmatprep.mubr.f32.mxu0 0.0
    %432 = vmatmul.mubr.f32.gmra.mrb[0].mxu0 %v355
    %v433 = vpop.f32.mrb[0].mxu0
    %v434 = vadd.f32 %v337, %v433
    %v435 = vpop.f32.mrb[0].mxu0
    %v436 = vadd.f32 %v339, %v435
    %437 = vmatprep.mubr.f32.mxu0 0.0
    %438 = vmatmul.mubr.f32.gmra.mrb[0].mxu0 %v357
    %v439 = vpop.f32.mrb[0].mxu0
    %v440 = vadd.f32 %v343, %v439
    %v441 = vpop.f32.mrb[0].mxu0
    %v442 = vadd.f32 %v345, %v441
    %443 = vmatprep.mubr.f32.mxu0 0.0
    %444 = vmatmul.mubr.f32.gmra.mrb[0].mxu0 %v359
    %v445 = vpop.f32.mrb[0].mxu0
    %v446 = vadd.f32 %v349, %v445
    %v447 = vpop.f32.mrb[0].mxu0
    %v448 = vadd.f32 %v351, %v447
    %449 = vdwg.mxu0
    %s450 = scalar_lea.vmem %s1, 128
    %v451 = vld [vmem:[%s450] sm:$0xff]
    %v452 = vld [vmem:[%s450 + $0x8] sm:$0xff]
    %v453 = vld [vmem:[%s450 + $0x10] sm:$0xff]
    %v454 = vld [vmem:[%s450 + $0x18] sm:$0xff]
    %v455 = vld [vmem:[%s450 + $0x20] sm:$0xff]
    %v456 = vld [vmem:[%s450 + $0x28] sm:$0xff]
    %v457 = vld [vmem:[%s450 + $0x30] sm:$0xff]
    %v458 = vld [vmem:[%s450 + $0x38] sm:$0xff]
    %vm459 = vcmask 1045504
    %v460 = vrot.slane %v222, 2
    %v461 = vrot.slane %v223, 2
    %v462 = vsel %vm459, %v460, %v461
    %v463 = vrot.slane %v224, 2
    %v464 = vsel %vm459, %v461, %v463
    %v465 = vrot.slane %v225, 2
    %v466 = vsel %vm459, %v463, %v465
    %v467 = vsel %vm255, %v462, 0
    %v469 = vsel %vm255, %v464, 0
    %v471 = vsel %vm255, %v466, 0
    %v473 = vsel %vm255, %v465, 0
    %475 = vmatprep.subr.mxu0 %v452
    %476 = vmatpush1.msra.mxu0 %v451
    %477 = vmatprep.subr.mxu0 %v454
    %478 = vmatpush1.msra.mxu0 %v453
    %479 = vmatprep.subr.mxu0 %v456
    %480 = vmatpush1.msra.mxu0 %v455
    %481 = vmatprep.subr.mxu0 %v458
    %482 = vmatpush1.msra.mxu0 %v457
    %483 = vmatprep.subr.mxu0 0.0
    %484 = vmatpush1.msra.mxu0 0.0
    %485 = vmatprep.subr.mxu0 0.0
    %486 = vmatpush1.msra.mxu0 0.0
    %487 = vmatprep.subr.mxu0 0.0
    %488 = vmatpush1.msra.mxu0 0.0
    %489 = vmatprep.subr.mxu0 0.0
    %490 = vmatpush1.msra.mxu0 0.0
    %491 = vmatprep.subr.mxu0 0.0
    %492 = vmatpush1.msra.mxu0 0.0
    %493 = vmatprep.subr.mxu0 0.0
    %494 = vmatpush1.msra.mxu0 0.0
    %495 = vmatprep.subr.mxu0 0.0
    %496 = vmatpush1.msra.mxu0 0.0
    %497 = vmatprep.subr.mxu0 0.0
    %498 = vmatpush1.msra.mxu0 0.0
    %499 = vmatprep.subr.mxu0 0.0
    %500 = vmatpush1.msra.mxu0 0.0
    %501 = vmatprep.subr.mxu0 0.0
    %502 = vmatpush1.msra.mxu0 0.0
    %503 = vmatprep.subr.mxu0 0.0
    %504 = vmatpush1.msra.mxu0 0.0
    %505 = vmatprep.subr.mxu0 0.0
    %506 = vmatpush1.msra.mxu0 0.0
    %507 = vmatprep.subr.mxu0 0.0
    %508 = vmatpush1.msra.mxu0 0.0
    %509 = vmatprep.subr.mxu0 0.0
    %510 = vmatpush1.msra.mxu0 0.0
    %511 = vmatprep.subr.mxu0 0.0
    %512 = vmatpush1.msra.mxu0 0.0
    %513 = vmatprep.subr.mxu0 0.0
    %514 = vmatpush1.msra.mxu0 0.0
    %515 = vmatprep.subr.mxu0 0.0
    %516 = vmatpush1.msra.mxu0 0.0
    %517 = vmatprep.subr.mxu0 0.0
    %518 = vmatpush1.msra.mxu0 0.0
    %519 = vmatprep.subr.mxu0 0.0
    %520 = vmatpush1.msra.mxu0 0.0
    %521 = vmatprep.subr.mxu0 0.0
    %522 = vmatpush1.msra.mxu0 0.0
    %523 = vmatprep.subr.mxu0 0.0
    %524 = vmatpush1.msra.mxu0 0.0
    %525 = vmatprep.subr.mxu0 0.0
    %526 = vmatpush1.msra.mxu0 0.0
    %527 = vmatprep.subr.mxu0 0.0
    %528 = vmatpush1.msra.mxu0 0.0
    %529 = vmatprep.subr.mxu0 0.0
    %530 = vmatpush1.msra.mxu0 0.0
    %531 = vmatprep.subr.mxu0 0.0
    %532 = vmatpush1.msra.mxu0 0.0
    %533 = vmatprep.subr.mxu0 0.0
    %534 = vmatpush1.msra.mxu0 0.0
    %535 = vmatprep.subr.mxu0 0.0
    %536 = vmatpush1.msra.mxu0 0.0
    %537 = vmatprep.subr.mxu0 0.0
    %538 = vmatpush1.msra.mxu0 0.0
    %539 = vmatprep.mubr.f32.mxu0 0.0
    %540 = vmatmul.mubr.f32.gmra.mrb[0].mxu0 %v467
    %v541 = vpop.f32.mrb[0].mxu0
    %v542 = vadd.f32 0.0, %v541
    %v543 = vpop.f32.mrb[0].mxu0
    %v544 = vadd.f32 0.0, %v543
    %545 = vmatprep.mubr.f32.mxu0 0.0
    %546 = vmatmul.mubr.f32.gmra.mrb[0].mxu0 %v469
    %v547 = vpop.f32.mrb[0].mxu0
    %v548 = vadd.f32 0.0, %v547
    %v549 = vpop.f32.mrb[0].mxu0
    %v550 = vadd.f32 0.0, %v549
    %551 = vmatprep.mubr.f32.mxu0 0.0
    %552 = vmatmul.mubr.f32.gmra.mrb[0].mxu0 %v471
    %v553 = vpop.f32.mrb[0].mxu0
    %v554 = vadd.f32 0.0, %v553
    %v555 = vpop.f32.mrb[0].mxu0
    %v556 = vadd.f32 0.0, %v555
    %557 = vmatprep.mubr.f32.mxu0 0.0
    %558 = vmatmul.mubr.f32.gmra.mrb[0].mxu0 %v473
    %v559 = vpop.f32.mrb[0].mxu0
    %v560 = vadd.f32 0.0, %v559
    %v561 = vpop.f32.mrb[0].mxu0
    %v562 = vadd.f32 0.0, %v561
    %563 = vdwg.mxu0
    %v564 = vadd.f32 %v428, %v542
    %v565 = vadd.f32 %v430, %v544
    %v566 = vadd.f32 %v434, %v548
    %v567 = vadd.f32 %v436, %v550
    %v568 = vadd.f32 %v440, %v554
    %v569 = vadd.f32 %v442, %v556
    %v570 = vadd.f32 %v446, %v560
    %v571 = vadd.f32 %v448, %v562
    %s572 = scalar_lea.vmem %s1, 192
    %v573 = vld [vmem:[%s572] sm:$0xff]
    %v574 = vld [vmem:[%s572 + $0x8] sm:$0xff]
    %v575 = vld [vmem:[%s572 + $0x10] sm:$0xff]
    %v576 = vld [vmem:[%s572 + $0x18] sm:$0xff]
    %v577 = vld [vmem:[%s572 + $0x20] sm:$0xff]
    %v578 = vld [vmem:[%s572 + $0x28] sm:$0xff]
    %v579 = vld [vmem:[%s572 + $0x30] sm:$0xff]
    %v580 = vld [vmem:[%s572 + $0x38] sm:$0xff]
    %vm581 = vcmask 1044480
    %v582 = vrot.slane %v222, 3
    %v583 = vrot.slane %v223, 3
    %v584 = vsel %vm581, %v582, %v583
    %v585 = vrot.slane %v224, 3
    %v586 = vsel %vm581, %v583, %v585
    %v587 = vrot.slane %v225, 3
    %v588 = vsel %vm581, %v585, %v587
    %v589 = vsel %vm255, %v584, 0
    %v591 = vsel %vm255, %v586, 0
    %v593 = vsel %vm255, %v588, 0
    %v595 = vsel %vm255, %v587, 0
    %597 = vmatprep.subr.mxu0 %v574
    %598 = vmatpush1.msra.mxu0 %v573
    %599 = vmatprep.subr.mxu0 %v576
    %600 = vmatpush1.msra.mxu0 %v575
    %601 = vmatprep.subr.mxu0 %v578
    %602 = vmatpush1.msra.mxu0 %v577
    %603 = vmatprep.subr.mxu0 %v580
    %604 = vmatpush1.msra.mxu0 %v579
    %605 = vmatprep.subr.mxu0 0.0
    %606 = vmatpush1.msra.mxu0 0.0
    %607 = vmatprep.subr.mxu0 0.0
    %608 = vmatpush1.msra.mxu0 0.0
    %609 = vmatprep.subr.mxu0 0.0
    %610 = vmatpush1.msra.mxu0 0.0
    %611 = vmatprep.subr.mxu0 0.0
    %612 = vmatpush1.msra.mxu0 0.0
    %613 = vmatprep.subr.mxu0 0.0
    %614 = vmatpush1.msra.mxu0 0.0
    %615 = vmatprep.subr.mxu0 0.0
    %616 = vmatpush1.msra.mxu0 0.0
    %617 = vmatprep.subr.mxu0 0.0
    %618 = vmatpush1.msra.mxu0 0.0
    %619 = vmatprep.subr.mxu0 0.0
    %620 = vmatpush1.msra.mxu0 0.0
    %621 = vmatprep.subr.mxu0 0.0
    %622 = vmatpush1.msra.mxu0 0.0
    %623 = vmatprep.subr.mxu0 0.0
    %624 = vmatpush1.msra.mxu0 0.0
    %625 = vmatprep.subr.mxu0 0.0
    %626 = vmatpush1.msra.mxu0 0.0
    %627 = vmatprep.subr.mxu0 0.0
    %628 = vmatpush1.msra.mxu0 0.0
    %629 = vmatprep.subr.mxu0 0.0
    %630 = vmatpush1.msra.mxu0 0.0
    %631 = vmatprep.subr.mxu0 0.0
    %632 = vmatpush1.msra.mxu0 0.0
    %633 = vmatprep.subr.mxu0 0.0
    %634 = vmatpush1.msra.mxu0 0.0
    %635 = vmatprep.subr.mxu0 0.0
    %636 = vmatpush1.msra.mxu0 0.0
    %637 = vmatprep.subr.mxu0 0.0
    %638 = vmatpush1.msra.mxu0 0.0
    %639 = vmatprep.subr.mxu0 0.0
    %640 = vmatpush1.msra.mxu0 0.0
    %641 = vmatprep.subr.mxu0 0.0
    %642 = vmatpush1.msra.mxu0 0.0
    %643 = vmatprep.subr.mxu0 0.0
    %644 = vmatpush1.msra.mxu0 0.0
    %645 = vmatprep.subr.mxu0 0.0
    %646 = vmatpush1.msra.mxu0 0.0
    %647 = vmatprep.subr.mxu0 0.0
    %648 = vmatpush1.msra.mxu0 0.0
    %649 = vmatprep.subr.mxu0 0.0
    %650 = vmatpush1.msra.mxu0 0.0
    %651 = vmatprep.subr.mxu0 0.0
    %652 = vmatpush1.msra.mxu0 0.0
    %653 = vmatprep.subr.mxu0 0.0
    %654 = vmatpush1.msra.mxu0 0.0
    %655 = vmatprep.subr.mxu0 0.0
    %656 = vmatpush1.msra.mxu0 0.0
    %657 = vmatprep.subr.mxu0 0.0
    %658 = vmatpush1.msra.mxu0 0.0
    %659 = vmatprep.subr.mxu0 0.0
    %660 = vmatpush1.msra.mxu0 0.0
    %661 = vmatprep.mubr.f32.mxu0 0.0
    %662 = vmatmul.mubr.f32.gmra.mrb[0].mxu0 %v589
    %v663 = vpop.f32.mrb[0].mxu0
    %v664 = vadd.f32 0.0, %v663
    %v665 = vpop.f32.mrb[0].mxu0
    %v666 = vadd.f32 0.0, %v665
    %667 = vmatprep.mubr.f32.mxu0 0.0
    %668 = vmatmul.mubr.f32.gmra.mrb[0].mxu0 %v591
    %v669 = vpop.f32.mrb[0].mxu0
    %v670 = vadd.f32 0.0, %v669
    %v671 = vpop.f32.mrb[0].mxu0
    %v672 = vadd.f32 0.0, %v671
    %673 = vmatprep.mubr.f32.mxu0 0.0
    %674 = vmatmul.mubr.f32.gmra.mrb[0].mxu0 %v593
    %v675 = vpop.f32.mrb[0].mxu0
    %v676 = vadd.f32 0.0, %v675
    %v677 = vpop.f32.mrb[0].mxu0
    %v678 = vadd.f32 0.0, %v677
    %679 = vmatprep.mubr.f32.mxu0 0.0
    %680 = vmatmul.mubr.f32.gmra.mrb[0].mxu0 %v595
    %v681 = vpop.f32.mrb[0].mxu0
    %v682 = vadd.f32 0.0, %v681
    %v683 = vpop.f32.mrb[0].mxu0
    %v684 = vadd.f32 0.0, %v683
    %685 = vdwg.mxu0
    %v686 = vadd.f32 %v564, %v664
    %v687 = vadd.f32 %v565, %v666
    %v688 = vadd.f32 %v566, %v670
    %v689 = vadd.f32 %v567, %v672
    %v690 = vadd.f32 %v568, %v676
    %v691 = vadd.f32 %v569, %v678
    %v692 = vadd.f32 %v570, %v682
    %v693 = vadd.f32 %v571, %v684
    %s694 = scalar_lea.vmem %s1, 256
    %v695 = vld [vmem:[%s694] sm:$0xff]
    %v696 = vld [vmem:[%s694 + $0x8] sm:$0xff]
    %v697 = vld [vmem:[%s694 + $0x10] sm:$0xff]
    %v698 = vld [vmem:[%s694 + $0x18] sm:$0xff]
    %v699 = vld [vmem:[%s694 + $0x20] sm:$0xff]
    %v700 = vld [vmem:[%s694 + $0x28] sm:$0xff]
    %v701 = vld [vmem:[%s694 + $0x30] sm:$0xff]
    %v702 = vld [vmem:[%s694 + $0x38] sm:$0xff]
    %vm703 = vcmask 1043456
    %v704 = vrot.slane %v222, 4
    %v705 = vrot.slane %v223, 4
    %v706 = vsel %vm703, %v704, %v705
    %v707 = vrot.slane %v224, 4
    %v708 = vsel %vm703, %v705, %v707
    %v709 = vrot.slane %v225, 4
    %v710 = vsel %vm703, %v707, %v709
    %v711 = vsel %vm255, %v706, 0
    %v713 = vsel %vm255, %v708, 0
    %v715 = vsel %vm255, %v710, 0
    %v717 = vsel %vm255, %v709, 0
    %719 = vmatprep.subr.mxu0 %v696
    %720 = vmatpush1.msra.mxu0 %v695
    %721 = vmatprep.subr.mxu0 %v698
    %722 = vmatpush1.msra.mxu0 %v697
    %723 = vmatprep.subr.mxu0 %v700
    %724 = vmatpush1.msra.mxu0 %v699
    %725 = vmatprep.subr.mxu0 %v702
    %726 = vmatpush1.msra.mxu0 %v701
    %727 = vmatprep.subr.mxu0 0.0
    %728 = vmatpush1.msra.mxu0 0.0
    %729 = vmatprep.subr.mxu0 0.0
    %730 = vmatpush1.msra.mxu0 0.0
    %731 = vmatprep.subr.mxu0 0.0
    %732 = vmatpush1.msra.mxu0 0.0
    %733 = vmatprep.subr.mxu0 0.0
    %734 = vmatpush1.msra.mxu0 0.0
    %735 = vmatprep.subr.mxu0 0.0
    %736 = vmatpush1.msra.mxu0 0.0
    %737 = vmatprep.subr.mxu0 0.0
    %738 = vmatpush1.msra.mxu0 0.0
    %739 = vmatprep.subr.mxu0 0.0
    %740 = vmatpush1.msra.mxu0 0.0
    %741 = vmatprep.subr.mxu0 0.0
    %742 = vmatpush1.msra.mxu0 0.0
    %743 = vmatprep.subr.mxu0 0.0
    %744 = vmatpush1.msra.mxu0 0.0
    %745 = vmatprep.subr.mxu0 0.0
    %746 = vmatpush1.msra.mxu0 0.0
    %747 = vmatprep.subr.mxu0 0.0
    %748 = vmatpush1.msra.mxu0 0.0
    %749 = vmatprep.subr.mxu0 0.0
    %750 = vmatpush1.msra.mxu0 0.0
    %751 = vmatprep.subr.mxu0 0.0
    %752 = vmatpush1.msra.mxu0 0.0
    %753 = vmatprep.subr.mxu0 0.0
    %754 = vmatpush1.msra.mxu0 0.0
    %755 = vmatprep.subr.mxu0 0.0
    %756 = vmatpush1.msra.mxu0 0.0
    %757 = vmatprep.subr.mxu0 0.0
    %758 = vmatpush1.msra.mxu0 0.0
    %759 = vmatprep.subr.mxu0 0.0
    %760 = vmatpush1.msra.mxu0 0.0
    %761 = vmatprep.subr.mxu0 0.0
    %762 = vmatpush1.msra.mxu0 0.0
    %763 = vmatprep.subr.mxu0 0.0
    %764 = vmatpush1.msra.mxu0 0.0
    %765 = vmatprep.subr.mxu0 0.0
    %766 = vmatpush1.msra.mxu0 0.0
    %767 = vmatprep.subr.mxu0 0.0
    %768 = vmatpush1.msra.mxu0 0.0
    %769 = vmatprep.subr.mxu0 0.0
    %770 = vmatpush1.msra.mxu0 0.0
    %771 = vmatprep.subr.mxu0 0.0
    %772 = vmatpush1.msra.mxu0 0.0
    %773 = vmatprep.subr.mxu0 0.0
    %774 = vmatpush1.msra.mxu0 0.0
    %775 = vmatprep.subr.mxu0 0.0
    %776 = vmatpush1.msra.mxu0 0.0
    %777 = vmatprep.subr.mxu0 0.0
    %778 = vmatpush1.msra.mxu0 0.0
    %779 = vmatprep.subr.mxu0 0.0
    %780 = vmatpush1.msra.mxu0 0.0
    %781 = vmatprep.subr.mxu0 0.0
    %782 = vmatpush1.msra.mxu0 0.0
    %783 = vmatprep.mubr.f32.mxu0 0.0
    %784 = vmatmul.mubr.f32.gmra.mrb[0].mxu0 %v711
    %v785 = vpop.f32.mrb[0].mxu0
    %v786 = vadd.f32 0.0, %v785
    %v787 = vpop.f32.mrb[0].mxu0
    %v788 = vadd.f32 0.0, %v787
    %789 = vmatprep.mubr.f32.mxu0 0.0
    %790 = vmatmul.mubr.f32.gmra.mrb[0].mxu0 %v713
    %v791 = vpop.f32.mrb[0].mxu0
    %v792 = vadd.f32 0.0, %v791
    %v793 = vpop.f32.mrb[0].mxu0
    %v794 = vadd.f32 0.0, %v793
    %795 = vmatprep.mubr.f32.mxu0 0.0
    %796 = vmatmul.mubr.f32.gmra.mrb[0].mxu0 %v715
    %v797 = vpop.f32.mrb[0].mxu0
    %v798 = vadd.f32 0.0, %v797
    %v799 = vpop.f32.mrb[0].mxu0
    %v800 = vadd.f32 0.0, %v799
    %801 = vmatprep.mubr.f32.mxu0 0.0
    %802 = vmatmul.mubr.f32.gmra.mrb[0].mxu0 %v717
    %v803 = vpop.f32.mrb[0].mxu0
    %v804 = vadd.f32 0.0, %v803
    %v805 = vpop.f32.mrb[0].mxu0
    %v806 = vadd.f32 0.0, %v805
    %807 = vdwg.mxu0
    %v808 = vadd.f32 %v686, %v786
    %v809 = vadd.f32 %v687, %v788
    %v810 = vadd.f32 %v688, %v792
    %v811 = vadd.f32 %v689, %v794
    %v812 = vadd.f32 %v690, %v798
    %v813 = vadd.f32 %v691, %v800
    %v814 = vadd.f32 %v692, %v804
    %v815 = vadd.f32 %v693, %v806
    %v816 = vld [vmem:[%s2] sm:$0x3]
    %v818 = vlaneseq
    %v819 = vshrl.u32 %v818, 7
    %v820 = vsub.s32 0, %v819
    %v821 = vrot.slane %v816, %v820
    %v822 = vlaneseq
    %v823 = vshrl.u32 %v822, 7
    %v824 = vsub.s32 1, %v823
    %v825 = vrot.slane %v816, %v824
    %v828 = vadd.f32 %v808, %v821
    %v829 = vadd.f32 %v809, %v825
    %v830 = vadd.f32 %v810, %v821
    %v831 = vadd.f32 %v811, %v825
    %v832 = vadd.f32 %v812, %v821
    %v833 = vadd.f32 %v813, %v825
    %v834 = vadd.f32 %v814, %v821
    %v835 = vadd.f32 %v815, %v825
    %s836 = scalar_lea.vmem %s0, 32
    %v837 = vld [vmem:[%s836] sm:$0xff]
    %v838 = vld [vmem:[%s836 + $0x8] sm:$0xff]
    %v839 = vld [vmem:[%s836 + $0x10] sm:$0xff]
    %v840 = vld [vmem:[%s836 + $0x18] sm:$0xff]
    %v845 = vrot.slane %v837, 1
    %v846 = vrot.slane %v838, 1
    %v847 = vsel %vm247, %v845, %v846
    %v848 = vrot.slane %v839, 1
    %v849 = vsel %vm247, %v846, %v848
    %v850 = vrot.slane %v840, 1
    %v851 = vsel %vm247, %v848, %v850
    %v852 = vsel %vm255, %v847, 0
    %v854 = vsel %vm255, %v849, 0
    %v856 = vsel %vm255, %v851, 0
    %v858 = vsel %vm255, %v850, 0
    %860 = vmatprep.subr.mxu0 %v236
    %861 = vmatpush1.msra.mxu0 %v235
    %862 = vmatprep.subr.mxu0 %v238
    %863 = vmatpush1.msra.mxu0 %v237
    %864 = vmatprep.subr.mxu0 %v240
    %865 = vmatpush1.msra.mxu0 %v239
    %866 = vmatprep.subr.mxu0 %v242
    %867 = vmatpush1.msra.mxu0 %v241
    %868 = vmatprep.subr.mxu0 0.0
    %869 = vmatpush1.msra.mxu0 0.0
    %870 = vmatprep.subr.mxu0 0.0
    %871 = vmatpush1.msra.mxu0 0.0
    %872 = vmatprep.subr.mxu0 0.0
    %873 = vmatpush1.msra.mxu0 0.0
    %874 = vmatprep.subr.mxu0 0.0
    %875 = vmatpush1.msra.mxu0 0.0
    %876 = vmatprep.subr.mxu0 0.0
    %877 = vmatpush1.msra.mxu0 0.0
    %878 = vmatprep.subr.mxu0 0.0
    %879 = vmatpush1.msra.mxu0 0.0
    %880 = vmatprep.subr.mxu0 0.0
    %881 = vmatpush1.msra.mxu0 0.0
    %882 = vmatprep.subr.mxu0 0.0
    %883 = vmatpush1.msra.mxu0 0.0
    %884 = vmatprep.subr.mxu0 0.0
    %885 = vmatpush1.msra.mxu0 0.0
    %886 = vmatprep.subr.mxu0 0.0
    %887 = vmatpush1.msra.mxu0 0.0
    %888 = vmatprep.subr.mxu0 0.0
    %889 = vmatpush1.msra.mxu0 0.0
    %890 = vmatprep.subr.mxu0 0.0
    %891 = vmatpush1.msra.mxu0 0.0
    %892 = vmatprep.subr.mxu0 0.0
    %893 = vmatpush1.msra.mxu0 0.0
    %894 = vmatprep.subr.mxu0 0.0
    %895 = vmatpush1.msra.mxu0 0.0
    %896 = vmatprep.subr.mxu0 0.0
    %897 = vmatpush1.msra.mxu0 0.0
    %898 = vmatprep.subr.mxu0 0.0
    %899 = vmatpush1.msra.mxu0 0.0
    %900 = vmatprep.subr.mxu0 0.0
    %901 = vmatpush1.msra.mxu0 0.0
    %902 = vmatprep.subr.mxu0 0.0
    %903 = vmatpush1.msra.mxu0 0.0
    %904 = vmatprep.subr.mxu0 0.0
    %905 = vmatpush1.msra.mxu0 0.0
    %906 = vmatprep.subr.mxu0 0.0
    %907 = vmatpush1.msra.mxu0 0.0
    %908 = vmatprep.subr.mxu0 0.0
    %909 = vmatpush1.msra.mxu0 0.0
    %910 = vmatprep.subr.mxu0 0.0
    %911 = vmatpush1.msra.mxu0 0.0
    %912 = vmatprep.subr.mxu0 0.0
    %913 = vmatpush1.msra.mxu0 0.0
    %914 = vmatprep.subr.mxu0 0.0
    %915 = vmatpush1.msra.mxu0 0.0
    %916 = vmatprep.subr.mxu0 0.0
    %917 = vmatpush1.msra.mxu0 0.0
    %918 = vmatprep.subr.mxu0 0.0
    %919 = vmatpush1.msra.mxu0 0.0
    %920 = vmatprep.subr.mxu0 0.0
    %921 = vmatpush1.msra.mxu0 0.0
    %922 = vmatprep.subr.mxu0 0.0
    %923 = vmatpush1.msra.mxu0 0.0
    %924 = vmatprep.mubr.f32.mxu0 0.0
    %925 = vmatmul.mubr.f32.gmra.mrb[0].mxu0 %v852
    %v926 = vpop.f32.mrb[0].mxu0
    %v927 = vadd.f32 0.0, %v926
    %v928 = vpop.f32.mrb[0].mxu0
    %v929 = vadd.f32 0.0, %v928
    %930 = vmatprep.mubr.f32.mxu0 0.0
    %931 = vmatmul.mubr.f32.gmra.mrb[0].mxu0 %v854
    %v932 = vpop.f32.mrb[0].mxu0
    %v933 = vadd.f32 0.0, %v932
    %v934 = vpop.f32.mrb[0].mxu0
    %v935 = vadd.f32 0.0, %v934
    %936 = vmatprep.mubr.f32.mxu0 0.0
    %937 = vmatmul.mubr.f32.gmra.mrb[0].mxu0 %v856
    %v938 = vpop.f32.mrb[0].mxu0
    %v939 = vadd.f32 0.0, %v938
    %v940 = vpop.f32.mrb[0].mxu0
    %v941 = vadd.f32 0.0, %v940
    %942 = vmatprep.mubr.f32.mxu0 0.0
    %943 = vmatmul.mubr.f32.gmra.mrb[0].mxu0 %v858
    %v944 = vpop.f32.mrb[0].mxu0
    %v945 = vadd.f32 0.0, %v944
    %v946 = vpop.f32.mrb[0].mxu0
    %v947 = vadd.f32 0.0, %v946
    %948 = vdwg.mxu0
    %v949 = vsel %vm255, %v837, 0
    %v951 = vsel %vm255, %v838, 0
    %v953 = vsel %vm255, %v839, 0
    %v955 = vsel %vm255, %v840, 0
    %957 = vmatprep.subr.mxu0 %v227
    %958 = vmatpush1.msra.mxu0 %v226
    %959 = vmatprep.subr.mxu0 %v229
    %960 = vmatpush1.msra.mxu0 %v228
    %961 = vmatprep.subr.mxu0 %v231
    %962 = vmatpush1.msra.mxu0 %v230
    %963 = vmatprep.subr.mxu0 %v233
    %964 = vmatpush1.msra.mxu0 %v232
    %965 = vmatprep.subr.mxu0 0.0
    %966 = vmatpush1.msra.mxu0 0.0
    %967 = vmatprep.subr.mxu0 0.0
    %968 = vmatpush1.msra.mxu0 0.0
    %969 = vmatprep.subr.mxu0 0.0
    %970 = vmatpush1.msra.mxu0 0.0
    %971 = vmatprep.subr.mxu0 0.0
    %972 = vmatpush1.msra.mxu0 0.0
    %973 = vmatprep.subr.mxu0 0.0
    %974 = vmatpush1.msra.mxu0 0.0
    %975 = vmatprep.subr.mxu0 0.0
    %976 = vmatpush1.msra.mxu0 0.0
    %977 = vmatprep.subr.mxu0 0.0
    %978 = vmatpush1.msra.mxu0 0.0
    %979 = vmatprep.subr.mxu0 0.0
    %980 = vmatpush1.msra.mxu0 0.0
    %981 = vmatprep.subr.mxu0 0.0
    %982 = vmatpush1.msra.mxu0 0.0
    %983 = vmatprep.subr.mxu0 0.0
    %984 = vmatpush1.msra.mxu0 0.0
    %985 = vmatprep.subr.mxu0 0.0
    %986 = vmatpush1.msra.mxu0 0.0
    %987 = vmatprep.subr.mxu0 0.0
    %988 = vmatpush1.msra.mxu0 0.0
    %989 = vmatprep.subr.mxu0 0.0
    %990 = vmatpush1.msra.mxu0 0.0
    %991 = vmatprep.subr.mxu0 0.0
    %992 = vmatpush1.msra.mxu0 0.0
    %993 = vmatprep.subr.mxu0 0.0
    %994 = vmatpush1.msra.mxu0 0.0
    %995 = vmatprep.subr.mxu0 0.0
    %996 = vmatpush1.msra.mxu0 0.0
    %997 = vmatprep.subr.mxu0 0.0
    %998 = vmatpush1.msra.mxu0 0.0
    %999 = vmatprep.subr.mxu0 0.0
    %1000 = vmatpush1.msra.mxu0 0.0
    %1001 = vmatprep.subr.mxu0 0.0
    %1002 = vmatpush1.msra.mxu0 0.0
    %1003 = vmatprep.subr.mxu0 0.0
    %1004 = vmatpush1.msra.mxu0 0.0
    %1005 = vmatprep.subr.mxu0 0.0
    %1006 = vmatpush1.msra.mxu0 0.0
    %1007 = vmatprep.subr.mxu0 0.0
    %1008 = vmatpush1.msra.mxu0 0.0
    %1009 = vmatprep.subr.mxu0 0.0
    %1010 = vmatpush1.msra.mxu0 0.0
    %1011 = vmatprep.subr.mxu0 0.0
    %1012 = vmatpush1.msra.mxu0 0.0
    %1013 = vmatprep.subr.mxu0 0.0
    %1014 = vmatpush1.msra.mxu0 0.0
    %1015 = vmatprep.subr.mxu0 0.0
    %1016 = vmatpush1.msra.mxu0 0.0
    %1017 = vmatprep.subr.mxu0 0.0
    %1018 = vmatpush1.msra.mxu0 0.0
    %1019 = vmatprep.subr.mxu0 0.0
    %1020 = vmatpush1.msra.mxu0 0.0
    %1021 = vmatprep.mubr.f32.mxu0 0.0
    %1022 = vmatmul.mubr.f32.gmra.mrb[0].mxu0 %v949
    %v1023 = vpop.f32.mrb[0].mxu0
    %v1024 = vadd.f32 %v927, %v1023
    %v1025 = vpop.f32.mrb[0].mxu0
    %v1026 = vadd.f32 %v929, %v1025
    %1027 = vmatprep.mubr.f32.mxu0 0.0
    %1028 = vmatmul.mubr.f32.gmra.mrb[0].mxu0 %v951
    %v1029 = vpop.f32.mrb[0].mxu0
    %v1030 = vadd.f32 %v933, %v1029
    %v1031 = vpop.f32.mrb[0].mxu0
    %v1032 = vadd.f32 %v935, %v1031
    %1033 = vmatprep.mubr.f32.mxu0 0.0
    %1034 = vmatmul.mubr.f32.gmra.mrb[0].mxu0 %v953
    %v1035 = vpop.f32.mrb[0].mxu0
    %v1036 = vadd.f32 %v939, %v1035
    %v1037 = vpop.f32.mrb[0].mxu0
    %v1038 = vadd.f32 %v941, %v1037
    %1039 = vmatprep.mubr.f32.mxu0 0.0
    %1040 = vmatmul.mubr.f32.gmra.mrb[0].mxu0 %v955
    %v1041 = vpop.f32.mrb[0].mxu0
    %v1042 = vadd.f32 %v945, %v1041
    %v1043 = vpop.f32.mrb[0].mxu0
    %v1044 = vadd.f32 %v947, %v1043
    %1045 = vdwg.mxu0
    %v1046 = vrot.slane %v837, 2
    %v1047 = vrot.slane %v838, 2
    %v1048 = vsel %vm459, %v1046, %v1047
    %v1049 = vrot.slane %v839, 2
    %v1050 = vsel %vm459, %v1047, %v1049
    %v1051 = vrot.slane %v840, 2
    %v1052 = vsel %vm459, %v1049, %v1051
    %v1053 = vsel %vm255, %v1048, 0
    %v1055 = vsel %vm255, %v1050, 0
    %v1057 = vsel %vm255, %v1052, 0
    %v1059 = vsel %vm255, %v1051, 0
    %1061 = vmatprep.subr.mxu0 %v452
    %1062 = vmatpush1.msra.mxu0 %v451
    %1063 = vmatprep.subr.mxu0 %v454
    %1064 = vmatpush1.msra.mxu0 %v453
    %1065 = vmatprep.subr.mxu0 %v456
    %1066 = vmatpush1.msra.mxu0 %v455
    %1067 = vmatprep.subr.mxu0 %v458
    %1068 = vmatpush1.msra.mxu0 %v457
    %1069 = vmatprep.subr.mxu0 0.0
    %1070 = vmatpush1.msra.mxu0 0.0
    %1071 = vmatprep.subr.mxu0 0.0
    %1072 = vmatpush1.msra.mxu0 0.0
    %1073 = vmatprep.subr.mxu0 0.0
    %1074 = vmatpush1.msra.mxu0 0.0
    %1075 = vmatprep.subr.mxu0 0.0
    %1076 = vmatpush1.msra.mxu0 0.0
    %1077 = vmatprep.subr.mxu0 0.0
    %1078 = vmatpush1.msra.mxu0 0.0
    %1079 = vmatprep.subr.mxu0 0.0
    %1080 = vmatpush1.msra.mxu0 0.0
    %1081 = vmatprep.subr.mxu0 0.0
    %1082 = vmatpush1.msra.mxu0 0.0
    %1083 = vmatprep.subr.mxu0 0.0
    %1084 = vmatpush1.msra.mxu0 0.0
    %1085 = vmatprep.subr.mxu0 0.0
    %1086 = vmatpush1.msra.mxu0 0.0
    %1087 = vmatprep.subr.mxu0 0.0
    %1088 = vmatpush1.msra.mxu0 0.0
    %1089 = vmatprep.subr.mxu0 0.0
    %1090 = vmatpush1.msra.mxu0 0.0
    %1091 = vmatprep.subr.mxu0 0.0
    %1092 = vmatpush1.msra.mxu0 0.0
    %1093 = vmatprep.subr.mxu0 0.0
    %1094 = vmatpush1.msra.mxu0 0.0
    %1095 = vmatprep.subr.mxu0 0.0
    %1096 = vmatpush1.msra.mxu0 0.0
    %1097 = vmatprep.subr.mxu0 0.0
    %1098 = vmatpush1.msra.mxu0 0.0
    %1099 = vmatprep.subr.mxu0 0.0
    %1100 = vmatpush1.msra.mxu0 0.0
    %1101 = vmatprep.subr.mxu0 0.0
    %1102 = vmatpush1.msra.mxu0 0.0
    %1103 = vmatprep.subr.mxu0 0.0
    %1104 = vmatpush1.msra.mxu0 0.0
    %1105 = vmatprep.subr.mxu0 0.0
    %1106 = vmatpush1.msra.mxu0 0.0
    %1107 = vmatprep.subr.mxu0 0.0
    %1108 = vmatpush1.msra.mxu0 0.0
    %1109 = vmatprep.subr.mxu0 0.0
    %1110 = vmatpush1.msra.mxu0 0.0
    %1111 = vmatprep.subr.mxu0 0.0
    %1112 = vmatpush1.msra.mxu0 0.0
    %1113 = vmatprep.subr.mxu0 0.0
    %1114 = vmatpush1.msra.mxu0 0.0
    %1115 = vmatprep.subr.mxu0 0.0
    %1116 = vmatpush1.msra.mxu0 0.0
    %1117 = vmatprep.subr.mxu0 0.0
    %1118 = vmatpush1.msra.mxu0 0.0
    %1119 = vmatprep.subr.mxu0 0.0
    %1120 = vmatpush1.msra.mxu0 0.0
    %1121 = vmatprep.subr.mxu0 0.0
    %1122 = vmatpush1.msra.mxu0 0.0
    %1123 = vmatprep.subr.mxu0 0.0
    %1124 = vmatpush1.msra.mxu0 0.0
    %1125 = vmatprep.mubr.f32.mxu0 0.0
    %1126 = vmatmul.mubr.f32.gmra.mrb[0].mxu0 %v1053
    %v1127 = vpop.f32.mrb[0].mxu0
    %v1128 = vadd.f32 0.0, %v1127
    %v1129 = vpop.f32.mrb[0].mxu0
    %v1130 = vadd.f32 0.0, %v1129
    %1131 = vmatprep.mubr.f32.mxu0 0.0
    %1132 = vmatmul.mubr.f32.gmra.mrb[0].mxu0 %v1055
    %v1133 = vpop.f32.mrb[0].mxu0
    %v1134 = vadd.f32 0.0, %v1133
    %v1135 = vpop.f32.mrb[0].mxu0
    %v1136 = vadd.f32 0.0, %v1135
    %1137 = vmatprep.mubr.f32.mxu0 0.0
    %1138 = vmatmul.mubr.f32.gmra.mrb[0].mxu0 %v1057
    %v1139 = vpop.f32.mrb[0].mxu0
    %v1140 = vadd.f32 0.0, %v1139
    %v1141 = vpop.f32.mrb[0].mxu0
    %v1142 = vadd.f32 0.0, %v1141
    %1143 = vmatprep.mubr.f32.mxu0 0.0
    %1144 = vmatmul.mubr.f32.gmra.mrb[0].mxu0 %v1059
    %v1145 = vpop.f32.mrb[0].mxu0
    %v1146 = vadd.f32 0.0, %v1145
    %v1147 = vpop.f32.mrb[0].mxu0
    %v1148 = vadd.f32 0.0, %v1147
    %1149 = vdwg.mxu0
    %v1150 = vadd.f32 %v1024, %v1128
    %v1151 = vadd.f32 %v1026, %v1130
    %v1152 = vadd.f32 %v1030, %v1134
    %v1153 = vadd.f32 %v1032, %v1136
    %v1154 = vadd.f32 %v1036, %v1140
    %v1155 = vadd.f32 %v1038, %v1142
    %v1156 = vadd.f32 %v1042, %v1146
    %v1157 = vadd.f32 %v1044, %v1148
    %v1158 = vrot.slane %v837, 3
    %v1159 = vrot.slane %v838, 3
    %v1160 = vsel %vm581, %v1158, %v1159
    %v1161 = vrot.slane %v839, 3
    %v1162 = vsel %vm581, %v1159, %v1161
    %v1163 = vrot.slane %v840, 3
    %v1164 = vsel %vm581, %v1161, %v1163
    %v1165 = vsel %vm255, %v1160, 0
    %v1167 = vsel %vm255, %v1162, 0
    %v1169 = vsel %vm255, %v1164, 0
    %v1171 = vsel %vm255, %v1163, 0
    %1173 = vmatprep.subr.mxu0 %v574
    %1174 = vmatpush1.msra.mxu0 %v573
    %1175 = vmatprep.subr.mxu0 %v576
    %1176 = vmatpush1.msra.mxu0 %v575
    %1177 = vmatprep.subr.mxu0 %v578
    %1178 = vmatpush1.msra.mxu0 %v577
    %1179 = vmatprep.subr.mxu0 %v580
    %1180 = vmatpush1.msra.mxu0 %v579
    %1181 = vmatprep.subr.mxu0 0.0
    %1182 = vmatpush1.msra.mxu0 0.0
    %1183 = vmatprep.subr.mxu0 0.0
    %1184 = vmatpush1.msra.mxu0 0.0
    %1185 = vmatprep.subr.mxu0 0.0
    %1186 = vmatpush1.msra.mxu0 0.0
    %1187 = vmatprep.subr.mxu0 0.0
    %1188 = vmatpush1.msra.mxu0 0.0
    %1189 = vmatprep.subr.mxu0 0.0
    %1190 = vmatpush1.msra.mxu0 0.0
    %1191 = vmatprep.subr.mxu0 0.0
    %1192 = vmatpush1.msra.mxu0 0.0
    %1193 = vmatprep.subr.mxu0 0.0
    %1194 = vmatpush1.msra.mxu0 0.0
    %1195 = vmatprep.subr.mxu0 0.0
    %1196 = vmatpush1.msra.mxu0 0.0
    %1197 = vmatprep.subr.mxu0 0.0
    %1198 = vmatpush1.msra.mxu0 0.0
    %1199 = vmatprep.subr.mxu0 0.0
    %1200 = vmatpush1.msra.mxu0 0.0
    %1201 = vmatprep.subr.mxu0 0.0
    %1202 = vmatpush1.msra.mxu0 0.0
    %1203 = vmatprep.subr.mxu0 0.0
    %1204 = vmatpush1.msra.mxu0 0.0
    %1205 = vmatprep.subr.mxu0 0.0
    %1206 = vmatpush1.msra.mxu0 0.0
    %1207 = vmatprep.subr.mxu0 0.0
    %1208 = vmatpush1.msra.mxu0 0.0
    %1209 = vmatprep.subr.mxu0 0.0
    %1210 = vmatpush1.msra.mxu0 0.0
    %1211 = vmatprep.subr.mxu0 0.0
    %1212 = vmatpush1.msra.mxu0 0.0
    %1213 = vmatprep.subr.mxu0 0.0
    %1214 = vmatpush1.msra.mxu0 0.0
    %1215 = vmatprep.subr.mxu0 0.0
    %1216 = vmatpush1.msra.mxu0 0.0
    %1217 = vmatprep.subr.mxu0 0.0
    %1218 = vmatpush1.msra.mxu0 0.0
    %1219 = vmatprep.subr.mxu0 0.0
    %1220 = vmatpush1.msra.mxu0 0.0
    %1221 = vmatprep.subr.mxu0 0.0
    %1222 = vmatpush1.msra.mxu0 0.0
    %1223 = vmatprep.subr.mxu0 0.0
    %1224 = vmatpush1.msra.mxu0 0.0
    %1225 = vmatprep.subr.mxu0 0.0
    %1226 = vmatpush1.msra.mxu0 0.0
    %1227 = vmatprep.subr.mxu0 0.0
    %1228 = vmatpush1.msra.mxu0 0.0
    %1229 = vmatprep.subr.mxu0 0.0
    %1230 = vmatpush1.msra.mxu0 0.0
    %1231 = vmatprep.subr.mxu0 0.0
    %1232 = vmatpush1.msra.mxu0 0.0
    %1233 = vmatprep.subr.mxu0 0.0
    %1234 = vmatpush1.msra.mxu0 0.0
    %1235 = vmatprep.subr.mxu0 0.0
    %1236 = vmatpush1.msra.mxu0 0.0
    %1237 = vmatprep.mubr.f32.mxu0 0.0
    %1238 = vmatmul.mubr.f32.gmra.mrb[0].mxu0 %v1165
    %v1239 = vpop.f32.mrb[0].mxu0
    %v1240 = vadd.f32 0.0, %v1239
    %v1241 = vpop.f32.mrb[0].mxu0
    %v1242 = vadd.f32 0.0, %v1241
    %1243 = vmatprep.mubr.f32.mxu0 0.0
    %1244 = vmatmul.mubr.f32.gmra.mrb[0].mxu0 %v1167
    %v1245 = vpop.f32.mrb[0].mxu0
    %v1246 = vadd.f32 0.0, %v1245
    %v1247 = vpop.f32.mrb[0].mxu0
    %v1248 = vadd.f32 0.0, %v1247
    %1249 = vmatprep.mubr.f32.mxu0 0.0
    %1250 = vmatmul.mubr.f32.gmra.mrb[0].mxu0 %v1169
    %v1251 = vpop.f32.mrb[0].mxu0
    %v1252 = vadd.f32 0.0, %v1251
    %v1253 = vpop.f32.mrb[0].mxu0
    %v1254 = vadd.f32 0.0, %v1253
    %1255 = vmatprep.mubr.f32.mxu0 0.0
    %1256 = vmatmul.mubr.f32.gmra.mrb[0].mxu0 %v1171
    %v1257 = vpop.f32.mrb[0].mxu0
    %v1258 = vadd.f32 0.0, %v1257
    %v1259 = vpop.f32.mrb[0].mxu0
    %v1260 = vadd.f32 0.0, %v1259
    %1261 = vdwg.mxu0
    %v1262 = vadd.f32 %v1150, %v1240
    %v1263 = vadd.f32 %v1151, %v1242
    %v1264 = vadd.f32 %v1152, %v1246
    %v1265 = vadd.f32 %v1153, %v1248
    %v1266 = vadd.f32 %v1154, %v1252
    %v1267 = vadd.f32 %v1155, %v1254
    %v1268 = vadd.f32 %v1156, %v1258
    %v1269 = vadd.f32 %v1157, %v1260
    %v1270 = vrot.slane %v837, 4
    %v1271 = vrot.slane %v838, 4
    %v1272 = vsel %vm703, %v1270, %v1271
    %v1273 = vrot.slane %v839, 4
    %v1274 = vsel %vm703, %v1271, %v1273
    %v1275 = vrot.slane %v840, 4
    %v1276 = vsel %vm703, %v1273, %v1275
    %v1277 = vsel %vm255, %v1272, 0
    %v1279 = vsel %vm255, %v1274, 0
    %v1281 = vsel %vm255, %v1276, 0
    %v1283 = vsel %vm255, %v1275, 0
    %1285 = vmatprep.subr.mxu0 %v696
    %1286 = vmatpush1.msra.mxu0 %v695
    %1287 = vmatprep.subr.mxu0 %v698
    %1288 = vmatpush1.msra.mxu0 %v697
    %1289 = vmatprep.subr.mxu0 %v700
    %1290 = vmatpush1.msra.mxu0 %v699
    %1291 = vmatprep.subr.mxu0 %v702
    %1292 = vmatpush1.msra.mxu0 %v701
    %1293 = vmatprep.subr.mxu0 0.0
    %1294 = vmatpush1.msra.mxu0 0.0
    %1295 = vmatprep.subr.mxu0 0.0
    %1296 = vmatpush1.msra.mxu0 0.0
    %1297 = vmatprep.subr.mxu0 0.0
    %1298 = vmatpush1.msra.mxu0 0.0
    %1299 = vmatprep.subr.mxu0 0.0
    %1300 = vmatpush1.msra.mxu0 0.0
    %1301 = vmatprep.subr.mxu0 0.0
    %1302 = vmatpush1.msra.mxu0 0.0
    %1303 = vmatprep.subr.mxu0 0.0
    %1304 = vmatpush1.msra.mxu0 0.0
    %1305 = vmatprep.subr.mxu0 0.0
    %1306 = vmatpush1.msra.mxu0 0.0
    %1307 = vmatprep.subr.mxu0 0.0
    %1308 = vmatpush1.msra.mxu0 0.0
    %1309 = vmatprep.subr.mxu0 0.0
    %1310 = vmatpush1.msra.mxu0 0.0
    %1311 = vmatprep.subr.mxu0 0.0
    %1312 = vmatpush1.msra.mxu0 0.0
    %1313 = vmatprep.subr.mxu0 0.0
    %1314 = vmatpush1.msra.mxu0 0.0
    %1315 = vmatprep.subr.mxu0 0.0
    %1316 = vmatpush1.msra.mxu0 0.0
    %1317 = vmatprep.subr.mxu0 0.0
    %1318 = vmatpush1.msra.mxu0 0.0
    %1319 = vmatprep.subr.mxu0 0.0
    %1320 = vmatpush1.msra.mxu0 0.0
    %1321 = vmatprep.subr.mxu0 0.0
    %1322 = vmatpush1.msra.mxu0 0.0
    %1323 = vmatprep.subr.mxu0 0.0
    %1324 = vmatpush1.msra.mxu0 0.0
    %1325 = vmatprep.subr.mxu0 0.0
    %1326 = vmatpush1.msra.mxu0 0.0
    %1327 = vmatprep.subr.mxu0 0.0
    %1328 = vmatpush1.msra.mxu0 0.0
    %1329 = vmatprep.subr.mxu0 0.0
    %1330 = vmatpush1.msra.mxu0 0.0
    %1331 = vmatprep.subr.mxu0 0.0
    %1332 = vmatpush1.msra.mxu0 0.0
    %1333 = vmatprep.subr.mxu0 0.0
    %1334 = vmatpush1.msra.mxu0 0.0
    %1335 = vmatprep.subr.mxu0 0.0
    %1336 = vmatpush1.msra.mxu0 0.0
    %1337 = vmatprep.subr.mxu0 0.0
    %1338 = vmatpush1.msra.mxu0 0.0
    %1339 = vmatprep.subr.mxu0 0.0
    %1340 = vmatpush1.msra.mxu0 0.0
    %1341 = vmatprep.subr.mxu0 0.0
    %1342 = vmatpush1.msra.mxu0 0.0
    %1343 = vmatprep.subr.mxu0 0.0
    %1344 = vmatpush1.msra.mxu0 0.0
    %1345 = vmatprep.subr.mxu0 0.0
    %1346 = vmatpush1.msra.mxu0 0.0
    %1347 = vmatprep.subr.mxu0 0.0
    %1348 = vmatpush1.msra.mxu0 0.0
    %1349 = vmatprep.mubr.f32.mxu0 0.0
    %1350 = vmatmul.mubr.f32.gmra.mrb[0].mxu0 %v1277
    %v1351 = vpop.f32.mrb[0].mxu0
    %v1352 = vadd.f32 0.0, %v1351
    %v1353 = vpop.f32.mrb[0].mxu0
    %v1354 = vadd.f32 0.0, %v1353
    %1355 = vmatprep.mubr.f32.mxu0 0.0
    %1356 = vmatmul.mubr.f32.gmra.mrb[0].mxu0 %v1279
    %v1357 = vpop.f32.mrb[0].mxu0
    %v1358 = vadd.f32 0.0, %v1357
    %v1359 = vpop.f32.mrb[0].mxu0
    %v1360 = vadd.f32 0.0, %v1359
    %1361 = vmatprep.mubr.f32.mxu0 0.0
    %1362 = vmatmul.mubr.f32.gmra.mrb[0].mxu0 %v1281
    %v1363 = vpop.f32.mrb[0].mxu0
    %v1364 = vadd.f32 0.0, %v1363
    %v1365 = vpop.f32.mrb[0].mxu0
    %v1366 = vadd.f32 0.0, %v1365
    %1367 = vmatprep.mubr.f32.mxu0 0.0
    %1368 = vmatmul.mubr.f32.gmra.mrb[0].mxu0 %v1283
    %v1369 = vpop.f32.mrb[0].mxu0
    %v1370 = vadd.f32 0.0, %v1369
    %v1371 = vpop.f32.mrb[0].mxu0
    %v1372 = vadd.f32 0.0, %v1371
    %1373 = vdwg.mxu0
    %v1374 = vadd.f32 %v1262, %v1352
    %v1375 = vadd.f32 %v1263, %v1354
    %v1376 = vadd.f32 %v1264, %v1358
    %v1377 = vadd.f32 %v1265, %v1360
    %v1378 = vadd.f32 %v1266, %v1364
    %v1379 = vadd.f32 %v1267, %v1366
    %v1380 = vadd.f32 %v1268, %v1370
    %v1381 = vadd.f32 %v1269, %v1372
    %v1382 = vadd.f32 %v1374, %v821
    %v1383 = vadd.f32 %v1375, %v825
    %v1384 = vadd.f32 %v1376, %v821
    %v1385 = vadd.f32 %v1377, %v825
    %v1386 = vadd.f32 %v1378, %v821
    %v1387 = vadd.f32 %v1379, %v825
    %v1388 = vadd.f32 %v1380, %v821
    %v1389 = vadd.f32 %v1381, %v825
    %v1390 = vadd.f32 %v828, %v830
    %v1391 = vadd.f32 %v1390, %v832
    %v1392 = vsel %vm703, %v834, 0.0
    %v1393 = vadd.f32 %v1391, %v1392
    %v1394 = vrot.slane %v1393, 4
    %v1395 = vadd.f32 %v1393, %v1394
    %v1396 = vrot.slane %v1395, 2
    %v1397 = vadd.f32 %v1395, %v1396
    %v1398 = vrot.slane %v1397, 1
    %v1399 = vadd.f32 %v1397, %v1398
    %vm1400 = vcmask 326656
    %v1401 = vsel %vm1400, %v829, 0.0
    %v1402 = vsel %vm1400, %v831, 0.0
    %v1403 = vadd.f32 %v1401, %v1402
    %v1404 = vsel %vm1400, %v833, 0.0
    %v1405 = vadd.f32 %v1403, %v1404
    %vm1406 = vcmask 322560
    %v1407 = vsel %vm1406, %v835, 0.0
    %v1408 = vadd.f32 %v1405, %v1407
    %v1409 = vrot.slane %v1408, 4
    %v1410 = vadd.f32 %v1408, %v1409
    %v1411 = vrot.slane %v1410, 2
    %v1412 = vadd.f32 %v1410, %v1411
    %v1413 = vrot.slane %v1412, 1
    %v1414 = vadd.f32 %v1412, %v1413
    %v1415 = vadd.f32 %v1399, 0.0
    %v1416 = vadd.f32 %v1414, 0.0
    %v1417 = vmul.f32 %v828, %v828
    %v1418 = vmul.f32 %v829, %v829
    %v1419 = vmul.f32 %v830, %v830
    %v1420 = vmul.f32 %v831, %v831
    %v1421 = vmul.f32 %v832, %v832
    %v1422 = vmul.f32 %v833, %v833
    %v1423 = vmul.f32 %v834, %v834
    %v1424 = vmul.f32 %v835, %v835
    %v1425 = vadd.f32 %v1417, %v1419
    %v1426 = vadd.f32 %v1425, %v1421
    %v1427 = vsel %vm703, %v1423, 0.0
    %v1428 = vadd.f32 %v1426, %v1427
    %v1429 = vrot.slane %v1428, 4
    %v1430 = vadd.f32 %v1428, %v1429
    %v1431 = vrot.slane %v1430, 2
    %v1432 = vadd.f32 %v1430, %v1431
    %v1433 = vrot.slane %v1432, 1
    %v1434 = vadd.f32 %v1432, %v1433
    %v1435 = vsel %vm1400, %v1418, 0.0
    %v1436 = vsel %vm1400, %v1420, 0.0
    %v1437 = vadd.f32 %v1435, %v1436
    %v1438 = vsel %vm1400, %v1422, 0.0
    %v1439 = vadd.f32 %v1437, %v1438
    %v1440 = vsel %vm1406, %v1424, 0.0
    %v1441 = vadd.f32 %v1439, %v1440
    %v1442 = vrot.slane %v1441, 4
    %v1443 = vadd.f32 %v1441, %v1442
    %v1444 = vrot.slane %v1443, 2
    %v1445 = vadd.f32 %v1443, %v1444
    %v1446 = vrot.slane %v1445, 1
    %v1447 = vadd.f32 %v1445, %v1446
    %v1448 = vadd.f32 %v1434, 0.0
    %v1449 = vadd.f32 %v1447, 0.0
    %v1450 = vadd.f32 %v1382, %v1384
    %v1451 = vadd.f32 %v1450, %v1386
    %v1452 = vsel %vm703, %v1388, 0.0
    %v1453 = vadd.f32 %v1451, %v1452
    %v1454 = vrot.slane %v1453, 4
    %v1455 = vadd.f32 %v1453, %v1454
    %v1456 = vrot.slane %v1455, 2
    %v1457 = vadd.f32 %v1455, %v1456
    %v1458 = vrot.slane %v1457, 1
    %v1459 = vadd.f32 %v1457, %v1458
    %v1460 = vsel %vm1400, %v1383, 0.0
    %v1461 = vsel %vm1400, %v1385, 0.0
    %v1462 = vadd.f32 %v1460, %v1461
    %v1463 = vsel %vm1400, %v1387, 0.0
    %v1464 = vadd.f32 %v1462, %v1463
    %v1465 = vsel %vm1406, %v1389, 0.0
    %v1466 = vadd.f32 %v1464, %v1465
    %v1467 = vrot.slane %v1466, 4
    %v1468 = vadd.f32 %v1466, %v1467
    %v1469 = vrot.slane %v1468, 2
    %v1470 = vadd.f32 %v1468, %v1469
    %v1471 = vrot.slane %v1470, 1
    %v1472 = vadd.f32 %v1470, %v1471
    %v1473 = vadd.f32 %v1415, %v1459
    %v1474 = vadd.f32 %v1416, %v1472
    %v1475 = vmul.f32 %v1382, %v1382
    %v1476 = vmul.f32 %v1383, %v1383
    %v1477 = vmul.f32 %v1384, %v1384
    %v1478 = vmul.f32 %v1385, %v1385
    %v1479 = vmul.f32 %v1386, %v1386
    %v1480 = vmul.f32 %v1387, %v1387
    %v1481 = vmul.f32 %v1388, %v1388
    %v1482 = vmul.f32 %v1389, %v1389
    %v1483 = vadd.f32 %v1475, %v1477
    %v1484 = vadd.f32 %v1483, %v1479
    %v1485 = vsel %vm703, %v1481, 0.0
    %v1486 = vadd.f32 %v1484, %v1485
    %v1487 = vrot.slane %v1486, 4
    %v1488 = vadd.f32 %v1486, %v1487
    %v1489 = vrot.slane %v1488, 2
    %v1490 = vadd.f32 %v1488, %v1489
    %v1491 = vrot.slane %v1490, 1
    %v1492 = vadd.f32 %v1490, %v1491
    %v1493 = vsel %vm1400, %v1476, 0.0
    %v1494 = vsel %vm1400, %v1478, 0.0
    %v1495 = vadd.f32 %v1493, %v1494
    %v1496 = vsel %vm1400, %v1480, 0.0
    %v1497 = vadd.f32 %v1495, %v1496
    %v1498 = vsel %vm1406, %v1482, 0.0
    %v1499 = vadd.f32 %v1497, %v1498
    %v1500 = vrot.slane %v1499, 4
    %v1501 = vadd.f32 %v1499, %v1500
    %v1502 = vrot.slane %v1501, 2
    %v1503 = vadd.f32 %v1501, %v1502
    %v1504 = vrot.slane %v1503, 1
    %v1505 = vadd.f32 %v1503, %v1504
    %v1506 = vadd.f32 %v1448, %v1492
    %v1507 = vadd.f32 %v1449, %v1505
    %v1509 = vsel %vm1400, %v1474, 0
    %1511 = vmatprep.subr.mxu0 0.0
    %1512 = vmatpush1.msra.mxu0 %v87
    %1513 = vmatprep.subr.mxu0 0.0
    %1514 = vmatpush1.msra.mxu0 %v88
    %1515 = vmatprep.subr.mxu0 0.0
    %1516 = vmatpush1.msra.mxu0 %v89
    %1517 = vmatprep.subr.mxu0 0.0
    %1518 = vmatpush1.msra.mxu0 %v90
    %1519 = vmatprep.subr.mxu0 0.0
    %1520 = vmatpush1.msra.mxu0 %v91
    %1521 = vmatprep.subr.mxu0 0.0
    %1522 = vmatpush1.msra.mxu0 %v92
    %1523 = vmatprep.subr.mxu0 0.0
    %1524 = vmatpush1.msra.mxu0 %v93
    %1525 = vmatprep.subr.mxu0 0.0
    %1526 = vmatpush1.msra.mxu0 %v94
    %1527 = vmatprep.subr.mxu0 0.0
    %1528 = vmatpush1.msra.mxu0 %v95
    %1529 = vmatprep.subr.mxu0 0.0
    %1530 = vmatpush1.msra.mxu0 %v96
    %1531 = vmatprep.subr.mxu0 0.0
    %1532 = vmatpush1.msra.mxu0 %v97
    %1533 = vmatprep.subr.mxu0 0.0
    %1534 = vmatpush1.msra.mxu0 %v98
    %1535 = vmatprep.subr.mxu0 0.0
    %1536 = vmatpush1.msra.mxu0 %v99
    %1537 = vmatprep.subr.mxu0 0.0
    %1538 = vmatpush1.msra.mxu0 %v100
    %1539 = vmatprep.subr.mxu0 0.0
    %1540 = vmatpush1.msra.mxu0 %v101
    %1541 = vmatprep.subr.mxu0 0.0
    %1542 = vmatpush1.msra.mxu0 %v102
    %1543 = vmatprep.subr.mxu0 0.0
    %1544 = vmatpush1.msra.mxu0 %v103
    %1545 = vmatprep.subr.mxu0 0.0
    %1546 = vmatpush1.msra.mxu0 %v104
    %1547 = vmatprep.subr.mxu0 0.0
    %1548 = vmatpush1.msra.mxu0 %v105
    %1549 = vmatprep.subr.mxu0 0.0
    %1550 = vmatpush1.msra.mxu0 %v106
    %1551 = vmatprep.subr.mxu0 0.0
    %1552 = vmatpush1.msra.mxu0 %v107
    %1553 = vmatprep.subr.mxu0 0.0
    %1554 = vmatpush1.msra.mxu0 0.0
    %1555 = vmatprep.subr.mxu0 0.0
    %1556 = vmatpush1.msra.mxu0 0.0
    %1557 = vmatprep.subr.mxu0 0.0
    %1558 = vmatpush1.msra.mxu0 0.0
    %1559 = vmatprep.subr.mxu0 0.0
    %1560 = vmatpush1.msra.mxu0 0.0
    %1561 = vmatprep.subr.mxu0 0.0
    %1562 = vmatpush1.msra.mxu0 0.0
    %1563 = vmatprep.subr.mxu0 0.0
    %1564 = vmatpush1.msra.mxu0 0.0
    %1565 = vmatprep.subr.mxu0 0.0
    %1566 = vmatpush1.msra.mxu0 0.0
    %1567 = vmatprep.subr.mxu0 0.0
    %1568 = vmatpush1.msra.mxu0 0.0
    %1569 = vmatprep.subr.mxu0 0.0
    %1570 = vmatpush1.msra.mxu0 0.0
    %1571 = vmatprep.subr.mxu0 0.0
    %1572 = vmatpush1.msra.mxu0 0.0
    %1573 = vmatprep.subr.mxu0 0.0
    %1574 = vmatpush1.msra.mxu0 0.0
    %1575 = vmatprep.mubr.f32.mxu0 %v1509
    %1576 = vmatmul.mubr.f32.gmra.mrb[0].mxu0 %v1473
    %v1577 = vpop.f32.mrb[0].mxu0
    %v1578 = vadd.f32 0.0, %v1577
    %v1579 = vpop.f32.mrb[0].mxu0
    %1580 = vdwg.mxu0
    %v1581 = vrcp.pop 1568.0
    %v1582 = vmul.f32 %v1578, %v1581
    %v1584 = vsel %vm1400, %v1507, 0
    %1586 = vmatprep.subr.mxu0 0.0
    %1587 = vmatpush1.msra.mxu0 %v87
    %1588 = vmatprep.subr.mxu0 0.0
    %1589 = vmatpush1.msra.mxu0 %v88
    %1590 = vmatprep.subr.mxu0 0.0
    %1591 = vmatpush1.msra.mxu0 %v89
    %1592 = vmatprep.subr.mxu0 0.0
    %1593 = vmatpush1.msra.mxu0 %v90
    %1594 = vmatprep.subr.mxu0 0.0
    %1595 = vmatpush1.msra.mxu0 %v91
    %1596 = vmatprep.subr.mxu0 0.0
    %1597 = vmatpush1.msra.mxu0 %v92
    %1598 = vmatprep.subr.mxu0 0.0
    %1599 = vmatpush1.msra.mxu0 %v93
    %1600 = vmatprep.subr.mxu0 0.0
    %1601 = vmatpush1.msra.mxu0 %v94
    %1602 = vmatprep.subr.mxu0 0.0
    %1603 = vmatpush1.msra.mxu0 %v95
    %1604 = vmatprep.subr.mxu0 0.0
    %1605 = vmatpush1.msra.mxu0 %v96
    %1606 = vmatprep.subr.mxu0 0.0
    %1607 = vmatpush1.msra.mxu0 %v97
    %1608 = vmatprep.subr.mxu0 0.0
    %1609 = vmatpush1.msra.mxu0 %v98
    %1610 = vmatprep.subr.mxu0 0.0
    %1611 = vmatpush1.msra.mxu0 %v99
    %1612 = vmatprep.subr.mxu0 0.0
    %1613 = vmatpush1.msra.mxu0 %v100
    %1614 = vmatprep.subr.mxu0 0.0
    %1615 = vmatpush1.msra.mxu0 %v101
    %1616 = vmatprep.subr.mxu0 0.0
    %1617 = vmatpush1.msra.mxu0 %v102
    %1618 = vmatprep.subr.mxu0 0.0
    %1619 = vmatpush1.msra.mxu0 %v103
    %1620 = vmatprep.subr.mxu0 0.0
    %1621 = vmatpush1.msra.mxu0 %v104
    %1622 = vmatprep.subr.mxu0 0.0
    %1623 = vmatpush1.msra.mxu0 %v105
    %1624 = vmatprep.subr.mxu0 0.0
    %1625 = vmatpush1.msra.mxu0 %v106
    %1626 = vmatprep.subr.mxu0 0.0
    %1627 = vmatpush1.msra.mxu0 %v107
    %1628 = vmatprep.subr.mxu0 0.0
    %1629 = vmatpush1.msra.mxu0 0.0
    %1630 = vmatprep.subr.mxu0 0.0
    %1631 = vmatpush1.msra.mxu0 0.0
    %1632 = vmatprep.subr.mxu0 0.0
    %1633 = vmatpush1.msra.mxu0 0.0
    %1634 = vmatprep.subr.mxu0 0.0
    %1635 = vmatpush1.msra.mxu0 0.0
    %1636 = vmatprep.subr.mxu0 0.0
    %1637 = vmatpush1.msra.mxu0 0.0
    %1638 = vmatprep.subr.mxu0 0.0
    %1639 = vmatpush1.msra.mxu0 0.0
    %1640 = vmatprep.subr.mxu0 0.0
    %1641 = vmatpush1.msra.mxu0 0.0
    %1642 = vmatprep.subr.mxu0 0.0
    %1643 = vmatpush1.msra.mxu0 0.0
    %1644 = vmatprep.subr.mxu0 0.0
    %1645 = vmatpush1.msra.mxu0 0.0
    %1646 = vmatprep.subr.mxu0 0.0
    %1647 = vmatpush1.msra.mxu0 0.0
    %1648 = vmatprep.subr.mxu0 0.0
    %1649 = vmatpush1.msra.mxu0 0.0
    %1650 = vmatprep.mubr.f32.mxu0 %v1584
    %1651 = vmatmul.mubr.f32.gmra.mrb[0].mxu0 %v1506
    %v1652 = vpop.f32.mrb[0].mxu0
    %v1653 = vadd.f32 0.0, %v1652
    %v1654 = vpop.f32.mrb[0].mxu0
    %1655 = vdwg.mxu0
    %v1656 = vmul.f32 %v1653, %v1581
    %v1657 = vmul.f32 %v1582, %v1582
    %v1658 = vsub.f32 %v1656, %v1657
    %v1659 = vmax.f32 %v1658, 0.0
    %v1660 = vld [vmem:[%s3] sm:$0x1]
    %v1661 = vadd.f32 %v1659, 1e-05
    %v1662 = vrsqrt.pop %v1661
    %v1663 = vmul.f32 %v1660, %v1662
    %v1664 = vld [vmem:[%s4] sm:$0x1]
    %v1665 = vmul.f32 %v1582, %v1663
    %v1666 = vsub.f32 %v1664, %v1665
    %vm1667 = vcmask 64512
    %v1669 = vsel %vm1667, %v1663, 0
    %1671 = vmatprep.subr.mxu0 %v109
    %1672 = vmatpush1.msra.mxu0 %v108
    %1673 = vmatprep.subr.mxu0 0.0
    %1674 = vmatpush1.msra.mxu0 0.0
    %1675 = vmatprep.subr.mxu0 0.0
    %1676 = vmatpush1.msra.mxu0 0.0
    %1677 = vmatprep.subr.mxu0 0.0
    %1678 = vmatpush1.msra.mxu0 0.0
    %1679 = vmatprep.subr.mxu0 0.0
    %1680 = vmatpush1.msra.mxu0 0.0
    %1681 = vmatprep.subr.mxu0 0.0
    %1682 = vmatpush1.msra.mxu0 0.0
    %1683 = vmatprep.subr.mxu0 0.0
    %1684 = vmatpush1.msra.mxu0 0.0
    %1685 = vmatprep.subr.mxu0 0.0
    %1686 = vmatpush1.msra.mxu0 0.0
    %1687 = vmatprep.subr.mxu0 0.0
    %1688 = vmatpush1.msra.mxu0 0.0
    %1689 = vmatprep.subr.mxu0 0.0
    %1690 = vmatpush1.msra.mxu0 0.0
    %1691 = vmatprep.subr.mxu0 0.0
    %1692 = vmatpush1.msra.mxu0 0.0
    %1693 = vmatprep.subr.mxu0 0.0
    %1694 = vmatpush1.msra.mxu0 0.0
    %1695 = vmatprep.subr.mxu0 0.0
    %1696 = vmatpush1.msra.mxu0 0.0
    %1697 = vmatprep.subr.mxu0 0.0
    %1698 = vmatpush1.msra.mxu0 0.0
    %1699 = vmatprep.subr.mxu0 0.0
    %1700 = vmatpush1.msra.mxu0 0.0
    %1701 = vmatprep.subr.mxu0 0.0
    %1702 = vmatpush1.msra.mxu0 0.0
    %1703 = vmatprep.subr.mxu0 0.0
    %1704 = vmatpush1.msra.mxu0 0.0
    %1705 = vmatprep.subr.mxu0 0.0
    %1706 = vmatpush1.msra.mxu0 0.0
    %1707 = vmatprep.subr.mxu0 0.0
    %1708 = vmatpush1.msra.mxu0 0.0
    %1709 = vmatprep.subr.mxu0 0.0
    %1710 = vmatpush1.msra.mxu0 0.0
    %1711 = vmatprep.subr.mxu0 0.0
    %1712 = vmatpush1.msra.mxu0 0.0
    %1713 = vmatprep.subr.mxu0 0.0
    %1714 = vmatpush1.msra.mxu0 0.0
    %1715 = vmatprep.subr.mxu0 0.0
    %1716 = vmatpush1.msra.mxu0 0.0
    %1717 = vmatprep.subr.mxu0 0.0
    %1718 = vmatpush1.msra.mxu0 0.0
    %1719 = vmatprep.subr.mxu0 0.0
    %1720 = vmatpush1.msra.mxu0 0.0
    %1721 = vmatprep.subr.mxu0 0.0
    %1722 = vmatpush1.msra.mxu0 0.0
    %1723 = vmatprep.subr.mxu0 0.0
    %1724 = vmatpush1.msra.mxu0 0.0
    %1725 = vmatprep.subr.mxu0 0.0
    %1726 = vmatpush1.msra.mxu0 0.0
    %1727 = vmatprep.subr.mxu0 0.0
    %1728 = vmatpush1.msra.mxu0 0.0
    %1729 = vmatprep.subr.mxu0 0.0
    %1730 = vmatpush1.msra.mxu0 0.0
    %1731 = vmatprep.subr.mxu0 0.0
    %1732 = vmatpush1.msra.mxu0 0.0
    %1733 = vmatprep.subr.mxu0 0.0
    %1734 = vmatpush1.msra.mxu0 0.0
    %1735 = vmatprep.mubr.f32.mxu0 0.0
    %1736 = vmatmul.mubr.f32.gmra.mrb[0].mxu0 %v1669
    %v1737 = vpop.f32.mrb[0].mxu0
    %v1738 = vadd.f32 0.0, %v1737
    %v1739 = vpop.f32.mrb[0].mxu0
    %v1740 = vadd.f32 0.0, %v1739
    %1741 = vdwg.mxu0
    %v1743 = vsel %vm1667, %v1666, 0
    %1745 = vmatprep.subr.mxu0 %v109
    %1746 = vmatpush1.msra.mxu0 %v108
    %1747 = vmatprep.subr.mxu0 0.0
    %1748 = vmatpush1.msra.mxu0 0.0
    %1749 = vmatprep.subr.mxu0 0.0
    %1750 = vmatpush1.msra.mxu0 0.0
    %1751 = vmatprep.subr.mxu0 0.0
    %1752 = vmatpush1.msra.mxu0 0.0
    %1753 = vmatprep.subr.mxu0 0.0
    %1754 = vmatpush1.msra.mxu0 0.0
    %1755 = vmatprep.subr.mxu0 0.0
    %1756 = vmatpush1.msra.mxu0 0.0
    %1757 = vmatprep.subr.mxu0 0.0
    %1758 = vmatpush1.msra.mxu0 0.0
    %1759 = vmatprep.subr.mxu0 0.0
    %1760 = vmatpush1.msra.mxu0 0.0
    %1761 = vmatprep.subr.mxu0 0.0
    %1762 = vmatpush1.msra.mxu0 0.0
    %1763 = vmatprep.subr.mxu0 0.0
    %1764 = vmatpush1.msra.mxu0 0.0
    %1765 = vmatprep.subr.mxu0 0.0
    %1766 = vmatpush1.msra.mxu0 0.0
    %1767 = vmatprep.subr.mxu0 0.0
    %1768 = vmatpush1.msra.mxu0 0.0
    %1769 = vmatprep.subr.mxu0 0.0
    %1770 = vmatpush1.msra.mxu0 0.0
    %1771 = vmatprep.subr.mxu0 0.0
    %1772 = vmatpush1.msra.mxu0 0.0
    %1773 = vmatprep.subr.mxu0 0.0
    %1774 = vmatpush1.msra.mxu0 0.0
    %1775 = vmatprep.subr.mxu0 0.0
    %1776 = vmatpush1.msra.mxu0 0.0
    %1777 = vmatprep.subr.mxu0 0.0
    %1778 = vmatpush1.msra.mxu0 0.0
    %1779 = vmatprep.subr.mxu0 0.0
    %1780 = vmatpush1.msra.mxu0 0.0
    %1781 = vmatprep.subr.mxu0 0.0
    %1782 = vmatpush1.msra.mxu0 0.0
    %1783 = vmatprep.subr.mxu0 0.0
    %1784 = vmatpush1.msra.mxu0 0.0
    %1785 = vmatprep.subr.mxu0 0.0
    %1786 = vmatpush1.msra.mxu0 0.0
    %1787 = vmatprep.subr.mxu0 0.0
    %1788 = vmatpush1.msra.mxu0 0.0
    %1789 = vmatprep.subr.mxu0 0.0
    %1790 = vmatpush1.msra.mxu0 0.0
    %1791 = vmatprep.subr.mxu0 0.0
    %1792 = vmatpush1.msra.mxu0 0.0
    %1793 = vmatprep.subr.mxu0 0.0
    %1794 = vmatpush1.msra.mxu0 0.0
    %1795 = vmatprep.subr.mxu0 0.0
    %1796 = vmatpush1.msra.mxu0 0.0
    %1797 = vmatprep.subr.mxu0 0.0
    %1798 = vmatpush1.msra.mxu0 0.0
    %1799 = vmatprep.subr.mxu0 0.0
    %1800 = vmatpush1.msra.mxu0 0.0
    %1801 = vmatprep.subr.mxu0 0.0
    %1802 = vmatpush1.msra.mxu0 0.0
    %1803 = vmatprep.subr.mxu0 0.0
    %1804 = vmatpush1.msra.mxu0 0.0
    %1805 = vmatprep.subr.mxu0 0.0
    %1806 = vmatpush1.msra.mxu0 0.0
    %1807 = vmatprep.subr.mxu0 0.0
    %1808 = vmatpush1.msra.mxu0 0.0
    %1809 = vmatprep.mubr.f32.mxu0 0.0
    %1810 = vmatmul.mubr.f32.gmra.mrb[0].mxu0 %v1743
    %v1811 = vpop.f32.mrb[0].mxu0
    %v1812 = vadd.f32 0.0, %v1811
    %v1813 = vpop.f32.mrb[0].mxu0
    %v1814 = vadd.f32 0.0, %v1813
    %1815 = vdwg.mxu0
    %v1816 = vlaneseq
    %v1817 = vshrl.u32 %v1816, 7
    %v1818 = vsub.s32 0, %v1817
    %v1819 = vrot.slane %v1738, %v1818
    %v1820 = vlaneseq
    %v1821 = vshrl.u32 %v1820, 7
    %v1822 = vsub.s32 0, %v1821
    %v1823 = vrot.slane %v1740, %v1822
    %v1824 = vmul.f32 %v828, %v1819
    %v1825 = vmul.f32 %v829, %v1823
    %v1826 = vmul.f32 %v830, %v1819
    %v1827 = vmul.f32 %v831, %v1823
    %v1828 = vmul.f32 %v832, %v1819
    %v1829 = vmul.f32 %v833, %v1823
    %v1830 = vmul.f32 %v834, %v1819
    %v1831 = vmul.f32 %v835, %v1823
    %v1832 = vlaneseq
    %v1833 = vshrl.u32 %v1832, 7
    %v1834 = vsub.s32 0, %v1833
    %v1835 = vrot.slane %v1812, %v1834
    %v1836 = vlaneseq
    %v1837 = vshrl.u32 %v1836, 7
    %v1838 = vsub.s32 0, %v1837
    %v1839 = vrot.slane %v1814, %v1838
    %v1840 = vadd.f32 %v1824, %v1835
    %v1841 = vadd.f32 %v1825, %v1839
    %v1842 = vadd.f32 %v1826, %v1835
    %v1843 = vadd.f32 %v1827, %v1839
    %v1844 = vadd.f32 %v1828, %v1835
    %v1845 = vadd.f32 %v1829, %v1839
    %v1846 = vadd.f32 %v1830, %v1835
    %v1847 = vadd.f32 %v1831, %v1839
    %v1848 = vmax.f32 %v1840, 0.0
    %v1849 = vmax.f32 %v1841, 0.0
    %v1850 = vmax.f32 %v1842, 0.0
    %v1851 = vmax.f32 %v1843, 0.0
    %v1852 = vmax.f32 %v1844, 0.0
    %v1853 = vmax.f32 %v1845, 0.0
    %v1854 = vmax.f32 %v1846, 0.0
    %v1855 = vmax.f32 %v1847, 0.0
    %v1857 = vsel %vm1400, %v1849, 0
    %v1860 = vsel %vm1400, %v1851, 0
    %v1863 = vsel %vm1400, %v1853, 0
    %v1866 = vsel %vm1400, %v1855, 0
    %1868 = vmatprep.subr.mxu0 0.0
    %1869 = vmatpush1.msra.mxu0 %v110
    %1870 = vmatprep.subr.mxu0 0.0
    %1871 = vmatpush1.msra.mxu0 %v111
    %1872 = vmatprep.subr.mxu0 0.0
    %1873 = vmatpush1.msra.mxu0 %v112
    %1874 = vmatprep.subr.mxu0 0.0
    %1875 = vmatpush1.msra.mxu0 %v113
    %1876 = vmatprep.subr.mxu0 0.0
    %1877 = vmatpush1.msra.mxu0 %v114
    %1878 = vmatprep.subr.mxu0 0.0
    %1879 = vmatpush1.msra.mxu0 %v115
    %1880 = vmatprep.subr.mxu0 0.0
    %1881 = vmatpush1.msra.mxu0 %v116
    %1882 = vmatprep.subr.mxu0 0.0
    %1883 = vmatpush1.msra.mxu0 %v117
    %1884 = vmatprep.subr.mxu0 0.0
    %1885 = vmatpush1.msra.mxu0 %v118
    %1886 = vmatprep.subr.mxu0 0.0
    %1887 = vmatpush1.msra.mxu0 %v119
    %1888 = vmatprep.subr.mxu0 0.0
    %1889 = vmatpush1.msra.mxu0 %v120
    %1890 = vmatprep.subr.mxu0 0.0
    %1891 = vmatpush1.msra.mxu0 %v121
    %1892 = vmatprep.subr.mxu0 0.0
    %1893 = vmatpush1.msra.mxu0 %v122
    %1894 = vmatprep.subr.mxu0 0.0
    %1895 = vmatpush1.msra.mxu0 %v123
    %1896 = vmatprep.subr.mxu0 0.0
    %1897 = vmatpush1.msra.mxu0 %v124
    %1898 = vmatprep.subr.mxu0 0.0
    %1899 = vmatpush1.msra.mxu0 %v125
    %1900 = vmatprep.subr.mxu0 0.0
    %1901 = vmatpush1.msra.mxu0 %v126
    %1902 = vmatprep.subr.mxu0 0.0
    %1903 = vmatpush1.msra.mxu0 %v127
    %1904 = vmatprep.subr.mxu0 0.0
    %1905 = vmatpush1.msra.mxu0 %v128
    %1906 = vmatprep.subr.mxu0 0.0
    %1907 = vmatpush1.msra.mxu0 %v129
    %1908 = vmatprep.subr.mxu0 0.0
    %1909 = vmatpush1.msra.mxu0 %v130
    %1910 = vmatprep.subr.mxu0 0.0
    %1911 = vmatpush1.msra.mxu0 0.0
    %1912 = vmatprep.subr.mxu0 0.0
    %1913 = vmatpush1.msra.mxu0 0.0
    %1914 = vmatprep.subr.mxu0 0.0
    %1915 = vmatpush1.msra.mxu0 0.0
    %1916 = vmatprep.subr.mxu0 0.0
    %1917 = vmatpush1.msra.mxu0 0.0
    %1918 = vmatprep.subr.mxu0 0.0
    %1919 = vmatpush1.msra.mxu0 0.0
    %1920 = vmatprep.subr.mxu0 0.0
    %1921 = vmatpush1.msra.mxu0 0.0
    %1922 = vmatprep.subr.mxu0 0.0
    %1923 = vmatpush1.msra.mxu0 0.0
    %1924 = vmatprep.subr.mxu0 0.0
    %1925 = vmatpush1.msra.mxu0 0.0
    %1926 = vmatprep.subr.mxu0 0.0
    %1927 = vmatpush1.msra.mxu0 0.0
    %1928 = vmatprep.subr.mxu0 0.0
    %1929 = vmatpush1.msra.mxu0 0.0
    %1930 = vmatprep.subr.mxu0 0.0
    %1931 = vmatpush1.msra.mxu0 0.0
    %1932 = vmatprep.mubr.f32.mxu0 %v1857
    %1933 = vmatmul.mubr.f32.gmra.mrb[0].mxu0 %v1848
    %v1934 = vpop.f32.mrb[0].mxu0
    %v1935 = vadd.f32 0.0, %v1934
    %v1936 = vpop.f32.mrb[0].mxu0
    %1937 = vmatprep.mubr.f32.mxu0 %v1860
    %1938 = vmatmul.mubr.f32.gmra.mrb[0].mxu0 %v1850
    %v1939 = vpop.f32.mrb[0].mxu0
    %v1940 = vadd.f32 0.0, %v1939
    %v1941 = vpop.f32.mrb[0].mxu0
    %1942 = vmatprep.mubr.f32.mxu0 %v1863
    %1943 = vmatmul.mubr.f32.gmra.mrb[0].mxu0 %v1852
    %v1944 = vpop.f32.mrb[0].mxu0
    %v1945 = vadd.f32 0.0, %v1944
    %v1946 = vpop.f32.mrb[0].mxu0
    %1947 = vmatprep.mubr.f32.mxu0 %v1866
    %1948 = vmatmul.mubr.f32.gmra.mrb[0].mxu0 %v1854
    %v1949 = vpop.f32.mrb[0].mxu0
    %v1950 = vadd.f32 0.0, %v1949
    %v1951 = vpop.f32.mrb[0].mxu0
    %1952 = vdwg.mxu0
    %1953 = vmatprep.subr.mxu0 0.0
    %1954 = vmatpush1.msra.mxu0 %v131
    %1955 = vmatprep.subr.mxu0 0.0
    %1956 = vmatpush1.msra.mxu0 %v132
    %1957 = vmatprep.subr.mxu0 0.0
    %1958 = vmatpush1.msra.mxu0 %v133
    %1959 = vmatprep.subr.mxu0 0.0
    %1960 = vmatpush1.msra.mxu0 %v134
    %1961 = vmatprep.subr.mxu0 0.0
    %1962 = vmatpush1.msra.mxu0 %v135
    %1963 = vmatprep.subr.mxu0 0.0
    %1964 = vmatpush1.msra.mxu0 %v136
    %1965 = vmatprep.subr.mxu0 0.0
    %1966 = vmatpush1.msra.mxu0 %v137
    %1967 = vmatprep.subr.mxu0 0.0
    %1968 = vmatpush1.msra.mxu0 %v138
    %1969 = vmatprep.subr.mxu0 0.0
    %1970 = vmatpush1.msra.mxu0 %v139
    %1971 = vmatprep.subr.mxu0 0.0
    %1972 = vmatpush1.msra.mxu0 %v140
    %1973 = vmatprep.subr.mxu0 0.0
    %1974 = vmatpush1.msra.mxu0 %v141
    %1975 = vmatprep.subr.mxu0 0.0
    %1976 = vmatpush1.msra.mxu0 %v142
    %1977 = vmatprep.subr.mxu0 0.0
    %1978 = vmatpush1.msra.mxu0 %v143
    %1979 = vmatprep.subr.mxu0 0.0
    %1980 = vmatpush1.msra.mxu0 %v144
    %1981 = vmatprep.subr.mxu0 0.0
    %1982 = vmatpush1.msra.mxu0 %v145
    %1983 = vmatprep.subr.mxu0 0.0
    %1984 = vmatpush1.msra.mxu0 %v146
    %1985 = vmatprep.subr.mxu0 0.0
    %1986 = vmatpush1.msra.mxu0 %v147
    %1987 = vmatprep.subr.mxu0 0.0
    %1988 = vmatpush1.msra.mxu0 %v148
    %1989 = vmatprep.subr.mxu0 0.0
    %1990 = vmatpush1.msra.mxu0 %v149
    %1991 = vmatprep.subr.mxu0 0.0
    %1992 = vmatpush1.msra.mxu0 %v150
    %1993 = vmatprep.subr.mxu0 0.0
    %1994 = vmatpush1.msra.mxu0 %v151
    %1995 = vmatprep.subr.mxu0 0.0
    %1996 = vmatpush1.msra.mxu0 0.0
    %1997 = vmatprep.subr.mxu0 0.0
    %1998 = vmatpush1.msra.mxu0 0.0
    %1999 = vmatprep.subr.mxu0 0.0
    %2000 = vmatpush1.msra.mxu0 0.0
    %2001 = vmatprep.subr.mxu0 0.0
    %2002 = vmatpush1.msra.mxu0 0.0
    %2003 = vmatprep.subr.mxu0 0.0
    %2004 = vmatpush1.msra.mxu0 0.0
    %2005 = vmatprep.subr.mxu0 0.0
    %2006 = vmatpush1.msra.mxu0 0.0
    %2007 = vmatprep.subr.mxu0 0.0
    %2008 = vmatpush1.msra.mxu0 0.0
    %2009 = vmatprep.subr.mxu0 0.0
    %2010 = vmatpush1.msra.mxu0 0.0
    %2011 = vmatprep.subr.mxu0 0.0
    %2012 = vmatpush1.msra.mxu0 0.0
    %2013 = vmatprep.subr.mxu0 0.0
    %2014 = vmatpush1.msra.mxu0 0.0
    %2015 = vmatprep.subr.mxu0 0.0
    %2016 = vmatpush1.msra.mxu0 0.0
    %2017 = vmatprep.mubr.f32.mxu0 %v1857
    %2018 = vmatmul.mubr.f32.gmra.mrb[0].mxu0 %v1848
    %v2019 = vpop.f32.mrb[0].mxu0
    %v2020 = vadd.f32 0.0, %v2019
    %v2021 = vpop.f32.mrb[0].mxu0
    %2022 = vmatprep.mubr.f32.mxu0 %v1860
    %2023 = vmatmul.mubr.f32.gmra.mrb[0].mxu0 %v1850
    %v2024 = vpop.f32.mrb[0].mxu0
    %v2025 = vadd.f32 0.0, %v2024
    %v2026 = vpop.f32.mrb[0].mxu0
    %2027 = vmatprep.mubr.f32.mxu0 %v1863
    %2028 = vmatmul.mubr.f32.gmra.mrb[0].mxu0 %v1852
    %v2029 = vpop.f32.mrb[0].mxu0
    %v2030 = vadd.f32 0.0, %v2029
    %v2031 = vpop.f32.mrb[0].mxu0
    %2032 = vmatprep.mubr.f32.mxu0 %v1866
    %2033 = vmatmul.mubr.f32.gmra.mrb[0].mxu0 %v1854
    %v2034 = vpop.f32.mrb[0].mxu0
    %v2035 = vadd.f32 0.0, %v2034
    %v2036 = vpop.f32.mrb[0].mxu0
    %2037 = vdwg.mxu0
    %v2038 = vmax.f32 %v1935, %v2020
    %v2039 = vmax.f32 %v1940, %v2025
    %v2040 = vmax.f32 %v1945, %v2030
    %v2041 = vmax.f32 %v1950, %v2035
    %vm2042 = vcmask 228352
    %v2044 = vsel %vm2042, %v152, 0
    %v2047 = vsel %vm2042, %v153, 0
    %v2050 = vsel %vm703, %v2041, 0
    %2052 = vmatprep.subr.mxu0 0.0
    %2053 = vmatpush1.msra.mxu0 %v2038
    %2054 = vmatprep.subr.mxu0 0.0
    %2055 = vmatpush1.msra.mxu0 %v2039
    %2056 = vmatprep.subr.mxu0 0.0
    %2057 = vmatpush1.msra.mxu0 %v2040
    %2058 = vmatprep.subr.mxu0 0.0
    %2059 = vmatpush1.msra.mxu0 %v2050
    %2060 = vmatprep.subr.mxu0 0.0
    %2061 = vmatpush1.msra.mxu0 0.0
    %2062 = vmatprep.subr.mxu0 0.0
    %2063 = vmatpush1.msra.mxu0 0.0
    %2064 = vmatprep.subr.mxu0 0.0
    %2065 = vmatpush1.msra.mxu0 0.0
    %2066 = vmatprep.subr.mxu0 0.0
    %2067 = vmatpush1.msra.mxu0 0.0
    %2068 = vmatprep.subr.mxu0 0.0
    %2069 = vmatpush1.msra.mxu0 0.0
    %2070 = vmatprep.subr.mxu0 0.0
    %2071 = vmatpush1.msra.mxu0 0.0
    %2072 = vmatprep.subr.mxu0 0.0
    %2073 = vmatpush1.msra.mxu0 0.0
    %2074 = vmatprep.subr.mxu0 0.0
    %2075 = vmatpush1.msra.mxu0 0.0
    %2076 = vmatprep.subr.mxu0 0.0
    %2077 = vmatpush1.msra.mxu0 0.0
    %2078 = vmatprep.subr.mxu0 0.0
    %2079 = vmatpush1.msra.mxu0 0.0
    %2080 = vmatprep.subr.mxu0 0.0
    %2081 = vmatpush1.msra.mxu0 0.0
    %2082 = vmatprep.subr.mxu0 0.0
    %2083 = vmatpush1.msra.mxu0 0.0
    %2084 = vmatprep.subr.mxu0 0.0
    %2085 = vmatpush1.msra.mxu0 0.0
    %2086 = vmatprep.subr.mxu0 0.0
    %2087 = vmatpush1.msra.mxu0 0.0
    %2088 = vmatprep.subr.mxu0 0.0
    %2089 = vmatpush1.msra.mxu0 0.0
    %2090 = vmatprep.subr.mxu0 0.0
    %2091 = vmatpush1.msra.mxu0 0.0
    %2092 = vmatprep.subr.mxu0 0.0
    %2093 = vmatpush1.msra.mxu0 0.0
    %2094 = vmatprep.subr.mxu0 0.0
    %2095 = vmatpush1.msra.mxu0 0.0
    %2096 = vmatprep.subr.mxu0 0.0
    %2097 = vmatpush1.msra.mxu0 0.0
    %2098 = vmatprep.subr.mxu0 0.0
    %2099 = vmatpush1.msra.mxu0 0.0
    %2100 = vmatprep.subr.mxu0 0.0
    %2101 = vmatpush1.msra.mxu0 0.0
    %2102 = vmatprep.subr.mxu0 0.0
    %2103 = vmatpush1.msra.mxu0 0.0
    %2104 = vmatprep.subr.mxu0 0.0
    %2105 = vmatpush1.msra.mxu0 0.0
    %2106 = vmatprep.subr.mxu0 0.0
    %2107 = vmatpush1.msra.mxu0 0.0
    %2108 = vmatprep.subr.mxu0 0.0
    %2109 = vmatpush1.msra.mxu0 0.0
    %2110 = vmatprep.subr.mxu0 0.0
    %2111 = vmatpush1.msra.mxu0 0.0
    %2112 = vmatprep.subr.mxu0 0.0
    %2113 = vmatpush1.msra.mxu0 0.0
    %2114 = vmatprep.subr.mxu0 0.0
    %2115 = vmatpush1.msra.mxu0 0.0
    %2116 = vmatprep.mubr.f32.mxu0 0.0
    %2117 = vmatmul.mubr.f32.gmra.mrb[0].mxu0 %v2044
    %v2118 = vpop.f32.mrb[0].mxu0
    %v2119 = vadd.f32 0.0, %v2118
    %v2120 = vpop.f32.mrb[0].mxu0
    %2121 = vmatprep.mubr.f32.mxu0 0.0
    %2122 = vmatmul.mubr.f32.gmra.mrb[0].mxu0 %v2047
    %v2123 = vpop.f32.mrb[0].mxu0
    %v2124 = vadd.f32 0.0, %v2123
    %v2125 = vpop.f32.mrb[0].mxu0
    %2126 = vdwg.mxu0
    %v2128 = vsel %vm2042, %v154, 0
    %v2131 = vsel %vm2042, %v155, 0
    %2133 = vmatprep.subr.mxu0 0.0
    %2134 = vmatpush1.msra.mxu0 %v2038
    %2135 = vmatprep.subr.mxu0 0.0
    %2136 = vmatpush1.msra.mxu0 %v2039
    %2137 = vmatprep.subr.mxu0 0.0
    %2138 = vmatpush1.msra.mxu0 %v2040
    %2139 = vmatprep.subr.mxu0 0.0
    %2140 = vmatpush1.msra.mxu0 %v2050
    %2141 = vmatprep.subr.mxu0 0.0
    %2142 = vmatpush1.msra.mxu0 0.0
    %2143 = vmatprep.subr.mxu0 0.0
    %2144 = vmatpush1.msra.mxu0 0.0
    %2145 = vmatprep.subr.mxu0 0.0
    %2146 = vmatpush1.msra.mxu0 0.0
    %2147 = vmatprep.subr.mxu0 0.0
    %2148 = vmatpush1.msra.mxu0 0.0
    %2149 = vmatprep.subr.mxu0 0.0
    %2150 = vmatpush1.msra.mxu0 0.0
    %2151 = vmatprep.subr.mxu0 0.0
    %2152 = vmatpush1.msra.mxu0 0.0
    %2153 = vmatprep.subr.mxu0 0.0
    %2154 = vmatpush1.msra.mxu0 0.0
    %2155 = vmatprep.subr.mxu0 0.0
    %2156 = vmatpush1.msra.mxu0 0.0
    %2157 = vmatprep.subr.mxu0 0.0
    %2158 = vmatpush1.msra.mxu0 0.0
    %2159 = vmatprep.subr.mxu0 0.0
    %2160 = vmatpush1.msra.mxu0 0.0
    %2161 = vmatprep.subr.mxu0 0.0
    %2162 = vmatpush1.msra.mxu0 0.0
    %2163 = vmatprep.subr.mxu0 0.0
    %2164 = vmatpush1.msra.mxu0 0.0
    %2165 = vmatprep.subr.mxu0 0.0
    %2166 = vmatpush1.msra.mxu0 0.0
    %2167 = vmatprep.subr.mxu0 0.0
    %2168 = vmatpush1.msra.mxu0 0.0
    %2169 = vmatprep.subr.mxu0 0.0
    %2170 = vmatpush1.msra.mxu0 0.0
    %2171 = vmatprep.subr.mxu0 0.0
    %2172 = vmatpush1.msra.mxu0 0.0
    %2173 = vmatprep.subr.mxu0 0.0
    %2174 = vmatpush1.msra.mxu0 0.0
    %2175 = vmatprep.subr.mxu0 0.0
    %2176 = vmatpush1.msra.mxu0 0.0
    %2177 = vmatprep.subr.mxu0 0.0
    %2178 = vmatpush1.msra.mxu0 0.0
    %2179 = vmatprep.subr.mxu0 0.0
    %2180 = vmatpush1.msra.mxu0 0.0
    %2181 = vmatprep.subr.mxu0 0.0
    %2182 = vmatpush1.msra.mxu0 0.0
    %2183 = vmatprep.subr.mxu0 0.0
    %2184 = vmatpush1.msra.mxu0 0.0
    %2185 = vmatprep.subr.mxu0 0.0
    %2186 = vmatpush1.msra.mxu0 0.0
    %2187 = vmatprep.subr.mxu0 0.0
    %2188 = vmatpush1.msra.mxu0 0.0
    %2189 = vmatprep.subr.mxu0 0.0
    %2190 = vmatpush1.msra.mxu0 0.0
    %2191 = vmatprep.subr.mxu0 0.0
    %2192 = vmatpush1.msra.mxu0 0.0
    %2193 = vmatprep.subr.mxu0 0.0
    %2194 = vmatpush1.msra.mxu0 0.0
    %2195 = vmatprep.subr.mxu0 0.0
    %2196 = vmatpush1.msra.mxu0 0.0
    %2197 = vmatprep.mubr.f32.mxu0 0.0
    %2198 = vmatmul.mubr.f32.gmra.mrb[0].mxu0 %v2128
    %v2199 = vpop.f32.mrb[0].mxu0
    %v2200 = vadd.f32 0.0, %v2199
    %v2201 = vpop.f32.mrb[0].mxu0
    %2202 = vmatprep.mubr.f32.mxu0 0.0
    %2203 = vmatmul.mubr.f32.gmra.mrb[0].mxu0 %v2131
    %v2204 = vpop.f32.mrb[0].mxu0
    %v2205 = vadd.f32 0.0, %v2204
    %v2206 = vpop.f32.mrb[0].mxu0
    %2207 = vdwg.mxu0
    %v2208 = vmax.f32 %v2119, %v2200
    %v2209 = vmax.f32 %v2124, %v2205
    %v2210 = vmul.f32 %v1382, %v1819
    %v2211 = vmul.f32 %v1383, %v1823
    %v2212 = vmul.f32 %v1384, %v1819
    %v2213 = vmul.f32 %v1385, %v1823
    %v2214 = vmul.f32 %v1386, %v1819
    %v2215 = vmul.f32 %v1387, %v1823
    %v2216 = vmul.f32 %v1388, %v1819
    %v2217 = vmul.f32 %v1389, %v1823
    %v2218 = vadd.f32 %v2210, %v1835
    %v2219 = vadd.f32 %v2211, %v1839
    %v2220 = vadd.f32 %v2212, %v1835
    %v2221 = vadd.f32 %v2213, %v1839
    %v2222 = vadd.f32 %v2214, %v1835
    %v2223 = vadd.f32 %v2215, %v1839
    %v2224 = vadd.f32 %v2216, %v1835
    %v2225 = vadd.f32 %v2217, %v1839
    %v2226 = vmax.f32 %v2218, 0.0
    %v2227 = vmax.f32 %v2219, 0.0
    %v2228 = vmax.f32 %v2220, 0.0
    %v2229 = vmax.f32 %v2221, 0.0
    %v2230 = vmax.f32 %v2222, 0.0
    %v2231 = vmax.f32 %v2223, 0.0
    %v2232 = vmax.f32 %v2224, 0.0
    %v2233 = vmax.f32 %v2225, 0.0
    %v2235 = vsel %vm1400, %v2227, 0
    %v2238 = vsel %vm1400, %v2229, 0
    %v2241 = vsel %vm1400, %v2231, 0
    %v2244 = vsel %vm1400, %v2233, 0
    %2246 = vmatprep.subr.mxu0 0.0
    %2247 = vmatpush1.msra.mxu0 %v110
    %2248 = vmatprep.subr.mxu0 0.0
    %2249 = vmatpush1.msra.mxu0 %v111
    %2250 = vmatprep.subr.mxu0 0.0
    %2251 = vmatpush1.msra.mxu0 %v112
    %2252 = vmatprep.subr.mxu0 0.0
    %2253 = vmatpush1.msra.mxu0 %v113
    %2254 = vmatprep.subr.mxu0 0.0
    %2255 = vmatpush1.msra.mxu0 %v114
    %2256 = vmatprep.subr.mxu0 0.0
    %2257 = vmatpush1.msra.mxu0 %v115
    %2258 = vmatprep.subr.mxu0 0.0
    %2259 = vmatpush1.msra.mxu0 %v116
    %2260 = vmatprep.subr.mxu0 0.0
    %2261 = vmatpush1.msra.mxu0 %v117
    %2262 = vmatprep.subr.mxu0 0.0
    %2263 = vmatpush1.msra.mxu0 %v118
    %2264 = vmatprep.subr.mxu0 0.0
    %2265 = vmatpush1.msra.mxu0 %v119
    %2266 = vmatprep.subr.mxu0 0.0
    %2267 = vmatpush1.msra.mxu0 %v120
    %2268 = vmatprep.subr.mxu0 0.0
    %2269 = vmatpush1.msra.mxu0 %v121
    %2270 = vmatprep.subr.mxu0 0.0
    %2271 = vmatpush1.msra.mxu0 %v122
    %2272 = vmatprep.subr.mxu0 0.0
    %2273 = vmatpush1.msra.mxu0 %v123
    %2274 = vmatprep.subr.mxu0 0.0
    %2275 = vmatpush1.msra.mxu0 %v124
    %2276 = vmatprep.subr.mxu0 0.0
    %2277 = vmatpush1.msra.mxu0 %v125
    %2278 = vmatprep.subr.mxu0 0.0
    %2279 = vmatpush1.msra.mxu0 %v126
    %2280 = vmatprep.subr.mxu0 0.0
    %2281 = vmatpush1.msra.mxu0 %v127
    %2282 = vmatprep.subr.mxu0 0.0
    %2283 = vmatpush1.msra.mxu0 %v128
    %2284 = vmatprep.subr.mxu0 0.0
    %2285 = vmatpush1.msra.mxu0 %v129
    %2286 = vmatprep.subr.mxu0 0.0
    %2287 = vmatpush1.msra.mxu0 %v130
    %2288 = vmatprep.subr.mxu0 0.0
    %2289 = vmatpush1.msra.mxu0 0.0
    %2290 = vmatprep.subr.mxu0 0.0
    %2291 = vmatpush1.msra.mxu0 0.0
    %2292 = vmatprep.subr.mxu0 0.0
    %2293 = vmatpush1.msra.mxu0 0.0
    %2294 = vmatprep.subr.mxu0 0.0
    %2295 = vmatpush1.msra.mxu0 0.0
    %2296 = vmatprep.subr.mxu0 0.0
    %2297 = vmatpush1.msra.mxu0 0.0
    %2298 = vmatprep.subr.mxu0 0.0
    %2299 = vmatpush1.msra.mxu0 0.0
    %2300 = vmatprep.subr.mxu0 0.0
    %2301 = vmatpush1.msra.mxu0 0.0
    %2302 = vmatprep.subr.mxu0 0.0
    %2303 = vmatpush1.msra.mxu0 0.0
    %2304 = vmatprep.subr.mxu0 0.0
    %2305 = vmatpush1.msra.mxu0 0.0
    %2306 = vmatprep.subr.mxu0 0.0
    %2307 = vmatpush1.msra.mxu0 0.0
    %2308 = vmatprep.subr.mxu0 0.0
    %2309 = vmatpush1.msra.mxu0 0.0
    %2310 = vmatprep.mubr.f32.mxu0 %v2235
    %2311 = vmatmul.mubr.f32.gmra.mrb[0].mxu0 %v2226
    %v2312 = vpop.f32.mrb[0].mxu0
    %v2313 = vadd.f32 0.0, %v2312
    %v2314 = vpop.f32.mrb[0].mxu0
    %2315 = vmatprep.mubr.f32.mxu0 %v2238
    %2316 = vmatmul.mubr.f32.gmra.mrb[0].mxu0 %v2228
    %v2317 = vpop.f32.mrb[0].mxu0
    %v2318 = vadd.f32 0.0, %v2317
    %v2319 = vpop.f32.mrb[0].mxu0
    %2320 = vmatprep.mubr.f32.mxu0 %v2241
    %2321 = vmatmul.mubr.f32.gmra.mrb[0].mxu0 %v2230
    %v2322 = vpop.f32.mrb[0].mxu0
    %v2323 = vadd.f32 0.0, %v2322
    %v2324 = vpop.f32.mrb[0].mxu0
    %2325 = vmatprep.mubr.f32.mxu0 %v2244
    %2326 = vmatmul.mubr.f32.gmra.mrb[0].mxu0 %v2232
    %v2327 = vpop.f32.mrb[0].mxu0
    %v2328 = vadd.f32 0.0, %v2327
    %v2329 = vpop.f32.mrb[0].mxu0
    %2330 = vdwg.mxu0
    %2331 = vmatprep.subr.mxu0 0.0
    %2332 = vmatpush1.msra.mxu0 %v131
    %2333 = vmatprep.subr.mxu0 0.0
    %2334 = vmatpush1.msra.mxu0 %v132
    %2335 = vmatprep.subr.mxu0 0.0
    %2336 = vmatpush1.msra.mxu0 %v133
    %2337 = vmatprep.subr.mxu0 0.0
    %2338 = vmatpush1.msra.mxu0 %v134
    %2339 = vmatprep.subr.mxu0 0.0
    %2340 = vmatpush1.msra.mxu0 %v135
    %2341 = vmatprep.subr.mxu0 0.0
    %2342 = vmatpush1.msra.mxu0 %v136
    %2343 = vmatprep.subr.mxu0 0.0
    %2344 = vmatpush1.msra.mxu0 %v137
    %2345 = vmatprep.subr.mxu0 0.0
    %2346 = vmatpush1.msra.mxu0 %v138
    %2347 = vmatprep.subr.mxu0 0.0
    %2348 = vmatpush1.msra.mxu0 %v139
    %2349 = vmatprep.subr.mxu0 0.0
    %2350 = vmatpush1.msra.mxu0 %v140
    %2351 = vmatprep.subr.mxu0 0.0
    %2352 = vmatpush1.msra.mxu0 %v141
    %2353 = vmatprep.subr.mxu0 0.0
    %2354 = vmatpush1.msra.mxu0 %v142
    %2355 = vmatprep.subr.mxu0 0.0
    %2356 = vmatpush1.msra.mxu0 %v143
    %2357 = vmatprep.subr.mxu0 0.0
    %2358 = vmatpush1.msra.mxu0 %v144
    %2359 = vmatprep.subr.mxu0 0.0
    %2360 = vmatpush1.msra.mxu0 %v145
    %2361 = vmatprep.subr.mxu0 0.0
    %2362 = vmatpush1.msra.mxu0 %v146
    %2363 = vmatprep.subr.mxu0 0.0
    %2364 = vmatpush1.msra.mxu0 %v147
    %2365 = vmatprep.subr.mxu0 0.0
    %2366 = vmatpush1.msra.mxu0 %v148
    %2367 = vmatprep.subr.mxu0 0.0
    %2368 = vmatpush1.msra.mxu0 %v149
    %2369 = vmatprep.subr.mxu0 0.0
    %2370 = vmatpush1.msra.mxu0 %v150
    %2371 = vmatprep.subr.mxu0 0.0
    %2372 = vmatpush1.msra.mxu0 %v151
    %2373 = vmatprep.subr.mxu0 0.0
    %2374 = vmatpush1.msra.mxu0 0.0
    %2375 = vmatprep.subr.mxu0 0.0
    %2376 = vmatpush1.msra.mxu0 0.0
    %2377 = vmatprep.subr.mxu0 0.0
    %2378 = vmatpush1.msra.mxu0 0.0
    %2379 = vmatprep.subr.mxu0 0.0
    %2380 = vmatpush1.msra.mxu0 0.0
    %2381 = vmatprep.subr.mxu0 0.0
    %2382 = vmatpush1.msra.mxu0 0.0
    %2383 = vmatprep.subr.mxu0 0.0
    %2384 = vmatpush1.msra.mxu0 0.0
    %2385 = vmatprep.subr.mxu0 0.0
    %2386 = vmatpush1.msra.mxu0 0.0
    %2387 = vmatprep.subr.mxu0 0.0
    %2388 = vmatpush1.msra.mxu0 0.0
    %2389 = vmatprep.subr.mxu0 0.0
    %2390 = vmatpush1.msra.mxu0 0.0
    %2391 = vmatprep.subr.mxu0 0.0
    %2392 = vmatpush1.msra.mxu0 0.0
    %2393 = vmatprep.subr.mxu0 0.0
    %2394 = vmatpush1.msra.mxu0 0.0
    %2395 = vmatprep.mubr.f32.mxu0 %v2235
    %2396 = vmatmul.mubr.f32.gmra.mrb[0].mxu0 %v2226
    %v2397 = vpop.f32.mrb[0].mxu0
    %v2398 = vadd.f32 0.0, %v2397
    %v2399 = vpop.f32.mrb[0].mxu0
    %2400 = vmatprep.mubr.f32.mxu0 %v2238
    %2401 = vmatmul.mubr.f32.gmra.mrb[0].mxu0 %v2228
    %v2402 = vpop.f32.mrb[0].mxu0
    %v2403 = vadd.f32 0.0, %v2402
    %v2404 = vpop.f32.mrb[0].mxu0
    %2405 = vmatprep.mubr.f32.mxu0 %v2241
    %2406 = vmatmul.mubr.f32.gmra.mrb[0].mxu0 %v2230
    %v2407 = vpop.f32.mrb[0].mxu0
    %v2408 = vadd.f32 0.0, %v2407
    %v2409 = vpop.f32.mrb[0].mxu0
    %2410 = vmatprep.mubr.f32.mxu0 %v2244
    %2411 = vmatmul.mubr.f32.gmra.mrb[0].mxu0 %v2232
    %v2412 = vpop.f32.mrb[0].mxu0
    %v2413 = vadd.f32 0.0, %v2412
    %v2414 = vpop.f32.mrb[0].mxu0
    %2415 = vdwg.mxu0
    %v2416 = vmax.f32 %v2313, %v2398
    %v2417 = vmax.f32 %v2318, %v2403
    %v2418 = vmax.f32 %v2323, %v2408
    %v2419 = vmax.f32 %v2328, %v2413
    %v2421 = vsel %vm703, %v2419, 0
    %2423 = vmatprep.subr.mxu0 0.0
    %2424 = vmatpush1.msra.mxu0 %v2416
    %2425 = vmatprep.subr.mxu0 0.0
    %2426 = vmatpush1.msra.mxu0 %v2417
    %2427 = vmatprep.subr.mxu0 0.0
    %2428 = vmatpush1.msra.mxu0 %v2418
    %2429 = vmatprep.subr.mxu0 0.0
    %2430 = vmatpush1.msra.mxu0 %v2421
    %2431 = vmatprep.subr.mxu0 0.0
    %2432 = vmatpush1.msra.mxu0 0.0
    %2433 = vmatprep.subr.mxu0 0.0
    %2434 = vmatpush1.msra.mxu0 0.0
    %2435 = vmatprep.subr.mxu0 0.0
    %2436 = vmatpush1.msra.mxu0 0.0
    %2437 = vmatprep.subr.mxu0 0.0
    %2438 = vmatpush1.msra.mxu0 0.0
    %2439 = vmatprep.subr.mxu0 0.0
    %2440 = vmatpush1.msra.mxu0 0.0
    %2441 = vmatprep.subr.mxu0 0.0
    %2442 = vmatpush1.msra.mxu0 0.0
    %2443 = vmatprep.subr.mxu0 0.0
    %2444 = vmatpush1.msra.mxu0 0.0
    %2445 = vmatprep.subr.mxu0 0.0
    %2446 = vmatpush1.msra.mxu0 0.0
    %2447 = vmatprep.subr.mxu0 0.0
    %2448 = vmatpush1.msra.mxu0 0.0
    %2449 = vmatprep.subr.mxu0 0.0
    %2450 = vmatpush1.msra.mxu0 0.0
    %2451 = vmatprep.subr.mxu0 0.0
    %2452 = vmatpush1.msra.mxu0 0.0
    %2453 = vmatprep.subr.mxu0 0.0
    %2454 = vmatpush1.msra.mxu0 0.0
    %2455 = vmatprep.subr.mxu0 0.0
    %2456 = vmatpush1.msra.mxu0 0.0
    %2457 = vmatprep.subr.mxu0 0.0
    %2458 = vmatpush1.msra.mxu0 0.0
    %2459 = vmatprep.subr.mxu0 0.0
    %2460 = vmatpush1.msra.mxu0 0.0
    %2461 = vmatprep.subr.mxu0 0.0
    %2462 = vmatpush1.msra.mxu0 0.0
    %2463 = vmatprep.subr.mxu0 0.0
    %2464 = vmatpush1.msra.mxu0 0.0
    %2465 = vmatprep.subr.mxu0 0.0
    %2466 = vmatpush1.msra.mxu0 0.0
    %2467 = vmatprep.subr.mxu0 0.0
    %2468 = vmatpush1.msra.mxu0 0.0
    %2469 = vmatprep.subr.mxu0 0.0
    %2470 = vmatpush1.msra.mxu0 0.0
    %2471 = vmatprep.subr.mxu0 0.0
    %2472 = vmatpush1.msra.mxu0 0.0
    %2473 = vmatprep.subr.mxu0 0.0
    %2474 = vmatpush1.msra.mxu0 0.0
    %2475 = vmatprep.subr.mxu0 0.0
    %2476 = vmatpush1.msra.mxu0 0.0
    %2477 = vmatprep.subr.mxu0 0.0
    %2478 = vmatpush1.msra.mxu0 0.0
    %2479 = vmatprep.subr.mxu0 0.0
    %2480 = vmatpush1.msra.mxu0 0.0
    %2481 = vmatprep.subr.mxu0 0.0
    %2482 = vmatpush1.msra.mxu0 0.0
    %2483 = vmatprep.subr.mxu0 0.0
    %2484 = vmatpush1.msra.mxu0 0.0
    %2485 = vmatprep.subr.mxu0 0.0
    %2486 = vmatpush1.msra.mxu0 0.0
    %2487 = vmatprep.mubr.f32.mxu0 0.0
    %2488 = vmatmul.mubr.f32.gmra.mrb[0].mxu0 %v2044
    %v2489 = vpop.f32.mrb[0].mxu0
    %v2490 = vadd.f32 0.0, %v2489
    %v2491 = vpop.f32.mrb[0].mxu0
    %2492 = vmatprep.mubr.f32.mxu0 0.0
    %2493 = vmatmul.mubr.f32.gmra.mrb[0].mxu0 %v2047
    %v2494 = vpop.f32.mrb[0].mxu0
    %v2495 = vadd.f32 0.0, %v2494
    %v2496 = vpop.f32.mrb[0].mxu0
    %2497 = vdwg.mxu0
    %2498 = vmatprep.subr.mxu0 0.0
    %2499 = vmatpush1.msra.mxu0 %v2416
    %2500 = vmatprep.subr.mxu0 0.0
    %2501 = vmatpush1.msra.mxu0 %v2417
    %2502 = vmatprep.subr.mxu0 0.0
    %2503 = vmatpush1.msra.mxu0 %v2418
    %2504 = vmatprep.subr.mxu0 0.0
    %2505 = vmatpush1.msra.mxu0 %v2421
    %2506 = vmatprep.subr.mxu0 0.0
    %2507 = vmatpush1.msra.mxu0 0.0
    %2508 = vmatprep.subr.mxu0 0.0
    %2509 = vmatpush1.msra.mxu0 0.0
    %2510 = vmatprep.subr.mxu0 0.0
    %2511 = vmatpush1.msra.mxu0 0.0
    %2512 = vmatprep.subr.mxu0 0.0
    %2513 = vmatpush1.msra.mxu0 0.0
    %2514 = vmatprep.subr.mxu0 0.0
    %2515 = vmatpush1.msra.mxu0 0.0
    %2516 = vmatprep.subr.mxu0 0.0
    %2517 = vmatpush1.msra.mxu0 0.0
    %2518 = vmatprep.subr.mxu0 0.0
    %2519 = vmatpush1.msra.mxu0 0.0
    %2520 = vmatprep.subr.mxu0 0.0
    %2521 = vmatpush1.msra.mxu0 0.0
    %2522 = vmatprep.subr.mxu0 0.0
    %2523 = vmatpush1.msra.mxu0 0.0
    %2524 = vmatprep.subr.mxu0 0.0
    %2525 = vmatpush1.msra.mxu0 0.0
    %2526 = vmatprep.subr.mxu0 0.0
    %2527 = vmatpush1.msra.mxu0 0.0
    %2528 = vmatprep.subr.mxu0 0.0
    %2529 = vmatpush1.msra.mxu0 0.0
    %2530 = vmatprep.subr.mxu0 0.0
    %2531 = vmatpush1.msra.mxu0 0.0
    %2532 = vmatprep.subr.mxu0 0.0
    %2533 = vmatpush1.msra.mxu0 0.0
    %2534 = vmatprep.subr.mxu0 0.0
    %2535 = vmatpush1.msra.mxu0 0.0
    %2536 = vmatprep.subr.mxu0 0.0
    %2537 = vmatpush1.msra.mxu0 0.0
    %2538 = vmatprep.subr.mxu0 0.0
    %2539 = vmatpush1.msra.mxu0 0.0
    %2540 = vmatprep.subr.mxu0 0.0
    %2541 = vmatpush1.msra.mxu0 0.0
    %2542 = vmatprep.subr.mxu0 0.0
    %2543 = vmatpush1.msra.mxu0 0.0
    %2544 = vmatprep.subr.mxu0 0.0
    %2545 = vmatpush1.msra.mxu0 0.0
    %2546 = vmatprep.subr.mxu0 0.0
    %2547 = vmatpush1.msra.mxu0 0.0
    %2548 = vmatprep.subr.mxu0 0.0
    %2549 = vmatpush1.msra.mxu0 0.0
    %2550 = vmatprep.subr.mxu0 0.0
    %2551 = vmatpush1.msra.mxu0 0.0
    %2552 = vmatprep.subr.mxu0 0.0
    %2553 = vmatpush1.msra.mxu0 0.0
    %2554 = vmatprep.subr.mxu0 0.0
    %2555 = vmatpush1.msra.mxu0 0.0
    %2556 = vmatprep.subr.mxu0 0.0
    %2557 = vmatpush1.msra.mxu0 0.0
    %2558 = vmatprep.subr.mxu0 0.0
    %2559 = vmatpush1.msra.mxu0 0.0
    %2560 = vmatprep.subr.mxu0 0.0
    %2561 = vmatpush1.msra.mxu0 0.0
    %2562 = vmatprep.mubr.f32.mxu0 0.0
    %2563 = vmatmul.mubr.f32.gmra.mrb[0].mxu0 %v2128
    %v2564 = vpop.f32.mrb[0].mxu0
    %v2565 = vadd.f32 0.0, %v2564
    %v2566 = vpop.f32.mrb[0].mxu0
    %2567 = vmatprep.mubr.f32.mxu0 0.0
    %2568 = vmatmul.mubr.f32.gmra.mrb[0].mxu0 %v2131
    %v2569 = vpop.f32.mrb[0].mxu0
    %v2570 = vadd.f32 0.0, %v2569
    %v2571 = vpop.f32.mrb[0].mxu0
    %2572 = vdwg.mxu0
    %v2573 = vmax.f32 %v2490, %v2565
    %v2574 = vmax.f32 %v2495, %v2570
    %v2575 = vld [vmem:[%s11] sm:$0xff]
    %v2576 = vld [vmem:[%s11 + $0x8] sm:$0xff]
    %v2577 = vld [vmem:[%s11 + $0x10] sm:$0xff]
    %v2578 = vld [vmem:[%s11 + $0x18] sm:$0xff]
    %v2579 = vld [vmem:[%s11 + $0x20] sm:$0xff]
    %v2580 = vld [vmem:[%s11 + $0x28] sm:$0xff]
    %v2581 = vld [vmem:[%s11 + $0x30] sm:$0xff]
    %v2582 = vld [vmem:[%s11 + $0x38] sm:$0xff]
    %v2583 = vld [vmem:[%s11 + $0x40] sm:$0xff]
    %v2584 = vld [vmem:[%s11 + $0x48] sm:$0xff]
    %v2585 = vld [vmem:[%s11 + $0x50] sm:$0xff]
    %v2586 = vld [vmem:[%s11 + $0x58] sm:$0xff]
    %v2587 = vld [vmem:[%s11 + $0x60] sm:$0xff]
    %v2588 = vld [vmem:[%s11 + $0x68] sm:$0xff]
    %v2589 = vld [vmem:[%s11 + $0x70] sm:$0xff]
    %v2590 = vld [vmem:[%s11 + $0x78] sm:$0xff]
    %v2591 = vld [vmem:[%s11 + $0x80] sm:$0xff]
    %v2592 = vld [vmem:[%s11 + $0x88] sm:$0xff]
    %v2593 = vld [vmem:[%s11 + $0x90] sm:$0xff]
    %v2594 = vld [vmem:[%s11 + $0x98] sm:$0xff]
    %v2595 = vld [vmem:[%s11 + $0xa0] sm:$0xf]
    %v2596 = vld [vmem:[%s11 + $0xa8] sm:$0xf]
    %s2597 = scalar_lea.vmem %s11, 176
    %v2598 = vld [vmem:[%s2597] sm:$0xff]
    %v2599 = vld [vmem:[%s2597 + $0x8] sm:$0xff]
    %v2600 = vld [vmem:[%s2597 + $0x10] sm:$0xff]
    %v2601 = vld [vmem:[%s2597 + $0x18] sm:$0xff]
    %v2602 = vld [vmem:[%s2597 + $0x20] sm:$0xff]
    %v2603 = vld [vmem:[%s2597 + $0x28] sm:$0xff]
    %v2604 = vld [vmem:[%s2597 + $0x30] sm:$0xff]
    %v2605 = vld [vmem:[%s2597 + $0x38] sm:$0xff]
    %v2606 = vld [vmem:[%s2597 + $0x40] sm:$0xff]
    %v2607 = vld [vmem:[%s2597 + $0x48] sm:$0xff]
    %v2608 = vld [vmem:[%s2597 + $0x50] sm:$0xff]
    %v2609 = vld [vmem:[%s2597 + $0x58] sm:$0xff]
    %v2610 = vld [vmem:[%s2597 + $0x60] sm:$0xff]
    %v2611 = vld [vmem:[%s2597 + $0x68] sm:$0xff]
    %v2612 = vld [vmem:[%s2597 + $0x70] sm:$0xff]
    %v2613 = vld [vmem:[%s2597 + $0x78] sm:$0xff]
    %v2614 = vld [vmem:[%s2597 + $0x80] sm:$0xff]
    %v2615 = vld [vmem:[%s2597 + $0x88] sm:$0xff]
    %v2616 = vld [vmem:[%s2597 + $0x90] sm:$0xff]
    %v2617 = vld [vmem:[%s2597 + $0x98] sm:$0xff]
    %v2618 = vld [vmem:[%s2597 + $0xa0] sm:$0xf]
    %v2619 = vld [vmem:[%s2597 + $0xa8] sm:$0xf]
    %v2622 = vrot.slane %v2208, 1
    %v2623 = vrot.slane %v2209, 1
    %v2624 = vsel %vm247, %v2622, %v2623
    %vm2625 = vcmask 687104
    %v2626 = vsel %vm2625, %v2624, 0
    %v2628 = vsel %vm2625, %v2623, 0
    %v2631 = vsel %vm703, %v2618, 0
    %v2634 = vsel %vm703, %v2619, 0
    %2636 = vmatprep.subr.mxu0 %v2599
    %2637 = vmatpush1.msra.mxu0 %v2598
    %2638 = vmatprep.subr.mxu0 %v2601
    %2639 = vmatpush1.msra.mxu0 %v2600
    %2640 = vmatprep.subr.mxu0 %v2603
    %2641 = vmatpush1.msra.mxu0 %v2602
    %2642 = vmatprep.subr.mxu0 %v2605
    %2643 = vmatpush1.msra.mxu0 %v2604
    %2644 = vmatprep.subr.mxu0 %v2607
    %2645 = vmatpush1.msra.mxu0 %v2606
    %2646 = vmatprep.subr.mxu0 %v2609
    %2647 = vmatpush1.msra.mxu0 %v2608
    %2648 = vmatprep.subr.mxu0 %v2611
    %2649 = vmatpush1.msra.mxu0 %v2610
    %2650 = vmatprep.subr.mxu0 %v2613
    %2651 = vmatpush1.msra.mxu0 %v2612
    %2652 = vmatprep.subr.mxu0 %v2615
    %2653 = vmatpush1.msra.mxu0 %v2614
    %2654 = vmatprep.subr.mxu0 %v2617
    %2655 = vmatpush1.msra.mxu0 %v2616
    %2656 = vmatprep.subr.mxu0 %v2634
    %2657 = vmatpush1.msra.mxu0 %v2631
    %2658 = vmatprep.subr.mxu0 0.0
    %2659 = vmatpush1.msra.mxu0 0.0
    %2660 = vmatprep.subr.mxu0 0.0
    %2661 = vmatpush1.msra.mxu0 0.0
    %2662 = vmatprep.subr.mxu0 0.0
    %2663 = vmatpush1.msra.mxu0 0.0
    %2664 = vmatprep.subr.mxu0 0.0
    %2665 = vmatpush1.msra.mxu0 0.0
    %2666 = vmatprep.subr.mxu0 0.0
    %2667 = vmatpush1.msra.mxu0 0.0
    %2668 = vmatprep.subr.mxu0 0.0
    %2669 = vmatpush1.msra.mxu0 0.0
    %2670 = vmatprep.subr.mxu0 0.0
    %2671 = vmatpush1.msra.mxu0 0.0
    %2672 = vmatprep.subr.mxu0 0.0
    %2673 = vmatpush1.msra.mxu0 0.0
    %2674 = vmatprep.subr.mxu0 0.0
    %2675 = vmatpush1.msra.mxu0 0.0
    %2676 = vmatprep.subr.mxu0 0.0
    %2677 = vmatpush1.msra.mxu0 0.0
    %2678 = vmatprep.subr.mxu0 0.0
    %2679 = vmatpush1.msra.mxu0 0.0
    %2680 = vmatprep.subr.mxu0 0.0
    %2681 = vmatpush1.msra.mxu0 0.0
    %2682 = vmatprep.subr.mxu0 0.0
    %2683 = vmatpush1.msra.mxu0 0.0
    %2684 = vmatprep.subr.mxu0 0.0
    %2685 = vmatpush1.msra.mxu0 0.0
    %2686 = vmatprep.subr.mxu0 0.0
    %2687 = vmatpush1.msra.mxu0 0.0
    %2688 = vmatprep.subr.mxu0 0.0
    %2689 = vmatpush1.msra.mxu0 0.0
    %2690 = vmatprep.subr.mxu0 0.0
    %2691 = vmatpush1.msra.mxu0 0.0
    %2692 = vmatprep.subr.mxu0 0.0
    %2693 = vmatpush1.msra.mxu0 0.0
    %2694 = vmatprep.subr.mxu0 0.0
    %2695 = vmatpush1.msra.mxu0 0.0
    %2696 = vmatprep.subr.mxu0 0.0
    %2697 = vmatpush1.msra.mxu0 0.0
    %2698 = vmatprep.subr.mxu0 0.0
    %2699 = vmatpush1.msra.mxu0 0.0
    %2700 = vmatprep.mubr.f32.mxu0 0.0
    %2701 = vmatmul.mubr.f32.gmra.mrb[0].mxu0 %v2626
    %v2702 = vpop.f32.mrb[0].mxu0
    %v2703 = vadd.f32 0.0, %v2702
    %v2704 = vpop.f32.mrb[0].mxu0
    %v2705 = vadd.f32 0.0, %v2704
    %2706 = vmatprep.mubr.f32.mxu0 0.0
    %2707 = vmatmul.mubr.f32.gmra.mrb[0].mxu0 %v2628
    %v2708 = vpop.f32.mrb[0].mxu0
    %v2709 = vadd.f32 0.0, %v2708
    %v2710 = vpop.f32.mrb[0].mxu0
    %v2711 = vadd.f32 0.0, %v2710
    %2712 = vdwg.mxu0
    %v2713 = vsel %vm2625, %v2208, 0
    %v2715 = vsel %vm2625, %v2209, 0
    %v2718 = vsel %vm703, %v2595, 0
    %v2721 = vsel %vm703, %v2596, 0
    %2723 = vmatprep.subr.mxu0 %v2576
    %2724 = vmatpush1.msra.mxu0 %v2575
    %2725 = vmatprep.subr.mxu0 %v2578
    %2726 = vmatpush1.msra.mxu0 %v2577
    %2727 = vmatprep.subr.mxu0 %v2580
    %2728 = vmatpush1.msra.mxu0 %v2579
    %2729 = vmatprep.subr.mxu0 %v2582
    %2730 = vmatpush1.msra.mxu0 %v2581
    %2731 = vmatprep.subr.mxu0 %v2584
    %2732 = vmatpush1.msra.mxu0 %v2583
    %2733 = vmatprep.subr.mxu0 %v2586
    %2734 = vmatpush1.msra.mxu0 %v2585
    %2735 = vmatprep.subr.mxu0 %v2588
    %2736 = vmatpush1.msra.mxu0 %v2587
    %2737 = vmatprep.subr.mxu0 %v2590
    %2738 = vmatpush1.msra.mxu0 %v2589
    %2739 = vmatprep.subr.mxu0 %v2592
    %2740 = vmatpush1.msra.mxu0 %v2591
    %2741 = vmatprep.subr.mxu0 %v2594
    %2742 = vmatpush1.msra.mxu0 %v2593
    %2743 = vmatprep.subr.mxu0 %v2721
    %2744 = vmatpush1.msra.mxu0 %v2718
    %2745 = vmatprep.subr.mxu0 0.0
    %2746 = vmatpush1.msra.mxu0 0.0
    %2747 = vmatprep.subr.mxu0 0.0
    %2748 = vmatpush1.msra.mxu0 0.0
    %2749 = vmatprep.subr.mxu0 0.0
    %2750 = vmatpush1.msra.mxu0 0.0
    %2751 = vmatprep.subr.mxu0 0.0
    %2752 = vmatpush1.msra.mxu0 0.0
    %2753 = vmatprep.subr.mxu0 0.0
    %2754 = vmatpush1.msra.mxu0 0.0
    %2755 = vmatprep.subr.mxu0 0.0
    %2756 = vmatpush1.msra.mxu0 0.0
    %2757 = vmatprep.subr.mxu0 0.0
    %2758 = vmatpush1.msra.mxu0 0.0
    %2759 = vmatprep.subr.mxu0 0.0
    %2760 = vmatpush1.msra.mxu0 0.0
    %2761 = vmatprep.subr.mxu0 0.0
    %2762 = vmatpush1.msra.mxu0 0.0
    %2763 = vmatprep.subr.mxu0 0.0
    %2764 = vmatpush1.msra.mxu0 0.0
    %2765 = vmatprep.subr.mxu0 0.0
    %2766 = vmatpush1.msra.mxu0 0.0
    %2767 = vmatprep.subr.mxu0 0.0
    %2768 = vmatpush1.msra.mxu0 0.0
    %2769 = vmatprep.subr.mxu0 0.0
    %2770 = vmatpush1.msra.mxu0 0.0
    %2771 = vmatprep.subr.mxu0 0.0
    %2772 = vmatpush1.msra.mxu0 0.0
    %2773 = vmatprep.subr.mxu0 0.0
    %2774 = vmatpush1.msra.mxu0 0.0
    %2775 = vmatprep.subr.mxu0 0.0
    %2776 = vmatpush1.msra.mxu0 0.0
    %2777 = vmatprep.subr.mxu0 0.0
    %2778 = vmatpush1.msra.mxu0 0.0
    %2779 = vmatprep.subr.mxu0 0.0
    %2780 = vmatpush1.msra.mxu0 0.0
    %2781 = vmatprep.subr.mxu0 0.0
    %2782 = vmatpush1.msra.mxu0 0.0
    %2783 = vmatprep.subr.mxu0 0.0
    %2784 = vmatpush1.msra.mxu0 0.0
    %2785 = vmatprep.subr.mxu0 0.0
    %2786 = vmatpush1.msra.mxu0 0.0
    %2787 = vmatprep.mubr.f32.mxu0 0.0
    %2788 = vmatmul.mubr.f32.gmra.mrb[0].mxu0 %v2713
    %v2789 = vpop.f32.mrb[0].mxu0
    %v2790 = vadd.f32 %v2703, %v2789
    %v2791 = vpop.f32.mrb[0].mxu0
    %v2792 = vadd.f32 %v2705, %v2791
    %2793 = vmatprep.mubr.f32.mxu0 0.0
    %2794 = vmatmul.mubr.f32.gmra.mrb[0].mxu0 %v2715
    %v2795 = vpop.f32.mrb[0].mxu0
    %v2796 = vadd.f32 %v2709, %v2795
    %v2797 = vpop.f32.mrb[0].mxu0
    %v2798 = vadd.f32 %v2711, %v2797
    %2799 = vdwg.mxu0
    %s2800 = scalar_lea.vmem %s11, 352
    %v2801 = vld [vmem:[%s2800] sm:$0xff]
    %v2802 = vld [vmem:[%s2800 + $0x8] sm:$0xff]
    %v2803 = vld [vmem:[%s2800 + $0x10] sm:$0xff]
    %v2804 = vld [vmem:[%s2800 + $0x18] sm:$0xff]
    %v2805 = vld [vmem:[%s2800 + $0x20] sm:$0xff]
    %v2806 = vld [vmem:[%s2800 + $0x28] sm:$0xff]
    %v2807 = vld [vmem:[%s2800 + $0x30] sm:$0xff]
    %v2808 = vld [vmem:[%s2800 + $0x38] sm:$0xff]
    %v2809 = vld [vmem:[%s2800 + $0x40] sm:$0xff]
    %v2810 = vld [vmem:[%s2800 + $0x48] sm:$0xff]
    %v2811 = vld [vmem:[%s2800 + $0x50] sm:$0xff]
    %v2812 = vld [vmem:[%s2800 + $0x58] sm:$0xff]
    %v2813 = vld [vmem:[%s2800 + $0x60] sm:$0xff]
    %v2814 = vld [vmem:[%s2800 + $0x68] sm:$0xff]
    %v2815 = vld [vmem:[%s2800 + $0x70] sm:$0xff]
    %v2816 = vld [vmem:[%s2800 + $0x78] sm:$0xff]
    %v2817 = vld [vmem:[%s2800 + $0x80] sm:$0xff]
    %v2818 = vld [vmem:[%s2800 + $0x88] sm:$0xff]
    %v2819 = vld [vmem:[%s2800 + $0x90] sm:$0xff]
    %v2820 = vld [vmem:[%s2800 + $0x98] sm:$0xff]
    %v2821 = vld [vmem:[%s2800 + $0xa0] sm:$0xf]
    %v2822 = vld [vmem:[%s2800 + $0xa8] sm:$0xf]
    %v2823 = vrot.slane %v2208, 2
    %v2824 = vrot.slane %v2209, 2
    %v2825 = vsel %vm459, %v2823, %v2824
    %v2826 = vsel %vm2625, %v2825, 0
    %v2828 = vsel %vm2625, %v2824, 0
    %v2831 = vsel %vm703, %v2821, 0
    %v2834 = vsel %vm703, %v2822, 0
    %2836 = vmatprep.subr.mxu0 %v2802
    %2837 = vmatpush1.msra.mxu0 %v2801
    %2838 = vmatprep.subr.mxu0 %v2804
    %2839 = vmatpush1.msra.mxu0 %v2803
    %2840 = vmatprep.subr.mxu0 %v2806
    %2841 = vmatpush1.msra.mxu0 %v2805
    %2842 = vmatprep.subr.mxu0 %v2808
    %2843 = vmatpush1.msra.mxu0 %v2807
    %2844 = vmatprep.subr.mxu0 %v2810
    %2845 = vmatpush1.msra.mxu0 %v2809
    %2846 = vmatprep.subr.mxu0 %v2812
    %2847 = vmatpush1.msra.mxu0 %v2811
    %2848 = vmatprep.subr.mxu0 %v2814
    %2849 = vmatpush1.msra.mxu0 %v2813
    %2850 = vmatprep.subr.mxu0 %v2816
    %2851 = vmatpush1.msra.mxu0 %v2815
    %2852 = vmatprep.subr.mxu0 %v2818
    %2853 = vmatpush1.msra.mxu0 %v2817
    %2854 = vmatprep.subr.mxu0 %v2820
    %2855 = vmatpush1.msra.mxu0 %v2819
    %2856 = vmatprep.subr.mxu0 %v2834
    %2857 = vmatpush1.msra.mxu0 %v2831
    %2858 = vmatprep.subr.mxu0 0.0
    %2859 = vmatpush1.msra.mxu0 0.0
    %2860 = vmatprep.subr.mxu0 0.0
    %2861 = vmatpush1.msra.mxu0 0.0
    %2862 = vmatprep.subr.mxu0 0.0
    %2863 = vmatpush1.msra.mxu0 0.0
    %2864 = vmatprep.subr.mxu0 0.0
    %2865 = vmatpush1.msra.mxu0 0.0
    %2866 = vmatprep.subr.mxu0 0.0
    %2867 = vmatpush1.msra.mxu0 0.0
    %2868 = vmatprep.subr.mxu0 0.0
    %2869 = vmatpush1.msra.mxu0 0.0
    %2870 = vmatprep.subr.mxu0 0.0
    %2871 = vmatpush1.msra.mxu0 0.0
    %2872 = vmatprep.subr.mxu0 0.0
    %2873 = vmatpush1.msra.mxu0 0.0
    %2874 = vmatprep.subr.mxu0 0.0
    %2875 = vmatpush1.msra.mxu0 0.0
    %2876 = vmatprep.subr.mxu0 0.0
    %2877 = vmatpush1.msra.mxu0 0.0
    %2878 = vmatprep.subr.mxu0 0.0
    %2879 = vmatpush1.msra.mxu0 0.0
    %2880 = vmatprep.subr.mxu0 0.0
    %2881 = vmatpush1.msra.mxu0 0.0
    %2882 = vmatprep.subr.mxu0 0.0
    %2883 = vmatpush1.msra.mxu0 0.0
    %2884 = vmatprep.subr.mxu0 0.0
    %2885 = vmatpush1.msra.mxu0 0.0
    %2886 = vmatprep.subr.mxu0 0.0
    %2887 = vmatpush1.msra.mxu0 0.0
    %2888 = vmatprep.subr.mxu0 0.0
    %2889 = vmatpush1.msra.mxu0 0.0
    %2890 = vmatprep.subr.mxu0 0.0
    %2891 = vmatpush1.msra.mxu0 0.0
    %2892 = vmatprep.subr.mxu0 0.0
    %2893 = vmatpush1.msra.mxu0 0.0
    %2894 = vmatprep.subr.mxu0 0.0
    %2895 = vmatpush1.msra.mxu0 0.0
    %2896 = vmatprep.subr.mxu0 0.0
    %2897 = vmatpush1.msra.mxu0 0.0
    %2898 = vmatprep.subr.mxu0 0.0
    %2899 = vmatpush1.msra.mxu0 0.0
    %2900 = vmatprep.mubr.f32.mxu0 0.0
    %2901 = vmatmul.mubr.f32.gmra.mrb[0].mxu0 %v2826
    %v2902 = vpop.f32.mrb[0].mxu0
    %v2903 = vadd.f32 0.0, %v2902
    %v2904 = vpop.f32.mrb[0].mxu0
    %v2905 = vadd.f32 0.0, %v2904
    %2906 = vmatprep.mubr.f32.mxu0 0.0
    %2907 = vmatmul.mubr.f32.gmra.mrb[0].mxu0 %v2828
    %v2908 = vpop.f32.mrb[0].mxu0
    %v2909 = vadd.f32 0.0, %v2908
    %v2910 = vpop.f32.mrb[0].mxu0
    %v2911 = vadd.f32 0.0, %v2910
    %2912 = vdwg.mxu0
    %v2913 = vadd.f32 %v2790, %v2903
    %v2914 = vadd.f32 %v2792, %v2905
    %v2915 = vadd.f32 %v2796, %v2909
    %v2916 = vadd.f32 %v2798, %v2911
    %s2917 = scalar_lea.vmem %s11, 528
    %v2918 = vld [vmem:[%s2917] sm:$0xff]
    %v2919 = vld [vmem:[%s2917 + $0x8] sm:$0xff]
    %v2920 = vld [vmem:[%s2917 + $0x10] sm:$0xff]
    %v2921 = vld [vmem:[%s2917 + $0x18] sm:$0xff]
    %v2922 = vld [vmem:[%s2917 + $0x20] sm:$0xff]
    %v2923 = vld [vmem:[%s2917 + $0x28] sm:$0xff]
    %v2924 = vld [vmem:[%s2917 + $0x30] sm:$0xff]
    %v2925 = vld [vmem:[%s2917 + $0x38] sm:$0xff]
    %v2926 = vld [vmem:[%s2917 + $0x40] sm:$0xff]
    %v2927 = vld [vmem:[%s2917 + $0x48] sm:$0xff]
    %v2928 = vld [vmem:[%s2917 + $0x50] sm:$0xff]
    %v2929 = vld [vmem:[%s2917 + $0x58] sm:$0xff]
    %v2930 = vld [vmem:[%s2917 + $0x60] sm:$0xff]
    %v2931 = vld [vmem:[%s2917 + $0x68] sm:$0xff]
    %v2932 = vld [vmem:[%s2917 + $0x70] sm:$0xff]
    %v2933 = vld [vmem:[%s2917 + $0x78] sm:$0xff]
    %v2934 = vld [vmem:[%s2917 + $0x80] sm:$0xff]
    %v2935 = vld [vmem:[%s2917 + $0x88] sm:$0xff]
    %v2936 = vld [vmem:[%s2917 + $0x90] sm:$0xff]
    %v2937 = vld [vmem:[%s2917 + $0x98] sm:$0xff]
    %v2938 = vld [vmem:[%s2917 + $0xa0] sm:$0xf]
    %v2939 = vld [vmem:[%s2917 + $0xa8] sm:$0xf]
    %v2940 = vrot.slane %v2208, 3
    %v2941 = vrot.slane %v2209, 3
    %v2942 = vsel %vm581, %v2940, %v2941
    %v2943 = vsel %vm2625, %v2942, 0
    %v2945 = vsel %vm2625, %v2941, 0
    %v2948 = vsel %vm703, %v2938, 0
    %v2951 = vsel %vm703, %v2939, 0
    %2953 = vmatprep.subr.mxu0 %v2919
    %2954 = vmatpush1.msra.mxu0 %v2918
    %2955 = vmatprep.subr.mxu0 %v2921
    %2956 = vmatpush1.msra.mxu0 %v2920
    %2957 = vmatprep.subr.mxu0 %v2923
    %2958 = vmatpush1.msra.mxu0 %v2922
    %2959 = vmatprep.subr.mxu0 %v2925
    %2960 = vmatpush1.msra.mxu0 %v2924
    %2961 = vmatprep.subr.mxu0 %v2927
    %2962 = vmatpush1.msra.mxu0 %v2926
    %2963 = vmatprep.subr.mxu0 %v2929
    %2964 = vmatpush1.msra.mxu0 %v2928
    %2965 = vmatprep.subr.mxu0 %v2931
    %2966 = vmatpush1.msra.mxu0 %v2930
    %2967 = vmatprep.subr.mxu0 %v2933
    %2968 = vmatpush1.msra.mxu0 %v2932
    %2969 = vmatprep.subr.mxu0 %v2935
    %2970 = vmatpush1.msra.mxu0 %v2934
    %2971 = vmatprep.subr.mxu0 %v2937
    %2972 = vmatpush1.msra.mxu0 %v2936
    %2973 = vmatprep.subr.mxu0 %v2951
    %2974 = vmatpush1.msra.mxu0 %v2948
    %2975 = vmatprep.subr.mxu0 0.0
    %2976 = vmatpush1.msra.mxu0 0.0
    %2977 = vmatprep.subr.mxu0 0.0
    %2978 = vmatpush1.msra.mxu0 0.0
    %2979 = vmatprep.subr.mxu0 0.0
    %2980 = vmatpush1.msra.mxu0 0.0
    %2981 = vmatprep.subr.mxu0 0.0
    %2982 = vmatpush1.msra.mxu0 0.0
    %2983 = vmatprep.subr.mxu0 0.0
    %2984 = vmatpush1.msra.mxu0 0.0
    %2985 = vmatprep.subr.mxu0 0.0
    %2986 = vmatpush1.msra.mxu0 0.0
    %2987 = vmatprep.subr.mxu0 0.0
    %2988 = vmatpush1.msra.mxu0 0.0
    %2989 = vmatprep.subr.mxu0 0.0
    %2990 = vmatpush1.msra.mxu0 0.0
    %2991 = vmatprep.subr.mxu0 0.0
    %2992 = vmatpush1.msra.mxu0 0.0
    %2993 = vmatprep.subr.mxu0 0.0
    %2994 = vmatpush1.msra.mxu0 0.0
    %2995 = vmatprep.subr.mxu0 0.0
    %2996 = vmatpush1.msra.mxu0 0.0
    %2997 = vmatprep.subr.mxu0 0.0
    %2998 = vmatpush1.msra.mxu0 0.0
    %2999 = vmatprep.subr.mxu0 0.0
    %3000 = vmatpush1.msra.mxu0 0.0
    %3001 = vmatprep.subr.mxu0 0.0
    %3002 = vmatpush1.msra.mxu0 0.0
    %3003 = vmatprep.subr.mxu0 0.0
    %3004 = vmatpush1.msra.mxu0 0.0
    %3005 = vmatprep.subr.mxu0 0.0
    %3006 = vmatpush1.msra.mxu0 0.0
    %3007 = vmatprep.subr.mxu0 0.0
    %3008 = vmatpush1.msra.mxu0 0.0
    %3009 = vmatprep.subr.mxu0 0.0
    %3010 = vmatpush1.msra.mxu0 0.0
    %3011 = vmatprep.subr.mxu0 0.0
    %3012 = vmatpush1.msra.mxu0 0.0
    %3013 = vmatprep.subr.mxu0 0.0
    %3014 = vmatpush1.msra.mxu0 0.0
    %3015 = vmatprep.subr.mxu0 0.0
    %3016 = vmatpush1.msra.mxu0 0.0
    %3017 = vmatprep.mubr.f32.mxu0 0.0
    %3018 = vmatmul.mubr.f32.gmra.mrb[0].mxu0 %v2943
    %v3019 = vpop.f32.mrb[0].mxu0
    %v3020 = vadd.f32 0.0, %v3019
    %v3021 = vpop.f32.mrb[0].mxu0
    %v3022 = vadd.f32 0.0, %v3021
    %3023 = vmatprep.mubr.f32.mxu0 0.0
    %3024 = vmatmul.mubr.f32.gmra.mrb[0].mxu0 %v2945
    %v3025 = vpop.f32.mrb[0].mxu0
    %v3026 = vadd.f32 0.0, %v3025
    %v3027 = vpop.f32.mrb[0].mxu0
    %v3028 = vadd.f32 0.0, %v3027
    %3029 = vdwg.mxu0
    %v3030 = vadd.f32 %v2913, %v3020
    %v3031 = vadd.f32 %v2914, %v3022
    %v3032 = vadd.f32 %v2915, %v3026
    %v3033 = vadd.f32 %v2916, %v3028
    %s3034 = scalar_lea.vmem %s11, 704
    %v3035 = vld [vmem:[%s3034] sm:$0xff]
    %v3036 = vld [vmem:[%s3034 + $0x8] sm:$0xff]
    %v3037 = vld [vmem:[%s3034 + $0x10] sm:$0xff]
    %v3038 = vld [vmem:[%s3034 + $0x18] sm:$0xff]
    %v3039 = vld [vmem:[%s3034 + $0x20] sm:$0xff]
    %v3040 = vld [vmem:[%s3034 + $0x28] sm:$0xff]
    %v3041 = vld [vmem:[%s3034 + $0x30] sm:$0xff]
    %v3042 = vld [vmem:[%s3034 + $0x38] sm:$0xff]
    %v3043 = vld [vmem:[%s3034 + $0x40] sm:$0xff]
    %v3044 = vld [vmem:[%s3034 + $0x48] sm:$0xff]
    %v3045 = vld [vmem:[%s3034 + $0x50] sm:$0xff]
    %v3046 = vld [vmem:[%s3034 + $0x58] sm:$0xff]
    %v3047 = vld [vmem:[%s3034 + $0x60] sm:$0xff]
    %v3048 = vld [vmem:[%s3034 + $0x68] sm:$0xff]
    %v3049 = vld [vmem:[%s3034 + $0x70] sm:$0xff]
    %v3050 = vld [vmem:[%s3034 + $0x78] sm:$0xff]
    %v3051 = vld [vmem:[%s3034 + $0x80] sm:$0xff]
    %v3052 = vld [vmem:[%s3034 + $0x88] sm:$0xff]
    %v3053 = vld [vmem:[%s3034 + $0x90] sm:$0xff]
    %v3054 = vld [vmem:[%s3034 + $0x98] sm:$0xff]
    %v3055 = vld [vmem:[%s3034 + $0xa0] sm:$0xf]
    %v3056 = vld [vmem:[%s3034 + $0xa8] sm:$0xf]
    %v3057 = vrot.slane %v2208, 4
    %v3058 = vrot.slane %v2209, 4
    %v3059 = vsel %vm703, %v3057, %v3058
    %v3060 = vsel %vm2625, %v3059, 0
    %v3062 = vsel %vm2625, %v3058, 0
    %v3065 = vsel %vm703, %v3055, 0
    %v3068 = vsel %vm703, %v3056, 0
    %3070 = vmatprep.subr.mxu0 %v3036
    %3071 = vmatpush1.msra.mxu0 %v3035
    %3072 = vmatprep.subr.mxu0 %v3038
    %3073 = vmatpush1.msra.mxu0 %v3037
    %3074 = vmatprep.subr.mxu0 %v3040
    %3075 = vmatpush1.msra.mxu0 %v3039
    %3076 = vmatprep.subr.mxu0 %v3042
    %3077 = vmatpush1.msra.mxu0 %v3041
    %3078 = vmatprep.subr.mxu0 %v3044
    %3079 = vmatpush1.msra.mxu0 %v3043
    %3080 = vmatprep.subr.mxu0 %v3046
    %3081 = vmatpush1.msra.mxu0 %v3045
    %3082 = vmatprep.subr.mxu0 %v3048
    %3083 = vmatpush1.msra.mxu0 %v3047
    %3084 = vmatprep.subr.mxu0 %v3050
    %3085 = vmatpush1.msra.mxu0 %v3049
    %3086 = vmatprep.subr.mxu0 %v3052
    %3087 = vmatpush1.msra.mxu0 %v3051
    %3088 = vmatprep.subr.mxu0 %v3054
    %3089 = vmatpush1.msra.mxu0 %v3053
    %3090 = vmatprep.subr.mxu0 %v3068
    %3091 = vmatpush1.msra.mxu0 %v3065
    %3092 = vmatprep.subr.mxu0 0.0
    %3093 = vmatpush1.msra.mxu0 0.0
    %3094 = vmatprep.subr.mxu0 0.0
    %3095 = vmatpush1.msra.mxu0 0.0
    %3096 = vmatprep.subr.mxu0 0.0
    %3097 = vmatpush1.msra.mxu0 0.0
    %3098 = vmatprep.subr.mxu0 0.0
    %3099 = vmatpush1.msra.mxu0 0.0
    %3100 = vmatprep.subr.mxu0 0.0
    %3101 = vmatpush1.msra.mxu0 0.0
    %3102 = vmatprep.subr.mxu0 0.0
    %3103 = vmatpush1.msra.mxu0 0.0
    %3104 = vmatprep.subr.mxu0 0.0
    %3105 = vmatpush1.msra.mxu0 0.0
    %3106 = vmatprep.subr.mxu0 0.0
    %3107 = vmatpush1.msra.mxu0 0.0
    %3108 = vmatprep.subr.mxu0 0.0
    %3109 = vmatpush1.msra.mxu0 0.0
    %3110 = vmatprep.subr.mxu0 0.0
    %3111 = vmatpush1.msra.mxu0 0.0
    %3112 = vmatprep.subr.mxu0 0.0
    %3113 = vmatpush1.msra.mxu0 0.0
    %3114 = vmatprep.subr.mxu0 0.0
    %3115 = vmatpush1.msra.mxu0 0.0
    %3116 = vmatprep.subr.mxu0 0.0
    %3117 = vmatpush1.msra.mxu0 0.0
    %3118 = vmatprep.subr.mxu0 0.0
    %3119 = vmatpush1.msra.mxu0 0.0
    %3120 = vmatprep.subr.mxu0 0.0
    %3121 = vmatpush1.msra.mxu0 0.0
    %3122 = vmatprep.subr.mxu0 0.0
    %3123 = vmatpush1.msra.mxu0 0.0
    %3124 = vmatprep.subr.mxu0 0.0
    %3125 = vmatpush1.msra.mxu0 0.0
    %3126 = vmatprep.subr.mxu0 0.0
    %3127 = vmatpush1.msra.mxu0 0.0
    %3128 = vmatprep.subr.mxu0 0.0
    %3129 = vmatpush1.msra.mxu0 0.0
    %3130 = vmatprep.subr.mxu0 0.0
    %3131 = vmatpush1.msra.mxu0 0.0
    %3132 = vmatprep.subr.mxu0 0.0
    %3133 = vmatpush1.msra.mxu0 0.0
    %3134 = vmatprep.mubr.f32.mxu0 0.0
    %3135 = vmatmul.mubr.f32.gmra.mrb[0].mxu0 %v3060
    %v3136 = vpop.f32.mrb[0].mxu0
    %v3137 = vadd.f32 0.0, %v3136
    %v3138 = vpop.f32.mrb[0].mxu0
    %v3139 = vadd.f32 0.0, %v3138
    %3140 = vmatprep.mubr.f32.mxu0 0.0
    %3141 = vmatmul.mubr.f32.gmra.mrb[0].mxu0 %v3062
    %v3142 = vpop.f32.mrb[0].mxu0
    %v3143 = vadd.f32 0.0, %v3142
    %v3144 = vpop.f32.mrb[0].mxu0
    %v3145 = vadd.f32 0.0, %v3144
    %3146 = vdwg.mxu0
    %v3147 = vadd.f32 %v3030, %v3137
    %v3148 = vadd.f32 %v3031, %v3139
    %v3149 = vadd.f32 %v3032, %v3143
    %v3150 = vadd.f32 %v3033, %v3145
    %v3151 = vld [vmem:[%s12] sm:$0x3]
    %v3153 = vlaneseq
    %v3154 = vshrl.u32 %v3153, 7
    %v3155 = vsub.s32 0, %v3154
    %v3156 = vrot.slane %v3151, %v3155
    %v3157 = vlaneseq
    %v3158 = vshrl.u32 %v3157, 7
    %v3159 = vsub.s32 1, %v3158
    %v3160 = vrot.slane %v3151, %v3159
    %v3163 = vadd.f32 %v3147, %v3156
    %v3164 = vadd.f32 %v3148, %v3160
    %v3165 = vadd.f32 %v3149, %v3156
    %v3166 = vadd.f32 %v3150, %v3160
    %v3169 = vrot.slane %v2573, 1
    %v3170 = vrot.slane %v2574, 1
    %v3171 = vsel %vm247, %v3169, %v3170
    %v3172 = vsel %vm2625, %v3171, 0
    %v3174 = vsel %vm2625, %v3170, 0
    %3176 = vmatprep.subr.mxu0 %v2599
    %3177 = vmatpush1.msra.mxu0 %v2598
    %3178 = vmatprep.subr.mxu0 %v2601
    %3179 = vmatpush1.msra.mxu0 %v2600
    %3180 = vmatprep.subr.mxu0 %v2603
    %3181 = vmatpush1.msra.mxu0 %v2602
    %3182 = vmatprep.subr.mxu0 %v2605
    %3183 = vmatpush1.msra.mxu0 %v2604
    %3184 = vmatprep.subr.mxu0 %v2607
    %3185 = vmatpush1.msra.mxu0 %v2606
    %3186 = vmatprep.subr.mxu0 %v2609
    %3187 = vmatpush1.msra.mxu0 %v2608
    %3188 = vmatprep.subr.mxu0 %v2611
    %3189 = vmatpush1.msra.mxu0 %v2610
    %3190 = vmatprep.subr.mxu0 %v2613
    %3191 = vmatpush1.msra.mxu0 %v2612
    %3192 = vmatprep.subr.mxu0 %v2615
    %3193 = vmatpush1.msra.mxu0 %v2614
    %3194 = vmatprep.subr.mxu0 %v2617
    %3195 = vmatpush1.msra.mxu0 %v2616
    %3196 = vmatprep.subr.mxu0 %v2634
    %3197 = vmatpush1.msra.mxu0 %v2631
    %3198 = vmatprep.subr.mxu0 0.0
    %3199 = vmatpush1.msra.mxu0 0.0
    %3200 = vmatprep.subr.mxu0 0.0
    %3201 = vmatpush1.msra.mxu0 0.0
    %3202 = vmatprep.subr.mxu0 0.0
    %3203 = vmatpush1.msra.mxu0 0.0
    %3204 = vmatprep.subr.mxu0 0.0
    %3205 = vmatpush1.msra.mxu0 0.0
    %3206 = vmatprep.subr.mxu0 0.0
    %3207 = vmatpush1.msra.mxu0 0.0
    %3208 = vmatprep.subr.mxu0 0.0
    %3209 = vmatpush1.msra.mxu0 0.0
    %3210 = vmatprep.subr.mxu0 0.0
    %3211 = vmatpush1.msra.mxu0 0.0
    %3212 = vmatprep.subr.mxu0 0.0
    %3213 = vmatpush1.msra.mxu0 0.0
    %3214 = vmatprep.subr.mxu0 0.0
    %3215 = vmatpush1.msra.mxu0 0.0
    %3216 = vmatprep.subr.mxu0 0.0
    %3217 = vmatpush1.msra.mxu0 0.0
    %3218 = vmatprep.subr.mxu0 0.0
    %3219 = vmatpush1.msra.mxu0 0.0
    %3220 = vmatprep.subr.mxu0 0.0
    %3221 = vmatpush1.msra.mxu0 0.0
    %3222 = vmatprep.subr.mxu0 0.0
    %3223 = vmatpush1.msra.mxu0 0.0
    %3224 = vmatprep.subr.mxu0 0.0
    %3225 = vmatpush1.msra.mxu0 0.0
    %3226 = vmatprep.subr.mxu0 0.0
    %3227 = vmatpush1.msra.mxu0 0.0
    %3228 = vmatprep.subr.mxu0 0.0
    %3229 = vmatpush1.msra.mxu0 0.0
    %3230 = vmatprep.subr.mxu0 0.0
    %3231 = vmatpush1.msra.mxu0 0.0
    %3232 = vmatprep.subr.mxu0 0.0
    %3233 = vmatpush1.msra.mxu0 0.0
    %3234 = vmatprep.subr.mxu0 0.0
    %3235 = vmatpush1.msra.mxu0 0.0
    %3236 = vmatprep.subr.mxu0 0.0
    %3237 = vmatpush1.msra.mxu0 0.0
    %3238 = vmatprep.subr.mxu0 0.0
    %3239 = vmatpush1.msra.mxu0 0.0
    %3240 = vmatprep.mubr.f32.mxu0 0.0
    %3241 = vmatmul.mubr.f32.gmra.mrb[0].mxu0 %v3172
    %v3242 = vpop.f32.mrb[0].mxu0
    %v3243 = vadd.f32 0.0, %v3242
    %v3244 = vpop.f32.mrb[0].mxu0
    %v3245 = vadd.f32 0.0, %v3244
    %3246 = vmatprep.mubr.f32.mxu0 0.0
    %3247 = vmatmul.mubr.f32.gmra.mrb[0].mxu0 %v3174
    %v3248 = vpop.f32.mrb[0].mxu0
    %v3249 = vadd.f32 0.0, %v3248
    %v3250 = vpop.f32.mrb[0].mxu0
    %v3251 = vadd.f32 0.0, %v3250
    %3252 = vdwg.mxu0
    %v3253 = vsel %vm2625, %v2573, 0
    %v3255 = vsel %vm2625, %v2574, 0
    %3257 = vmatprep.subr.mxu0 %v2576
    %3258 = vmatpush1.msra.mxu0 %v2575
    %3259 = vmatprep.subr.mxu0 %v2578
    %3260 = vmatpush1.msra.mxu0 %v2577
    %3261 = vmatprep.subr.mxu0 %v2580
    %3262 = vmatpush1.msra.mxu0 %v2579
    %3263 = vmatprep.subr.mxu0 %v2582
    %3264 = vmatpush1.msra.mxu0 %v2581
    %3265 = vmatprep.subr.mxu0 %v2584
    %3266 = vmatpush1.msra.mxu0 %v2583
    %3267 = vmatprep.subr.mxu0 %v2586
    %3268 = vmatpush1.msra.mxu0 %v2585
    %3269 = vmatprep.subr.mxu0 %v2588
    %3270 = vmatpush1.msra.mxu0 %v2587
    %3271 = vmatprep.subr.mxu0 %v2590
    %3272 = vmatpush1.msra.mxu0 %v2589
    %3273 = vmatprep.subr.mxu0 %v2592
    %3274 = vmatpush1.msra.mxu0 %v2591
    %3275 = vmatprep.subr.mxu0 %v2594
    %3276 = vmatpush1.msra.mxu0 %v2593
    %3277 = vmatprep.subr.mxu0 %v2721
    %3278 = vmatpush1.msra.mxu0 %v2718
    %3279 = vmatprep.subr.mxu0 0.0
    %3280 = vmatpush1.msra.mxu0 0.0
    %3281 = vmatprep.subr.mxu0 0.0
    %3282 = vmatpush1.msra.mxu0 0.0
    %3283 = vmatprep.subr.mxu0 0.0
    %3284 = vmatpush1.msra.mxu0 0.0
    %3285 = vmatprep.subr.mxu0 0.0
    %3286 = vmatpush1.msra.mxu0 0.0
    %3287 = vmatprep.subr.mxu0 0.0
    %3288 = vmatpush1.msra.mxu0 0.0
    %3289 = vmatprep.subr.mxu0 0.0
    %3290 = vmatpush1.msra.mxu0 0.0
    %3291 = vmatprep.subr.mxu0 0.0
    %3292 = vmatpush1.msra.mxu0 0.0
    %3293 = vmatprep.subr.mxu0 0.0
    %3294 = vmatpush1.msra.mxu0 0.0
    %3295 = vmatprep.subr.mxu0 0.0
    %3296 = vmatpush1.msra.mxu0 0.0
    %3297 = vmatprep.subr.mxu0 0.0
    %3298 = vmatpush1.msra.mxu0 0.0
    %3299 = vmatprep.subr.mxu0 0.0
    %3300 = vmatpush1.msra.mxu0 0.0
    %3301 = vmatprep.subr.mxu0 0.0
    %3302 = vmatpush1.msra.mxu0 0.0
    %3303 = vmatprep.subr.mxu0 0.0
    %3304 = vmatpush1.msra.mxu0 0.0
    %3305 = vmatprep.subr.mxu0 0.0
    %3306 = vmatpush1.msra.mxu0 0.0
    %3307 = vmatprep.subr.mxu0 0.0
    %3308 = vmatpush1.msra.mxu0 0.0
    %3309 = vmatprep.subr.mxu0 0.0
    %3310 = vmatpush1.msra.mxu0 0.0
    %3311 = vmatprep.subr.mxu0 0.0
    %3312 = vmatpush1.msra.mxu0 0.0
    %3313 = vmatprep.subr.mxu0 0.0
    %3314 = vmatpush1.msra.mxu0 0.0
    %3315 = vmatprep.subr.mxu0 0.0
    %3316 = vmatpush1.msra.mxu0 0.0
    %3317 = vmatprep.subr.mxu0 0.0
    %3318 = vmatpush1.msra.mxu0 0.0
    %3319 = vmatprep.subr.mxu0 0.0
    %3320 = vmatpush1.msra.mxu0 0.0
    %3321 = vmatprep.mubr.f32.mxu0 0.0
    %3322 = vmatmul.mubr.f32.gmra.mrb[0].mxu0 %v3253
    %v3323 = vpop.f32.mrb[0].mxu0
    %v3324 = vadd.f32 %v3243, %v3323
    %v3325 = vpop.f32.mrb[0].mxu0
    %v3326 = vadd.f32 %v3245, %v3325
    %3327 = vmatprep.mubr.f32.mxu0 0.0
    %3328 = vmatmul.mubr.f32.gmra.mrb[0].mxu0 %v3255
    %v3329 = vpop.f32.mrb[0].mxu0
    %v3330 = vadd.f32 %v3249, %v3329
    %v3331 = vpop.f32.mrb[0].mxu0
    %v3332 = vadd.f32 %v3251, %v3331
    %3333 = vdwg.mxu0
    %v3334 = vrot.slane %v2573, 2
    %v3335 = vrot.slane %v2574, 2
    %v3336 = vsel %vm459, %v3334, %v3335
    %v3337 = vsel %vm2625, %v3336, 0
    %v3339 = vsel %vm2625, %v3335, 0
    %3341 = vmatprep.subr.mxu0 %v2802
    %3342 = vmatpush1.msra.mxu0 %v2801
    %3343 = vmatprep.subr.mxu0 %v2804
    %3344 = vmatpush1.msra.mxu0 %v2803
    %3345 = vmatprep.subr.mxu0 %v2806
    %3346 = vmatpush1.msra.mxu0 %v2805
    %3347 = vmatprep.subr.mxu0 %v2808
    %3348 = vmatpush1.msra.mxu0 %v2807
    %3349 = vmatprep.subr.mxu0 %v2810
    %3350 = vmatpush1.msra.mxu0 %v2809
    %3351 = vmatprep.subr.mxu0 %v2812
    %3352 = vmatpush1.msra.mxu0 %v2811
    %3353 = vmatprep.subr.mxu0 %v2814
    %3354 = vmatpush1.msra.mxu0 %v2813
    %3355 = vmatprep.subr.mxu0 %v2816
    %3356 = vmatpush1.msra.mxu0 %v2815
    %3357 = vmatprep.subr.mxu0 %v2818
    %3358 = vmatpush1.msra.mxu0 %v2817
    %3359 = vmatprep.subr.mxu0 %v2820
    %3360 = vmatpush1.msra.mxu0 %v2819
    %3361 = vmatprep.subr.mxu0 %v2834
    %3362 = vmatpush1.msra.mxu0 %v2831
    %3363 = vmatprep.subr.mxu0 0.0
    %3364 = vmatpush1.msra.mxu0 0.0
    %3365 = vmatprep.subr.mxu0 0.0
    %3366 = vmatpush1.msra.mxu0 0.0
    %3367 = vmatprep.subr.mxu0 0.0
    %3368 = vmatpush1.msra.mxu0 0.0
    %3369 = vmatprep.subr.mxu0 0.0
    %3370 = vmatpush1.msra.mxu0 0.0
    %3371 = vmatprep.subr.mxu0 0.0
    %3372 = vmatpush1.msra.mxu0 0.0
    %3373 = vmatprep.subr.mxu0 0.0
    %3374 = vmatpush1.msra.mxu0 0.0
    %3375 = vmatprep.subr.mxu0 0.0
    %3376 = vmatpush1.msra.mxu0 0.0
    %3377 = vmatprep.subr.mxu0 0.0
    %3378 = vmatpush1.msra.mxu0 0.0
    %3379 = vmatprep.subr.mxu0 0.0
    %3380 = vmatpush1.msra.mxu0 0.0
    %3381 = vmatprep.subr.mxu0 0.0
    %3382 = vmatpush1.msra.mxu0 0.0
    %3383 = vmatprep.subr.mxu0 0.0
    %3384 = vmatpush1.msra.mxu0 0.0
    %3385 = vmatprep.subr.mxu0 0.0
    %3386 = vmatpush1.msra.mxu0 0.0
    %3387 = vmatprep.subr.mxu0 0.0
    %3388 = vmatpush1.msra.mxu0 0.0
    %3389 = vmatprep.subr.mxu0 0.0
    %3390 = vmatpush1.msra.mxu0 0.0
    %3391 = vmatprep.subr.mxu0 0.0
    %3392 = vmatpush1.msra.mxu0 0.0
    %3393 = vmatprep.subr.mxu0 0.0
    %3394 = vmatpush1.msra.mxu0 0.0
    %3395 = vmatprep.subr.mxu0 0.0
    %3396 = vmatpush1.msra.mxu0 0.0
    %3397 = vmatprep.subr.mxu0 0.0
    %3398 = vmatpush1.msra.mxu0 0.0
    %3399 = vmatprep.subr.mxu0 0.0
    %3400 = vmatpush1.msra.mxu0 0.0
    %3401 = vmatprep.subr.mxu0 0.0
    %3402 = vmatpush1.msra.mxu0 0.0
    %3403 = vmatprep.subr.mxu0 0.0
    %3404 = vmatpush1.msra.mxu0 0.0
    %3405 = vmatprep.mubr.f32.mxu0 0.0
    %3406 = vmatmul.mubr.f32.gmra.mrb[0].mxu0 %v3337
    %v3407 = vpop.f32.mrb[0].mxu0
    %v3408 = vadd.f32 0.0, %v3407
    %v3409 = vpop.f32.mrb[0].mxu0
    %v3410 = vadd.f32 0.0, %v3409
    %3411 = vmatprep.mubr.f32.mxu0 0.0
    %3412 = vmatmul.mubr.f32.gmra.mrb[0].mxu0 %v3339
    %v3413 = vpop.f32.mrb[0].mxu0
    %v3414 = vadd.f32 0.0, %v3413
    %v3415 = vpop.f32.mrb[0].mxu0
    %v3416 = vadd.f32 0.0, %v3415
    %3417 = vdwg.mxu0
    %v3418 = vadd.f32 %v3324, %v3408
    %v3419 = vadd.f32 %v3326, %v3410
    %v3420 = vadd.f32 %v3330, %v3414
    %v3421 = vadd.f32 %v3332, %v3416
    %v3422 = vrot.slane %v2573, 3
    %v3423 = vrot.slane %v2574, 3
    %v3424 = vsel %vm581, %v3422, %v3423
    %v3425 = vsel %vm2625, %v3424, 0
    %v3427 = vsel %vm2625, %v3423, 0
    %3429 = vmatprep.subr.mxu0 %v2919
    %3430 = vmatpush1.msra.mxu0 %v2918
    %3431 = vmatprep.subr.mxu0 %v2921
    %3432 = vmatpush1.msra.mxu0 %v2920
    %3433 = vmatprep.subr.mxu0 %v2923
    %3434 = vmatpush1.msra.mxu0 %v2922
    %3435 = vmatprep.subr.mxu0 %v2925
    %3436 = vmatpush1.msra.mxu0 %v2924
    %3437 = vmatprep.subr.mxu0 %v2927
    %3438 = vmatpush1.msra.mxu0 %v2926
    %3439 = vmatprep.subr.mxu0 %v2929
    %3440 = vmatpush1.msra.mxu0 %v2928
    %3441 = vmatprep.subr.mxu0 %v2931
    %3442 = vmatpush1.msra.mxu0 %v2930
    %3443 = vmatprep.subr.mxu0 %v2933
    %3444 = vmatpush1.msra.mxu0 %v2932
    %3445 = vmatprep.subr.mxu0 %v2935
    %3446 = vmatpush1.msra.mxu0 %v2934
    %3447 = vmatprep.subr.mxu0 %v2937
    %3448 = vmatpush1.msra.mxu0 %v2936
    %3449 = vmatprep.subr.mxu0 %v2951
    %3450 = vmatpush1.msra.mxu0 %v2948
    %3451 = vmatprep.subr.mxu0 0.0
    %3452 = vmatpush1.msra.mxu0 0.0
    %3453 = vmatprep.subr.mxu0 0.0
    %3454 = vmatpush1.msra.mxu0 0.0
    %3455 = vmatprep.subr.mxu0 0.0
    %3456 = vmatpush1.msra.mxu0 0.0
    %3457 = vmatprep.subr.mxu0 0.0
    %3458 = vmatpush1.msra.mxu0 0.0
    %3459 = vmatprep.subr.mxu0 0.0
    %3460 = vmatpush1.msra.mxu0 0.0
    %3461 = vmatprep.subr.mxu0 0.0
    %3462 = vmatpush1.msra.mxu0 0.0
    %3463 = vmatprep.subr.mxu0 0.0
    %3464 = vmatpush1.msra.mxu0 0.0
    %3465 = vmatprep.subr.mxu0 0.0
    %3466 = vmatpush1.msra.mxu0 0.0
    %3467 = vmatprep.subr.mxu0 0.0
    %3468 = vmatpush1.msra.mxu0 0.0
    %3469 = vmatprep.subr.mxu0 0.0
    %3470 = vmatpush1.msra.mxu0 0.0
    %3471 = vmatprep.subr.mxu0 0.0
    %3472 = vmatpush1.msra.mxu0 0.0
    %3473 = vmatprep.subr.mxu0 0.0
    %3474 = vmatpush1.msra.mxu0 0.0
    %3475 = vmatprep.subr.mxu0 0.0
    %3476 = vmatpush1.msra.mxu0 0.0
    %3477 = vmatprep.subr.mxu0 0.0
    %3478 = vmatpush1.msra.mxu0 0.0
    %3479 = vmatprep.subr.mxu0 0.0
    %3480 = vmatpush1.msra.mxu0 0.0
    %3481 = vmatprep.subr.mxu0 0.0
    %3482 = vmatpush1.msra.mxu0 0.0
    %3483 = vmatprep.subr.mxu0 0.0
    %3484 = vmatpush1.msra.mxu0 0.0
    %3485 = vmatprep.subr.mxu0 0.0
    %3486 = vmatpush1.msra.mxu0 0.0
    %3487 = vmatprep.subr.mxu0 0.0
    %3488 = vmatpush1.msra.mxu0 0.0
    %3489 = vmatprep.subr.mxu0 0.0
    %3490 = vmatpush1.msra.mxu0 0.0
    %3491 = vmatprep.subr.mxu0 0.0
    %3492 = vmatpush1.msra.mxu0 0.0
    %3493 = vmatprep.mubr.f32.mxu0 0.0
    %3494 = vmatmul.mubr.f32.gmra.mrb[0].mxu0 %v3425
    %v3495 = vpop.f32.mrb[0].mxu0
    %v3496 = vadd.f32 0.0, %v3495
    %v3497 = vpop.f32.mrb[0].mxu0
    %v3498 = vadd.f32 0.0, %v3497
    %3499 = vmatprep.mubr.f32.mxu0 0.0
    %3500 = vmatmul.mubr.f32.gmra.mrb[0].mxu0 %v3427
    %v3501 = vpop.f32.mrb[0].mxu0
    %v3502 = vadd.f32 0.0, %v3501
    %v3503 = vpop.f32.mrb[0].mxu0
    %v3504 = vadd.f32 0.0, %v3503
    %3505 = vdwg.mxu0
    %v3506 = vadd.f32 %v3418, %v3496
    %v3507 = vadd.f32 %v3419, %v3498
    %v3508 = vadd.f32 %v3420, %v3502
    %v3509 = vadd.f32 %v3421, %v3504
    %v3510 = vrot.slane %v2573, 4
    %v3511 = vrot.slane %v2574, 4
    %v3512 = vsel %vm703, %v3510, %v3511
    %v3513 = vsel %vm2625, %v3512, 0
    %v3515 = vsel %vm2625, %v3511, 0
    %3517 = vmatprep.subr.mxu0 %v3036
    %3518 = vmatpush1.msra.mxu0 %v3035
    %3519 = vmatprep.subr.mxu0 %v3038
    %3520 = vmatpush1.msra.mxu0 %v3037
    %3521 = vmatprep.subr.mxu0 %v3040
    %3522 = vmatpush1.msra.mxu0 %v3039
    %3523 = vmatprep.subr.mxu0 %v3042
    %3524 = vmatpush1.msra.mxu0 %v3041
    %3525 = vmatprep.subr.mxu0 %v3044
    %3526 = vmatpush1.msra.mxu0 %v3043
    %3527 = vmatprep.subr.mxu0 %v3046
    %3528 = vmatpush1.msra.mxu0 %v3045
    %3529 = vmatprep.subr.mxu0 %v3048
    %3530 = vmatpush1.msra.mxu0 %v3047
    %3531 = vmatprep.subr.mxu0 %v3050
    %3532 = vmatpush1.msra.mxu0 %v3049
    %3533 = vmatprep.subr.mxu0 %v3052
    %3534 = vmatpush1.msra.mxu0 %v3051
    %3535 = vmatprep.subr.mxu0 %v3054
    %3536 = vmatpush1.msra.mxu0 %v3053
    %3537 = vmatprep.subr.mxu0 %v3068
    %3538 = vmatpush1.msra.mxu0 %v3065
    %3539 = vmatprep.subr.mxu0 0.0
    %3540 = vmatpush1.msra.mxu0 0.0
    %3541 = vmatprep.subr.mxu0 0.0
    %3542 = vmatpush1.msra.mxu0 0.0
    %3543 = vmatprep.subr.mxu0 0.0
    %3544 = vmatpush1.msra.mxu0 0.0
    %3545 = vmatprep.subr.mxu0 0.0
    %3546 = vmatpush1.msra.mxu0 0.0
    %3547 = vmatprep.subr.mxu0 0.0
    %3548 = vmatpush1.msra.mxu0 0.0
    %3549 = vmatprep.subr.mxu0 0.0
    %3550 = vmatpush1.msra.mxu0 0.0
    %3551 = vmatprep.subr.mxu0 0.0
    %3552 = vmatpush1.msra.mxu0 0.0
    %3553 = vmatprep.subr.mxu0 0.0
    %3554 = vmatpush1.msra.mxu0 0.0
    %3555 = vmatprep.subr.mxu0 0.0
    %3556 = vmatpush1.msra.mxu0 0.0
    %3557 = vmatprep.subr.mxu0 0.0
    %3558 = vmatpush1.msra.mxu0 0.0
    %3559 = vmatprep.subr.mxu0 0.0
    %3560 = vmatpush1.msra.mxu0 0.0
    %3561 = vmatprep.subr.mxu0 0.0
    %3562 = vmatpush1.msra.mxu0 0.0
    %3563 = vmatprep.subr.mxu0 0.0
    %3564 = vmatpush1.msra.mxu0 0.0
    %3565 = vmatprep.subr.mxu0 0.0
    %3566 = vmatpush1.msra.mxu0 0.0
    %3567 = vmatprep.subr.mxu0 0.0
    %3568 = vmatpush1.msra.mxu0 0.0
    %3569 = vmatprep.subr.mxu0 0.0
    %3570 = vmatpush1.msra.mxu0 0.0
    %3571 = vmatprep.subr.mxu0 0.0
    %3572 = vmatpush1.msra.mxu0 0.0
    %3573 = vmatprep.subr.mxu0 0.0
    %3574 = vmatpush1.msra.mxu0 0.0
    %3575 = vmatprep.subr.mxu0 0.0
    %3576 = vmatpush1.msra.mxu0 0.0
    %3577 = vmatprep.subr.mxu0 0.0
    %3578 = vmatpush1.msra.mxu0 0.0
    %3579 = vmatprep.subr.mxu0 0.0
    %3580 = vmatpush1.msra.mxu0 0.0
    %3581 = vmatprep.mubr.f32.mxu0 0.0
    %3582 = vmatmul.mubr.f32.gmra.mrb[0].mxu0 %v3513
    %v3583 = vpop.f32.mrb[0].mxu0
    %v3584 = vadd.f32 0.0, %v3583
    %v3585 = vpop.f32.mrb[0].mxu0
    %v3586 = vadd.f32 0.0, %v3585
    %3587 = vmatprep.mubr.f32.mxu0 0.0
    %3588 = vmatmul.mubr.f32.gmra.mrb[0].mxu0 %v3515
    %v3589 = vpop.f32.mrb[0].mxu0
    %v3590 = vadd.f32 0.0, %v3589
    %v3591 = vpop.f32.mrb[0].mxu0
    %v3592 = vadd.f32 0.0, %v3591
    %3593 = vdwg.mxu0
    %v3594 = vadd.f32 %v3506, %v3584
    %v3595 = vadd.f32 %v3507, %v3586
    %v3596 = vadd.f32 %v3508, %v3590
    %v3597 = vadd.f32 %v3509, %v3592
    %v3598 = vadd.f32 %v3594, %v3156
    %v3599 = vadd.f32 %v3595, %v3160
    %v3600 = vadd.f32 %v3596, %v3156
    %v3601 = vadd.f32 %v3597, %v3160
    %vm3602 = vcmask 1041408
    %v3603 = vsel %vm3602, %v3165, 0.0
    %v3604 = vadd.f32 %v3163, %v3603
    %v3605 = vrot.slane %v3604, 4
    %v3606 = vadd.f32 %v3604, %v3605
    %v3607 = vrot.slane %v3606, 2
    %v3608 = vadd.f32 %v3606, %v3607
    %v3609 = vrot.slane %v3608, 1
    %v3610 = vadd.f32 %v3608, %v3609
    %v3611 = vsel %vm255, %v3164, 0.0
    %vm3612 = vcmask 254976
    %v3613 = vsel %vm3612, %v3166, 0.0
    %v3614 = vadd.f32 %v3611, %v3613
    %v3615 = vrot.slane %v3614, 4
    %v3616 = vadd.f32 %v3614, %v3615
    %v3617 = vrot.slane %v3616, 2
    %v3618 = vadd.f32 %v3616, %v3617
    %v3619 = vrot.slane %v3618, 1
    %v3620 = vadd.f32 %v3618, %v3619
    %v3621 = vadd.f32 %v3610, 0.0
    %v3622 = vadd.f32 %v3620, 0.0
    %v3623 = vmul.f32 %v3163, %v3163
    %v3624 = vmul.f32 %v3164, %v3164
    %v3625 = vmul.f32 %v3165, %v3165
    %v3626 = vmul.f32 %v3166, %v3166
    %v3627 = vsel %vm3602, %v3625, 0.0
    %v3628 = vadd.f32 %v3623, %v3627
    %v3629 = vrot.slane %v3628, 4
    %v3630 = vadd.f32 %v3628, %v3629
    %v3631 = vrot.slane %v3630, 2
    %v3632 = vadd.f32 %v3630, %v3631
    %v3633 = vrot.slane %v3632, 1
    %v3634 = vadd.f32 %v3632, %v3633
    %v3635 = vsel %vm255, %v3624, 0.0
    %v3636 = vsel %vm3612, %v3626, 0.0
    %v3637 = vadd.f32 %v3635, %v3636
    %v3638 = vrot.slane %v3637, 4
    %v3639 = vadd.f32 %v3637, %v3638
    %v3640 = vrot.slane %v3639, 2
    %v3641 = vadd.f32 %v3639, %v3640
    %v3642 = vrot.slane %v3641, 1
    %v3643 = vadd.f32 %v3641, %v3642
    %v3644 = vadd.f32 %v3634, 0.0
    %v3645 = vadd.f32 %v3643, 0.0
    %v3646 = vsel %vm3602, %v3600, 0.0
    %v3647 = vadd.f32 %v3598, %v3646
    %v3648 = vrot.slane %v3647, 4
    %v3649 = vadd.f32 %v3647, %v3648
    %v3650 = vrot.slane %v3649, 2
    %v3651 = vadd.f32 %v3649, %v3650
    %v3652 = vrot.slane %v3651, 1
    %v3653 = vadd.f32 %v3651, %v3652
    %v3654 = vsel %vm255, %v3599, 0.0
    %v3655 = vsel %vm3612, %v3601, 0.0
    %v3656 = vadd.f32 %v3654, %v3655
    %v3657 = vrot.slane %v3656, 4
    %v3658 = vadd.f32 %v3656, %v3657
    %v3659 = vrot.slane %v3658, 2
    %v3660 = vadd.f32 %v3658, %v3659
    %v3661 = vrot.slane %v3660, 1
    %v3662 = vadd.f32 %v3660, %v3661
    %v3663 = vadd.f32 %v3621, %v3653
    %v3664 = vadd.f32 %v3622, %v3662
    %v3665 = vmul.f32 %v3598, %v3598
    %v3666 = vmul.f32 %v3599, %v3599
    %v3667 = vmul.f32 %v3600, %v3600
    %v3668 = vmul.f32 %v3601, %v3601
    %v3669 = vsel %vm3602, %v3667, 0.0
    %v3670 = vadd.f32 %v3665, %v3669
    %v3671 = vrot.slane %v3670, 4
    %v3672 = vadd.f32 %v3670, %v3671
    %v3673 = vrot.slane %v3672, 2
    %v3674 = vadd.f32 %v3672, %v3673
    %v3675 = vrot.slane %v3674, 1
    %v3676 = vadd.f32 %v3674, %v3675
    %v3677 = vsel %vm255, %v3666, 0.0
    %v3678 = vsel %vm3612, %v3668, 0.0
    %v3679 = vadd.f32 %v3677, %v3678
    %v3680 = vrot.slane %v3679, 4
    %v3681 = vadd.f32 %v3679, %v3680
    %v3682 = vrot.slane %v3681, 2
    %v3683 = vadd.f32 %v3681, %v3682
    %v3684 = vrot.slane %v3683, 1
    %v3685 = vadd.f32 %v3683, %v3684
    %v3686 = vadd.f32 %v3644, %v3676
    %v3687 = vadd.f32 %v3645, %v3685
    %v3689 = vsel %vm255, %v3664, 0
    %3691 = vmatprep.subr.mxu0 0.0
    %3692 = vmatpush1.msra.mxu0 %v156
    %3693 = vmatprep.subr.mxu0 0.0
    %3694 = vmatpush1.msra.mxu0 %v157
    %3695 = vmatprep.subr.mxu0 0.0
    %3696 = vmatpush1.msra.mxu0 %v158
    %3697 = vmatprep.subr.mxu0 0.0
    %3698 = vmatpush1.msra.mxu0 %v159
    %3699 = vmatprep.subr.mxu0 0.0
    %3700 = vmatpush1.msra.mxu0 %v160
    %3701 = vmatprep.subr.mxu0 0.0
    %3702 = vmatpush1.msra.mxu0 %v161
    %3703 = vmatprep.subr.mxu0 0.0
    %3704 = vmatpush1.msra.mxu0 %v162
    %3705 = vmatprep.subr.mxu0 0.0
    %3706 = vmatpush1.msra.mxu0 %v163
    %3707 = vmatprep.subr.mxu0 0.0
    %3708 = vmatpush1.msra.mxu0 %v164
    %3709 = vmatprep.subr.mxu0 0.0
    %3710 = vmatpush1.msra.mxu0 %v165
    %3711 = vmatprep.subr.mxu0 0.0
    %3712 = vmatpush1.msra.mxu0 %v166
    %3713 = vmatprep.subr.mxu0 0.0
    %3714 = vmatpush1.msra.mxu0 %v167
    %3715 = vmatprep.subr.mxu0 0.0
    %3716 = vmatpush1.msra.mxu0 %v168
    %3717 = vmatprep.subr.mxu0 0.0
    %3718 = vmatpush1.msra.mxu0 %v169
    %3719 = vmatprep.subr.mxu0 0.0
    %3720 = vmatpush1.msra.mxu0 %v170
    %3721 = vmatprep.subr.mxu0 0.0
    %3722 = vmatpush1.msra.mxu0 %v171
    %3723 = vmatprep.subr.mxu0 0.0
    %3724 = vmatpush1.msra.mxu0 %v172
    %3725 = vmatprep.subr.mxu0 0.0
    %3726 = vmatpush1.msra.mxu0 %v173
    %3727 = vmatprep.subr.mxu0 0.0
    %3728 = vmatpush1.msra.mxu0 %v174
    %3729 = vmatprep.subr.mxu0 0.0
    %3730 = vmatpush1.msra.mxu0 %v175
    %3731 = vmatprep.subr.mxu0 0.0
    %3732 = vmatpush1.msra.mxu0 0.0
    %3733 = vmatprep.subr.mxu0 0.0
    %3734 = vmatpush1.msra.mxu0 0.0
    %3735 = vmatprep.subr.mxu0 0.0
    %3736 = vmatpush1.msra.mxu0 0.0
    %3737 = vmatprep.subr.mxu0 0.0
    %3738 = vmatpush1.msra.mxu0 0.0
    %3739 = vmatprep.subr.mxu0 0.0
    %3740 = vmatpush1.msra.mxu0 0.0
    %3741 = vmatprep.subr.mxu0 0.0
    %3742 = vmatpush1.msra.mxu0 0.0
    %3743 = vmatprep.subr.mxu0 0.0
    %3744 = vmatpush1.msra.mxu0 0.0
    %3745 = vmatprep.subr.mxu0 0.0
    %3746 = vmatpush1.msra.mxu0 0.0
    %3747 = vmatprep.subr.mxu0 0.0
    %3748 = vmatpush1.msra.mxu0 0.0
    %3749 = vmatprep.subr.mxu0 0.0
    %3750 = vmatpush1.msra.mxu0 0.0
    %3751 = vmatprep.subr.mxu0 0.0
    %3752 = vmatpush1.msra.mxu0 0.0
    %3753 = vmatprep.subr.mxu0 0.0
    %3754 = vmatpush1.msra.mxu0 0.0
    %3755 = vmatprep.mubr.f32.mxu0 %v3689
    %3756 = vmatmul.mubr.f32.gmra.mrb[0].mxu0 %v3663
    %v3757 = vpop.f32.mrb[0].mxu0
    %v3758 = vadd.f32 0.0, %v3757
    %v3759 = vpop.f32.mrb[0].mxu0
    %3760 = vdwg.mxu0
    %v3761 = vrcp.pop 200.0
    %v3762 = vmul.f32 %v3758, %v3761
    %v3764 = vsel %vm255, %v3687, 0
    %3766 = vmatprep.subr.mxu0 0.0
    %3767 = vmatpush1.msra.mxu0 %v156
    %3768 = vmatprep.subr.mxu0 0.0
    %3769 = vmatpush1.msra.mxu0 %v157
    %3770 = vmatprep.subr.mxu0 0.0
    %3771 = vmatpush1.msra.mxu0 %v158
    %3772 = vmatprep.subr.mxu0 0.0
    %3773 = vmatpush1.msra.mxu0 %v159
    %3774 = vmatprep.subr.mxu0 0.0
    %3775 = vmatpush1.msra.mxu0 %v160
    %3776 = vmatprep.subr.mxu0 0.0
    %3777 = vmatpush1.msra.mxu0 %v161
    %3778 = vmatprep.subr.mxu0 0.0
    %3779 = vmatpush1.msra.mxu0 %v162
    %3780 = vmatprep.subr.mxu0 0.0
    %3781 = vmatpush1.msra.mxu0 %v163
    %3782 = vmatprep.subr.mxu0 0.0
    %3783 = vmatpush1.msra.mxu0 %v164
    %3784 = vmatprep.subr.mxu0 0.0
    %3785 = vmatpush1.msra.mxu0 %v165
    %3786 = vmatprep.subr.mxu0 0.0
    %3787 = vmatpush1.msra.mxu0 %v166
    %3788 = vmatprep.subr.mxu0 0.0
    %3789 = vmatpush1.msra.mxu0 %v167
    %3790 = vmatprep.subr.mxu0 0.0
    %3791 = vmatpush1.msra.mxu0 %v168
    %3792 = vmatprep.subr.mxu0 0.0
    %3793 = vmatpush1.msra.mxu0 %v169
    %3794 = vmatprep.subr.mxu0 0.0
    %3795 = vmatpush1.msra.mxu0 %v170
    %3796 = vmatprep.subr.mxu0 0.0
    %3797 = vmatpush1.msra.mxu0 %v171
    %3798 = vmatprep.subr.mxu0 0.0
    %3799 = vmatpush1.msra.mxu0 %v172
    %3800 = vmatprep.subr.mxu0 0.0
    %3801 = vmatpush1.msra.mxu0 %v173
    %3802 = vmatprep.subr.mxu0 0.0
    %3803 = vmatpush1.msra.mxu0 %v174
    %3804 = vmatprep.subr.mxu0 0.0
    %3805 = vmatpush1.msra.mxu0 %v175
    %3806 = vmatprep.subr.mxu0 0.0
    %3807 = vmatpush1.msra.mxu0 0.0
    %3808 = vmatprep.subr.mxu0 0.0
    %3809 = vmatpush1.msra.mxu0 0.0
    %3810 = vmatprep.subr.mxu0 0.0
    %3811 = vmatpush1.msra.mxu0 0.0
    %3812 = vmatprep.subr.mxu0 0.0
    %3813 = vmatpush1.msra.mxu0 0.0
    %3814 = vmatprep.subr.mxu0 0.0
    %3815 = vmatpush1.msra.mxu0 0.0
    %3816 = vmatprep.subr.mxu0 0.0
    %3817 = vmatpush1.msra.mxu0 0.0
    %3818 = vmatprep.subr.mxu0 0.0
    %3819 = vmatpush1.msra.mxu0 0.0
    %3820 = vmatprep.subr.mxu0 0.0
    %3821 = vmatpush1.msra.mxu0 0.0
    %3822 = vmatprep.subr.mxu0 0.0
    %3823 = vmatpush1.msra.mxu0 0.0
    %3824 = vmatprep.subr.mxu0 0.0
    %3825 = vmatpush1.msra.mxu0 0.0
    %3826 = vmatprep.subr.mxu0 0.0
    %3827 = vmatpush1.msra.mxu0 0.0
    %3828 = vmatprep.subr.mxu0 0.0
    %3829 = vmatpush1.msra.mxu0 0.0
    %3830 = vmatprep.mubr.f32.mxu0 %v3764
    %3831 = vmatmul.mubr.f32.gmra.mrb[0].mxu0 %v3686
    %v3832 = vpop.f32.mrb[0].mxu0
    %v3833 = vadd.f32 0.0, %v3832
    %v3834 = vpop.f32.mrb[0].mxu0
    %3835 = vdwg.mxu0
    %v3836 = vmul.f32 %v3833, %v3761
    %v3837 = vmul.f32 %v3762, %v3762
    %v3838 = vsub.f32 %v3836, %v3837
    %v3839 = vmax.f32 %v3838, 0.0
    %v3840 = vld [vmem:[%s13] sm:$0x1]
    %v3841 = vadd.f32 %v3839, 1e-05
    %v3842 = vrsqrt.pop %v3841
    %v3843 = vmul.f32 %v3840, %v3842
    %v3844 = vld [vmem:[%s14] sm:$0x1]
    %v3845 = vmul.f32 %v3762, %v3843
    %v3846 = vsub.f32 %v3844, %v3845
    %vm3847 = vcmask 130048
    %v3849 = vsel %vm3847, %v3843, 0
    %3851 = vmatprep.subr.mxu0 %v177
    %3852 = vmatpush1.msra.mxu0 %v176
    %3853 = vmatprep.subr.mxu0 %v179
    %3854 = vmatpush1.msra.mxu0 %v178
    %3855 = vmatprep.subr.mxu0 0.0
    %3856 = vmatpush1.msra.mxu0 0.0
    %3857 = vmatprep.subr.mxu0 0.0
    %3858 = vmatpush1.msra.mxu0 0.0
    %3859 = vmatprep.subr.mxu0 0.0
    %3860 = vmatpush1.msra.mxu0 0.0
    %3861 = vmatprep.subr.mxu0 0.0
    %3862 = vmatpush1.msra.mxu0 0.0
    %3863 = vmatprep.subr.mxu0 0.0
    %3864 = vmatpush1.msra.mxu0 0.0
    %3865 = vmatprep.subr.mxu0 0.0
    %3866 = vmatpush1.msra.mxu0 0.0
    %3867 = vmatprep.subr.mxu0 0.0
    %3868 = vmatpush1.msra.mxu0 0.0
    %3869 = vmatprep.subr.mxu0 0.0
    %3870 = vmatpush1.msra.mxu0 0.0
    %3871 = vmatprep.subr.mxu0 0.0
    %3872 = vmatpush1.msra.mxu0 0.0
    %3873 = vmatprep.subr.mxu0 0.0
    %3874 = vmatpush1.msra.mxu0 0.0
    %3875 = vmatprep.subr.mxu0 0.0
    %3876 = vmatpush1.msra.mxu0 0.0
    %3877 = vmatprep.subr.mxu0 0.0
    %3878 = vmatpush1.msra.mxu0 0.0
    %3879 = vmatprep.subr.mxu0 0.0
    %3880 = vmatpush1.msra.mxu0 0.0
    %3881 = vmatprep.subr.mxu0 0.0
    %3882 = vmatpush1.msra.mxu0 0.0
    %3883 = vmatprep.subr.mxu0 0.0
    %3884 = vmatpush1.msra.mxu0 0.0
    %3885 = vmatprep.subr.mxu0 0.0
    %3886 = vmatpush1.msra.mxu0 0.0
    %3887 = vmatprep.subr.mxu0 0.0
    %3888 = vmatpush1.msra.mxu0 0.0
    %3889 = vmatprep.subr.mxu0 0.0
    %3890 = vmatpush1.msra.mxu0 0.0
    %3891 = vmatprep.subr.mxu0 0.0
    %3892 = vmatpush1.msra.mxu0 0.0
    %3893 = vmatprep.subr.mxu0 0.0
    %3894 = vmatpush1.msra.mxu0 0.0
    %3895 = vmatprep.subr.mxu0 0.0
    %3896 = vmatpush1.msra.mxu0 0.0
    %3897 = vmatprep.subr.mxu0 0.0
    %3898 = vmatpush1.msra.mxu0 0.0
    %3899 = vmatprep.subr.mxu0 0.0
    %3900 = vmatpush1.msra.mxu0 0.0
    %3901 = vmatprep.subr.mxu0 0.0
    %3902 = vmatpush1.msra.mxu0 0.0
    %3903 = vmatprep.subr.mxu0 0.0
    %3904 = vmatpush1.msra.mxu0 0.0
    %3905 = vmatprep.subr.mxu0 0.0
    %3906 = vmatpush1.msra.mxu0 0.0
    %3907 = vmatprep.subr.mxu0 0.0
    %3908 = vmatpush1.msra.mxu0 0.0
    %3909 = vmatprep.subr.mxu0 0.0
    %3910 = vmatpush1.msra.mxu0 0.0
    %3911 = vmatprep.subr.mxu0 0.0
    %3912 = vmatpush1.msra.mxu0 0.0
    %3913 = vmatprep.subr.mxu0 0.0
    %3914 = vmatpush1.msra.mxu0 0.0
    %3915 = vmatprep.mubr.f32.mxu0 0.0
    %3916 = vmatmul.mubr.f32.gmra.mrb[0].mxu0 %v3849
    %v3917 = vpop.f32.mrb[0].mxu0
    %v3918 = vadd.f32 0.0, %v3917
    %v3919 = vpop.f32.mrb[0].mxu0
    %v3920 = vadd.f32 0.0, %v3919
    %3921 = vdwg.mxu0
    %v3923 = vsel %vm3847, %v3846, 0
    %3925 = vmatprep.subr.mxu0 %v177
    %3926 = vmatpush1.msra.mxu0 %v176
    %3927 = vmatprep.subr.mxu0 %v179
    %3928 = vmatpush1.msra.mxu0 %v178
    %3929 = vmatprep.subr.mxu0 0.0
    %3930 = vmatpush1.msra.mxu0 0.0
    %3931 = vmatprep.subr.mxu0 0.0
    %3932 = vmatpush1.msra.mxu0 0.0
    %3933 = vmatprep.subr.mxu0 0.0
    %3934 = vmatpush1.msra.mxu0 0.0
    %3935 = vmatprep.subr.mxu0 0.0
    %3936 = vmatpush1.msra.mxu0 0.0
    %3937 = vmatprep.subr.mxu0 0.0
    %3938 = vmatpush1.msra.mxu0 0.0
    %3939 = vmatprep.subr.mxu0 0.0
    %3940 = vmatpush1.msra.mxu0 0.0
    %3941 = vmatprep.subr.mxu0 0.0
    %3942 = vmatpush1.msra.mxu0 0.0
    %3943 = vmatprep.subr.mxu0 0.0
    %3944 = vmatpush1.msra.mxu0 0.0
    %3945 = vmatprep.subr.mxu0 0.0
    %3946 = vmatpush1.msra.mxu0 0.0
    %3947 = vmatprep.subr.mxu0 0.0
    %3948 = vmatpush1.msra.mxu0 0.0
    %3949 = vmatprep.subr.mxu0 0.0
    %3950 = vmatpush1.msra.mxu0 0.0
    %3951 = vmatprep.subr.mxu0 0.0
    %3952 = vmatpush1.msra.mxu0 0.0
    %3953 = vmatprep.subr.mxu0 0.0
    %3954 = vmatpush1.msra.mxu0 0.0
    %3955 = vmatprep.subr.mxu0 0.0
    %3956 = vmatpush1.msra.mxu0 0.0
    %3957 = vmatprep.subr.mxu0 0.0
    %3958 = vmatpush1.msra.mxu0 0.0
    %3959 = vmatprep.subr.mxu0 0.0
    %3960 = vmatpush1.msra.mxu0 0.0
    %3961 = vmatprep.subr.mxu0 0.0
    %3962 = vmatpush1.msra.mxu0 0.0
    %3963 = vmatprep.subr.mxu0 0.0
    %3964 = vmatpush1.msra.mxu0 0.0
    %3965 = vmatprep.subr.mxu0 0.0
    %3966 = vmatpush1.msra.mxu0 0.0
    %3967 = vmatprep.subr.mxu0 0.0
    %3968 = vmatpush1.msra.mxu0 0.0
    %3969 = vmatprep.subr.mxu0 0.0
    %3970 = vmatpush1.msra.mxu0 0.0
    %3971 = vmatprep.subr.mxu0 0.0
    %3972 = vmatpush1.msra.mxu0 0.0
    %3973 = vmatprep.subr.mxu0 0.0
    %3974 = vmatpush1.msra.mxu0 0.0
    %3975 = vmatprep.subr.mxu0 0.0
    %3976 = vmatpush1.msra.mxu0 0.0
    %3977 = vmatprep.subr.mxu0 0.0
    %3978 = vmatpush1.msra.mxu0 0.0
    %3979 = vmatprep.subr.mxu0 0.0
    %3980 = vmatpush1.msra.mxu0 0.0
    %3981 = vmatprep.subr.mxu0 0.0
    %3982 = vmatpush1.msra.mxu0 0.0
    %3983 = vmatprep.subr.mxu0 0.0
    %3984 = vmatpush1.msra.mxu0 0.0
    %3985 = vmatprep.subr.mxu0 0.0
    %3986 = vmatpush1.msra.mxu0 0.0
    %3987 = vmatprep.subr.mxu0 0.0
    %3988 = vmatpush1.msra.mxu0 0.0
    %3989 = vmatprep.mubr.f32.mxu0 0.0
    %3990 = vmatmul.mubr.f32.gmra.mrb[0].mxu0 %v3923
    %v3991 = vpop.f32.mrb[0].mxu0
    %v3992 = vadd.f32 0.0, %v3991
    %v3993 = vpop.f32.mrb[0].mxu0
    %v3994 = vadd.f32 0.0, %v3993
    %3995 = vdwg.mxu0
    %v3996 = vlaneseq
    %v3997 = vshrl.u32 %v3996, 7
    %v3998 = vsub.s32 0, %v3997
    %v3999 = vrot.slane %v3918, %v3998
    %v4000 = vlaneseq
    %v4001 = vshrl.u32 %v4000, 7
    %v4002 = vsub.s32 0, %v4001
    %v4003 = vrot.slane %v3920, %v4002
    %v4004 = vmul.f32 %v3163, %v3999
    %v4005 = vmul.f32 %v3164, %v4003
    %v4006 = vmul.f32 %v3165, %v3999
    %v4007 = vmul.f32 %v3166, %v4003
    %v4008 = vlaneseq
    %v4009 = vshrl.u32 %v4008, 7
    %v4010 = vsub.s32 0, %v4009
    %v4011 = vrot.slane %v3992, %v4010
    %v4012 = vlaneseq
    %v4013 = vshrl.u32 %v4012, 7
    %v4014 = vsub.s32 0, %v4013
    %v4015 = vrot.slane %v3994, %v4014
    %v4016 = vadd.f32 %v4004, %v4011
    %v4017 = vadd.f32 %v4005, %v4015
    %v4018 = vadd.f32 %v4006, %v4011
    %v4019 = vadd.f32 %v4007, %v4015
    %v4020 = vmax.f32 %v4016, 0.0
    %v4021 = vmax.f32 %v4017, 0.0
    %v4022 = vmax.f32 %v4018, 0.0
    %v4023 = vmax.f32 %v4019, 0.0
    %v4025 = vsel %vm255, %v4021, 0
    %v4028 = vsel %vm255, %v4023, 0
    %4030 = vmatprep.subr.mxu0 0.0
    %4031 = vmatpush1.msra.mxu0 %v180
    %4032 = vmatprep.subr.mxu0 0.0
    %4033 = vmatpush1.msra.mxu0 %v181
    %4034 = vmatprep.subr.mxu0 0.0
    %4035 = vmatpush1.msra.mxu0 %v182
    %4036 = vmatprep.subr.mxu0 0.0
    %4037 = vmatpush1.msra.mxu0 %v183
    %4038 = vmatprep.subr.mxu0 0.0
    %4039 = vmatpush1.msra.mxu0 %v184
    %4040 = vmatprep.subr.mxu0 0.0
    %4041 = vmatpush1.msra.mxu0 %v185
    %4042 = vmatprep.subr.mxu0 0.0
    %4043 = vmatpush1.msra.mxu0 %v186
    %4044 = vmatprep.subr.mxu0 0.0
    %4045 = vmatpush1.msra.mxu0 %v187
    %4046 = vmatprep.subr.mxu0 0.0
    %4047 = vmatpush1.msra.mxu0 %v188
    %4048 = vmatprep.subr.mxu0 0.0
    %4049 = vmatpush1.msra.mxu0 %v189
    %4050 = vmatprep.subr.mxu0 0.0
    %4051 = vmatpush1.msra.mxu0 %v190
    %4052 = vmatprep.subr.mxu0 0.0
    %4053 = vmatpush1.msra.mxu0 %v191
    %4054 = vmatprep.subr.mxu0 0.0
    %4055 = vmatpush1.msra.mxu0 %v192
    %4056 = vmatprep.subr.mxu0 0.0
    %4057 = vmatpush1.msra.mxu0 %v193
    %4058 = vmatprep.subr.mxu0 0.0
    %4059 = vmatpush1.msra.mxu0 %v194
    %4060 = vmatprep.subr.mxu0 0.0
    %4061 = vmatpush1.msra.mxu0 %v195
    %4062 = vmatprep.subr.mxu0 0.0
    %4063 = vmatpush1.msra.mxu0 %v196
    %4064 = vmatprep.subr.mxu0 0.0
    %4065 = vmatpush1.msra.mxu0 %v197
    %4066 = vmatprep.subr.mxu0 0.0
    %4067 = vmatpush1.msra.mxu0 %v198
    %4068 = vmatprep.subr.mxu0 0.0
    %4069 = vmatpush1.msra.mxu0 %v199
    %4070 = vmatprep.subr.mxu0 0.0
    %4071 = vmatpush1.msra.mxu0 0.0
    %4072 = vmatprep.subr.mxu0 0.0
    %4073 = vmatpush1.msra.mxu0 0.0
    %4074 = vmatprep.subr.mxu0 0.0
    %4075 = vmatpush1.msra.mxu0 0.0
    %4076 = vmatprep.subr.mxu0 0.0
    %4077 = vmatpush1.msra.mxu0 0.0
    %4078 = vmatprep.subr.mxu0 0.0
    %4079 = vmatpush1.msra.mxu0 0.0
    %4080 = vmatprep.subr.mxu0 0.0
    %4081 = vmatpush1.msra.mxu0 0.0
    %4082 = vmatprep.subr.mxu0 0.0
    %4083 = vmatpush1.msra.mxu0 0.0
    %4084 = vmatprep.subr.mxu0 0.0
    %4085 = vmatpush1.msra.mxu0 0.0
    %4086 = vmatprep.subr.mxu0 0.0
    %4087 = vmatpush1.msra.mxu0 0.0
    %4088 = vmatprep.subr.mxu0 0.0
    %4089 = vmatpush1.msra.mxu0 0.0
    %4090 = vmatprep.subr.mxu0 0.0
    %4091 = vmatpush1.msra.mxu0 0.0
    %4092 = vmatprep.subr.mxu0 0.0
    %4093 = vmatpush1.msra.mxu0 0.0
    %4094 = vmatprep.mubr.f32.mxu0 %v4025
    %4095 = vmatmul.mubr.f32.gmra.mrb[0].mxu0 %v4020
    %v4096 = vpop.f32.mrb[0].mxu0
    %v4097 = vadd.f32 0.0, %v4096
    %v4098 = vpop.f32.mrb[0].mxu0
    %4099 = vmatprep.mubr.f32.mxu0 %v4028
    %4100 = vmatmul.mubr.f32.gmra.mrb[0].mxu0 %v4022
    %v4101 = vpop.f32.mrb[0].mxu0
    %v4102 = vadd.f32 0.0, %v4101
    %v4103 = vpop.f32.mrb[0].mxu0
    %4104 = vdwg.mxu0
    %4105 = vmatprep.subr.mxu0 0.0
    %4106 = vmatpush1.msra.mxu0 %v200
    %4107 = vmatprep.subr.mxu0 0.0
    %4108 = vmatpush1.msra.mxu0 %v201
    %4109 = vmatprep.subr.mxu0 0.0
    %4110 = vmatpush1.msra.mxu0 %v202
    %4111 = vmatprep.subr.mxu0 0.0
    %4112 = vmatpush1.msra.mxu0 %v203
    %4113 = vmatprep.subr.mxu0 0.0
    %4114 = vmatpush1.msra.mxu0 %v204
    %4115 = vmatprep.subr.mxu0 0.0
    %4116 = vmatpush1.msra.mxu0 %v205
    %4117 = vmatprep.subr.mxu0 0.0
    %4118 = vmatpush1.msra.mxu0 %v206
    %4119 = vmatprep.subr.mxu0 0.0
    %4120 = vmatpush1.msra.mxu0 %v207
    %4121 = vmatprep.subr.mxu0 0.0
    %4122 = vmatpush1.msra.mxu0 %v208
    %4123 = vmatprep.subr.mxu0 0.0
    %4124 = vmatpush1.msra.mxu0 %v209
    %4125 = vmatprep.subr.mxu0 0.0
    %4126 = vmatpush1.msra.mxu0 %v210
    %4127 = vmatprep.subr.mxu0 0.0
    %4128 = vmatpush1.msra.mxu0 %v211
    %4129 = vmatprep.subr.mxu0 0.0
    %4130 = vmatpush1.msra.mxu0 %v212
    %4131 = vmatprep.subr.mxu0 0.0
    %4132 = vmatpush1.msra.mxu0 %v213
    %4133 = vmatprep.subr.mxu0 0.0
    %4134 = vmatpush1.msra.mxu0 %v214
    %4135 = vmatprep.subr.mxu0 0.0
    %4136 = vmatpush1.msra.mxu0 %v215
    %4137 = vmatprep.subr.mxu0 0.0
    %4138 = vmatpush1.msra.mxu0 %v216
    %4139 = vmatprep.subr.mxu0 0.0
    %4140 = vmatpush1.msra.mxu0 %v217
    %4141 = vmatprep.subr.mxu0 0.0
    %4142 = vmatpush1.msra.mxu0 %v218
    %4143 = vmatprep.subr.mxu0 0.0
    %4144 = vmatpush1.msra.mxu0 %v219
    %4145 = vmatprep.subr.mxu0 0.0
    %4146 = vmatpush1.msra.mxu0 0.0
    %4147 = vmatprep.subr.mxu0 0.0
    %4148 = vmatpush1.msra.mxu0 0.0
    %4149 = vmatprep.subr.mxu0 0.0
    %4150 = vmatpush1.msra.mxu0 0.0
    %4151 = vmatprep.subr.mxu0 0.0
    %4152 = vmatpush1.msra.mxu0 0.0
    %4153 = vmatprep.subr.mxu0 0.0
    %4154 = vmatpush1.msra.mxu0 0.0
    %4155 = vmatprep.subr.mxu0 0.0
    %4156 = vmatpush1.msra.mxu0 0.0
    %4157 = vmatprep.subr.mxu0 0.0
    %4158 = vmatpush1.msra.mxu0 0.0
    %4159 = vmatprep.subr.mxu0 0.0
    %4160 = vmatpush1.msra.mxu0 0.0
    %4161 = vmatprep.subr.mxu0 0.0
    %4162 = vmatpush1.msra.mxu0 0.0
    %4163 = vmatprep.subr.mxu0 0.0
    %4164 = vmatpush1.msra.mxu0 0.0
    %4165 = vmatprep.subr.mxu0 0.0
    %4166 = vmatpush1.msra.mxu0 0.0
    %4167 = vmatprep.subr.mxu0 0.0
    %4168 = vmatpush1.msra.mxu0 0.0
    %4169 = vmatprep.mubr.f32.mxu0 %v4025
    %4170 = vmatmul.mubr.f32.gmra.mrb[0].mxu0 %v4020
    %v4171 = vpop.f32.mrb[0].mxu0
    %v4172 = vadd.f32 0.0, %v4171
    %v4173 = vpop.f32.mrb[0].mxu0
    %4174 = vmatprep.mubr.f32.mxu0 %v4028
    %4175 = vmatmul.mubr.f32.gmra.mrb[0].mxu0 %v4022
    %v4176 = vpop.f32.mrb[0].mxu0
    %v4177 = vadd.f32 0.0, %v4176
    %v4178 = vpop.f32.mrb[0].mxu0
    %4179 = vdwg.mxu0
    %v4180 = vmax.f32 %v4097, %v4172
    %v4181 = vmax.f32 %v4102, %v4177
    %vm4182 = vcmask 80896
    %v4184 = vsel %vm4182, %v220, 0
    %v4187 = vsel %vm3602, %v4181, 0
    %4189 = vmatprep.subr.mxu0 0.0
    %4190 = vmatpush1.msra.mxu0 %v4180
    %4191 = vmatprep.subr.mxu0 0.0
    %4192 = vmatpush1.msra.mxu0 %v4187
    %4193 = vmatprep.subr.mxu0 0.0
    %4194 = vmatpush1.msra.mxu0 0.0
    %4195 = vmatprep.subr.mxu0 0.0
    %4196 = vmatpush1.msra.mxu0 0.0
    %4197 = vmatprep.subr.mxu0 0.0
    %4198 = vmatpush1.msra.mxu0 0.0
    %4199 = vmatprep.subr.mxu0 0.0
    %4200 = vmatpush1.msra.mxu0 0.0
    %4201 = vmatprep.subr.mxu0 0.0
    %4202 = vmatpush1.msra.mxu0 0.0
    %4203 = vmatprep.subr.mxu0 0.0
    %4204 = vmatpush1.msra.mxu0 0.0
    %4205 = vmatprep.subr.mxu0 0.0
    %4206 = vmatpush1.msra.mxu0 0.0
    %4207 = vmatprep.subr.mxu0 0.0
    %4208 = vmatpush1.msra.mxu0 0.0
    %4209 = vmatprep.subr.mxu0 0.0
    %4210 = vmatpush1.msra.mxu0 0.0
    %4211 = vmatprep.subr.mxu0 0.0
    %4212 = vmatpush1.msra.mxu0 0.0
    %4213 = vmatprep.subr.mxu0 0.0
    %4214 = vmatpush1.msra.mxu0 0.0
    %4215 = vmatprep.subr.mxu0 0.0
    %4216 = vmatpush1.msra.mxu0 0.0
    %4217 = vmatprep.subr.mxu0 0.0
    %4218 = vmatpush1.msra.mxu0 0.0
    %4219 = vmatprep.subr.mxu0 0.0
    %4220 = vmatpush1.msra.mxu0 0.0
    %4221 = vmatprep.subr.mxu0 0.0
    %4222 = vmatpush1.msra.mxu0 0.0
    %4223 = vmatprep.subr.mxu0 0.0
    %4224 = vmatpush1.msra.mxu0 0.0
    %4225 = vmatprep.subr.mxu0 0.0
    %4226 = vmatpush1.msra.mxu0 0.0
    %4227 = vmatprep.subr.mxu0 0.0
    %4228 = vmatpush1.msra.mxu0 0.0
    %4229 = vmatprep.subr.mxu0 0.0
    %4230 = vmatpush1.msra.mxu0 0.0
    %4231 = vmatprep.subr.mxu0 0.0
    %4232 = vmatpush1.msra.mxu0 0.0
    %4233 = vmatprep.subr.mxu0 0.0
    %4234 = vmatpush1.msra.mxu0 0.0
    %4235 = vmatprep.subr.mxu0 0.0
    %4236 = vmatpush1.msra.mxu0 0.0
    %4237 = vmatprep.subr.mxu0 0.0
    %4238 = vmatpush1.msra.mxu0 0.0
    %4239 = vmatprep.subr.mxu0 0.0
    %4240 = vmatpush1.msra.mxu0 0.0
    %4241 = vmatprep.subr.mxu0 0.0
    %4242 = vmatpush1.msra.mxu0 0.0
    %4243 = vmatprep.subr.mxu0 0.0
    %4244 = vmatpush1.msra.mxu0 0.0
    %4245 = vmatprep.subr.mxu0 0.0
    %4246 = vmatpush1.msra.mxu0 0.0
    %4247 = vmatprep.subr.mxu0 0.0
    %4248 = vmatpush1.msra.mxu0 0.0
    %4249 = vmatprep.subr.mxu0 0.0
    %4250 = vmatpush1.msra.mxu0 0.0
    %4251 = vmatprep.subr.mxu0 0.0
    %4252 = vmatpush1.msra.mxu0 0.0
    %4253 = vmatprep.mubr.f32.mxu0 0.0
    %4254 = vmatmul.mubr.f32.gmra.mrb[0].mxu0 %v4184
    %v4255 = vpop.f32.mrb[0].mxu0
    %v4256 = vadd.f32 0.0, %v4255
    %v4257 = vpop.f32.mrb[0].mxu0
    %4258 = vdwg.mxu0
    %v4260 = vsel %vm4182, %v221, 0
    %4262 = vmatprep.subr.mxu0 0.0
    %4263 = vmatpush1.msra.mxu0 %v4180
    %4264 = vmatprep.subr.mxu0 0.0
    %4265 = vmatpush1.msra.mxu0 %v4187
    %4266 = vmatprep.subr.mxu0 0.0
    %4267 = vmatpush1.msra.mxu0 0.0
    %4268 = vmatprep.subr.mxu0 0.0
    %4269 = vmatpush1.msra.mxu0 0.0
    %4270 = vmatprep.subr.mxu0 0.0
    %4271 = vmatpush1.msra.mxu0 0.0
    %4272 = vmatprep.subr.mxu0 0.0
    %4273 = vmatpush1.msra.mxu0 0.0
    %4274 = vmatprep.subr.mxu0 0.0
    %4275 = vmatpush1.msra.mxu0 0.0
    %4276 = vmatprep.subr.mxu0 0.0
    %4277 = vmatpush1.msra.mxu0 0.0
    %4278 = vmatprep.subr.mxu0 0.0
    %4279 = vmatpush1.msra.mxu0 0.0
    %4280 = vmatprep.subr.mxu0 0.0
    %4281 = vmatpush1.msra.mxu0 0.0
    %4282 = vmatprep.subr.mxu0 0.0
    %4283 = vmatpush1.msra.mxu0 0.0
    %4284 = vmatprep.subr.mxu0 0.0
    %4285 = vmatpush1.msra.mxu0 0.0
    %4286 = vmatprep.subr.mxu0 0.0
    %4287 = vmatpush1.msra.mxu0 0.0
    %4288 = vmatprep.subr.mxu0 0.0
    %4289 = vmatpush1.msra.mxu0 0.0
    %4290 = vmatprep.subr.mxu0 0.0
    %4291 = vmatpush1.msra.mxu0 0.0
    %4292 = vmatprep.subr.mxu0 0.0
    %4293 = vmatpush1.msra.mxu0 0.0
    %4294 = vmatprep.subr.mxu0 0.0
    %4295 = vmatpush1.msra.mxu0 0.0
    %4296 = vmatprep.subr.mxu0 0.0
    %4297 = vmatpush1.msra.mxu0 0.0
    %4298 = vmatprep.subr.mxu0 0.0
    %4299 = vmatpush1.msra.mxu0 0.0
    %4300 = vmatprep.subr.mxu0 0.0
    %4301 = vmatpush1.msra.mxu0 0.0
    %4302 = vmatprep.subr.mxu0 0.0
    %4303 = vmatpush1.msra.mxu0 0.0
    %4304 = vmatprep.subr.mxu0 0.0
    %4305 = vmatpush1.msra.mxu0 0.0
    %4306 = vmatprep.subr.mxu0 0.0
    %4307 = vmatpush1.msra.mxu0 0.0
    %4308 = vmatprep.subr.mxu0 0.0
    %4309 = vmatpush1.msra.mxu0 0.0
    %4310 = vmatprep.subr.mxu0 0.0
    %4311 = vmatpush1.msra.mxu0 0.0
    %4312 = vmatprep.subr.mxu0 0.0
    %4313 = vmatpush1.msra.mxu0 0.0
    %4314 = vmatprep.subr.mxu0 0.0
    %4315 = vmatpush1.msra.mxu0 0.0
    %4316 = vmatprep.subr.mxu0 0.0
    %4317 = vmatpush1.msra.mxu0 0.0
    %4318 = vmatprep.subr.mxu0 0.0
    %4319 = vmatpush1.msra.mxu0 0.0
    %4320 = vmatprep.subr.mxu0 0.0
    %4321 = vmatpush1.msra.mxu0 0.0
    %4322 = vmatprep.subr.mxu0 0.0
    %4323 = vmatpush1.msra.mxu0 0.0
    %4324 = vmatprep.subr.mxu0 0.0
    %4325 = vmatpush1.msra.mxu0 0.0
    %4326 = vmatprep.mubr.f32.mxu0 0.0
    %4327 = vmatmul.mubr.f32.gmra.mrb[0].mxu0 %v4260
    %v4328 = vpop.f32.mrb[0].mxu0
    %v4329 = vadd.f32 0.0, %v4328
    %v4330 = vpop.f32.mrb[0].mxu0
    %4331 = vdwg.mxu0
    %v4332 = vmax.f32 %v4256, %v4329
    %v4333 = vld [vmem:[%s22] sm:$0x1]
    %v4334 = vld [vmem:[%s21] sm:$0xff]
    %v4335 = vld [vmem:[%s21 + $0x8] sm:$0xff]
    %v4336 = vld [vmem:[%s21 + $0x10] sm:$0xff]
    %v4337 = vld [vmem:[%s21 + $0x18] sm:$0xff]
    %v4338 = vld [vmem:[%s21 + $0x20] sm:$0xff]
    %v4339 = vld [vmem:[%s21 + $0x28] sm:$0xff]
    %v4340 = vld [vmem:[%s21 + $0x30] sm:$0xff]
    %v4341 = vld [vmem:[%s21 + $0x38] sm:$0xff]
    %v4342 = vld [vmem:[%s21 + $0x40] sm:$0xff]
    %v4343 = vld [vmem:[%s21 + $0x48] sm:$0xff]
    %vm4344 = vcmask 654336
    %v4346 = vsel %vm4344, %v4332, 0
    %4348 = vmatprep.subr.mxu0 0.0
    %4349 = vmatpush1.msra.mxu0 %v4334
    %4350 = vmatprep.subr.mxu0 0.0
    %4351 = vmatpush1.msra.mxu0 %v4335
    %4352 = vmatprep.subr.mxu0 0.0
    %4353 = vmatpush1.msra.mxu0 %v4336
    %4354 = vmatprep.subr.mxu0 0.0
    %4355 = vmatpush1.msra.mxu0 %v4337
    %4356 = vmatprep.subr.mxu0 0.0
    %4357 = vmatpush1.msra.mxu0 %v4338
    %4358 = vmatprep.subr.mxu0 0.0
    %4359 = vmatpush1.msra.mxu0 %v4339
    %4360 = vmatprep.subr.mxu0 0.0
    %4361 = vmatpush1.msra.mxu0 %v4340
    %4362 = vmatprep.subr.mxu0 0.0
    %4363 = vmatpush1.msra.mxu0 %v4341
    %4364 = vmatprep.subr.mxu0 0.0
    %4365 = vmatpush1.msra.mxu0 %v4342
    %4366 = vmatprep.subr.mxu0 0.0
    %4367 = vmatpush1.msra.mxu0 %v4343
    %4368 = vmatprep.subr.mxu0 0.0
    %4369 = vmatpush1.msra.mxu0 0.0
    %4370 = vmatprep.subr.mxu0 0.0
    %4371 = vmatpush1.msra.mxu0 0.0
    %4372 = vmatprep.subr.mxu0 0.0
    %4373 = vmatpush1.msra.mxu0 0.0
    %4374 = vmatprep.subr.mxu0 0.0
    %4375 = vmatpush1.msra.mxu0 0.0
    %4376 = vmatprep.subr.mxu0 0.0
    %4377 = vmatpush1.msra.mxu0 0.0
    %4378 = vmatprep.subr.mxu0 0.0
    %4379 = vmatpush1.msra.mxu0 0.0
    %4380 = vmatprep.subr.mxu0 0.0
    %4381 = vmatpush1.msra.mxu0 0.0
    %4382 = vmatprep.subr.mxu0 0.0
    %4383 = vmatpush1.msra.mxu0 0.0
    %4384 = vmatprep.subr.mxu0 0.0
    %4385 = vmatpush1.msra.mxu0 0.0
    %4386 = vmatprep.subr.mxu0 0.0
    %4387 = vmatpush1.msra.mxu0 0.0
    %4388 = vmatprep.subr.mxu0 0.0
    %4389 = vmatpush1.msra.mxu0 0.0
    %4390 = vmatprep.subr.mxu0 0.0
    %4391 = vmatpush1.msra.mxu0 0.0
    %4392 = vmatprep.subr.mxu0 0.0
    %4393 = vmatpush1.msra.mxu0 0.0
    %4394 = vmatprep.subr.mxu0 0.0
    %4395 = vmatpush1.msra.mxu0 0.0
    %4396 = vmatprep.subr.mxu0 0.0
    %4397 = vmatpush1.msra.mxu0 0.0
    %4398 = vmatprep.subr.mxu0 0.0
    %4399 = vmatpush1.msra.mxu0 0.0
    %4400 = vmatprep.subr.mxu0 0.0
    %4401 = vmatpush1.msra.mxu0 0.0
    %4402 = vmatprep.subr.mxu0 0.0
    %4403 = vmatpush1.msra.mxu0 0.0
    %4404 = vmatprep.subr.mxu0 0.0
    %4405 = vmatpush1.msra.mxu0 0.0
    %4406 = vmatprep.subr.mxu0 0.0
    %4407 = vmatpush1.msra.mxu0 0.0
    %4408 = vmatprep.subr.mxu0 0.0
    %4409 = vmatpush1.msra.mxu0 0.0
    %4410 = vmatprep.subr.mxu0 0.0
    %4411 = vmatpush1.msra.mxu0 0.0
    %4412 = vmatprep.mubr.f32.mxu0 0.0
    %4413 = vmatmul.mubr.f32.gmra.mrb[0].mxu0 %v4346
    %v4414 = vpop.f32.mrb[0].mxu0
    %v4415 = vadd.f32 0.0, %v4414
    %v4416 = vpop.f32.mrb[0].mxu0
    %4417 = vdwg.mxu0
    %v4418 = vadd.f32 %v4333, %v4415
    %s4419 = scalar_lea.vmem %s21, 80
    %v4420 = vld [vmem:[%s4419] sm:$0xff]
    %v4421 = vld [vmem:[%s4419 + $0x8] sm:$0xff]
    %v4422 = vld [vmem:[%s4419 + $0x10] sm:$0xff]
    %v4423 = vld [vmem:[%s4419 + $0x18] sm:$0xff]
    %v4424 = vld [vmem:[%s4419 + $0x20] sm:$0xff]
    %v4425 = vld [vmem:[%s4419 + $0x28] sm:$0xff]
    %v4426 = vld [vmem:[%s4419 + $0x30] sm:$0xff]
    %v4427 = vld [vmem:[%s4419 + $0x38] sm:$0xff]
    %v4428 = vld [vmem:[%s4419 + $0x40] sm:$0xff]
    %v4429 = vld [vmem:[%s4419 + $0x48] sm:$0xff]
    %v4430 = vrot.slane %v4332, 1
    %v4431 = vsel %vm4344, %v4430, 0
    %4433 = vmatprep.subr.mxu0 0.0
    %4434 = vmatpush1.msra.mxu0 %v4420
    %4435 = vmatprep.subr.mxu0 0.0
    %4436 = vmatpush1.msra.mxu0 %v4421
    %4437 = vmatprep.subr.mxu0 0.0
    %4438 = vmatpush1.msra.mxu0 %v4422
    %4439 = vmatprep.subr.mxu0 0.0
    %4440 = vmatpush1.msra.mxu0 %v4423
    %4441 = vmatprep.subr.mxu0 0.0
    %4442 = vmatpush1.msra.mxu0 %v4424
    %4443 = vmatprep.subr.mxu0 0.0
    %4444 = vmatpush1.msra.mxu0 %v4425
    %4445 = vmatprep.subr.mxu0 0.0
    %4446 = vmatpush1.msra.mxu0 %v4426
    %4447 = vmatprep.subr.mxu0 0.0
    %4448 = vmatpush1.msra.mxu0 %v4427
    %4449 = vmatprep.subr.mxu0 0.0
    %4450 = vmatpush1.msra.mxu0 %v4428
    %4451 = vmatprep.subr.mxu0 0.0
    %4452 = vmatpush1.msra.mxu0 %v4429
    %4453 = vmatprep.subr.mxu0 0.0
    %4454 = vmatpush1.msra.mxu0 0.0
    %4455 = vmatprep.subr.mxu0 0.0
    %4456 = vmatpush1.msra.mxu0 0.0
    %4457 = vmatprep.subr.mxu0 0.0
    %4458 = vmatpush1.msra.mxu0 0.0
    %4459 = vmatprep.subr.mxu0 0.0
    %4460 = vmatpush1.msra.mxu0 0.0
    %4461 = vmatprep.subr.mxu0 0.0
    %4462 = vmatpush1.msra.mxu0 0.0
    %4463 = vmatprep.subr.mxu0 0.0
    %4464 = vmatpush1.msra.mxu0 0.0
    %4465 = vmatprep.subr.mxu0 0.0
    %4466 = vmatpush1.msra.mxu0 0.0
    %4467 = vmatprep.subr.mxu0 0.0
    %4468 = vmatpush1.msra.mxu0 0.0
    %4469 = vmatprep.subr.mxu0 0.0
    %4470 = vmatpush1.msra.mxu0 0.0
    %4471 = vmatprep.subr.mxu0 0.0
    %4472 = vmatpush1.msra.mxu0 0.0
    %4473 = vmatprep.subr.mxu0 0.0
    %4474 = vmatpush1.msra.mxu0 0.0
    %4475 = vmatprep.subr.mxu0 0.0
    %4476 = vmatpush1.msra.mxu0 0.0
    %4477 = vmatprep.subr.mxu0 0.0
    %4478 = vmatpush1.msra.mxu0 0.0
    %4479 = vmatprep.subr.mxu0 0.0
    %4480 = vmatpush1.msra.mxu0 0.0
    %4481 = vmatprep.subr.mxu0 0.0
    %4482 = vmatpush1.msra.mxu0 0.0
    %4483 = vmatprep.subr.mxu0 0.0
    %4484 = vmatpush1.msra.mxu0 0.0
    %4485 = vmatprep.subr.mxu0 0.0
    %4486 = vmatpush1.msra.mxu0 0.0
    %4487 = vmatprep.subr.mxu0 0.0
    %4488 = vmatpush1.msra.mxu0 0.0
    %4489 = vmatprep.subr.mxu0 0.0
    %4490 = vmatpush1.msra.mxu0 0.0
    %4491 = vmatprep.subr.mxu0 0.0
    %4492 = vmatpush1.msra.mxu0 0.0
    %4493 = vmatprep.subr.mxu0 0.0
    %4494 = vmatpush1.msra.mxu0 0.0
    %4495 = vmatprep.subr.mxu0 0.0
    %4496 = vmatpush1.msra.mxu0 0.0
    %4497 = vmatprep.mubr.f32.mxu0 0.0
    %4498 = vmatmul.mubr.f32.gmra.mrb[0].mxu0 %v4431
    %v4499 = vpop.f32.mrb[0].mxu0
    %v4500 = vadd.f32 0.0, %v4499
    %v4501 = vpop.f32.mrb[0].mxu0
    %4502 = vdwg.mxu0
    %v4503 = vadd.f32 %v4418, %v4500
    %s4504 = scalar_lea.vmem %s21, 160
    %v4505 = vld [vmem:[%s4504] sm:$0xff]
    %v4506 = vld [vmem:[%s4504 + $0x8] sm:$0xff]
    %v4507 = vld [vmem:[%s4504 + $0x10] sm:$0xff]
    %v4508 = vld [vmem:[%s4504 + $0x18] sm:$0xff]
    %v4509 = vld [vmem:[%s4504 + $0x20] sm:$0xff]
    %v4510 = vld [vmem:[%s4504 + $0x28] sm:$0xff]
    %v4511 = vld [vmem:[%s4504 + $0x30] sm:$0xff]
    %v4512 = vld [vmem:[%s4504 + $0x38] sm:$0xff]
    %v4513 = vld [vmem:[%s4504 + $0x40] sm:$0xff]
    %v4514 = vld [vmem:[%s4504 + $0x48] sm:$0xff]
    %v4515 = vrot.slane %v4332, 2
    %v4516 = vsel %vm4344, %v4515, 0
    %4518 = vmatprep.subr.mxu0 0.0
    %4519 = vmatpush1.msra.mxu0 %v4505
    %4520 = vmatprep.subr.mxu0 0.0
    %4521 = vmatpush1.msra.mxu0 %v4506
    %4522 = vmatprep.subr.mxu0 0.0
    %4523 = vmatpush1.msra.mxu0 %v4507
    %4524 = vmatprep.subr.mxu0 0.0
    %4525 = vmatpush1.msra.mxu0 %v4508
    %4526 = vmatprep.subr.mxu0 0.0
    %4527 = vmatpush1.msra.mxu0 %v4509
    %4528 = vmatprep.subr.mxu0 0.0
    %4529 = vmatpush1.msra.mxu0 %v4510
    %4530 = vmatprep.subr.mxu0 0.0
    %4531 = vmatpush1.msra.mxu0 %v4511
    %4532 = vmatprep.subr.mxu0 0.0
    %4533 = vmatpush1.msra.mxu0 %v4512
    %4534 = vmatprep.subr.mxu0 0.0
    %4535 = vmatpush1.msra.mxu0 %v4513
    %4536 = vmatprep.subr.mxu0 0.0
    %4537 = vmatpush1.msra.mxu0 %v4514
    %4538 = vmatprep.subr.mxu0 0.0
    %4539 = vmatpush1.msra.mxu0 0.0
    %4540 = vmatprep.subr.mxu0 0.0
    %4541 = vmatpush1.msra.mxu0 0.0
    %4542 = vmatprep.subr.mxu0 0.0
    %4543 = vmatpush1.msra.mxu0 0.0
    %4544 = vmatprep.subr.mxu0 0.0
    %4545 = vmatpush1.msra.mxu0 0.0
    %4546 = vmatprep.subr.mxu0 0.0
    %4547 = vmatpush1.msra.mxu0 0.0
    %4548 = vmatprep.subr.mxu0 0.0
    %4549 = vmatpush1.msra.mxu0 0.0
    %4550 = vmatprep.subr.mxu0 0.0
    %4551 = vmatpush1.msra.mxu0 0.0
    %4552 = vmatprep.subr.mxu0 0.0
    %4553 = vmatpush1.msra.mxu0 0.0
    %4554 = vmatprep.subr.mxu0 0.0
    %4555 = vmatpush1.msra.mxu0 0.0
    %4556 = vmatprep.subr.mxu0 0.0
    %4557 = vmatpush1.msra.mxu0 0.0
    %4558 = vmatprep.subr.mxu0 0.0
    %4559 = vmatpush1.msra.mxu0 0.0
    %4560 = vmatprep.subr.mxu0 0.0
    %4561 = vmatpush1.msra.mxu0 0.0
    %4562 = vmatprep.subr.mxu0 0.0
    %4563 = vmatpush1.msra.mxu0 0.0
    %4564 = vmatprep.subr.mxu0 0.0
    %4565 = vmatpush1.msra.mxu0 0.0
    %4566 = vmatprep.subr.mxu0 0.0
    %4567 = vmatpush1.msra.mxu0 0.0
    %4568 = vmatprep.subr.mxu0 0.0
    %4569 = vmatpush1.msra.mxu0 0.0
    %4570 = vmatprep.subr.mxu0 0.0
    %4571 = vmatpush1.msra.mxu0 0.0
    %4572 = vmatprep.subr.mxu0 0.0
    %4573 = vmatpush1.msra.mxu0 0.0
    %4574 = vmatprep.subr.mxu0 0.0
    %4575 = vmatpush1.msra.mxu0 0.0
    %4576 = vmatprep.subr.mxu0 0.0
    %4577 = vmatpush1.msra.mxu0 0.0
    %4578 = vmatprep.subr.mxu0 0.0
    %4579 = vmatpush1.msra.mxu0 0.0
    %4580 = vmatprep.subr.mxu0 0.0
    %4581 = vmatpush1.msra.mxu0 0.0
    %4582 = vmatprep.mubr.f32.mxu0 0.0
    %4583 = vmatmul.mubr.f32.gmra.mrb[0].mxu0 %v4516
    %v4584 = vpop.f32.mrb[0].mxu0
    %v4585 = vadd.f32 0.0, %v4584
    %v4586 = vpop.f32.mrb[0].mxu0
    %4587 = vdwg.mxu0
    %v4588 = vadd.f32 %v4503, %v4585
    %s4589 = scalar_lea.vmem %s21, 240
    %v4590 = vld [vmem:[%s4589] sm:$0xff]
    %v4591 = vld [vmem:[%s4589 + $0x8] sm:$0xff]
    %v4592 = vld [vmem:[%s4589 + $0x10] sm:$0xff]
    %v4593 = vld [vmem:[%s4589 + $0x18] sm:$0xff]
    %v4594 = vld [vmem:[%s4589 + $0x20] sm:$0xff]
    %v4595 = vld [vmem:[%s4589 + $0x28] sm:$0xff]
    %v4596 = vld [vmem:[%s4589 + $0x30] sm:$0xff]
    %v4597 = vld [vmem:[%s4589 + $0x38] sm:$0xff]
    %v4598 = vld [vmem:[%s4589 + $0x40] sm:$0xff]
    %v4599 = vld [vmem:[%s4589 + $0x48] sm:$0xff]
    %v4600 = vrot.slane %v4332, 3
    %v4601 = vsel %vm4344, %v4600, 0
    %4603 = vmatprep.subr.mxu0 0.0
    %4604 = vmatpush1.msra.mxu0 %v4590
    %4605 = vmatprep.subr.mxu0 0.0
    %4606 = vmatpush1.msra.mxu0 %v4591
    %4607 = vmatprep.subr.mxu0 0.0
    %4608 = vmatpush1.msra.mxu0 %v4592
    %4609 = vmatprep.subr.mxu0 0.0
    %4610 = vmatpush1.msra.mxu0 %v4593
    %4611 = vmatprep.subr.mxu0 0.0
    %4612 = vmatpush1.msra.mxu0 %v4594
    %4613 = vmatprep.subr.mxu0 0.0
    %4614 = vmatpush1.msra.mxu0 %v4595
    %4615 = vmatprep.subr.mxu0 0.0
    %4616 = vmatpush1.msra.mxu0 %v4596
    %4617 = vmatprep.subr.mxu0 0.0
    %4618 = vmatpush1.msra.mxu0 %v4597
    %4619 = vmatprep.subr.mxu0 0.0
    %4620 = vmatpush1.msra.mxu0 %v4598
    %4621 = vmatprep.subr.mxu0 0.0
    %4622 = vmatpush1.msra.mxu0 %v4599
    %4623 = vmatprep.subr.mxu0 0.0
    %4624 = vmatpush1.msra.mxu0 0.0
    %4625 = vmatprep.subr.mxu0 0.0
    %4626 = vmatpush1.msra.mxu0 0.0
    %4627 = vmatprep.subr.mxu0 0.0
    %4628 = vmatpush1.msra.mxu0 0.0
    %4629 = vmatprep.subr.mxu0 0.0
    %4630 = vmatpush1.msra.mxu0 0.0
    %4631 = vmatprep.subr.mxu0 0.0
    %4632 = vmatpush1.msra.mxu0 0.0
    %4633 = vmatprep.subr.mxu0 0.0
    %4634 = vmatpush1.msra.mxu0 0.0
    %4635 = vmatprep.subr.mxu0 0.0
    %4636 = vmatpush1.msra.mxu0 0.0
    %4637 = vmatprep.subr.mxu0 0.0
    %4638 = vmatpush1.msra.mxu0 0.0
    %4639 = vmatprep.subr.mxu0 0.0
    %4640 = vmatpush1.msra.mxu0 0.0
    %4641 = vmatprep.subr.mxu0 0.0
    %4642 = vmatpush1.msra.mxu0 0.0
    %4643 = vmatprep.subr.mxu0 0.0
    %4644 = vmatpush1.msra.mxu0 0.0
    %4645 = vmatprep.subr.mxu0 0.0
    %4646 = vmatpush1.msra.mxu0 0.0
    %4647 = vmatprep.subr.mxu0 0.0
    %4648 = vmatpush1.msra.mxu0 0.0
    %4649 = vmatprep.subr.mxu0 0.0
    %4650 = vmatpush1.msra.mxu0 0.0
    %4651 = vmatprep.subr.mxu0 0.0
    %4652 = vmatpush1.msra.mxu0 0.0
    %4653 = vmatprep.subr.mxu0 0.0
    %4654 = vmatpush1.msra.mxu0 0.0
    %4655 = vmatprep.subr.mxu0 0.0
    %4656 = vmatpush1.msra.mxu0 0.0
    %4657 = vmatprep.subr.mxu0 0.0
    %4658 = vmatpush1.msra.mxu0 0.0
    %4659 = vmatprep.subr.mxu0 0.0
    %4660 = vmatpush1.msra.mxu0 0.0
    %4661 = vmatprep.subr.mxu0 0.0
    %4662 = vmatpush1.msra.mxu0 0.0
    %4663 = vmatprep.subr.mxu0 0.0
    %4664 = vmatpush1.msra.mxu0 0.0
    %4665 = vmatprep.subr.mxu0 0.0
    %4666 = vmatpush1.msra.mxu0 0.0
    %4667 = vmatprep.mubr.f32.mxu0 0.0
    %4668 = vmatmul.mubr.f32.gmra.mrb[0].mxu0 %v4601
    %v4669 = vpop.f32.mrb[0].mxu0
    %v4670 = vadd.f32 0.0, %v4669
    %v4671 = vpop.f32.mrb[0].mxu0
    %4672 = vdwg.mxu0
    %v4673 = vadd.f32 %v4588, %v4670
    %s4674 = scalar_lea.vmem %s21, 320
    %v4675 = vld [vmem:[%s4674] sm:$0xff]
    %v4676 = vld [vmem:[%s4674 + $0x8] sm:$0xff]
    %v4677 = vld [vmem:[%s4674 + $0x10] sm:$0xff]
    %v4678 = vld [vmem:[%s4674 + $0x18] sm:$0xff]
    %v4679 = vld [vmem:[%s4674 + $0x20] sm:$0xff]
    %v4680 = vld [vmem:[%s4674 + $0x28] sm:$0xff]
    %v4681 = vld [vmem:[%s4674 + $0x30] sm:$0xff]
    %v4682 = vld [vmem:[%s4674 + $0x38] sm:$0xff]
    %v4683 = vld [vmem:[%s4674 + $0x40] sm:$0xff]
    %v4684 = vld [vmem:[%s4674 + $0x48] sm:$0xff]
    %v4685 = vrot.slane %v4332, 4
    %v4686 = vsel %vm4344, %v4685, 0
    %4688 = vmatprep.subr.mxu0 0.0
    %4689 = vmatpush1.msra.mxu0 %v4675
    %4690 = vmatprep.subr.mxu0 0.0
    %4691 = vmatpush1.msra.mxu0 %v4676
    %4692 = vmatprep.subr.mxu0 0.0
    %4693 = vmatpush1.msra.mxu0 %v4677
    %4694 = vmatprep.subr.mxu0 0.0
    %4695 = vmatpush1.msra.mxu0 %v4678
    %4696 = vmatprep.subr.mxu0 0.0
    %4697 = vmatpush1.msra.mxu0 %v4679
    %4698 = vmatprep.subr.mxu0 0.0
    %4699 = vmatpush1.msra.mxu0 %v4680
    %4700 = vmatprep.subr.mxu0 0.0
    %4701 = vmatpush1.msra.mxu0 %v4681
    %4702 = vmatprep.subr.mxu0 0.0
    %4703 = vmatpush1.msra.mxu0 %v4682
    %4704 = vmatprep.subr.mxu0 0.0
    %4705 = vmatpush1.msra.mxu0 %v4683
    %4706 = vmatprep.subr.mxu0 0.0
    %4707 = vmatpush1.msra.mxu0 %v4684
    %4708 = vmatprep.subr.mxu0 0.0
    %4709 = vmatpush1.msra.mxu0 0.0
    %4710 = vmatprep.subr.mxu0 0.0
    %4711 = vmatpush1.msra.mxu0 0.0
    %4712 = vmatprep.subr.mxu0 0.0
    %4713 = vmatpush1.msra.mxu0 0.0
    %4714 = vmatprep.subr.mxu0 0.0
    %4715 = vmatpush1.msra.mxu0 0.0
    %4716 = vmatprep.subr.mxu0 0.0
    %4717 = vmatpush1.msra.mxu0 0.0
    %4718 = vmatprep.subr.mxu0 0.0
    %4719 = vmatpush1.msra.mxu0 0.0
    %4720 = vmatprep.subr.mxu0 0.0
    %4721 = vmatpush1.msra.mxu0 0.0
    %4722 = vmatprep.subr.mxu0 0.0
    %4723 = vmatpush1.msra.mxu0 0.0
    %4724 = vmatprep.subr.mxu0 0.0
    %4725 = vmatpush1.msra.mxu0 0.0
    %4726 = vmatprep.subr.mxu0 0.0
    %4727 = vmatpush1.msra.mxu0 0.0
    %4728 = vmatprep.subr.mxu0 0.0
    %4729 = vmatpush1.msra.mxu0 0.0
    %4730 = vmatprep.subr.mxu0 0.0
    %4731 = vmatpush1.msra.mxu0 0.0
    %4732 = vmatprep.subr.mxu0 0.0
    %4733 = vmatpush1.msra.mxu0 0.0
    %4734 = vmatprep.subr.mxu0 0.0
    %4735 = vmatpush1.msra.mxu0 0.0
    %4736 = vmatprep.subr.mxu0 0.0
    %4737 = vmatpush1.msra.mxu0 0.0
    %4738 = vmatprep.subr.mxu0 0.0
    %4739 = vmatpush1.msra.mxu0 0.0
    %4740 = vmatprep.subr.mxu0 0.0
    %4741 = vmatpush1.msra.mxu0 0.0
    %4742 = vmatprep.subr.mxu0 0.0
    %4743 = vmatpush1.msra.mxu0 0.0
    %4744 = vmatprep.subr.mxu0 0.0
    %4745 = vmatpush1.msra.mxu0 0.0
    %4746 = vmatprep.subr.mxu0 0.0
    %4747 = vmatpush1.msra.mxu0 0.0
    %4748 = vmatprep.subr.mxu0 0.0
    %4749 = vmatpush1.msra.mxu0 0.0
    %4750 = vmatprep.subr.mxu0 0.0
    %4751 = vmatpush1.msra.mxu0 0.0
    %4752 = vmatprep.mubr.f32.mxu0 0.0
    %4753 = vmatmul.mubr.f32.gmra.mrb[0].mxu0 %v4686
    %v4754 = vpop.f32.mrb[0].mxu0
    %v4755 = vadd.f32 0.0, %v4754
    %v4756 = vpop.f32.mrb[0].mxu0
    %4757 = vdwg.mxu0
    %v4758 = vadd.f32 %v4673, %v4755
    %v4759 = vmax.f32 %v4758, 0.0
    %v4760 = vld [vmem:[%s23] sm:$0xff]
    %v4761 = vld [vmem:[%s23 + $0x8] sm:$0xff]
    %v4762 = vld [vmem:[%s23 + $0x10] sm:$0xff]
    %v4763 = vld [vmem:[%s23 + $0x18] sm:$0xff]
    %v4764 = vld [vmem:[%s23 + $0x20] sm:$0xff]
    %v4765 = vld [vmem:[%s23 + $0x28] sm:$0xff]
    %v4766 = vld [vmem:[%s23 + $0x30] sm:$0xff]
    %v4767 = vld [vmem:[%s23 + $0x38] sm:$0xff]
    %v4768 = vld [vmem:[%s23 + $0x40] sm:$0xff]
    %v4769 = vld [vmem:[%s23 + $0x48] sm:$0xff]
    %v4770 = vld [vmem:[%s23 + $0x50] sm:$0xff]
    %v4771 = vld [vmem:[%s23 + $0x58] sm:$0xff]
    %v4772 = vld [vmem:[%s23 + $0x60] sm:$0xff]
    %v4773 = vld [vmem:[%s23 + $0x68] sm:$0xff]
    %v4774 = vld [vmem:[%s23 + $0x70] sm:$0xff]
    %v4775 = vld [vmem:[%s23 + $0x78] sm:$0xff]
    %v4776 = vld [vmem:[%s24] sm:$0x1]
    %4777 = vmatprep.subr.mxu0 0.0
    %4778 = vmatpush1.msra.mxu0 %v4760
    %4779 = vmatprep.subr.mxu0 0.0
    %4780 = vmatpush1.msra.mxu0 %v4761
    %4781 = vmatprep.subr.mxu0 0.0
    %4782 = vmatpush1.msra.mxu0 %v4762
    %4783 = vmatprep.subr.mxu0 0.0
    %4784 = vmatpush1.msra.mxu0 %v4763
    %4785 = vmatprep.subr.mxu0 0.0
    %4786 = vmatpush1.msra.mxu0 %v4764
    %4787 = vmatprep.subr.mxu0 0.0
    %4788 = vmatpush1.msra.mxu0 %v4765
    %4789 = vmatprep.subr.mxu0 0.0
    %4790 = vmatpush1.msra.mxu0 %v4766
    %4791 = vmatprep.subr.mxu0 0.0
    %4792 = vmatpush1.msra.mxu0 %v4767
    %4793 = vmatprep.subr.mxu0 0.0
    %4794 = vmatpush1.msra.mxu0 %v4768
    %4795 = vmatprep.subr.mxu0 0.0
    %4796 = vmatpush1.msra.mxu0 %v4769
    %4797 = vmatprep.subr.mxu0 0.0
    %4798 = vmatpush1.msra.mxu0 %v4770
    %4799 = vmatprep.subr.mxu0 0.0
    %4800 = vmatpush1.msra.mxu0 %v4771
    %4801 = vmatprep.subr.mxu0 0.0
    %4802 = vmatpush1.msra.mxu0 %v4772
    %4803 = vmatprep.subr.mxu0 0.0
    %4804 = vmatpush1.msra.mxu0 %v4773
    %4805 = vmatprep.subr.mxu0 0.0
    %4806 = vmatpush1.msra.mxu0 %v4774
    %4807 = vmatprep.subr.mxu0 0.0
    %4808 = vmatpush1.msra.mxu0 %v4775
    %4809 = vmatprep.subr.mxu0 0.0
    %4810 = vmatpush1.msra.mxu0 0.0
    %4811 = vmatprep.subr.mxu0 0.0
    %4812 = vmatpush1.msra.mxu0 0.0
    %4813 = vmatprep.subr.mxu0 0.0
    %4814 = vmatpush1.msra.mxu0 0.0
    %4815 = vmatprep.subr.mxu0 0.0
    %4816 = vmatpush1.msra.mxu0 0.0
    %4817 = vmatprep.subr.mxu0 0.0
    %4818 = vmatpush1.msra.mxu0 0.0
    %4819 = vmatprep.subr.mxu0 0.0
    %4820 = vmatpush1.msra.mxu0 0.0
    %4821 = vmatprep.subr.mxu0 0.0
    %4822 = vmatpush1.msra.mxu0 0.0
    %4823 = vmatprep.subr.mxu0 0.0
    %4824 = vmatpush1.msra.mxu0 0.0
    %4825 = vmatprep.subr.mxu0 0.0
    %4826 = vmatpush1.msra.mxu0 0.0
    %4827 = vmatprep.subr.mxu0 0.0
    %4828 = vmatpush1.msra.mxu0 0.0
    %4829 = vmatprep.subr.mxu0 0.0
    %4830 = vmatpush1.msra.mxu0 0.0
    %4831 = vmatprep.subr.mxu0 0.0
    %4832 = vmatpush1.msra.mxu0 0.0
    %4833 = vmatprep.subr.mxu0 0.0
    %4834 = vmatpush1.msra.mxu0 0.0
    %4835 = vmatprep.subr.mxu0 0.0
    %4836 = vmatpush1.msra.mxu0 0.0
    %4837 = vmatprep.subr.mxu0 0.0
    %4838 = vmatpush1.msra.mxu0 0.0
    %4839 = vmatprep.subr.mxu0 0.0
    %4840 = vmatpush1.msra.mxu0 0.0
    %4841 = vmatprep.mubr.f32.mxu0 0.0
    %4842 = vmatmul.mubr.f32.gmra.mrb[0].mxu0 %v4759
    %v4843 = vpop.f32.mrb[0].mxu0
    %v4844 = vadd.f32 %v4776, %v4843
    %v4845 = vpop.f32.mrb[0].mxu0
    %4846 = vdwg.mxu0
    %v4847 = vmax.f32 %v4844, 0.0
    %v4848 = vld [vmem:[%s25] sm:$0xff]
    %v4849 = vld [vmem:[%s25 + $0x8] sm:$0xff]
    %v4850 = vld [vmem:[%s25 + $0x10] sm:$0xff]
    %v4851 = vld [vmem:[%s25 + $0x18] sm:$0xff]
    %v4852 = vld [vmem:[%s25 + $0x20] sm:$0xff]
    %v4853 = vld [vmem:[%s25 + $0x28] sm:$0xff]
    %v4854 = vld [vmem:[%s25 + $0x30] sm:$0xff]
    %v4855 = vld [vmem:[%s25 + $0x38] sm:$0xff]
    %v4856 = vld [vmem:[%s25 + $0x40] sm:$0xff]
    %v4857 = vld [vmem:[%s25 + $0x48] sm:$0xff]
    %v4858 = vld [vmem:[%s25 + $0x50] sm:$0xff]
    %v4859 = vld [vmem:[%s25 + $0x58] sm:$0xff]
    %v4860 = vld [vmem:[%s25 + $0x60] sm:$0xff]
    %v4861 = vld [vmem:[%s25 + $0x68] sm:$0xff]
    %v4862 = vld [vmem:[%s25 + $0x70] sm:$0xff]
    %v4863 = vld [vmem:[%s25 + $0x78] sm:$0xff]
    %v4864 = vld [vmem:[%s26] sm:$0x1]
    %4865 = vmatprep.subr.mxu0 0.0
    %4866 = vmatpush1.msra.mxu0 %v4848
    %4867 = vmatprep.subr.mxu0 0.0
    %4868 = vmatpush1.msra.mxu0 %v4849
    %4869 = vmatprep.subr.mxu0 0.0
    %4870 = vmatpush1.msra.mxu0 %v4850
    %4871 = vmatprep.subr.mxu0 0.0
    %4872 = vmatpush1.msra.mxu0 %v4851
    %4873 = vmatprep.subr.mxu0 0.0
    %4874 = vmatpush1.msra.mxu0 %v4852
    %4875 = vmatprep.subr.mxu0 0.0
    %4876 = vmatpush1.msra.mxu0 %v4853
    %4877 = vmatprep.subr.mxu0 0.0
    %4878 = vmatpush1.msra.mxu0 %v4854
    %4879 = vmatprep.subr.mxu0 0.0
    %4880 = vmatpush1.msra.mxu0 %v4855
    %4881 = vmatprep.subr.mxu0 0.0
    %4882 = vmatpush1.msra.mxu0 %v4856
    %4883 = vmatprep.subr.mxu0 0.0
    %4884 = vmatpush1.msra.mxu0 %v4857
    %4885 = vmatprep.subr.mxu0 0.0
    %4886 = vmatpush1.msra.mxu0 %v4858
    %4887 = vmatprep.subr.mxu0 0.0
    %4888 = vmatpush1.msra.mxu0 %v4859
    %4889 = vmatprep.subr.mxu0 0.0
    %4890 = vmatpush1.msra.mxu0 %v4860
    %4891 = vmatprep.subr.mxu0 0.0
    %4892 = vmatpush1.msra.mxu0 %v4861
    %4893 = vmatprep.subr.mxu0 0.0
    %4894 = vmatpush1.msra.mxu0 %v4862
    %4895 = vmatprep.subr.mxu0 0.0
    %4896 = vmatpush1.msra.mxu0 %v4863
    %4897 = vmatprep.subr.mxu0 0.0
    %4898 = vmatpush1.msra.mxu0 0.0
    %4899 = vmatprep.subr.mxu0 0.0
    %4900 = vmatpush1.msra.mxu0 0.0
    %4901 = vmatprep.subr.mxu0 0.0
    %4902 = vmatpush1.msra.mxu0 0.0
    %4903 = vmatprep.subr.mxu0 0.0
    %4904 = vmatpush1.msra.mxu0 0.0
    %4905 = vmatprep.subr.mxu0 0.0
    %4906 = vmatpush1.msra.mxu0 0.0
    %4907 = vmatprep.subr.mxu0 0.0
    %4908 = vmatpush1.msra.mxu0 0.0
    %4909 = vmatprep.subr.mxu0 0.0
    %4910 = vmatpush1.msra.mxu0 0.0
    %4911 = vmatprep.subr.mxu0 0.0
    %4912 = vmatpush1.msra.mxu0 0.0
    %4913 = vmatprep.subr.mxu0 0.0
    %4914 = vmatpush1.msra.mxu0 0.0
    %4915 = vmatprep.subr.mxu0 0.0
    %4916 = vmatpush1.msra.mxu0 0.0
    %4917 = vmatprep.subr.mxu0 0.0
    %4918 = vmatpush1.msra.mxu0 0.0
    %4919 = vmatprep.subr.mxu0 0.0
    %4920 = vmatpush1.msra.mxu0 0.0
    %4921 = vmatprep.subr.mxu0 0.0
    %4922 = vmatpush1.msra.mxu0 0.0
    %4923 = vmatprep.subr.mxu0 0.0
    %4924 = vmatpush1.msra.mxu0 0.0
    %4925 = vmatprep.subr.mxu0 0.0
    %4926 = vmatpush1.msra.mxu0 0.0
    %4927 = vmatprep.subr.mxu0 0.0
    %4928 = vmatpush1.msra.mxu0 0.0
    %4929 = vmatprep.mubr.f32.mxu0 0.0
    %4930 = vmatmul.mubr.f32.gmra.mrb[0].mxu0 %v4847
    %v4931 = vpop.f32.mrb[0].mxu0
    %v4932 = vadd.f32 %v4864, %v4931
    %v4933 = vpop.f32.mrb[0].mxu0
    %4934 = vdwg.mxu0
    %4935 = vst [vmem:[#allocation2] sm:$0x1] %v4932
    %v4936 = vmul.f32 %v3598, %v3999
    %v4937 = vmul.f32 %v3599, %v4003
    %v4938 = vmul.f32 %v3600, %v3999
    %v4939 = vmul.f32 %v3601, %v4003
    %v4940 = vadd.f32 %v4936, %v4011
    %v4941 = vadd.f32 %v4937, %v4015
    %v4942 = vadd.f32 %v4938, %v4011
    %v4943 = vadd.f32 %v4939, %v4015
    %v4944 = vmax.f32 %v4940, 0.0
    %v4945 = vmax.f32 %v4941, 0.0
    %v4946 = vmax.f32 %v4942, 0.0
    %v4947 = vmax.f32 %v4943, 0.0
    %v4949 = vsel %vm255, %v4945, 0
    %v4952 = vsel %vm255, %v4947, 0
    %4954 = vmatprep.subr.mxu0 0.0
    %4955 = vmatpush1.msra.mxu0 %v180
    %4956 = vmatprep.subr.mxu0 0.0
    %4957 = vmatpush1.msra.mxu0 %v181
    %4958 = vmatprep.subr.mxu0 0.0
    %4959 = vmatpush1.msra.mxu0 %v182
    %4960 = vmatprep.subr.mxu0 0.0
    %4961 = vmatpush1.msra.mxu0 %v183
    %4962 = vmatprep.subr.mxu0 0.0
    %4963 = vmatpush1.msra.mxu0 %v184
    %4964 = vmatprep.subr.mxu0 0.0
    %4965 = vmatpush1.msra.mxu0 %v185
    %4966 = vmatprep.subr.mxu0 0.0
    %4967 = vmatpush1.msra.mxu0 %v186
    %4968 = vmatprep.subr.mxu0 0.0
    %4969 = vmatpush1.msra.mxu0 %v187
    %4970 = vmatprep.subr.mxu0 0.0
    %4971 = vmatpush1.msra.mxu0 %v188
    %4972 = vmatprep.subr.mxu0 0.0
    %4973 = vmatpush1.msra.mxu0 %v189
    %4974 = vmatprep.subr.mxu0 0.0
    %4975 = vmatpush1.msra.mxu0 %v190
    %4976 = vmatprep.subr.mxu0 0.0
    %4977 = vmatpush1.msra.mxu0 %v191
    %4978 = vmatprep.subr.mxu0 0.0
    %4979 = vmatpush1.msra.mxu0 %v192
    %4980 = vmatprep.subr.mxu0 0.0
    %4981 = vmatpush1.msra.mxu0 %v193
    %4982 = vmatprep.subr.mxu0 0.0
    %4983 = vmatpush1.msra.mxu0 %v194
    %4984 = vmatprep.subr.mxu0 0.0
    %4985 = vmatpush1.msra.mxu0 %v195
    %4986 = vmatprep.subr.mxu0 0.0
    %4987 = vmatpush1.msra.mxu0 %v196
    %4988 = vmatprep.subr.mxu0 0.0
    %4989 = vmatpush1.msra.mxu0 %v197
    %4990 = vmatprep.subr.mxu0 0.0
    %4991 = vmatpush1.msra.mxu0 %v198
    %4992 = vmatprep.subr.mxu0 0.0
    %4993 = vmatpush1.msra.mxu0 %v199
    %4994 = vmatprep.subr.mxu0 0.0
    %4995 = vmatpush1.msra.mxu0 0.0
    %4996 = vmatprep.subr.mxu0 0.0
    %4997 = vmatpush1.msra.mxu0 0.0
    %4998 = vmatprep.subr.mxu0 0.0
    %4999 = vmatpush1.msra.mxu0 0.0
    %5000 = vmatprep.subr.mxu0 0.0
    %5001 = vmatpush1.msra.mxu0 0.0
    %5002 = vmatprep.subr.mxu0 0.0
    %5003 = vmatpush1.msra.mxu0 0.0
    %5004 = vmatprep.subr.mxu0 0.0
    %5005 = vmatpush1.msra.mxu0 0.0
    %5006 = vmatprep.subr.mxu0 0.0
    %5007 = vmatpush1.msra.mxu0 0.0
    %5008 = vmatprep.subr.mxu0 0.0
    %5009 = vmatpush1.msra.mxu0 0.0
    %5010 = vmatprep.subr.mxu0 0.0
    %5011 = vmatpush1.msra.mxu0 0.0
    %5012 = vmatprep.subr.mxu0 0.0
    %5013 = vmatpush1.msra.mxu0 0.0
    %5014 = vmatprep.subr.mxu0 0.0
    %5015 = vmatpush1.msra.mxu0 0.0
    %5016 = vmatprep.subr.mxu0 0.0
    %5017 = vmatpush1.msra.mxu0 0.0
    %5018 = vmatprep.mubr.f32.mxu0 %v4949
    %5019 = vmatmul.mubr.f32.gmra.mrb[0].mxu0 %v4944
    %v5020 = vpop.f32.mrb[0].mxu0
    %v5021 = vadd.f32 0.0, %v5020
    %v5022 = vpop.f32.mrb[0].mxu0
    %5023 = vmatprep.mubr.f32.mxu0 %v4952
    %5024 = vmatmul.mubr.f32.gmra.mrb[0].mxu0 %v4946
    %v5025 = vpop.f32.mrb[0].mxu0
    %v5026 = vadd.f32 0.0, %v5025
    %v5027 = vpop.f32.mrb[0].mxu0
    %5028 = vdwg.mxu0
    %5029 = vmatprep.subr.mxu0 0.0
    %5030 = vmatpush1.msra.mxu0 %v200
    %5031 = vmatprep.subr.mxu0 0.0
    %5032 = vmatpush1.msra.mxu0 %v201
    %5033 = vmatprep.subr.mxu0 0.0
    %5034 = vmatpush1.msra.mxu0 %v202
    %5035 = vmatprep.subr.mxu0 0.0
    %5036 = vmatpush1.msra.mxu0 %v203
    %5037 = vmatprep.subr.mxu0 0.0
    %5038 = vmatpush1.msra.mxu0 %v204
    %5039 = vmatprep.subr.mxu0 0.0
    %5040 = vmatpush1.msra.mxu0 %v205
    %5041 = vmatprep.subr.mxu0 0.0
    %5042 = vmatpush1.msra.mxu0 %v206
    %5043 = vmatprep.subr.mxu0 0.0
    %5044 = vmatpush1.msra.mxu0 %v207
    %5045 = vmatprep.subr.mxu0 0.0
    %5046 = vmatpush1.msra.mxu0 %v208
    %5047 = vmatprep.subr.mxu0 0.0
    %5048 = vmatpush1.msra.mxu0 %v209
    %5049 = vmatprep.subr.mxu0 0.0
    %5050 = vmatpush1.msra.mxu0 %v210
    %5051 = vmatprep.subr.mxu0 0.0
    %5052 = vmatpush1.msra.mxu0 %v211
    %5053 = vmatprep.subr.mxu0 0.0
    %5054 = vmatpush1.msra.mxu0 %v212
    %5055 = vmatprep.subr.mxu0 0.0
    %5056 = vmatpush1.msra.mxu0 %v213
    %5057 = vmatprep.subr.mxu0 0.0
    %5058 = vmatpush1.msra.mxu0 %v214
    %5059 = vmatprep.subr.mxu0 0.0
    %5060 = vmatpush1.msra.mxu0 %v215
    %5061 = vmatprep.subr.mxu0 0.0
    %5062 = vmatpush1.msra.mxu0 %v216
    %5063 = vmatprep.subr.mxu0 0.0
    %5064 = vmatpush1.msra.mxu0 %v217
    %5065 = vmatprep.subr.mxu0 0.0
    %5066 = vmatpush1.msra.mxu0 %v218
    %5067 = vmatprep.subr.mxu0 0.0
    %5068 = vmatpush1.msra.mxu0 %v219
    %5069 = vmatprep.subr.mxu0 0.0
    %5070 = vmatpush1.msra.mxu0 0.0
    %5071 = vmatprep.subr.mxu0 0.0
    %5072 = vmatpush1.msra.mxu0 0.0
    %5073 = vmatprep.subr.mxu0 0.0
    %5074 = vmatpush1.msra.mxu0 0.0
    %5075 = vmatprep.subr.mxu0 0.0
    %5076 = vmatpush1.msra.mxu0 0.0
    %5077 = vmatprep.subr.mxu0 0.0
    %5078 = vmatpush1.msra.mxu0 0.0
    %5079 = vmatprep.subr.mxu0 0.0
    %5080 = vmatpush1.msra.mxu0 0.0
    %5081 = vmatprep.subr.mxu0 0.0
    %5082 = vmatpush1.msra.mxu0 0.0
    %5083 = vmatprep.subr.mxu0 0.0
    %5084 = vmatpush1.msra.mxu0 0.0
    %5085 = vmatprep.subr.mxu0 0.0
    %5086 = vmatpush1.msra.mxu0 0.0
    %5087 = vmatprep.subr.mxu0 0.0
    %5088 = vmatpush1.msra.mxu0 0.0
    %5089 = vmatprep.subr.mxu0 0.0
    %5090 = vmatpush1.msra.mxu0 0.0
    %5091 = vmatprep.subr.mxu0 0.0
    %5092 = vmatpush1.msra.mxu0 0.0
    %5093 = vmatprep.mubr.f32.mxu0 %v4949
    %5094 = vmatmul.mubr.f32.gmra.mrb[0].mxu0 %v4944
    %v5095 = vpop.f32.mrb[0].mxu0
    %v5096 = vadd.f32 0.0, %v5095
    %v5097 = vpop.f32.mrb[0].mxu0
    %5098 = vmatprep.mubr.f32.mxu0 %v4952
    %5099 = vmatmul.mubr.f32.gmra.mrb[0].mxu0 %v4946
    %v5100 = vpop.f32.mrb[0].mxu0
    %v5101 = vadd.f32 0.0, %v5100
    %v5102 = vpop.f32.mrb[0].mxu0
    %5103 = vdwg.mxu0
    %v5104 = vmax.f32 %v5021, %v5096
    %v5105 = vmax.f32 %v5026, %v5101
    %v5107 = vsel %vm3602, %v5105, 0
    %5109 = vmatprep.subr.mxu0 0.0
    %5110 = vmatpush1.msra.mxu0 %v5104
    %5111 = vmatprep.subr.mxu0 0.0
    %5112 = vmatpush1.msra.mxu0 %v5107
    %5113 = vmatprep.subr.mxu0 0.0
    %5114 = vmatpush1.msra.mxu0 0.0
    %5115 = vmatprep.subr.mxu0 0.0
    %5116 = vmatpush1.msra.mxu0 0.0
    %5117 = vmatprep.subr.mxu0 0.0
    %5118 = vmatpush1.msra.mxu0 0.0
    %5119 = vmatprep.subr.mxu0 0.0
    %5120 = vmatpush1.msra.mxu0 0.0
    %5121 = vmatprep.subr.mxu0 0.0
    %5122 = vmatpush1.msra.mxu0 0.0
    %5123 = vmatprep.subr.mxu0 0.0
    %5124 = vmatpush1.msra.mxu0 0.0
    %5125 = vmatprep.subr.mxu0 0.0
    %5126 = vmatpush1.msra.mxu0 0.0
    %5127 = vmatprep.subr.mxu0 0.0
    %5128 = vmatpush1.msra.mxu0 0.0
    %5129 = vmatprep.subr.mxu0 0.0
    %5130 = vmatpush1.msra.mxu0 0.0
    %5131 = vmatprep.subr.mxu0 0.0
    %5132 = vmatpush1.msra.mxu0 0.0
    %5133 = vmatprep.subr.mxu0 0.0
    %5134 = vmatpush1.msra.mxu0 0.0
    %5135 = vmatprep.subr.mxu0 0.0
    %5136 = vmatpush1.msra.mxu0 0.0
    %5137 = vmatprep.subr.mxu0 0.0
    %5138 = vmatpush1.msra.mxu0 0.0
    %5139 = vmatprep.subr.mxu0 0.0
    %5140 = vmatpush1.msra.mxu0 0.0
    %5141 = vmatprep.subr.mxu0 0.0
    %5142 = vmatpush1.msra.mxu0 0.0
    %5143 = vmatprep.subr.mxu0 0.0
    %5144 = vmatpush1.msra.mxu0 0.0
    %5145 = vmatprep.subr.mxu0 0.0
    %5146 = vmatpush1.msra.mxu0 0.0
    %5147 = vmatprep.subr.mxu0 0.0
    %5148 = vmatpush1.msra.mxu0 0.0
    %5149 = vmatprep.subr.mxu0 0.0
    %5150 = vmatpush1.msra.mxu0 0.0
    %5151 = vmatprep.subr.mxu0 0.0
    %5152 = vmatpush1.msra.mxu0 0.0
    %5153 = vmatprep.subr.mxu0 0.0
    %5154 = vmatpush1.msra.mxu0 0.0
    %5155 = vmatprep.subr.mxu0 0.0
    %5156 = vmatpush1.msra.mxu0 0.0
    %5157 = vmatprep.subr.mxu0 0.0
    %5158 = vmatpush1.msra.mxu0 0.0
    %5159 = vmatprep.subr.mxu0 0.0
    %5160 = vmatpush1.msra.mxu0 0.0
    %5161 = vmatprep.subr.mxu0 0.0
    %5162 = vmatpush1.msra.mxu0 0.0
    %5163 = vmatprep.subr.mxu0 0.0
    %5164 = vmatpush1.msra.mxu0 0.0
    %5165 = vmatprep.subr.mxu0 0.0
    %5166 = vmatpush1.msra.mxu0 0.0
    %5167 = vmatprep.subr.mxu0 0.0
    %5168 = vmatpush1.msra.mxu0 0.0
    %5169 = vmatprep.subr.mxu0 0.0
    %5170 = vmatpush1.msra.mxu0 0.0
    %5171 = vmatprep.subr.mxu0 0.0
    %5172 = vmatpush1.msra.mxu0 0.0
    %5173 = vmatprep.mubr.f32.mxu0 0.0
    %5174 = vmatmul.mubr.f32.gmra.mrb[0].mxu0 %v4184
    %v5175 = vpop.f32.mrb[0].mxu0
    %v5176 = vadd.f32 0.0, %v5175
    %v5177 = vpop.f32.mrb[0].mxu0
    %5178 = vdwg.mxu0
    %5179 = vmatprep.subr.mxu0 0.0
    %5180 = vmatpush1.msra.mxu0 %v5104
    %5181 = vmatprep.subr.mxu0 0.0
    %5182 = vmatpush1.msra.mxu0 %v5107
    %5183 = vmatprep.subr.mxu0 0.0
    %5184 = vmatpush1.msra.mxu0 0.0
    %5185 = vmatprep.subr.mxu0 0.0
    %5186 = vmatpush1.msra.mxu0 0.0
    %5187 = vmatprep.subr.mxu0 0.0
    %5188 = vmatpush1.msra.mxu0 0.0
    %5189 = vmatprep.subr.mxu0 0.0
    %5190 = vmatpush1.msra.mxu0 0.0
    %5191 = vmatprep.subr.mxu0 0.0
    %5192 = vmatpush1.msra.mxu0 0.0
    %5193 = vmatprep.subr.mxu0 0.0
    %5194 = vmatpush1.msra.mxu0 0.0
    %5195 = vmatprep.subr.mxu0 0.0
    %5196 = vmatpush1.msra.mxu0 0.0
    %5197 = vmatprep.subr.mxu0 0.0
    %5198 = vmatpush1.msra.mxu0 0.0
    %5199 = vmatprep.subr.mxu0 0.0
    %5200 = vmatpush1.msra.mxu0 0.0
    %5201 = vmatprep.subr.mxu0 0.0
    %5202 = vmatpush1.msra.mxu0 0.0
    %5203 = vmatprep.subr.mxu0 0.0
    %5204 = vmatpush1.msra.mxu0 0.0
    %5205 = vmatprep.subr.mxu0 0.0
    %5206 = vmatpush1.msra.mxu0 0.0
    %5207 = vmatprep.subr.mxu0 0.0
    %5208 = vmatpush1.msra.mxu0 0.0
    %5209 = vmatprep.subr.mxu0 0.0
    %5210 = vmatpush1.msra.mxu0 0.0
    %5211 = vmatprep.subr.mxu0 0.0
    %5212 = vmatpush1.msra.mxu0 0.0
    %5213 = vmatprep.subr.mxu0 0.0
    %5214 = vmatpush1.msra.mxu0 0.0
    %5215 = vmatprep.subr.mxu0 0.0
    %5216 = vmatpush1.msra.mxu0 0.0
    %5217 = vmatprep.subr.mxu0 0.0
    %5218 = vmatpush1.msra.mxu0 0.0
    %5219 = vmatprep.subr.mxu0 0.0
    %5220 = vmatpush1.msra.mxu0 0.0
    %5221 = vmatprep.subr.mxu0 0.0
    %5222 = vmatpush1.msra.mxu0 0.0
    %5223 = vmatprep.subr.mxu0 0.0
    %5224 = vmatpush1.msra.mxu0 0.0
    %5225 = vmatprep.subr.mxu0 0.0
    %5226 = vmatpush1.msra.mxu0 0.0
    %5227 = vmatprep.subr.mxu0 0.0
    %5228 = vmatpush1.msra.mxu0 0.0
    %5229 = vmatprep.subr.mxu0 0.0
    %5230 = vmatpush1.msra.mxu0 0.0
    %5231 = vmatprep.subr.mxu0 0.0
    %5232 = vmatpush1.msra.mxu0 0.0
    %5233 = vmatprep.subr.mxu0 0.0
    %5234 = vmatpush1.msra.mxu0 0.0
    %5235 = vmatprep.subr.mxu0 0.0
    %5236 = vmatpush1.msra.mxu0 0.0
    %5237 = vmatprep.subr.mxu0 0.0
    %5238 = vmatpush1.msra.mxu0 0.0
    %5239 = vmatprep.subr.mxu0 0.0
    %5240 = vmatpush1.msra.mxu0 0.0
    %5241 = vmatprep.subr.mxu0 0.0
    %5242 = vmatpush1.msra.mxu0 0.0
    %5243 = vmatprep.mubr.f32.mxu0 0.0
    %5244 = vmatmul.mubr.f32.gmra.mrb[0].mxu0 %v4260
    %v5245 = vpop.f32.mrb[0].mxu0
    %v5246 = vadd.f32 0.0, %v5245
    %v5247 = vpop.f32.mrb[0].mxu0
    %5248 = vdwg.mxu0
    %v5249 = vmax.f32 %v5176, %v5246
    %v5250 = vld [vmem:[%s22] sm:$0x1]
    %v5251 = vld [vmem:[%s21] sm:$0xff]
    %v5252 = vld [vmem:[%s21 + $0x8] sm:$0xff]
    %v5253 = vld [vmem:[%s21 + $0x10] sm:$0xff]
    %v5254 = vld [vmem:[%s21 + $0x18] sm:$0xff]
    %v5255 = vld [vmem:[%s21 + $0x20] sm:$0xff]
    %v5256 = vld [vmem:[%s21 + $0x28] sm:$0xff]
    %v5257 = vld [vmem:[%s21 + $0x30] sm:$0xff]
    %v5258 = vld [vmem:[%s21 + $0x38] sm:$0xff]
    %v5259 = vld [vmem:[%s21 + $0x40] sm:$0xff]
    %v5260 = vld [vmem:[%s21 + $0x48] sm:$0xff]
    %v5262 = vsel %vm4344, %v5249, 0
    %5264 = vmatprep.subr.mxu0 0.0
    %5265 = vmatpush1.msra.mxu0 %v5251
    %5266 = vmatprep.subr.mxu0 0.0
    %5267 = vmatpush1.msra.mxu0 %v5252
    %5268 = vmatprep.subr.mxu0 0.0
    %5269 = vmatpush1.msra.mxu0 %v5253
    %5270 = vmatprep.subr.mxu0 0.0
    %5271 = vmatpush1.msra.mxu0 %v5254
    %5272 = vmatprep.subr.mxu0 0.0
    %5273 = vmatpush1.msra.mxu0 %v5255
    %5274 = vmatprep.subr.mxu0 0.0
    %5275 = vmatpush1.msra.mxu0 %v5256
    %5276 = vmatprep.subr.mxu0 0.0
    %5277 = vmatpush1.msra.mxu0 %v5257
    %5278 = vmatprep.subr.mxu0 0.0
    %5279 = vmatpush1.msra.mxu0 %v5258
    %5280 = vmatprep.subr.mxu0 0.0
    %5281 = vmatpush1.msra.mxu0 %v5259
    %5282 = vmatprep.subr.mxu0 0.0
    %5283 = vmatpush1.msra.mxu0 %v5260
    %5284 = vmatprep.subr.mxu0 0.0
    %5285 = vmatpush1.msra.mxu0 0.0
    %5286 = vmatprep.subr.mxu0 0.0
    %5287 = vmatpush1.msra.mxu0 0.0
    %5288 = vmatprep.subr.mxu0 0.0
    %5289 = vmatpush1.msra.mxu0 0.0
    %5290 = vmatprep.subr.mxu0 0.0
    %5291 = vmatpush1.msra.mxu0 0.0
    %5292 = vmatprep.subr.mxu0 0.0
    %5293 = vmatpush1.msra.mxu0 0.0
    %5294 = vmatprep.subr.mxu0 0.0
    %5295 = vmatpush1.msra.mxu0 0.0
    %5296 = vmatprep.subr.mxu0 0.0
    %5297 = vmatpush1.msra.mxu0 0.0
    %5298 = vmatprep.subr.mxu0 0.0
    %5299 = vmatpush1.msra.mxu0 0.0
    %5300 = vmatprep.subr.mxu0 0.0
    %5301 = vmatpush1.msra.mxu0 0.0
    %5302 = vmatprep.subr.mxu0 0.0
    %5303 = vmatpush1.msra.mxu0 0.0
    %5304 = vmatprep.subr.mxu0 0.0
    %5305 = vmatpush1.msra.mxu0 0.0
    %5306 = vmatprep.subr.mxu0 0.0
    %5307 = vmatpush1.msra.mxu0 0.0
    %5308 = vmatprep.subr.mxu0 0.0
    %5309 = vmatpush1.msra.mxu0 0.0
    %5310 = vmatprep.subr.mxu0 0.0
    %5311 = vmatpush1.msra.mxu0 0.0
    %5312 = vmatprep.subr.mxu0 0.0
    %5313 = vmatpush1.msra.mxu0 0.0
    %5314 = vmatprep.subr.mxu0 0.0
    %5315 = vmatpush1.msra.mxu0 0.0
    %5316 = vmatprep.subr.mxu0 0.0
    %5317 = vmatpush1.msra.mxu0 0.0
    %5318 = vmatprep.subr.mxu0 0.0
    %5319 = vmatpush1.msra.mxu0 0.0
    %5320 = vmatprep.subr.mxu0 0.0
    %5321 = vmatpush1.msra.mxu0 0.0
    %5322 = vmatprep.subr.mxu0 0.0
    %5323 = vmatpush1.msra.mxu0 0.0
    %5324 = vmatprep.subr.mxu0 0.0
    %5325 = vmatpush1.msra.mxu0 0.0
    %5326 = vmatprep.subr.mxu0 0.0
    %5327 = vmatpush1.msra.mxu0 0.0
    %5328 = vmatprep.mubr.f32.mxu0 0.0
    %5329 = vmatmul.mubr.f32.gmra.mrb[0].mxu0 %v5262
    %v5330 = vpop.f32.mrb[0].mxu0
    %v5331 = vadd.f32 0.0, %v5330
    %v5332 = vpop.f32.mrb[0].mxu0
    %5333 = vdwg.mxu0
    %v5334 = vadd.f32 %v5250, %v5331
    %v5335 = vld [vmem:[%s4419] sm:$0xff]
    %v5336 = vld [vmem:[%s4419 + $0x8] sm:$0xff]
    %v5337 = vld [vmem:[%s4419 + $0x10] sm:$0xff]
    %v5338 = vld [vmem:[%s4419 + $0x18] sm:$0xff]
    %v5339 = vld [vmem:[%s4419 + $0x20] sm:$0xff]
    %v5340 = vld [vmem:[%s4419 + $0x28] sm:$0xff]
    %v5341 = vld [vmem:[%s4419 + $0x30] sm:$0xff]
    %v5342 = vld [vmem:[%s4419 + $0x38] sm:$0xff]
    %v5343 = vld [vmem:[%s4419 + $0x40] sm:$0xff]
    %v5344 = vld [vmem:[%s4419 + $0x48] sm:$0xff]
    %v5345 = vrot.slane %v5249, 1
    %v5346 = vsel %vm4344, %v5345, 0
    %5348 = vmatprep.subr.mxu0 0.0
    %5349 = vmatpush1.msra.mxu0 %v5335
    %5350 = vmatprep.subr.mxu0 0.0
    %5351 = vmatpush1.msra.mxu0 %v5336
    %5352 = vmatprep.subr.mxu0 0.0
    %5353 = vmatpush1.msra.mxu0 %v5337
    %5354 = vmatprep.subr.mxu0 0.0
    %5355 = vmatpush1.msra.mxu0 %v5338
    %5356 = vmatprep.subr.mxu0 0.0
    %5357 = vmatpush1.msra.mxu0 %v5339
    %5358 = vmatprep.subr.mxu0 0.0
    %5359 = vmatpush1.msra.mxu0 %v5340
    %5360 = vmatprep.subr.mxu0 0.0
    %5361 = vmatpush1.msra.mxu0 %v5341
    %5362 = vmatprep.subr.mxu0 0.0
    %5363 = vmatpush1.msra.mxu0 %v5342
    %5364 = vmatprep.subr.mxu0 0.0
    %5365 = vmatpush1.msra.mxu0 %v5343
    %5366 = vmatprep.subr.mxu0 0.0
    %5367 = vmatpush1.msra.mxu0 %v5344
    %5368 = vmatprep.subr.mxu0 0.0
    %5369 = vmatpush1.msra.mxu0 0.0
    %5370 = vmatprep.subr.mxu0 0.0
    %5371 = vmatpush1.msra.mxu0 0.0
    %5372 = vmatprep.subr.mxu0 0.0
    %5373 = vmatpush1.msra.mxu0 0.0
    %5374 = vmatprep.subr.mxu0 0.0
    %5375 = vmatpush1.msra.mxu0 0.0
    %5376 = vmatprep.subr.mxu0 0.0
    %5377 = vmatpush1.msra.mxu0 0.0
    %5378 = vmatprep.subr.mxu0 0.0
    %5379 = vmatpush1.msra.mxu0 0.0
    %5380 = vmatprep.subr.mxu0 0.0
    %5381 = vmatpush1.msra.mxu0 0.0
    %5382 = vmatprep.subr.mxu0 0.0
    %5383 = vmatpush1.msra.mxu0 0.0
    %5384 = vmatprep.subr.mxu0 0.0
    %5385 = vmatpush1.msra.mxu0 0.0
    %5386 = vmatprep.subr.mxu0 0.0
    %5387 = vmatpush1.msra.mxu0 0.0
    %5388 = vmatprep.subr.mxu0 0.0
    %5389 = vmatpush1.msra.mxu0 0.0
    %5390 = vmatprep.subr.mxu0 0.0
    %5391 = vmatpush1.msra.mxu0 0.0
    %5392 = vmatprep.subr.mxu0 0.0
    %5393 = vmatpush1.msra.mxu0 0.0
    %5394 = vmatprep.subr.mxu0 0.0
    %5395 = vmatpush1.msra.mxu0 0.0
    %5396 = vmatprep.subr.mxu0 0.0
    %5397 = vmatpush1.msra.mxu0 0.0
    %5398 = vmatprep.subr.mxu0 0.0
    %5399 = vmatpush1.msra.mxu0 0.0
    %5400 = vmatprep.subr.mxu0 0.0
    %5401 = vmatpush1.msra.mxu0 0.0
    %5402 = vmatprep.subr.mxu0 0.0
    %5403 = vmatpush1.msra.mxu0 0.0
    %5404 = vmatprep.subr.mxu0 0.0
    %5405 = vmatpush1.msra.mxu0 0.0
    %5406 = vmatprep.subr.mxu0 0.0
    %5407 = vmatpush1.msra.mxu0 0.0
    %5408 = vmatprep.subr.mxu0 0.0
    %5409 = vmatpush1.msra.mxu0 0.0
    %5410 = vmatprep.subr.mxu0 0.0
    %5411 = vmatpush1.msra.mxu0 0.0
    %5412 = vmatprep.mubr.f32.mxu0 0.0
    %5413 = vmatmul.mubr.f32.gmra.mrb[0].mxu0 %v5346
    %v5414 = vpop.f32.mrb[0].mxu0
    %v5415 = vadd.f32 0.0, %v5414
    %v5416 = vpop.f32.mrb[0].mxu0
    %5417 = vdwg.mxu0
    %v5418 = vadd.f32 %v5334, %v5415
    %v5419 = vld [vmem:[%s4504] sm:$0xff]
    %v5420 = vld [vmem:[%s4504 + $0x8] sm:$0xff]
    %v5421 = vld [vmem:[%s4504 + $0x10] sm:$0xff]
    %v5422 = vld [vmem:[%s4504 + $0x18] sm:$0xff]
    %v5423 = vld [vmem:[%s4504 + $0x20] sm:$0xff]
    %v5424 = vld [vmem:[%s4504 + $0x28] sm:$0xff]
    %v5425 = vld [vmem:[%s4504 + $0x30] sm:$0xff]
    %v5426 = vld [vmem:[%s4504 + $0x38] sm:$0xff]
    %v5427 = vld [vmem:[%s4504 + $0x40] sm:$0xff]
    %v5428 = vld [vmem:[%s4504 + $0x48] sm:$0xff]
    %v5429 = vrot.slane %v5249, 2
    %v5430 = vsel %vm4344, %v5429, 0
    %5432 = vmatprep.subr.mxu0 0.0
    %5433 = vmatpush1.msra.mxu0 %v5419
    %5434 = vmatprep.subr.mxu0 0.0
    %5435 = vmatpush1.msra.mxu0 %v5420
    %5436 = vmatprep.subr.mxu0 0.0
    %5437 = vmatpush1.msra.mxu0 %v5421
    %5438 = vmatprep.subr.mxu0 0.0
    %5439 = vmatpush1.msra.mxu0 %v5422
    %5440 = vmatprep.subr.mxu0 0.0
    %5441 = vmatpush1.msra.mxu0 %v5423
    %5442 = vmatprep.subr.mxu0 0.0
    %5443 = vmatpush1.msra.mxu0 %v5424
    %5444 = vmatprep.subr.mxu0 0.0
    %5445 = vmatpush1.msra.mxu0 %v5425
    %5446 = vmatprep.subr.mxu0 0.0
    %5447 = vmatpush1.msra.mxu0 %v5426
    %5448 = vmatprep.subr.mxu0 0.0
    %5449 = vmatpush1.msra.mxu0 %v5427
    %5450 = vmatprep.subr.mxu0 0.0
    %5451 = vmatpush1.msra.mxu0 %v5428
    %5452 = vmatprep.subr.mxu0 0.0
    %5453 = vmatpush1.msra.mxu0 0.0
    %5454 = vmatprep.subr.mxu0 0.0
    %5455 = vmatpush1.msra.mxu0 0.0
    %5456 = vmatprep.subr.mxu0 0.0
    %5457 = vmatpush1.msra.mxu0 0.0
    %5458 = vmatprep.subr.mxu0 0.0
    %5459 = vmatpush1.msra.mxu0 0.0
    %5460 = vmatprep.subr.mxu0 0.0
    %5461 = vmatpush1.msra.mxu0 0.0
    %5462 = vmatprep.subr.mxu0 0.0
    %5463 = vmatpush1.msra.mxu0 0.0
    %5464 = vmatprep.subr.mxu0 0.0
    %5465 = vmatpush1.msra.mxu0 0.0
    %5466 = vmatprep.subr.mxu0 0.0
    %5467 = vmatpush1.msra.mxu0 0.0
    %5468 = vmatprep.subr.mxu0 0.0
    %5469 = vmatpush1.msra.mxu0 0.0
    %5470 = vmatprep.subr.mxu0 0.0
    %5471 = vmatpush1.msra.mxu0 0.0
    %5472 = vmatprep.subr.mxu0 0.0
    %5473 = vmatpush1.msra.mxu0 0.0
    %5474 = vmatprep.subr.mxu0 0.0
    %5475 = vmatpush1.msra.mxu0 0.0
    %5476 = vmatprep.subr.mxu0 0.0
    %5477 = vmatpush1.msra.mxu0 0.0
    %5478 = vmatprep.subr.mxu0 0.0
    %5479 = vmatpush1.msra.mxu0 0.0
    %5480 = vmatprep.subr.mxu0 0.0
    %5481 = vmatpush1.msra.mxu0 0.0
    %5482 = vmatprep.subr.mxu0 0.0
    %5483 = vmatpush1.msra.mxu0 0.0
    %5484 = vmatprep.subr.mxu0 0.0
    %5485 = vmatpush1.msra.mxu0 0.0
    %5486 = vmatprep.subr.mxu0 0.0
    %5487 = vmatpush1.msra.mxu0 0.0
    %5488 = vmatprep.subr.mxu0 0.0
    %5489 = vmatpush1.msra.mxu0 0.0
    %5490 = vmatprep.subr.mxu0 0.0
    %5491 = vmatpush1.msra.mxu0 0.0
    %5492 = vmatprep.subr.mxu0 0.0
    %5493 = vmatpush1.msra.mxu0 0.0
    %5494 = vmatprep.subr.mxu0 0.0
    %5495 = vmatpush1.msra.mxu0 0.0
    %5496 = vmatprep.mubr.f32.mxu0 0.0
    %5497 = vmatmul.mubr.f32.gmra.mrb[0].mxu0 %v5430
    %v5498 = vpop.f32.mrb[0].mxu0
    %v5499 = vadd.f32 0.0, %v5498
    %v5500 = vpop.f32.mrb[0].mxu0
    %5501 = vdwg.mxu0
    %v5502 = vadd.f32 %v5418, %v5499
    %v5503 = vld [vmem:[%s4589] sm:$0xff]
    %v5504 = vld [vmem:[%s4589 + $0x8] sm:$0xff]
    %v5505 = vld [vmem:[%s4589 + $0x10] sm:$0xff]
    %v5506 = vld [vmem:[%s4589 + $0x18] sm:$0xff]
    %v5507 = vld [vmem:[%s4589 + $0x20] sm:$0xff]
    %v5508 = vld [vmem:[%s4589 + $0x28] sm:$0xff]
    %v5509 = vld [vmem:[%s4589 + $0x30] sm:$0xff]
    %v5510 = vld [vmem:[%s4589 + $0x38] sm:$0xff]
    %v5511 = vld [vmem:[%s4589 + $0x40] sm:$0xff]
    %v5512 = vld [vmem:[%s4589 + $0x48] sm:$0xff]
    %v5513 = vrot.slane %v5249, 3
    %v5514 = vsel %vm4344, %v5513, 0
    %5516 = vmatprep.subr.mxu0 0.0
    %5517 = vmatpush1.msra.mxu0 %v5503
    %5518 = vmatprep.subr.mxu0 0.0
    %5519 = vmatpush1.msra.mxu0 %v5504
    %5520 = vmatprep.subr.mxu0 0.0
    %5521 = vmatpush1.msra.mxu0 %v5505
    %5522 = vmatprep.subr.mxu0 0.0
    %5523 = vmatpush1.msra.mxu0 %v5506
    %5524 = vmatprep.subr.mxu0 0.0
    %5525 = vmatpush1.msra.mxu0 %v5507
    %5526 = vmatprep.subr.mxu0 0.0
    %5527 = vmatpush1.msra.mxu0 %v5508
    %5528 = vmatprep.subr.mxu0 0.0
    %5529 = vmatpush1.msra.mxu0 %v5509
    %5530 = vmatprep.subr.mxu0 0.0
    %5531 = vmatpush1.msra.mxu0 %v5510
    %5532 = vmatprep.subr.mxu0 0.0
    %5533 = vmatpush1.msra.mxu0 %v5511
    %5534 = vmatprep.subr.mxu0 0.0
    %5535 = vmatpush1.msra.mxu0 %v5512
    %5536 = vmatprep.subr.mxu0 0.0
    %5537 = vmatpush1.msra.mxu0 0.0
    %5538 = vmatprep.subr.mxu0 0.0
    %5539 = vmatpush1.msra.mxu0 0.0
    %5540 = vmatprep.subr.mxu0 0.0
    %5541 = vmatpush1.msra.mxu0 0.0
    %5542 = vmatprep.subr.mxu0 0.0
    %5543 = vmatpush1.msra.mxu0 0.0
    %5544 = vmatprep.subr.mxu0 0.0
    %5545 = vmatpush1.msra.mxu0 0.0
    %5546 = vmatprep.subr.mxu0 0.0
    %5547 = vmatpush1.msra.mxu0 0.0
    %5548 = vmatprep.subr.mxu0 0.0
    %5549 = vmatpush1.msra.mxu0 0.0
    %5550 = vmatprep.subr.mxu0 0.0
    %5551 = vmatpush1.msra.mxu0 0.0
    %5552 = vmatprep.subr.mxu0 0.0
    %5553 = vmatpush1.msra.mxu0 0.0
    %5554 = vmatprep.subr.mxu0 0.0
    %5555 = vmatpush1.msra.mxu0 0.0
    %5556 = vmatprep.subr.mxu0 0.0
    %5557 = vmatpush1.msra.mxu0 0.0
    %5558 = vmatprep.subr.mxu0 0.0
    %5559 = vmatpush1.msra.mxu0 0.0
    %5560 = vmatprep.subr.mxu0 0.0
    %5561 = vmatpush1.msra.mxu0 0.0
    %5562 = vmatprep.subr.mxu0 0.0
    %5563 = vmatpush1.msra.mxu0 0.0
    %5564 = vmatprep.subr.mxu0 0.0
    %5565 = vmatpush1.msra.mxu0 0.0
    %5566 = vmatprep.subr.mxu0 0.0
    %5567 = vmatpush1.msra.mxu0 0.0
    %5568 = vmatprep.subr.mxu0 0.0
    %5569 = vmatpush1.msra.mxu0 0.0
    %5570 = vmatprep.subr.mxu0 0.0
    %5571 = vmatpush1.msra.mxu0 0.0
    %5572 = vmatprep.subr.mxu0 0.0
    %5573 = vmatpush1.msra.mxu0 0.0
    %5574 = vmatprep.subr.mxu0 0.0
    %5575 = vmatpush1.msra.mxu0 0.0
    %5576 = vmatprep.subr.mxu0 0.0
    %5577 = vmatpush1.msra.mxu0 0.0
    %5578 = vmatprep.subr.mxu0 0.0
    %5579 = vmatpush1.msra.mxu0 0.0
    %5580 = vmatprep.mubr.f32.mxu0 0.0
    %5581 = vmatmul.mubr.f32.gmra.mrb[0].mxu0 %v5514
    %v5582 = vpop.f32.mrb[0].mxu0
    %v5583 = vadd.f32 0.0, %v5582
    %v5584 = vpop.f32.mrb[0].mxu0
    %5585 = vdwg.mxu0
    %v5586 = vadd.f32 %v5502, %v5583
    %v5587 = vld [vmem:[%s4674] sm:$0xff]
    %v5588 = vld [vmem:[%s4674 + $0x8] sm:$0xff]
    %v5589 = vld [vmem:[%s4674 + $0x10] sm:$0xff]
    %v5590 = vld [vmem:[%s4674 + $0x18] sm:$0xff]
    %v5591 = vld [vmem:[%s4674 + $0x20] sm:$0xff]
    %v5592 = vld [vmem:[%s4674 + $0x28] sm:$0xff]
    %v5593 = vld [vmem:[%s4674 + $0x30] sm:$0xff]
    %v5594 = vld [vmem:[%s4674 + $0x38] sm:$0xff]
    %v5595 = vld [vmem:[%s4674 + $0x40] sm:$0xff]
    %v5596 = vld [vmem:[%s4674 + $0x48] sm:$0xff]
    %v5597 = vrot.slane %v5249, 4
    %v5598 = vsel %vm4344, %v5597, 0
    %5600 = vmatprep.subr.mxu0 0.0
    %5601 = vmatpush1.msra.mxu0 %v5587
    %5602 = vmatprep.subr.mxu0 0.0
    %5603 = vmatpush1.msra.mxu0 %v5588
    %5604 = vmatprep.subr.mxu0 0.0
    %5605 = vmatpush1.msra.mxu0 %v5589
    %5606 = vmatprep.subr.mxu0 0.0
    %5607 = vmatpush1.msra.mxu0 %v5590
    %5608 = vmatprep.subr.mxu0 0.0
    %5609 = vmatpush1.msra.mxu0 %v5591
    %5610 = vmatprep.subr.mxu0 0.0
    %5611 = vmatpush1.msra.mxu0 %v5592
    %5612 = vmatprep.subr.mxu0 0.0
    %5613 = vmatpush1.msra.mxu0 %v5593
    %5614 = vmatprep.subr.mxu0 0.0
    %5615 = vmatpush1.msra.mxu0 %v5594
    %5616 = vmatprep.subr.mxu0 0.0
    %5617 = vmatpush1.msra.mxu0 %v5595
    %5618 = vmatprep.subr.mxu0 0.0
    %5619 = vmatpush1.msra.mxu0 %v5596
    %5620 = vmatprep.subr.mxu0 0.0
    %5621 = vmatpush1.msra.mxu0 0.0
    %5622 = vmatprep.subr.mxu0 0.0
    %5623 = vmatpush1.msra.mxu0 0.0
    %5624 = vmatprep.subr.mxu0 0.0
    %5625 = vmatpush1.msra.mxu0 0.0
    %5626 = vmatprep.subr.mxu0 0.0
    %5627 = vmatpush1.msra.mxu0 0.0
    %5628 = vmatprep.subr.mxu0 0.0
    %5629 = vmatpush1.msra.mxu0 0.0
    %5630 = vmatprep.subr.mxu0 0.0
    %5631 = vmatpush1.msra.mxu0 0.0
    %5632 = vmatprep.subr.mxu0 0.0
    %5633 = vmatpush1.msra.mxu0 0.0
    %5634 = vmatprep.subr.mxu0 0.0
    %5635 = vmatpush1.msra.mxu0 0.0
    %5636 = vmatprep.subr.mxu0 0.0
    %5637 = vmatpush1.msra.mxu0 0.0
    %5638 = vmatprep.subr.mxu0 0.0
    %5639 = vmatpush1.msra.mxu0 0.0
    %5640 = vmatprep.subr.mxu0 0.0
    %5641 = vmatpush1.msra.mxu0 0.0
    %5642 = vmatprep.subr.mxu0 0.0
    %5643 = vmatpush1.msra.mxu0 0.0
    %5644 = vmatprep.subr.mxu0 0.0
    %5645 = vmatpush1.msra.mxu0 0.0
    %5646 = vmatprep.subr.mxu0 0.0
    %5647 = vmatpush1.msra.mxu0 0.0
    %5648 = vmatprep.subr.mxu0 0.0
    %5649 = vmatpush1.msra.mxu0 0.0
    %5650 = vmatprep.subr.mxu0 0.0
    %5651 = vmatpush1.msra.mxu0 0.0
    %5652 = vmatprep.subr.mxu0 0.0
    %5653 = vmatpush1.msra.mxu0 0.0
    %5654 = vmatprep.subr.mxu0 0.0
    %5655 = vmatpush1.msra.mxu0 0.0
    %5656 = vmatprep.subr.mxu0 0.0
    %5657 = vmatpush1.msra.mxu0 0.0
    %5658 = vmatprep.subr.mxu0 0.0
    %5659 = vmatpush1.msra.mxu0 0.0
    %5660 = vmatprep.subr.mxu0 0.0
    %5661 = vmatpush1.msra.mxu0 0.0
    %5662 = vmatprep.subr.mxu0 0.0
    %5663 = vmatpush1.msra.mxu0 0.0
    %5664 = vmatprep.mubr.f32.mxu0 0.0
    %5665 = vmatmul.mubr.f32.gmra.mrb[0].mxu0 %v5598
    %v5666 = vpop.f32.mrb[0].mxu0
    %v5667 = vadd.f32 0.0, %v5666
    %v5668 = vpop.f32.mrb[0].mxu0
    %5669 = vdwg.mxu0
    %v5670 = vadd.f32 %v5586, %v5667
    %v5671 = vmax.f32 %v5670, 0.0
    %v5672 = vld [vmem:[%s23] sm:$0xff]
    %v5673 = vld [vmem:[%s23 + $0x8] sm:$0xff]
    %v5674 = vld [vmem:[%s23 + $0x10] sm:$0xff]
    %v5675 = vld [vmem:[%s23 + $0x18] sm:$0xff]
    %v5676 = vld [vmem:[%s23 + $0x20] sm:$0xff]
    %v5677 = vld [vmem:[%s23 + $0x28] sm:$0xff]
    %v5678 = vld [vmem:[%s23 + $0x30] sm:$0xff]
    %v5679 = vld [vmem:[%s23 + $0x38] sm:$0xff]
    %v5680 = vld [vmem:[%s23 + $0x40] sm:$0xff]
    %v5681 = vld [vmem:[%s23 + $0x48] sm:$0xff]
    %v5682 = vld [vmem:[%s23 + $0x50] sm:$0xff]
    %v5683 = vld [vmem:[%s23 + $0x58] sm:$0xff]
    %v5684 = vld [vmem:[%s23 + $0x60] sm:$0xff]
    %v5685 = vld [vmem:[%s23 + $0x68] sm:$0xff]
    %v5686 = vld [vmem:[%s23 + $0x70] sm:$0xff]
    %v5687 = vld [vmem:[%s23 + $0x78] sm:$0xff]
    %v5688 = vld [vmem:[%s24] sm:$0x1]
    %5689 = vmatprep.subr.mxu0 0.0
    %5690 = vmatpush1.msra.mxu0 %v5672
    %5691 = vmatprep.subr.mxu0 0.0
    %5692 = vmatpush1.msra.mxu0 %v5673
    %5693 = vmatprep.subr.mxu0 0.0
    %5694 = vmatpush1.msra.mxu0 %v5674
    %5695 = vmatprep.subr.mxu0 0.0
    %5696 = vmatpush1.msra.mxu0 %v5675
    %5697 = vmatprep.subr.mxu0 0.0
    %5698 = vmatpush1.msra.mxu0 %v5676
    %5699 = vmatprep.subr.mxu0 0.0
    %5700 = vmatpush1.msra.mxu0 %v5677
    %5701 = vmatprep.subr.mxu0 0.0
    %5702 = vmatpush1.msra.mxu0 %v5678
    %5703 = vmatprep.subr.mxu0 0.0
    %5704 = vmatpush1.msra.mxu0 %v5679
    %5705 = vmatprep.subr.mxu0 0.0
    %5706 = vmatpush1.msra.mxu0 %v5680
    %5707 = vmatprep.subr.mxu0 0.0
    %5708 = vmatpush1.msra.mxu0 %v5681
    %5709 = vmatprep.subr.mxu0 0.0
    %5710 = vmatpush1.msra.mxu0 %v5682
    %5711 = vmatprep.subr.mxu0 0.0
    %5712 = vmatpush1.msra.mxu0 %v5683
    %5713 = vmatprep.subr.mxu0 0.0
    %5714 = vmatpush1.msra.mxu0 %v5684
    %5715 = vmatprep.subr.mxu0 0.0
    %5716 = vmatpush1.msra.mxu0 %v5685
    %5717 = vmatprep.subr.mxu0 0.0
    %5718 = vmatpush1.msra.mxu0 %v5686
    %5719 = vmatprep.subr.mxu0 0.0
    %5720 = vmatpush1.msra.mxu0 %v5687
    %5721 = vmatprep.subr.mxu0 0.0
    %5722 = vmatpush1.msra.mxu0 0.0
    %5723 = vmatprep.subr.mxu0 0.0
    %5724 = vmatpush1.msra.mxu0 0.0
    %5725 = vmatprep.subr.mxu0 0.0
    %5726 = vmatpush1.msra.mxu0 0.0
    %5727 = vmatprep.subr.mxu0 0.0
    %5728 = vmatpush1.msra.mxu0 0.0
    %5729 = vmatprep.subr.mxu0 0.0
    %5730 = vmatpush1.msra.mxu0 0.0
    %5731 = vmatprep.subr.mxu0 0.0
    %5732 = vmatpush1.msra.mxu0 0.0
    %5733 = vmatprep.subr.mxu0 0.0
    %5734 = vmatpush1.msra.mxu0 0.0
    %5735 = vmatprep.subr.mxu0 0.0
    %5736 = vmatpush1.msra.mxu0 0.0
    %5737 = vmatprep.subr.mxu0 0.0
    %5738 = vmatpush1.msra.mxu0 0.0
    %5739 = vmatprep.subr.mxu0 0.0
    %5740 = vmatpush1.msra.mxu0 0.0
    %5741 = vmatprep.subr.mxu0 0.0
    %5742 = vmatpush1.msra.mxu0 0.0
    %5743 = vmatprep.subr.mxu0 0.0
    %5744 = vmatpush1.msra.mxu0 0.0
    %5745 = vmatprep.subr.mxu0 0.0
    %5746 = vmatpush1.msra.mxu0 0.0
    %5747 = vmatprep.subr.mxu0 0.0
    %5748 = vmatpush1.msra.mxu0 0.0
    %5749 = vmatprep.subr.mxu0 0.0
    %5750 = vmatpush1.msra.mxu0 0.0
    %5751 = vmatprep.subr.mxu0 0.0
    %5752 = vmatpush1.msra.mxu0 0.0
    %5753 = vmatprep.mubr.f32.mxu0 0.0
    %5754 = vmatmul.mubr.f32.gmra.mrb[0].mxu0 %v5671
    %v5755 = vpop.f32.mrb[0].mxu0
    %v5756 = vadd.f32 %v5688, %v5755
    %v5757 = vpop.f32.mrb[0].mxu0
    %5758 = vdwg.mxu0
    %v5759 = vmax.f32 %v5756, 0.0
    %v5760 = vld [vmem:[%s25] sm:$0xff]
    %v5761 = vld [vmem:[%s25 + $0x8] sm:$0xff]
    %v5762 = vld [vmem:[%s25 + $0x10] sm:$0xff]
    %v5763 = vld [vmem:[%s25 + $0x18] sm:$0xff]
    %v5764 = vld [vmem:[%s25 + $0x20] sm:$0xff]
    %v5765 = vld [vmem:[%s25 + $0x28] sm:$0xff]
    %v5766 = vld [vmem:[%s25 + $0x30] sm:$0xff]
    %v5767 = vld [vmem:[%s25 + $0x38] sm:$0xff]
    %v5768 = vld [vmem:[%s25 + $0x40] sm:$0xff]
    %v5769 = vld [vmem:[%s25 + $0x48] sm:$0xff]
    %v5770 = vld [vmem:[%s25 + $0x50] sm:$0xff]
    %v5771 = vld [vmem:[%s25 + $0x58] sm:$0xff]
    %v5772 = vld [vmem:[%s25 + $0x60] sm:$0xff]
    %v5773 = vld [vmem:[%s25 + $0x68] sm:$0xff]
    %v5774 = vld [vmem:[%s25 + $0x70] sm:$0xff]
    %v5775 = vld [vmem:[%s25 + $0x78] sm:$0xff]
    %v5776 = vld [vmem:[%s26] sm:$0x1]
    %5777 = vmatprep.subr.mxu0 0.0
    %5778 = vmatpush1.msra.mxu0 %v5760
    %5779 = vmatprep.subr.mxu0 0.0
    %5780 = vmatpush1.msra.mxu0 %v5761
    %5781 = vmatprep.subr.mxu0 0.0
    %5782 = vmatpush1.msra.mxu0 %v5762
    %5783 = vmatprep.subr.mxu0 0.0
    %5784 = vmatpush1.msra.mxu0 %v5763
    %5785 = vmatprep.subr.mxu0 0.0
    %5786 = vmatpush1.msra.mxu0 %v5764
    %5787 = vmatprep.subr.mxu0 0.0
    %5788 = vmatpush1.msra.mxu0 %v5765
    %5789 = vmatprep.subr.mxu0 0.0
    %5790 = vmatpush1.msra.mxu0 %v5766
    %5791 = vmatprep.subr.mxu0 0.0
    %5792 = vmatpush1.msra.mxu0 %v5767
    %5793 = vmatprep.subr.mxu0 0.0
    %5794 = vmatpush1.msra.mxu0 %v5768
    %5795 = vmatprep.subr.mxu0 0.0
    %5796 = vmatpush1.msra.mxu0 %v5769
    %5797 = vmatprep.subr.mxu0 0.0
    %5798 = vmatpush1.msra.mxu0 %v5770
    %5799 = vmatprep.subr.mxu0 0.0
    %5800 = vmatpush1.msra.mxu0 %v5771
    %5801 = vmatprep.subr.mxu0 0.0
    %5802 = vmatpush1.msra.mxu0 %v5772
    %5803 = vmatprep.subr.mxu0 0.0
    %5804 = vmatpush1.msra.mxu0 %v5773
    %5805 = vmatprep.subr.mxu0 0.0
    %5806 = vmatpush1.msra.mxu0 %v5774
    %5807 = vmatprep.subr.mxu0 0.0
    %5808 = vmatpush1.msra.mxu0 %v5775
    %5809 = vmatprep.subr.mxu0 0.0
    %5810 = vmatpush1.msra.mxu0 0.0
    %5811 = vmatprep.subr.mxu0 0.0
    %5812 = vmatpush1.msra.mxu0 0.0
    %5813 = vmatprep.subr.mxu0 0.0
    %5814 = vmatpush1.msra.mxu0 0.0
    %5815 = vmatprep.subr.mxu0 0.0
    %5816 = vmatpush1.msra.mxu0 0.0
    %5817 = vmatprep.subr.mxu0 0.0
    %5818 = vmatpush1.msra.mxu0 0.0
    %5819 = vmatprep.subr.mxu0 0.0
    %5820 = vmatpush1.msra.mxu0 0.0
    %5821 = vmatprep.subr.mxu0 0.0
    %5822 = vmatpush1.msra.mxu0 0.0
    %5823 = vmatprep.subr.mxu0 0.0
    %5824 = vmatpush1.msra.mxu0 0.0
    %5825 = vmatprep.subr.mxu0 0.0
    %5826 = vmatpush1.msra.mxu0 0.0
    %5827 = vmatprep.subr.mxu0 0.0
    %5828 = vmatpush1.msra.mxu0 0.0
    %5829 = vmatprep.subr.mxu0 0.0
    %5830 = vmatpush1.msra.mxu0 0.0
    %5831 = vmatprep.subr.mxu0 0.0
    %5832 = vmatpush1.msra.mxu0 0.0
    %5833 = vmatprep.subr.mxu0 0.0
    %5834 = vmatpush1.msra.mxu0 0.0
    %5835 = vmatprep.subr.mxu0 0.0
    %5836 = vmatpush1.msra.mxu0 0.0
    %5837 = vmatprep.subr.mxu0 0.0
    %5838 = vmatpush1.msra.mxu0 0.0
    %5839 = vmatprep.subr.mxu0 0.0
    %5840 = vmatpush1.msra.mxu0 0.0
    %5841 = vmatprep.mubr.f32.mxu0 0.0
    %5842 = vmatmul.mubr.f32.gmra.mrb[0].mxu0 %v5759
    %v5843 = vpop.f32.mrb[0].mxu0
    %v5844 = vadd.f32 %v5776, %v5843
    %v5845 = vpop.f32.mrb[0].mxu0
    %5846 = vdwg.mxu0
    %5847 = vst [vmem:[#allocation2 + $0x1] sm:$0x1] %v5844
    // Predicated region
    $region110: #{lenet5_forward.1} parent=1 // pred_check
      _
    $region111: #{lenet5_forward.1} parent=1 // pred_check_branch
      %5849 = sbr.rel (0) target = $region113
    $region112: #{lenet5_forward.1} parent=1 // pred_region
      %s5851 = ssub.s32 32, 32
      %5852 = vsyncadd [#allocation3], %s5851
      %s5854 = sshll.u32 [#allocation2], 4
      %s5855 = int_to_ptr.vmem [resolvable:$true] %s5854
      %5857 = dma.vmem_to_hbm [thread:$0]  %s5855, 32, %s27, [#allocation3]
    $region113: #{lenet5_forward.1} parent=1 // pred_fallthru
      _
    // Predicated region
    $region114: #{lenet5_forward.1} parent=1 // pred_check
      _
    $region115: #{lenet5_forward.1} parent=1 // pred_check_branch
      %5859 = sbr.rel (0) target = $region117
    $region116: #{lenet5_forward.1} parent=1 // pred_region
      %5860 = dma.done [#allocation3], 32
    $region117: #{lenet5_forward.1} parent=1 // pred_fallthru
      _
    %5861 = vsyncpa [#allocation3], 1

</llo_original>
